<compile_context>
chip_gen: v7x
topology: tpu7x:2x2x1
jax: 0.10.0
libtpu: 0.0.40
codegen_flags: <defaults>
</compile_context>

<pallas_src>
import jax
import jax.numpy as jnp
from jax import lax
from jax.experimental import pallas as pl
from jax.experimental.pallas import tpu as pltpu

LANES = 128          # every channel / feature dim is padded to one lane group
BATCH_CAP = 8        # per-grid-step batch chunk cap (keeps conv1 row accumulators
                     # vreg-sized; raise on v5e/v6e if throughput-bound)

_COMPILER_PARAMS = pltpu.CompilerParams(
    dimension_semantics=("parallel",),      # batch chunks are independent
    vmem_limit_bytes=32 * 1024 * 1024,
)

# network geometry (28x28 input is required by the 16*4*4 flatten)
H0, W0 = 28, 28
K = 5
OH1, OW1 = H0 - K + 1, W0 - K + 1      # 24, 24
PH1, PW1 = OH1 // 2, OW1 // 2          # 12, 12
OH2, OW2 = PH1 - K + 1, PW1 - K + 1    # 8, 8
PH2, PW2 = OH2 // 2, OW2 // 2          # 4, 4
C2 = 16                                # real conv2 output channels
C_OUT = 10


def _pick_bb(batch, cap=BATCH_CAP):
    """Largest divisor of batch <= cap, also capped at batch//2 so the grid has
    >= 2 steps.  Never falls back to the whole batch for non-divisible sizes."""
    if batch >= 2:
        cap = max(1, min(cap, batch // 2))
    else:
        cap = 1
    best = 1
    for d in range(1, min(cap, batch) + 1):
        if batch % d == 0:
            best = d
    return best


# ------------------------------ fused kernel --------------------------------


def _net_dropout_kernel(x_ref, c1w_ref, c1b_ref, c2w_ref, c2b_ref,
                        w1_ref, b1_ref, w2_ref, b2_ref, w3_ref, b3_ref,
                        o_ref, h1_ref, flat_ref):
    """Fused LeNet forward for one batch chunk.

    x_ref   : [bb, 28, 28, 1]   f32 images (NHWC, C=1)
    c1w_ref : [25, 1, 128]      f32 conv1 tap weights (out-ch zero-padded)
    c2w_ref : [25, 128, 128]    bf16 conv2 tap weights (in/out-ch zero-padded)
    w1_ref  : [256, 128]        bf16 fc1 (NCHW-flatten permutation folded in)
    w2_ref, w3_ref : [128,128]  bf16;  all b*_ref : [1, 128] f32
    o_ref   : [bb, 1, 128]      f32 softmax probabilities (lanes >= 10 are 0)
    h1_ref  : [bb, 12, 12, 128] f32 VMEM scratch (conv1+pool+relu output)
    flat_ref: [bb, 256]         f32 VMEM scratch (repacked classifier input)
    """
    bb = x_ref.shape[0]
    f32 = jnp.float32

    # ---- stage 1: conv1(1->6,5x5) + maxpool2x2 + ReLU, tiled by pooled row ----
    def conv1_row(p, carry):
        r0 = 2 * p
        acc0 = jnp.zeros((bb, OW1, LANES), f32)
        acc1 = jnp.zeros((bb, OW1, LANES), f32)
        for i in range(K):
            for j in range(K):
                w_t = c1w_ref[i * K + j]                              # [1, 128]
                acc0 = acc0 + x_ref[:, r0 + i, j:j + OW1, :] * w_t    # [bb,24,128]
                acc1 = acc1 + x_ref[:, r0 + 1 + i, j:j + OW1, :] * w_t
        v = jnp.maximum(acc0, acc1)                                   # 2x1 vertical pool
        v = jnp.max(v.reshape(bb, PW1, 2, LANES), axis=2)             # 1x2 horizontal pool
        # bias & ReLU commute with max-pool -> applied once, post-pool
        h1_ref[:, p, :, :] = jnp.maximum(v + c1b_ref[...], 0.0)
        return carry

    lax.fori_loop(0, PH1, conv1_row, 0)

    # ---- stage 2: conv2(6->16,5x5) + maxpool2x2 + ReLU (MXU, bf16 operands) ----
    n2 = bb * OH2 * OW2
    acc2 = jnp.zeros((n2, LANES), f32)
    for i in range(K):
        for j in range(K):
            tap = h1_ref[:, i:i + OH2, j:j + OW2, :]                  # [bb,8,8,128]
            tap = tap.reshape(n2, LANES).astype(jnp.bfloat16)
            acc2 = acc2 + jnp.dot(tap, c2w_ref[i * K + j],
                                  preferred_element_type=jnp.float32)
    acc2 = acc2.reshape(bb, PH2, 2, PW2, 2, LANES)
    pooled = jnp.max(jnp.max(acc2, axis=4), axis=2)                   # [bb,4,4,128]
    h2 = jnp.maximum(pooled + c2b_ref[...], 0.0)

    # ---- repack encoder output to 16 spatial x 16 real channels (256 lanes) ----
    # TODO(synk): nn.Dropout(p=0.2) is identity here (eval-mode semantics).
    for hh in range(PH2):
        for ww in range(PW2):
            k = (hh * PW2 + ww) * C2
            flat_ref[:, k:k + C2] = h2[:, hh, ww, :C2]

    # ---- classifier: fc1+ReLU -> fc2+ReLU -> fc3 -> masked exact softmax ----
    flat = flat_ref[...].astype(jnp.bfloat16)                         # [bb, 256]
    a1 = jnp.maximum(
        jnp.dot(flat, w1_ref[...], preferred_element_type=jnp.float32)
        + b1_ref[...], 0.0)
    a2 = jnp.maximum(
        jnp.dot(a1.astype(jnp.bfloat16), w2_ref[...],
                preferred_element_type=jnp.float32) + b2_ref[...], 0.0)
    logits = (jnp.dot(a2.astype(jnp.bfloat16), w3_ref[...],
                      preferred_element_type=jnp.float32) + b3_ref[...])

    lane = lax.broadcasted_iota(jnp.int32, (bb, LANES), 1)
    valid = lane < C_OUT
    m = jnp.max(jnp.where(valid, logits, f32(-1e30)), axis=1, keepdims=True)
    e = jnp.where(valid, jnp.exp(jnp.where(valid, logits - m, 0.0)), 0.0)
    denom = jnp.sum(e, axis=1, keepdims=True)
    o_ref[:, 0, :] = e / denom        # exact divide: rows sum to 1 (f32 rounding)


# ------------------------------ wrapper --------------------------------------


def _net_dropout_call(params, x_nhwc, bb):
    batch = x_nhwc.shape[0]
    return pl.pallas_call(
        _net_dropout_kernel,
        out_shape=jax.ShapeDtypeStruct((batch, 1, LANES), jnp.float32),
        grid=(batch // bb,),
        in_specs=[
            pl.BlockSpec((bb, H0, W0, 1), lambda i: (i, 0, 0, 0)),
            pl.BlockSpec((K * K, 1, LANES), lambda i: (0, 0, 0)),
            pl.BlockSpec((1, LANES), lambda i: (0, 0)),
            pl.BlockSpec((K * K, LANES, LANES), lambda i: (0, 0, 0)),
            pl.BlockSpec((1, LANES), lambda i: (0, 0)),
            pl.BlockSpec((C2 * PH2 * PW2, LANES), lambda i: (0, 0)),
            pl.BlockSpec((1, LANES), lambda i: (0, 0)),
            pl.BlockSpec((LANES, LANES), lambda i: (0, 0)),
            pl.BlockSpec((1, LANES), lambda i: (0, 0)),
            pl.BlockSpec((LANES, LANES), lambda i: (0, 0)),
            pl.BlockSpec((1, LANES), lambda i: (0, 0)),
        ],
        out_specs=pl.BlockSpec((bb, 1, LANES), lambda i: (i, 0, 0)),
        scratch_shapes=[
            pltpu.VMEM((bb, PH1, PW1, LANES), jnp.float32),   # conv1 output
            pltpu.VMEM((bb, C2 * PH2 * PW2), jnp.float32),    # repacked fc1 input
        ],
        compiler_params=_COMPILER_PARAMS,
    )(x_nhwc,
      params["conv1_w"], params["conv1_b"],
      params["conv2_w"], params["conv2_b"],
      params["fc1_w"], params["fc1_b"],
      params["fc2_w"], params["fc2_b"],
      params["fc3_w"], params["fc3_b"])


@jax.jit
def net_dropout_forward(params, x_nchw):
    batch = x_nchw.shape[0]
    assert x_nchw.shape[1:] == (1, H0, W0)
    # NCHW [B,1,28,28] -> NHWC [B,28,28,1]: channel dim is 1, so a pure reshape.
    x = x_nchw.astype(jnp.float32).reshape(batch, H0, W0, 1)
    bb = _pick_bb(batch)
    y = _net_dropout_call(params, x, bb)
    return y[:, 0, :C_OUT]


# --------------------------- parameter handling -------------------------------


def init_raw_params(key):
    """Parameters in the original PyTorch layouts."""
    ks = jax.random.split(key, 10)

    def u(k, shape, fan_in):
        bound = 1.0 / jnp.sqrt(fan_in)
        return jax.random.uniform(k, shape, jnp.float32, -bound, bound)

    return {
        "conv1_w": u(ks[0], (6, 1, 5, 5), 25),
        "conv1_b": u(ks[1], (6,), 25),
        "conv2_w": u(ks[2], (16, 6, 5, 5), 150),
        "conv2_b": u(ks[3], (16,), 150),
        "fc1_w": u(ks[4], (120, 256), 256),
        "fc1_b": u(ks[5], (120,), 256),
        "fc2_w": u(ks[6], (84, 120), 120),
        "fc2_b": u(ks[7], (84,), 120),
        "fc3_w": u(ks[8], (10, 84), 84),
        "fc3_b": u(ks[9], (10,), 84),
    }


def _pad_to(x, axis, size, value=0.0):
    pad = [(0, 0)] * x.ndim
    pad[axis] = (0, size - x.shape[axis])
    return jnp.pad(x, pad, constant_values=value)


def prepare_params(raw):
    """One-time transform of PyTorch-layout weights into kernel-ready layout."""

    def conv_taps(w, pad_in):  # [oc, ic, kh, kw] -> [kh*kw, ic(pad?), 128]
        oc, ic, kh, kw = w.shape
        t = jnp.transpose(w, (2, 3, 1, 0)).reshape(kh * kw, ic, oc)
        t = _pad_to(t, 2, LANES)
        if pad_in:
            t = _pad_to(t, 1, LANES)
        return t

    def bias_row(b):
        return _pad_to(b.reshape(1, -1).astype(jnp.float32), 1, LANES)

    # fc1: fold the PyTorch NCHW flatten (k = c*16 + h*4 + w) into the kernel's
    # (h, w, c)-ordered 256-wide repacked input.
    w1 = raw["fc1_w"].reshape(120, C2, PH2, PW2)                  # [n, c, h, w]
    w1 = jnp.transpose(w1, (2, 3, 1, 0)).reshape(C2 * PH2 * PW2, 120)
    w1 = _pad_to(w1, 1, LANES)                                    # [256, 128]

    return {
        "conv1_w": conv_taps(raw["conv1_w"], pad_in=False),                        # f32 [25,1,128]
        "conv1_b": bias_row(raw["conv1_b"]),
        "conv2_w": conv_taps(raw["conv2_w"], pad_in=True).astype(jnp.bfloat16),    # [25,128,128]
        "conv2_b": bias_row(raw["conv2_b"]),
        "fc1_w": w1.astype(jnp.bfloat16),
        "fc1_b": bias_row(raw["fc1_b"]),
        "fc2_w": _pad_to(_pad_to(raw["fc2_w"].T, 0, LANES), 1, LANES).astype(jnp.bfloat16),
        "fc2_b": bias_row(raw["fc2_b"]),
        "fc3_w": _pad_to(_pad_to(raw["fc3_w"].T, 0, LANES), 1, LANES).astype(jnp.bfloat16),
        "fc3_b": bias_row(raw["fc3_b"]),
    }


# ------------------------------ reference -------------------------------------


def reference_forward(raw, x_nchw):
    """Pure-JAX f32 re-implementation of the PyTorch module (eval mode)."""
    x = x_nchw.astype(jnp.float32)

    def conv(x, w, b):
        y = lax.conv_general_dilated(x, w, (1, 1), "VALID",
                                     dimension_numbers=("NCHW", "OIHW", "NCHW"))
        return y + b[None, :, None, None]

    def pool_relu(x):
        y = lax.reduce_window(x, -jnp.inf, lax.max,
                              (1, 1, 2, 2), (1, 1, 2, 2), "VALID")
        return jnp.maximum(y, 0.0)

    x = pool_relu(conv(x, raw["conv1_w"], raw["conv1_b"]))
    x = pool_relu(conv(x, raw["conv2_w"], raw["conv2_b"]))
    x = x.reshape(x.shape[0], C2 * PH2 * PW2)
    x = jnp.maximum(x @ raw["fc1_w"].T + raw["fc1_b"], 0.0)
    x = jnp.maximum(x @ raw["fc2_w"].T + raw["fc2_b"], 0.0)
    x = x @ raw["fc3_w"].T + raw["fc3_b"]
    return jax.nn.softmax(x, axis=1)


if __name__ == "__main__":
    key = jax.random.PRNGKey(0)
    pkey, xkey = jax.random.split(key)
    raw = init_raw_params(pkey)
    params = prepare_params(raw)

    # MNIST-shaped input (28x28 is required by the 16*4*4 flatten), batch=2.
    x = jax.random.normal(xkey, (2, 1, 28, 28), dtype=jnp.float32)

    out = jax.block_until_ready(net_dropout_forward(params, x))
    ref = jax.block_until_ready(reference_forward(raw, x))

    assert out.shape == (2, 10)
    assert bool(jnp.all(jnp.isfinite(out)))
    # exact (non-approx) softmax normalization: rows sum to 1 up to f32 rounding
    assert bool(jnp.allclose(jnp.sum(out, axis=1), 1.0, atol=1e-3))
    # bf16 matmul operands vs f32 reference -> slightly loosened tolerance
    assert bool(jnp.allclose(out, ref, atol=5e-3, rtol=5e-3)), \
        f"max abs diff {float(jnp.max(jnp.abs(out - ref)))}"
    print("KERNEL_OK")
</pallas_src>

<mosaic_0001>
module attributes {stable_mosaic.version = 11 : i64} {
  func.func @_net_dropout_kernel(%arg0: i32, %arg1: memref<1x28x28x1xf32, #tpu.memory_space<vmem>>, %arg2: memref<25x1x128xf32, #tpu.memory_space<vmem>>, %arg3: memref<1x128xf32, #tpu.memory_space<vmem>>, %arg4: memref<25x128x128xbf16, #tpu.memory_space<vmem>>, %arg5: memref<1x128xf32, #tpu.memory_space<vmem>>, %arg6: memref<256x128xbf16, #tpu.memory_space<vmem>>, %arg7: memref<1x128xf32, #tpu.memory_space<vmem>>, %arg8: memref<128x128xbf16, #tpu.memory_space<vmem>>, %arg9: memref<1x128xf32, #tpu.memory_space<vmem>>, %arg10: memref<128x128xbf16, #tpu.memory_space<vmem>>, %arg11: memref<1x128xf32, #tpu.memory_space<vmem>>, %arg12: memref<1x1x128xf32, #tpu.memory_space<vmem>>, %arg13: memref<1x12x12x128xf32, #tpu.memory_space<vmem>>, %arg14: memref<1x256xf32, #tpu.memory_space<vmem>>) attributes {dimension_semantics = [#tpu.dimension_semantics<parallel>], iteration_bounds = array<i64: 2>, scalar_prefetch = 0 : i64, scratch_operands = 2 : i64, tpu.core_type = #tpu.core_type<tc>, window_params = [{transform_indices = @transform_0, window_bounds = array<i64: 1, 28, 28, 1>}, {pipeline_mode = #tpu.pipeline_mode<synchronous>, transform_indices = @transform_1, window_bounds = array<i64: 25, 1, 128>}, {pipeline_mode = #tpu.pipeline_mode<synchronous>, transform_indices = @transform_2, window_bounds = array<i64: 1, 128>}, {pipeline_mode = #tpu.pipeline_mode<synchronous>, transform_indices = @transform_3, window_bounds = array<i64: 25, 128, 128>}, {pipeline_mode = #tpu.pipeline_mode<synchronous>, transform_indices = @transform_4, window_bounds = array<i64: 1, 128>}, {pipeline_mode = #tpu.pipeline_mode<synchronous>, transform_indices = @transform_5, window_bounds = array<i64: 256, 128>}, {pipeline_mode = #tpu.pipeline_mode<synchronous>, transform_indices = @transform_6, window_bounds = array<i64: 1, 128>}, {pipeline_mode = #tpu.pipeline_mode<synchronous>, transform_indices = @transform_7, window_bounds = array<i64: 128, 128>}, {pipeline_mode = #tpu.pipeline_mode<synchronous>, transform_indices = @transform_8, window_bounds = array<i64: 1, 128>}, {pipeline_mode = #tpu.pipeline_mode<synchronous>, transform_indices = @transform_9, window_bounds = array<i64: 128, 128>}, {pipeline_mode = #tpu.pipeline_mode<synchronous>, transform_indices = @transform_10, window_bounds = array<i64: 1, 128>}, {transform_indices = @transform_11, window_bounds = array<i64: 1, 1, 128>}]} {
    %c0_i32 = arith.constant 0 : i32
    %c12_i32 = arith.constant 12 : i32
    %0 = arith.addi %c0_i32, %c12_i32 : i32
    %c1_i32 = arith.constant 1 : i32
    scf.for %arg15 = %c0_i32 to %0 step %c1_i32  : i32 {
      %c2_i32 = arith.constant 2 : i32
      %275 = arith.muli %c2_i32, %arg15 : i32
      %cst_226 = arith.constant 0.000000e+00 : f32
      %276 = vector.broadcast %cst_226 : f32 to vector<1x24x128xf32>
      %cst_227 = arith.constant 0.000000e+00 : f32
      %277 = vector.broadcast %cst_227 : f32 to vector<1x24x128xf32>
      %c0_228 = arith.constant 0 : index
      %c0_229 = arith.constant 0 : index
      %c0_230 = arith.constant 0 : index
      %278 = vector.load %arg2[%c0_228, %c0_229, %c0_230] : memref<25x1x128xf32, #tpu.memory_space<vmem>>, vector<1x1x128xf32>
      %279 = vector.shape_cast %278 : vector<1x1x128xf32> to vector<1x128xf32>
      %c0_i32_231 = arith.constant 0 : i32
      %280 = arith.addi %275, %c0_i32_231 : i32
      %c0_232 = arith.constant 0 : index
      %281 = arith.index_cast %280 : i32 to index
      %c0_233 = arith.constant 0 : index
      %c0_234 = arith.constant 0 : index
      %282 = vector.load %arg1[%c0_232, %281, %c0_233, %c0_234] : memref<1x28x28x1xf32, #tpu.memory_space<vmem>>, vector<1x1x24x1xf32>
      %283 = vector.shape_cast %282 : vector<1x1x24x1xf32> to vector<1x24x1xf32>
      %284 = vector.shape_cast %279 : vector<1x128xf32> to vector<1x1x128xf32>
      %285 = vector.broadcast %283 : vector<1x24x1xf32> to vector<1x24x128xf32>
      %286 = vector.broadcast %284 : vector<1x1x128xf32> to vector<1x24x128xf32>
      %287 = arith.mulf %285, %286 : vector<1x24x128xf32>
      %288 = arith.addf %276, %287 : vector<1x24x128xf32>
      %c1_i32_235 = arith.constant 1 : i32
      %289 = arith.addi %275, %c1_i32_235 : i32
      %c0_i32_236 = arith.constant 0 : i32
      %290 = arith.addi %289, %c0_i32_236 : i32
      %c0_237 = arith.constant 0 : index
      %291 = arith.index_cast %290 : i32 to index
      %c0_238 = arith.constant 0 : index
      %c0_239 = arith.constant 0 : index
      %292 = vector.load %arg1[%c0_237, %291, %c0_238, %c0_239] : memref<1x28x28x1xf32, #tpu.memory_space<vmem>>, vector<1x1x24x1xf32>
      %293 = vector.shape_cast %292 : vector<1x1x24x1xf32> to vector<1x24x1xf32>
      %294 = vector.shape_cast %279 : vector<1x128xf32> to vector<1x1x128xf32>
      %295 = vector.broadcast %293 : vector<1x24x1xf32> to vector<1x24x128xf32>
      %296 = vector.broadcast %294 : vector<1x1x128xf32> to vector<1x24x128xf32>
      %297 = arith.mulf %295, %296 : vector<1x24x128xf32>
      %298 = arith.addf %277, %297 : vector<1x24x128xf32>
      %c1_240 = arith.constant 1 : index
      %c0_241 = arith.constant 0 : index
      %c0_242 = arith.constant 0 : index
      %299 = vector.load %arg2[%c1_240, %c0_241, %c0_242] : memref<25x1x128xf32, #tpu.memory_space<vmem>>, vector<1x1x128xf32>
      %300 = vector.shape_cast %299 : vector<1x1x128xf32> to vector<1x128xf32>
      %c0_i32_243 = arith.constant 0 : i32
      %301 = arith.addi %275, %c0_i32_243 : i32
      %c0_244 = arith.constant 0 : index
      %302 = arith.index_cast %301 : i32 to index
      %c1_245 = arith.constant 1 : index
      %c0_246 = arith.constant 0 : index
      %303 = vector.load %arg1[%c0_244, %302, %c1_245, %c0_246] : memref<1x28x28x1xf32, #tpu.memory_space<vmem>>, vector<1x1x24x1xf32>
      %304 = vector.shape_cast %303 : vector<1x1x24x1xf32> to vector<1x24x1xf32>
      %305 = vector.shape_cast %300 : vector<1x128xf32> to vector<1x1x128xf32>
      %306 = vector.broadcast %304 : vector<1x24x1xf32> to vector<1x24x128xf32>
      %307 = vector.broadcast %305 : vector<1x1x128xf32> to vector<1x24x128xf32>
      %308 = arith.mulf %306, %307 : vector<1x24x128xf32>
      %309 = arith.addf %288, %308 : vector<1x24x128xf32>
      %c1_i32_247 = arith.constant 1 : i32
      %310 = arith.addi %275, %c1_i32_247 : i32
      %c0_i32_248 = arith.constant 0 : i32
      %311 = arith.addi %310, %c0_i32_248 : i32
      %c0_249 = arith.constant 0 : index
      %312 = arith.index_cast %311 : i32 to index
      %c1_250 = arith.constant 1 : index
      %c0_251 = arith.constant 0 : index
      %313 = vector.load %arg1[%c0_249, %312, %c1_250, %c0_251] : memref<1x28x28x1xf32, #tpu.memory_space<vmem>>, vector<1x1x24x1xf32>
      %314 = vector.shape_cast %313 : vector<1x1x24x1xf32> to vector<1x24x1xf32>
      %315 = vector.shape_cast %300 : vector<1x128xf32> to vector<1x1x128xf32>
      %316 = vector.broadcast %314 : vector<1x24x1xf32> to vector<1x24x128xf32>
      %317 = vector.broadcast %315 : vector<1x1x128xf32> to vector<1x24x128xf32>
      %318 = arith.mulf %316, %317 : vector<1x24x128xf32>
      %319 = arith.addf %298, %318 : vector<1x24x128xf32>
      %c2_252 = arith.constant 2 : index
      %c0_253 = arith.constant 0 : index
      %c0_254 = arith.constant 0 : index
      %320 = vector.load %arg2[%c2_252, %c0_253, %c0_254] : memref<25x1x128xf32, #tpu.memory_space<vmem>>, vector<1x1x128xf32>
      %321 = vector.shape_cast %320 : vector<1x1x128xf32> to vector<1x128xf32>
      %c0_i32_255 = arith.constant 0 : i32
      %322 = arith.addi %275, %c0_i32_255 : i32
      %c0_256 = arith.constant 0 : index
      %323 = arith.index_cast %322 : i32 to index
      %c2_257 = arith.constant 2 : index
      %c0_258 = arith.constant 0 : index
      %324 = vector.load %arg1[%c0_256, %323, %c2_257, %c0_258] : memref<1x28x28x1xf32, #tpu.memory_space<vmem>>, vector<1x1x24x1xf32>
      %325 = vector.shape_cast %324 : vector<1x1x24x1xf32> to vector<1x24x1xf32>
      %326 = vector.shape_cast %321 : vector<1x128xf32> to vector<1x1x128xf32>
      %327 = vector.broadcast %325 : vector<1x24x1xf32> to vector<1x24x128xf32>
      %328 = vector.broadcast %326 : vector<1x1x128xf32> to vector<1x24x128xf32>
      %329 = arith.mulf %327, %328 : vector<1x24x128xf32>
      %330 = arith.addf %309, %329 : vector<1x24x128xf32>
      %c1_i32_259 = arith.constant 1 : i32
      %331 = arith.addi %275, %c1_i32_259 : i32
      %c0_i32_260 = arith.constant 0 : i32
      %332 = arith.addi %331, %c0_i32_260 : i32
      %c0_261 = arith.constant 0 : index
      %333 = arith.index_cast %332 : i32 to index
      %c2_262 = arith.constant 2 : index
      %c0_263 = arith.constant 0 : index
      %334 = vector.load %arg1[%c0_261, %333, %c2_262, %c0_263] : memref<1x28x28x1xf32, #tpu.memory_space<vmem>>, vector<1x1x24x1xf32>
      %335 = vector.shape_cast %334 : vector<1x1x24x1xf32> to vector<1x24x1xf32>
      %336 = vector.shape_cast %321 : vector<1x128xf32> to vector<1x1x128xf32>
      %337 = vector.broadcast %335 : vector<1x24x1xf32> to vector<1x24x128xf32>
      %338 = vector.broadcast %336 : vector<1x1x128xf32> to vector<1x24x128xf32>
      %339 = arith.mulf %337, %338 : vector<1x24x128xf32>
      %340 = arith.addf %319, %339 : vector<1x24x128xf32>
      %c3_264 = arith.constant 3 : index
      %c0_265 = arith.constant 0 : index
      %c0_266 = arith.constant 0 : index
      %341 = vector.load %arg2[%c3_264, %c0_265, %c0_266] : memref<25x1x128xf32, #tpu.memory_space<vmem>>, vector<1x1x128xf32>
      %342 = vector.shape_cast %341 : vector<1x1x128xf32> to vector<1x128xf32>
      %c0_i32_267 = arith.constant 0 : i32
      %343 = arith.addi %275, %c0_i32_267 : i32
      %c0_268 = arith.constant 0 : index
      %344 = arith.index_cast %343 : i32 to index
      %c3_269 = arith.constant 3 : index
      %c0_270 = arith.constant 0 : index
      %345 = vector.load %arg1[%c0_268, %344, %c3_269, %c0_270] : memref<1x28x28x1xf32, #tpu.memory_space<vmem>>, vector<1x1x24x1xf32>
      %346 = vector.shape_cast %345 : vector<1x1x24x1xf32> to vector<1x24x1xf32>
      %347 = vector.shape_cast %342 : vector<1x128xf32> to vector<1x1x128xf32>
      %348 = vector.broadcast %346 : vector<1x24x1xf32> to vector<1x24x128xf32>
      %349 = vector.broadcast %347 : vector<1x1x128xf32> to vector<1x24x128xf32>
      %350 = arith.mulf %348, %349 : vector<1x24x128xf32>
      %351 = arith.addf %330, %350 : vector<1x24x128xf32>
      %c1_i32_271 = arith.constant 1 : i32
      %352 = arith.addi %275, %c1_i32_271 : i32
      %c0_i32_272 = arith.constant 0 : i32
      %353 = arith.addi %352, %c0_i32_272 : i32
      %c0_273 = arith.constant 0 : index
      %354 = arith.index_cast %353 : i32 to index
      %c3_274 = arith.constant 3 : index
      %c0_275 = arith.constant 0 : index
      %355 = vector.load %arg1[%c0_273, %354, %c3_274, %c0_275] : memref<1x28x28x1xf32, #tpu.memory_space<vmem>>, vector<1x1x24x1xf32>
      %356 = vector.shape_cast %355 : vector<1x1x24x1xf32> to vector<1x24x1xf32>
      %357 = vector.shape_cast %342 : vector<1x128xf32> to vector<1x1x128xf32>
      %358 = vector.broadcast %356 : vector<1x24x1xf32> to vector<1x24x128xf32>
      %359 = vector.broadcast %357 : vector<1x1x128xf32> to vector<1x24x128xf32>
      %360 = arith.mulf %358, %359 : vector<1x24x128xf32>
      %361 = arith.addf %340, %360 : vector<1x24x128xf32>
      %c4_276 = arith.constant 4 : index
      %c0_277 = arith.constant 0 : index
      %c0_278 = arith.constant 0 : index
      %362 = vector.load %arg2[%c4_276, %c0_277, %c0_278] : memref<25x1x128xf32, #tpu.memory_space<vmem>>, vector<1x1x128xf32>
      %363 = vector.shape_cast %362 : vector<1x1x128xf32> to vector<1x128xf32>
      %c0_i32_279 = arith.constant 0 : i32
      %364 = arith.addi %275, %c0_i32_279 : i32
      %c0_280 = arith.constant 0 : index
      %365 = arith.index_cast %364 : i32 to index
      %c4_281 = arith.constant 4 : index
      %c0_282 = arith.constant 0 : index
      %366 = vector.load %arg1[%c0_280, %365, %c4_281, %c0_282] : memref<1x28x28x1xf32, #tpu.memory_space<vmem>>, vector<1x1x24x1xf32>
      %367 = vector.shape_cast %366 : vector<1x1x24x1xf32> to vector<1x24x1xf32>
      %368 = vector.shape_cast %363 : vector<1x128xf32> to vector<1x1x128xf32>
      %369 = vector.broadcast %367 : vector<1x24x1xf32> to vector<1x24x128xf32>
      %370 = vector.broadcast %368 : vector<1x1x128xf32> to vector<1x24x128xf32>
      %371 = arith.mulf %369, %370 : vector<1x24x128xf32>
      %372 = arith.addf %351, %371 : vector<1x24x128xf32>
      %c1_i32_283 = arith.constant 1 : i32
      %373 = arith.addi %275, %c1_i32_283 : i32
      %c0_i32_284 = arith.constant 0 : i32
      %374 = arith.addi %373, %c0_i32_284 : i32
      %c0_285 = arith.constant 0 : index
      %375 = arith.index_cast %374 : i32 to index
      %c4_286 = arith.constant 4 : index
      %c0_287 = arith.constant 0 : index
      %376 = vector.load %arg1[%c0_285, %375, %c4_286, %c0_287] : memref<1x28x28x1xf32, #tpu.memory_space<vmem>>, vector<1x1x24x1xf32>
      %377 = vector.shape_cast %376 : vector<1x1x24x1xf32> to vector<1x24x1xf32>
      %378 = vector.shape_cast %363 : vector<1x128xf32> to vector<1x1x128xf32>
      %379 = vector.broadcast %377 : vector<1x24x1xf32> to vector<1x24x128xf32>
      %380 = vector.broadcast %378 : vector<1x1x128xf32> to vector<1x24x128xf32>
      %381 = arith.mulf %379, %380 : vector<1x24x128xf32>
      %382 = arith.addf %361, %381 : vector<1x24x128xf32>
      %c5_288 = arith.constant 5 : index
      %c0_289 = arith.constant 0 : index
      %c0_290 = arith.constant 0 : index
      %383 = vector.load %arg2[%c5_288, %c0_289, %c0_290] : memref<25x1x128xf32, #tpu.memory_space<vmem>>, vector<1x1x128xf32>
      %384 = vector.shape_cast %383 : vector<1x1x128xf32> to vector<1x128xf32>
      %c1_i32_291 = arith.constant 1 : i32
      %385 = arith.addi %275, %c1_i32_291 : i32
      %c0_292 = arith.constant 0 : index
      %386 = arith.index_cast %385 : i32 to index
      %c0_293 = arith.constant 0 : index
      %c0_294 = arith.constant 0 : index
      %387 = vector.load %arg1[%c0_292, %386, %c0_293, %c0_294] : memref<1x28x28x1xf32, #tpu.memory_space<vmem>>, vector<1x1x24x1xf32>
      %388 = vector.shape_cast %387 : vector<1x1x24x1xf32> to vector<1x24x1xf32>
      %389 = vector.shape_cast %384 : vector<1x128xf32> to vector<1x1x128xf32>
      %390 = vector.broadcast %388 : vector<1x24x1xf32> to vector<1x24x128xf32>
      %391 = vector.broadcast %389 : vector<1x1x128xf32> to vector<1x24x128xf32>
      %392 = arith.mulf %390, %391 : vector<1x24x128xf32>
      %393 = arith.addf %372, %392 : vector<1x24x128xf32>
      %c1_i32_295 = arith.constant 1 : i32
      %394 = arith.addi %275, %c1_i32_295 : i32
      %c1_i32_296 = arith.constant 1 : i32
      %395 = arith.addi %394, %c1_i32_296 : i32
      %c0_297 = arith.constant 0 : index
      %396 = arith.index_cast %395 : i32 to index
      %c0_298 = arith.constant 0 : index
      %c0_299 = arith.constant 0 : index
      %397 = vector.load %arg1[%c0_297, %396, %c0_298, %c0_299] : memref<1x28x28x1xf32, #tpu.memory_space<vmem>>, vector<1x1x24x1xf32>
      %398 = vector.shape_cast %397 : vector<1x1x24x1xf32> to vector<1x24x1xf32>
      %399 = vector.shape_cast %384 : vector<1x128xf32> to vector<1x1x128xf32>
      %400 = vector.broadcast %398 : vector<1x24x1xf32> to vector<1x24x128xf32>
      %401 = vector.broadcast %399 : vector<1x1x128xf32> to vector<1x24x128xf32>
      %402 = arith.mulf %400, %401 : vector<1x24x128xf32>
      %403 = arith.addf %382, %402 : vector<1x24x128xf32>
      %c6_300 = arith.constant 6 : index
      %c0_301 = arith.constant 0 : index
      %c0_302 = arith.constant 0 : index
      %404 = vector.load %arg2[%c6_300, %c0_301, %c0_302] : memref<25x1x128xf32, #tpu.memory_space<vmem>>, vector<1x1x128xf32>
      %405 = vector.shape_cast %404 : vector<1x1x128xf32> to vector<1x128xf32>
      %c1_i32_303 = arith.constant 1 : i32
      %406 = arith.addi %275, %c1_i32_303 : i32
      %c0_304 = arith.constant 0 : index
      %407 = arith.index_cast %406 : i32 to index
      %c1_305 = arith.constant 1 : index
      %c0_306 = arith.constant 0 : index
      %408 = vector.load %arg1[%c0_304, %407, %c1_305, %c0_306] : memref<1x28x28x1xf32, #tpu.memory_space<vmem>>, vector<1x1x24x1xf32>
      %409 = vector.shape_cast %408 : vector<1x1x24x1xf32> to vector<1x24x1xf32>
      %410 = vector.shape_cast %405 : vector<1x128xf32> to vector<1x1x128xf32>
      %411 = vector.broadcast %409 : vector<1x24x1xf32> to vector<1x24x128xf32>
      %412 = vector.broadcast %410 : vector<1x1x128xf32> to vector<1x24x128xf32>
      %413 = arith.mulf %411, %412 : vector<1x24x128xf32>
      %414 = arith.addf %393, %413 : vector<1x24x128xf32>
      %c1_i32_307 = arith.constant 1 : i32
      %415 = arith.addi %275, %c1_i32_307 : i32
      %c1_i32_308 = arith.constant 1 : i32
      %416 = arith.addi %415, %c1_i32_308 : i32
      %c0_309 = arith.constant 0 : index
      %417 = arith.index_cast %416 : i32 to index
      %c1_310 = arith.constant 1 : index
      %c0_311 = arith.constant 0 : index
      %418 = vector.load %arg1[%c0_309, %417, %c1_310, %c0_311] : memref<1x28x28x1xf32, #tpu.memory_space<vmem>>, vector<1x1x24x1xf32>
      %419 = vector.shape_cast %418 : vector<1x1x24x1xf32> to vector<1x24x1xf32>
      %420 = vector.shape_cast %405 : vector<1x128xf32> to vector<1x1x128xf32>
      %421 = vector.broadcast %419 : vector<1x24x1xf32> to vector<1x24x128xf32>
      %422 = vector.broadcast %420 : vector<1x1x128xf32> to vector<1x24x128xf32>
      %423 = arith.mulf %421, %422 : vector<1x24x128xf32>
      %424 = arith.addf %403, %423 : vector<1x24x128xf32>
      %c7_312 = arith.constant 7 : index
      %c0_313 = arith.constant 0 : index
      %c0_314 = arith.constant 0 : index
      %425 = vector.load %arg2[%c7_312, %c0_313, %c0_314] : memref<25x1x128xf32, #tpu.memory_space<vmem>>, vector<1x1x128xf32>
      %426 = vector.shape_cast %425 : vector<1x1x128xf32> to vector<1x128xf32>
      %c1_i32_315 = arith.constant 1 : i32
      %427 = arith.addi %275, %c1_i32_315 : i32
      %c0_316 = arith.constant 0 : index
      %428 = arith.index_cast %427 : i32 to index
      %c2_317 = arith.constant 2 : index
      %c0_318 = arith.constant 0 : index
      %429 = vector.load %arg1[%c0_316, %428, %c2_317, %c0_318] : memref<1x28x28x1xf32, #tpu.memory_space<vmem>>, vector<1x1x24x1xf32>
      %430 = vector.shape_cast %429 : vector<1x1x24x1xf32> to vector<1x24x1xf32>
      %431 = vector.shape_cast %426 : vector<1x128xf32> to vector<1x1x128xf32>
      %432 = vector.broadcast %430 : vector<1x24x1xf32> to vector<1x24x128xf32>
      %433 = vector.broadcast %431 : vector<1x1x128xf32> to vector<1x24x128xf32>
      %434 = arith.mulf %432, %433 : vector<1x24x128xf32>
      %435 = arith.addf %414, %434 : vector<1x24x128xf32>
      %c1_i32_319 = arith.constant 1 : i32
      %436 = arith.addi %275, %c1_i32_319 : i32
      %c1_i32_320 = arith.constant 1 : i32
      %437 = arith.addi %436, %c1_i32_320 : i32
      %c0_321 = arith.constant 0 : index
      %438 = arith.index_cast %437 : i32 to index
      %c2_322 = arith.constant 2 : index
      %c0_323 = arith.constant 0 : index
      %439 = vector.load %arg1[%c0_321, %438, %c2_322, %c0_323] : memref<1x28x28x1xf32, #tpu.memory_space<vmem>>, vector<1x1x24x1xf32>
      %440 = vector.shape_cast %439 : vector<1x1x24x1xf32> to vector<1x24x1xf32>
      %441 = vector.shape_cast %426 : vector<1x128xf32> to vector<1x1x128xf32>
      %442 = vector.broadcast %440 : vector<1x24x1xf32> to vector<1x24x128xf32>
      %443 = vector.broadcast %441 : vector<1x1x128xf32> to vector<1x24x128xf32>
      %444 = arith.mulf %442, %443 : vector<1x24x128xf32>
      %445 = arith.addf %424, %444 : vector<1x24x128xf32>
      %c8_324 = arith.constant 8 : index
      %c0_325 = arith.constant 0 : index
      %c0_326 = arith.constant 0 : index
      %446 = vector.load %arg2[%c8_324, %c0_325, %c0_326] : memref<25x1x128xf32, #tpu.memory_space<vmem>>, vector<1x1x128xf32>
      %447 = vector.shape_cast %446 : vector<1x1x128xf32> to vector<1x128xf32>
      %c1_i32_327 = arith.constant 1 : i32
      %448 = arith.addi %275, %c1_i32_327 : i32
      %c0_328 = arith.constant 0 : index
      %449 = arith.index_cast %448 : i32 to index
      %c3_329 = arith.constant 3 : index
      %c0_330 = arith.constant 0 : index
      %450 = vector.load %arg1[%c0_328, %449, %c3_329, %c0_330] : memref<1x28x28x1xf32, #tpu.memory_space<vmem>>, vector<1x1x24x1xf32>
      %451 = vector.shape_cast %450 : vector<1x1x24x1xf32> to vector<1x24x1xf32>
      %452 = vector.shape_cast %447 : vector<1x128xf32> to vector<1x1x128xf32>
      %453 = vector.broadcast %451 : vector<1x24x1xf32> to vector<1x24x128xf32>
      %454 = vector.broadcast %452 : vector<1x1x128xf32> to vector<1x24x128xf32>
      %455 = arith.mulf %453, %454 : vector<1x24x128xf32>
      %456 = arith.addf %435, %455 : vector<1x24x128xf32>
      %c1_i32_331 = arith.constant 1 : i32
      %457 = arith.addi %275, %c1_i32_331 : i32
      %c1_i32_332 = arith.constant 1 : i32
      %458 = arith.addi %457, %c1_i32_332 : i32
      %c0_333 = arith.constant 0 : index
      %459 = arith.index_cast %458 : i32 to index
      %c3_334 = arith.constant 3 : index
      %c0_335 = arith.constant 0 : index
      %460 = vector.load %arg1[%c0_333, %459, %c3_334, %c0_335] : memref<1x28x28x1xf32, #tpu.memory_space<vmem>>, vector<1x1x24x1xf32>
      %461 = vector.shape_cast %460 : vector<1x1x24x1xf32> to vector<1x24x1xf32>
      %462 = vector.shape_cast %447 : vector<1x128xf32> to vector<1x1x128xf32>
      %463 = vector.broadcast %461 : vector<1x24x1xf32> to vector<1x24x128xf32>
      %464 = vector.broadcast %462 : vector<1x1x128xf32> to vector<1x24x128xf32>
      %465 = arith.mulf %463, %464 : vector<1x24x128xf32>
      %466 = arith.addf %445, %465 : vector<1x24x128xf32>
      %c9_336 = arith.constant 9 : index
      %c0_337 = arith.constant 0 : index
      %c0_338 = arith.constant 0 : index
      %467 = vector.load %arg2[%c9_336, %c0_337, %c0_338] : memref<25x1x128xf32, #tpu.memory_space<vmem>>, vector<1x1x128xf32>
      %468 = vector.shape_cast %467 : vector<1x1x128xf32> to vector<1x128xf32>
      %c1_i32_339 = arith.constant 1 : i32
      %469 = arith.addi %275, %c1_i32_339 : i32
      %c0_340 = arith.constant 0 : index
      %470 = arith.index_cast %469 : i32 to index
      %c4_341 = arith.constant 4 : index
      %c0_342 = arith.constant 0 : index
      %471 = vector.load %arg1[%c0_340, %470, %c4_341, %c0_342] : memref<1x28x28x1xf32, #tpu.memory_space<vmem>>, vector<1x1x24x1xf32>
      %472 = vector.shape_cast %471 : vector<1x1x24x1xf32> to vector<1x24x1xf32>
      %473 = vector.shape_cast %468 : vector<1x128xf32> to vector<1x1x128xf32>
      %474 = vector.broadcast %472 : vector<1x24x1xf32> to vector<1x24x128xf32>
      %475 = vector.broadcast %473 : vector<1x1x128xf32> to vector<1x24x128xf32>
      %476 = arith.mulf %474, %475 : vector<1x24x128xf32>
      %477 = arith.addf %456, %476 : vector<1x24x128xf32>
      %c1_i32_343 = arith.constant 1 : i32
      %478 = arith.addi %275, %c1_i32_343 : i32
      %c1_i32_344 = arith.constant 1 : i32
      %479 = arith.addi %478, %c1_i32_344 : i32
      %c0_345 = arith.constant 0 : index
      %480 = arith.index_cast %479 : i32 to index
      %c4_346 = arith.constant 4 : index
      %c0_347 = arith.constant 0 : index
      %481 = vector.load %arg1[%c0_345, %480, %c4_346, %c0_347] : memref<1x28x28x1xf32, #tpu.memory_space<vmem>>, vector<1x1x24x1xf32>
      %482 = vector.shape_cast %481 : vector<1x1x24x1xf32> to vector<1x24x1xf32>
      %483 = vector.shape_cast %468 : vector<1x128xf32> to vector<1x1x128xf32>
      %484 = vector.broadcast %482 : vector<1x24x1xf32> to vector<1x24x128xf32>
      %485 = vector.broadcast %483 : vector<1x1x128xf32> to vector<1x24x128xf32>
      %486 = arith.mulf %484, %485 : vector<1x24x128xf32>
      %487 = arith.addf %466, %486 : vector<1x24x128xf32>
      %c10_348 = arith.constant 10 : index
      %c0_349 = arith.constant 0 : index
      %c0_350 = arith.constant 0 : index
      %488 = vector.load %arg2[%c10_348, %c0_349, %c0_350] : memref<25x1x128xf32, #tpu.memory_space<vmem>>, vector<1x1x128xf32>
      %489 = vector.shape_cast %488 : vector<1x1x128xf32> to vector<1x128xf32>
      %c2_i32_351 = arith.constant 2 : i32
      %490 = arith.addi %275, %c2_i32_351 : i32
      %c0_352 = arith.constant 0 : index
      %491 = arith.index_cast %490 : i32 to index
      %c0_353 = arith.constant 0 : index
      %c0_354 = arith.constant 0 : index
      %492 = vector.load %arg1[%c0_352, %491, %c0_353, %c0_354] : memref<1x28x28x1xf32, #tpu.memory_space<vmem>>, vector<1x1x24x1xf32>
      %493 = vector.shape_cast %492 : vector<1x1x24x1xf32> to vector<1x24x1xf32>
      %494 = vector.shape_cast %489 : vector<1x128xf32> to vector<1x1x128xf32>
      %495 = vector.broadcast %493 : vector<1x24x1xf32> to vector<1x24x128xf32>
      %496 = vector.broadcast %494 : vector<1x1x128xf32> to vector<1x24x128xf32>
      %497 = arith.mulf %495, %496 : vector<1x24x128xf32>
      %498 = arith.addf %477, %497 : vector<1x24x128xf32>
      %c1_i32_355 = arith.constant 1 : i32
      %499 = arith.addi %275, %c1_i32_355 : i32
      %c2_i32_356 = arith.constant 2 : i32
      %500 = arith.addi %499, %c2_i32_356 : i32
      %c0_357 = arith.constant 0 : index
      %501 = arith.index_cast %500 : i32 to index
      %c0_358 = arith.constant 0 : index
      %c0_359 = arith.constant 0 : index
      %502 = vector.load %arg1[%c0_357, %501, %c0_358, %c0_359] : memref<1x28x28x1xf32, #tpu.memory_space<vmem>>, vector<1x1x24x1xf32>
      %503 = vector.shape_cast %502 : vector<1x1x24x1xf32> to vector<1x24x1xf32>
      %504 = vector.shape_cast %489 : vector<1x128xf32> to vector<1x1x128xf32>
      %505 = vector.broadcast %503 : vector<1x24x1xf32> to vector<1x24x128xf32>
      %506 = vector.broadcast %504 : vector<1x1x128xf32> to vector<1x24x128xf32>
      %507 = arith.mulf %505, %506 : vector<1x24x128xf32>
      %508 = arith.addf %487, %507 : vector<1x24x128xf32>
      %c11_360 = arith.constant 11 : index
      %c0_361 = arith.constant 0 : index
      %c0_362 = arith.constant 0 : index
      %509 = vector.load %arg2[%c11_360, %c0_361, %c0_362] : memref<25x1x128xf32, #tpu.memory_space<vmem>>, vector<1x1x128xf32>
      %510 = vector.shape_cast %509 : vector<1x1x128xf32> to vector<1x128xf32>
      %c2_i32_363 = arith.constant 2 : i32
      %511 = arith.addi %275, %c2_i32_363 : i32
      %c0_364 = arith.constant 0 : index
      %512 = arith.index_cast %511 : i32 to index
      %c1_365 = arith.constant 1 : index
      %c0_366 = arith.constant 0 : index
      %513 = vector.load %arg1[%c0_364, %512, %c1_365, %c0_366] : memref<1x28x28x1xf32, #tpu.memory_space<vmem>>, vector<1x1x24x1xf32>
      %514 = vector.shape_cast %513 : vector<1x1x24x1xf32> to vector<1x24x1xf32>
      %515 = vector.shape_cast %510 : vector<1x128xf32> to vector<1x1x128xf32>
      %516 = vector.broadcast %514 : vector<1x24x1xf32> to vector<1x24x128xf32>
      %517 = vector.broadcast %515 : vector<1x1x128xf32> to vector<1x24x128xf32>
      %518 = arith.mulf %516, %517 : vector<1x24x128xf32>
      %519 = arith.addf %498, %518 : vector<1x24x128xf32>
      %c1_i32_367 = arith.constant 1 : i32
      %520 = arith.addi %275, %c1_i32_367 : i32
      %c2_i32_368 = arith.constant 2 : i32
      %521 = arith.addi %520, %c2_i32_368 : i32
      %c0_369 = arith.constant 0 : index
      %522 = arith.index_cast %521 : i32 to index
      %c1_370 = arith.constant 1 : index
      %c0_371 = arith.constant 0 : index
      %523 = vector.load %arg1[%c0_369, %522, %c1_370, %c0_371] : memref<1x28x28x1xf32, #tpu.memory_space<vmem>>, vector<1x1x24x1xf32>
      %524 = vector.shape_cast %523 : vector<1x1x24x1xf32> to vector<1x24x1xf32>
      %525 = vector.shape_cast %510 : vector<1x128xf32> to vector<1x1x128xf32>
      %526 = vector.broadcast %524 : vector<1x24x1xf32> to vector<1x24x128xf32>
      %527 = vector.broadcast %525 : vector<1x1x128xf32> to vector<1x24x128xf32>
      %528 = arith.mulf %526, %527 : vector<1x24x128xf32>
      %529 = arith.addf %508, %528 : vector<1x24x128xf32>
      %c12_372 = arith.constant 12 : index
      %c0_373 = arith.constant 0 : index
      %c0_374 = arith.constant 0 : index
      %530 = vector.load %arg2[%c12_372, %c0_373, %c0_374] : memref<25x1x128xf32, #tpu.memory_space<vmem>>, vector<1x1x128xf32>
      %531 = vector.shape_cast %530 : vector<1x1x128xf32> to vector<1x128xf32>
      %c2_i32_375 = arith.constant 2 : i32
      %532 = arith.addi %275, %c2_i32_375 : i32
      %c0_376 = arith.constant 0 : index
      %533 = arith.index_cast %532 : i32 to index
      %c2_377 = arith.constant 2 : index
      %c0_378 = arith.constant 0 : index
      %534 = vector.load %arg1[%c0_376, %533, %c2_377, %c0_378] : memref<1x28x28x1xf32, #tpu.memory_space<vmem>>, vector<1x1x24x1xf32>
      %535 = vector.shape_cast %534 : vector<1x1x24x1xf32> to vector<1x24x1xf32>
      %536 = vector.shape_cast %531 : vector<1x128xf32> to vector<1x1x128xf32>
      %537 = vector.broadcast %535 : vector<1x24x1xf32> to vector<1x24x128xf32>
      %538 = vector.broadcast %536 : vector<1x1x128xf32> to vector<1x24x128xf32>
      %539 = arith.mulf %537, %538 : vector<1x24x128xf32>
      %540 = arith.addf %519, %539 : vector<1x24x128xf32>
      %c1_i32_379 = arith.constant 1 : i32
      %541 = arith.addi %275, %c1_i32_379 : i32
      %c2_i32_380 = arith.constant 2 : i32
      %542 = arith.addi %541, %c2_i32_380 : i32
      %c0_381 = arith.constant 0 : index
      %543 = arith.index_cast %542 : i32 to index
      %c2_382 = arith.constant 2 : index
      %c0_383 = arith.constant 0 : index
      %544 = vector.load %arg1[%c0_381, %543, %c2_382, %c0_383] : memref<1x28x28x1xf32, #tpu.memory_space<vmem>>, vector<1x1x24x1xf32>
      %545 = vector.shape_cast %544 : vector<1x1x24x1xf32> to vector<1x24x1xf32>
      %546 = vector.shape_cast %531 : vector<1x128xf32> to vector<1x1x128xf32>
      %547 = vector.broadcast %545 : vector<1x24x1xf32> to vector<1x24x128xf32>
      %548 = vector.broadcast %546 : vector<1x1x128xf32> to vector<1x24x128xf32>
      %549 = arith.mulf %547, %548 : vector<1x24x128xf32>
      %550 = arith.addf %529, %549 : vector<1x24x128xf32>
      %c13_384 = arith.constant 13 : index
      %c0_385 = arith.constant 0 : index
      %c0_386 = arith.constant 0 : index
      %551 = vector.load %arg2[%c13_384, %c0_385, %c0_386] : memref<25x1x128xf32, #tpu.memory_space<vmem>>, vector<1x1x128xf32>
      %552 = vector.shape_cast %551 : vector<1x1x128xf32> to vector<1x128xf32>
      %c2_i32_387 = arith.constant 2 : i32
      %553 = arith.addi %275, %c2_i32_387 : i32
      %c0_388 = arith.constant 0 : index
      %554 = arith.index_cast %553 : i32 to index
      %c3_389 = arith.constant 3 : index
      %c0_390 = arith.constant 0 : index
      %555 = vector.load %arg1[%c0_388, %554, %c3_389, %c0_390] : memref<1x28x28x1xf32, #tpu.memory_space<vmem>>, vector<1x1x24x1xf32>
      %556 = vector.shape_cast %555 : vector<1x1x24x1xf32> to vector<1x24x1xf32>
      %557 = vector.shape_cast %552 : vector<1x128xf32> to vector<1x1x128xf32>
      %558 = vector.broadcast %556 : vector<1x24x1xf32> to vector<1x24x128xf32>
      %559 = vector.broadcast %557 : vector<1x1x128xf32> to vector<1x24x128xf32>
      %560 = arith.mulf %558, %559 : vector<1x24x128xf32>
      %561 = arith.addf %540, %560 : vector<1x24x128xf32>
      %c1_i32_391 = arith.constant 1 : i32
      %562 = arith.addi %275, %c1_i32_391 : i32
      %c2_i32_392 = arith.constant 2 : i32
      %563 = arith.addi %562, %c2_i32_392 : i32
      %c0_393 = arith.constant 0 : index
      %564 = arith.index_cast %563 : i32 to index
      %c3_394 = arith.constant 3 : index
      %c0_395 = arith.constant 0 : index
      %565 = vector.load %arg1[%c0_393, %564, %c3_394, %c0_395] : memref<1x28x28x1xf32, #tpu.memory_space<vmem>>, vector<1x1x24x1xf32>
      %566 = vector.shape_cast %565 : vector<1x1x24x1xf32> to vector<1x24x1xf32>
      %567 = vector.shape_cast %552 : vector<1x128xf32> to vector<1x1x128xf32>
      %568 = vector.broadcast %566 : vector<1x24x1xf32> to vector<1x24x128xf32>
      %569 = vector.broadcast %567 : vector<1x1x128xf32> to vector<1x24x128xf32>
      %570 = arith.mulf %568, %569 : vector<1x24x128xf32>
      %571 = arith.addf %550, %570 : vector<1x24x128xf32>
      %c14_396 = arith.constant 14 : index
      %c0_397 = arith.constant 0 : index
      %c0_398 = arith.constant 0 : index
      %572 = vector.load %arg2[%c14_396, %c0_397, %c0_398] : memref<25x1x128xf32, #tpu.memory_space<vmem>>, vector<1x1x128xf32>
      %573 = vector.shape_cast %572 : vector<1x1x128xf32> to vector<1x128xf32>
      %c2_i32_399 = arith.constant 2 : i32
      %574 = arith.addi %275, %c2_i32_399 : i32
      %c0_400 = arith.constant 0 : index
      %575 = arith.index_cast %574 : i32 to index
      %c4_401 = arith.constant 4 : index
      %c0_402 = arith.constant 0 : index
      %576 = vector.load %arg1[%c0_400, %575, %c4_401, %c0_402] : memref<1x28x28x1xf32, #tpu.memory_space<vmem>>, vector<1x1x24x1xf32>
      %577 = vector.shape_cast %576 : vector<1x1x24x1xf32> to vector<1x24x1xf32>
      %578 = vector.shape_cast %573 : vector<1x128xf32> to vector<1x1x128xf32>
      %579 = vector.broadcast %577 : vector<1x24x1xf32> to vector<1x24x128xf32>
      %580 = vector.broadcast %578 : vector<1x1x128xf32> to vector<1x24x128xf32>
      %581 = arith.mulf %579, %580 : vector<1x24x128xf32>
      %582 = arith.addf %561, %581 : vector<1x24x128xf32>
      %c1_i32_403 = arith.constant 1 : i32
      %583 = arith.addi %275, %c1_i32_403 : i32
      %c2_i32_404 = arith.constant 2 : i32
      %584 = arith.addi %583, %c2_i32_404 : i32
      %c0_405 = arith.constant 0 : index
      %585 = arith.index_cast %584 : i32 to index
      %c4_406 = arith.constant 4 : index
      %c0_407 = arith.constant 0 : index
      %586 = vector.load %arg1[%c0_405, %585, %c4_406, %c0_407] : memref<1x28x28x1xf32, #tpu.memory_space<vmem>>, vector<1x1x24x1xf32>
      %587 = vector.shape_cast %586 : vector<1x1x24x1xf32> to vector<1x24x1xf32>
      %588 = vector.shape_cast %573 : vector<1x128xf32> to vector<1x1x128xf32>
      %589 = vector.broadcast %587 : vector<1x24x1xf32> to vector<1x24x128xf32>
      %590 = vector.broadcast %588 : vector<1x1x128xf32> to vector<1x24x128xf32>
      %591 = arith.mulf %589, %590 : vector<1x24x128xf32>
      %592 = arith.addf %571, %591 : vector<1x24x128xf32>
      %c15_408 = arith.constant 15 : index
      %c0_409 = arith.constant 0 : index
      %c0_410 = arith.constant 0 : index
      %593 = vector.load %arg2[%c15_408, %c0_409, %c0_410] : memref<25x1x128xf32, #tpu.memory_space<vmem>>, vector<1x1x128xf32>
      %594 = vector.shape_cast %593 : vector<1x1x128xf32> to vector<1x128xf32>
      %c3_i32 = arith.constant 3 : i32
      %595 = arith.addi %275, %c3_i32 : i32
      %c0_411 = arith.constant 0 : index
      %596 = arith.index_cast %595 : i32 to index
      %c0_412 = arith.constant 0 : index
      %c0_413 = arith.constant 0 : index
      %597 = vector.load %arg1[%c0_411, %596, %c0_412, %c0_413] : memref<1x28x28x1xf32, #tpu.memory_space<vmem>>, vector<1x1x24x1xf32>
      %598 = vector.shape_cast %597 : vector<1x1x24x1xf32> to vector<1x24x1xf32>
      %599 = vector.shape_cast %594 : vector<1x128xf32> to vector<1x1x128xf32>
      %600 = vector.broadcast %598 : vector<1x24x1xf32> to vector<1x24x128xf32>
      %601 = vector.broadcast %599 : vector<1x1x128xf32> to vector<1x24x128xf32>
      %602 = arith.mulf %600, %601 : vector<1x24x128xf32>
      %603 = arith.addf %582, %602 : vector<1x24x128xf32>
      %c1_i32_414 = arith.constant 1 : i32
      %604 = arith.addi %275, %c1_i32_414 : i32
      %c3_i32_415 = arith.constant 3 : i32
      %605 = arith.addi %604, %c3_i32_415 : i32
      %c0_416 = arith.constant 0 : index
      %606 = arith.index_cast %605 : i32 to index
      %c0_417 = arith.constant 0 : index
      %c0_418 = arith.constant 0 : index
      %607 = vector.load %arg1[%c0_416, %606, %c0_417, %c0_418] : memref<1x28x28x1xf32, #tpu.memory_space<vmem>>, vector<1x1x24x1xf32>
      %608 = vector.shape_cast %607 : vector<1x1x24x1xf32> to vector<1x24x1xf32>
      %609 = vector.shape_cast %594 : vector<1x128xf32> to vector<1x1x128xf32>
      %610 = vector.broadcast %608 : vector<1x24x1xf32> to vector<1x24x128xf32>
      %611 = vector.broadcast %609 : vector<1x1x128xf32> to vector<1x24x128xf32>
      %612 = arith.mulf %610, %611 : vector<1x24x128xf32>
      %613 = arith.addf %592, %612 : vector<1x24x128xf32>
      %c16_419 = arith.constant 16 : index
      %c0_420 = arith.constant 0 : index
      %c0_421 = arith.constant 0 : index
      %614 = vector.load %arg2[%c16_419, %c0_420, %c0_421] : memref<25x1x128xf32, #tpu.memory_space<vmem>>, vector<1x1x128xf32>
      %615 = vector.shape_cast %614 : vector<1x1x128xf32> to vector<1x128xf32>
      %c3_i32_422 = arith.constant 3 : i32
      %616 = arith.addi %275, %c3_i32_422 : i32
      %c0_423 = arith.constant 0 : index
      %617 = arith.index_cast %616 : i32 to index
      %c1_424 = arith.constant 1 : index
      %c0_425 = arith.constant 0 : index
      %618 = vector.load %arg1[%c0_423, %617, %c1_424, %c0_425] : memref<1x28x28x1xf32, #tpu.memory_space<vmem>>, vector<1x1x24x1xf32>
      %619 = vector.shape_cast %618 : vector<1x1x24x1xf32> to vector<1x24x1xf32>
      %620 = vector.shape_cast %615 : vector<1x128xf32> to vector<1x1x128xf32>
      %621 = vector.broadcast %619 : vector<1x24x1xf32> to vector<1x24x128xf32>
      %622 = vector.broadcast %620 : vector<1x1x128xf32> to vector<1x24x128xf32>
      %623 = arith.mulf %621, %622 : vector<1x24x128xf32>
      %624 = arith.addf %603, %623 : vector<1x24x128xf32>
      %c1_i32_426 = arith.constant 1 : i32
      %625 = arith.addi %275, %c1_i32_426 : i32
      %c3_i32_427 = arith.constant 3 : i32
      %626 = arith.addi %625, %c3_i32_427 : i32
      %c0_428 = arith.constant 0 : index
      %627 = arith.index_cast %626 : i32 to index
      %c1_429 = arith.constant 1 : index
      %c0_430 = arith.constant 0 : index
      %628 = vector.load %arg1[%c0_428, %627, %c1_429, %c0_430] : memref<1x28x28x1xf32, #tpu.memory_space<vmem>>, vector<1x1x24x1xf32>
      %629 = vector.shape_cast %628 : vector<1x1x24x1xf32> to vector<1x24x1xf32>
      %630 = vector.shape_cast %615 : vector<1x128xf32> to vector<1x1x128xf32>
      %631 = vector.broadcast %629 : vector<1x24x1xf32> to vector<1x24x128xf32>
      %632 = vector.broadcast %630 : vector<1x1x128xf32> to vector<1x24x128xf32>
      %633 = arith.mulf %631, %632 : vector<1x24x128xf32>
      %634 = arith.addf %613, %633 : vector<1x24x128xf32>
      %c17_431 = arith.constant 17 : index
      %c0_432 = arith.constant 0 : index
      %c0_433 = arith.constant 0 : index
      %635 = vector.load %arg2[%c17_431, %c0_432, %c0_433] : memref<25x1x128xf32, #tpu.memory_space<vmem>>, vector<1x1x128xf32>
      %636 = vector.shape_cast %635 : vector<1x1x128xf32> to vector<1x128xf32>
      %c3_i32_434 = arith.constant 3 : i32
      %637 = arith.addi %275, %c3_i32_434 : i32
      %c0_435 = arith.constant 0 : index
      %638 = arith.index_cast %637 : i32 to index
      %c2_436 = arith.constant 2 : index
      %c0_437 = arith.constant 0 : index
      %639 = vector.load %arg1[%c0_435, %638, %c2_436, %c0_437] : memref<1x28x28x1xf32, #tpu.memory_space<vmem>>, vector<1x1x24x1xf32>
      %640 = vector.shape_cast %639 : vector<1x1x24x1xf32> to vector<1x24x1xf32>
      %641 = vector.shape_cast %636 : vector<1x128xf32> to vector<1x1x128xf32>
      %642 = vector.broadcast %640 : vector<1x24x1xf32> to vector<1x24x128xf32>
      %643 = vector.broadcast %641 : vector<1x1x128xf32> to vector<1x24x128xf32>
      %644 = arith.mulf %642, %643 : vector<1x24x128xf32>
      %645 = arith.addf %624, %644 : vector<1x24x128xf32>
      %c1_i32_438 = arith.constant 1 : i32
      %646 = arith.addi %275, %c1_i32_438 : i32
      %c3_i32_439 = arith.constant 3 : i32
      %647 = arith.addi %646, %c3_i32_439 : i32
      %c0_440 = arith.constant 0 : index
      %648 = arith.index_cast %647 : i32 to index
      %c2_441 = arith.constant 2 : index
      %c0_442 = arith.constant 0 : index
      %649 = vector.load %arg1[%c0_440, %648, %c2_441, %c0_442] : memref<1x28x28x1xf32, #tpu.memory_space<vmem>>, vector<1x1x24x1xf32>
      %650 = vector.shape_cast %649 : vector<1x1x24x1xf32> to vector<1x24x1xf32>
      %651 = vector.shape_cast %636 : vector<1x128xf32> to vector<1x1x128xf32>
      %652 = vector.broadcast %650 : vector<1x24x1xf32> to vector<1x24x128xf32>
      %653 = vector.broadcast %651 : vector<1x1x128xf32> to vector<1x24x128xf32>
      %654 = arith.mulf %652, %653 : vector<1x24x128xf32>
      %655 = arith.addf %634, %654 : vector<1x24x128xf32>
      %c18_443 = arith.constant 18 : index
      %c0_444 = arith.constant 0 : index
      %c0_445 = arith.constant 0 : index
      %656 = vector.load %arg2[%c18_443, %c0_444, %c0_445] : memref<25x1x128xf32, #tpu.memory_space<vmem>>, vector<1x1x128xf32>
      %657 = vector.shape_cast %656 : vector<1x1x128xf32> to vector<1x128xf32>
      %c3_i32_446 = arith.constant 3 : i32
      %658 = arith.addi %275, %c3_i32_446 : i32
      %c0_447 = arith.constant 0 : index
      %659 = arith.index_cast %658 : i32 to index
      %c3_448 = arith.constant 3 : index
      %c0_449 = arith.constant 0 : index
      %660 = vector.load %arg1[%c0_447, %659, %c3_448, %c0_449] : memref<1x28x28x1xf32, #tpu.memory_space<vmem>>, vector<1x1x24x1xf32>
      %661 = vector.shape_cast %660 : vector<1x1x24x1xf32> to vector<1x24x1xf32>
      %662 = vector.shape_cast %657 : vector<1x128xf32> to vector<1x1x128xf32>
      %663 = vector.broadcast %661 : vector<1x24x1xf32> to vector<1x24x128xf32>
      %664 = vector.broadcast %662 : vector<1x1x128xf32> to vector<1x24x128xf32>
      %665 = arith.mulf %663, %664 : vector<1x24x128xf32>
      %666 = arith.addf %645, %665 : vector<1x24x128xf32>
      %c1_i32_450 = arith.constant 1 : i32
      %667 = arith.addi %275, %c1_i32_450 : i32
      %c3_i32_451 = arith.constant 3 : i32
      %668 = arith.addi %667, %c3_i32_451 : i32
      %c0_452 = arith.constant 0 : index
      %669 = arith.index_cast %668 : i32 to index
      %c3_453 = arith.constant 3 : index
      %c0_454 = arith.constant 0 : index
      %670 = vector.load %arg1[%c0_452, %669, %c3_453, %c0_454] : memref<1x28x28x1xf32, #tpu.memory_space<vmem>>, vector<1x1x24x1xf32>
      %671 = vector.shape_cast %670 : vector<1x1x24x1xf32> to vector<1x24x1xf32>
      %672 = vector.shape_cast %657 : vector<1x128xf32> to vector<1x1x128xf32>
      %673 = vector.broadcast %671 : vector<1x24x1xf32> to vector<1x24x128xf32>
      %674 = vector.broadcast %672 : vector<1x1x128xf32> to vector<1x24x128xf32>
      %675 = arith.mulf %673, %674 : vector<1x24x128xf32>
      %676 = arith.addf %655, %675 : vector<1x24x128xf32>
      %c19_455 = arith.constant 19 : index
      %c0_456 = arith.constant 0 : index
      %c0_457 = arith.constant 0 : index
      %677 = vector.load %arg2[%c19_455, %c0_456, %c0_457] : memref<25x1x128xf32, #tpu.memory_space<vmem>>, vector<1x1x128xf32>
      %678 = vector.shape_cast %677 : vector<1x1x128xf32> to vector<1x128xf32>
      %c3_i32_458 = arith.constant 3 : i32
      %679 = arith.addi %275, %c3_i32_458 : i32
      %c0_459 = arith.constant 0 : index
      %680 = arith.index_cast %679 : i32 to index
      %c4_460 = arith.constant 4 : index
      %c0_461 = arith.constant 0 : index
      %681 = vector.load %arg1[%c0_459, %680, %c4_460, %c0_461] : memref<1x28x28x1xf32, #tpu.memory_space<vmem>>, vector<1x1x24x1xf32>
      %682 = vector.shape_cast %681 : vector<1x1x24x1xf32> to vector<1x24x1xf32>
      %683 = vector.shape_cast %678 : vector<1x128xf32> to vector<1x1x128xf32>
      %684 = vector.broadcast %682 : vector<1x24x1xf32> to vector<1x24x128xf32>
      %685 = vector.broadcast %683 : vector<1x1x128xf32> to vector<1x24x128xf32>
      %686 = arith.mulf %684, %685 : vector<1x24x128xf32>
      %687 = arith.addf %666, %686 : vector<1x24x128xf32>
      %c1_i32_462 = arith.constant 1 : i32
      %688 = arith.addi %275, %c1_i32_462 : i32
      %c3_i32_463 = arith.constant 3 : i32
      %689 = arith.addi %688, %c3_i32_463 : i32
      %c0_464 = arith.constant 0 : index
      %690 = arith.index_cast %689 : i32 to index
      %c4_465 = arith.constant 4 : index
      %c0_466 = arith.constant 0 : index
      %691 = vector.load %arg1[%c0_464, %690, %c4_465, %c0_466] : memref<1x28x28x1xf32, #tpu.memory_space<vmem>>, vector<1x1x24x1xf32>
      %692 = vector.shape_cast %691 : vector<1x1x24x1xf32> to vector<1x24x1xf32>
      %693 = vector.shape_cast %678 : vector<1x128xf32> to vector<1x1x128xf32>
      %694 = vector.broadcast %692 : vector<1x24x1xf32> to vector<1x24x128xf32>
      %695 = vector.broadcast %693 : vector<1x1x128xf32> to vector<1x24x128xf32>
      %696 = arith.mulf %694, %695 : vector<1x24x128xf32>
      %697 = arith.addf %676, %696 : vector<1x24x128xf32>
      %c20_467 = arith.constant 20 : index
      %c0_468 = arith.constant 0 : index
      %c0_469 = arith.constant 0 : index
      %698 = vector.load %arg2[%c20_467, %c0_468, %c0_469] : memref<25x1x128xf32, #tpu.memory_space<vmem>>, vector<1x1x128xf32>
      %699 = vector.shape_cast %698 : vector<1x1x128xf32> to vector<1x128xf32>
      %c4_i32 = arith.constant 4 : i32
      %700 = arith.addi %275, %c4_i32 : i32
      %c0_470 = arith.constant 0 : index
      %701 = arith.index_cast %700 : i32 to index
      %c0_471 = arith.constant 0 : index
      %c0_472 = arith.constant 0 : index
      %702 = vector.load %arg1[%c0_470, %701, %c0_471, %c0_472] : memref<1x28x28x1xf32, #tpu.memory_space<vmem>>, vector<1x1x24x1xf32>
      %703 = vector.shape_cast %702 : vector<1x1x24x1xf32> to vector<1x24x1xf32>
      %704 = vector.shape_cast %699 : vector<1x128xf32> to vector<1x1x128xf32>
      %705 = vector.broadcast %703 : vector<1x24x1xf32> to vector<1x24x128xf32>
      %706 = vector.broadcast %704 : vector<1x1x128xf32> to vector<1x24x128xf32>
      %707 = arith.mulf %705, %706 : vector<1x24x128xf32>
      %708 = arith.addf %687, %707 : vector<1x24x128xf32>
      %c1_i32_473 = arith.constant 1 : i32
      %709 = arith.addi %275, %c1_i32_473 : i32
      %c4_i32_474 = arith.constant 4 : i32
      %710 = arith.addi %709, %c4_i32_474 : i32
      %c0_475 = arith.constant 0 : index
      %711 = arith.index_cast %710 : i32 to index
      %c0_476 = arith.constant 0 : index
      %c0_477 = arith.constant 0 : index
      %712 = vector.load %arg1[%c0_475, %711, %c0_476, %c0_477] : memref<1x28x28x1xf32, #tpu.memory_space<vmem>>, vector<1x1x24x1xf32>
      %713 = vector.shape_cast %712 : vector<1x1x24x1xf32> to vector<1x24x1xf32>
      %714 = vector.shape_cast %699 : vector<1x128xf32> to vector<1x1x128xf32>
      %715 = vector.broadcast %713 : vector<1x24x1xf32> to vector<1x24x128xf32>
      %716 = vector.broadcast %714 : vector<1x1x128xf32> to vector<1x24x128xf32>
      %717 = arith.mulf %715, %716 : vector<1x24x128xf32>
      %718 = arith.addf %697, %717 : vector<1x24x128xf32>
      %c21_478 = arith.constant 21 : index
      %c0_479 = arith.constant 0 : index
      %c0_480 = arith.constant 0 : index
      %719 = vector.load %arg2[%c21_478, %c0_479, %c0_480] : memref<25x1x128xf32, #tpu.memory_space<vmem>>, vector<1x1x128xf32>
      %720 = vector.shape_cast %719 : vector<1x1x128xf32> to vector<1x128xf32>
      %c4_i32_481 = arith.constant 4 : i32
      %721 = arith.addi %275, %c4_i32_481 : i32
      %c0_482 = arith.constant 0 : index
      %722 = arith.index_cast %721 : i32 to index
      %c1_483 = arith.constant 1 : index
      %c0_484 = arith.constant 0 : index
      %723 = vector.load %arg1[%c0_482, %722, %c1_483, %c0_484] : memref<1x28x28x1xf32, #tpu.memory_space<vmem>>, vector<1x1x24x1xf32>
      %724 = vector.shape_cast %723 : vector<1x1x24x1xf32> to vector<1x24x1xf32>
      %725 = vector.shape_cast %720 : vector<1x128xf32> to vector<1x1x128xf32>
      %726 = vector.broadcast %724 : vector<1x24x1xf32> to vector<1x24x128xf32>
      %727 = vector.broadcast %725 : vector<1x1x128xf32> to vector<1x24x128xf32>
      %728 = arith.mulf %726, %727 : vector<1x24x128xf32>
      %729 = arith.addf %708, %728 : vector<1x24x128xf32>
      %c1_i32_485 = arith.constant 1 : i32
      %730 = arith.addi %275, %c1_i32_485 : i32
      %c4_i32_486 = arith.constant 4 : i32
      %731 = arith.addi %730, %c4_i32_486 : i32
      %c0_487 = arith.constant 0 : index
      %732 = arith.index_cast %731 : i32 to index
      %c1_488 = arith.constant 1 : index
      %c0_489 = arith.constant 0 : index
      %733 = vector.load %arg1[%c0_487, %732, %c1_488, %c0_489] : memref<1x28x28x1xf32, #tpu.memory_space<vmem>>, vector<1x1x24x1xf32>
      %734 = vector.shape_cast %733 : vector<1x1x24x1xf32> to vector<1x24x1xf32>
      %735 = vector.shape_cast %720 : vector<1x128xf32> to vector<1x1x128xf32>
      %736 = vector.broadcast %734 : vector<1x24x1xf32> to vector<1x24x128xf32>
      %737 = vector.broadcast %735 : vector<1x1x128xf32> to vector<1x24x128xf32>
      %738 = arith.mulf %736, %737 : vector<1x24x128xf32>
      %739 = arith.addf %718, %738 : vector<1x24x128xf32>
      %c22_490 = arith.constant 22 : index
      %c0_491 = arith.constant 0 : index
      %c0_492 = arith.constant 0 : index
      %740 = vector.load %arg2[%c22_490, %c0_491, %c0_492] : memref<25x1x128xf32, #tpu.memory_space<vmem>>, vector<1x1x128xf32>
      %741 = vector.shape_cast %740 : vector<1x1x128xf32> to vector<1x128xf32>
      %c4_i32_493 = arith.constant 4 : i32
      %742 = arith.addi %275, %c4_i32_493 : i32
      %c0_494 = arith.constant 0 : index
      %743 = arith.index_cast %742 : i32 to index
      %c2_495 = arith.constant 2 : index
      %c0_496 = arith.constant 0 : index
      %744 = vector.load %arg1[%c0_494, %743, %c2_495, %c0_496] : memref<1x28x28x1xf32, #tpu.memory_space<vmem>>, vector<1x1x24x1xf32>
      %745 = vector.shape_cast %744 : vector<1x1x24x1xf32> to vector<1x24x1xf32>
      %746 = vector.shape_cast %741 : vector<1x128xf32> to vector<1x1x128xf32>
      %747 = vector.broadcast %745 : vector<1x24x1xf32> to vector<1x24x128xf32>
      %748 = vector.broadcast %746 : vector<1x1x128xf32> to vector<1x24x128xf32>
      %749 = arith.mulf %747, %748 : vector<1x24x128xf32>
      %750 = arith.addf %729, %749 : vector<1x24x128xf32>
      %c1_i32_497 = arith.constant 1 : i32
      %751 = arith.addi %275, %c1_i32_497 : i32
      %c4_i32_498 = arith.constant 4 : i32
      %752 = arith.addi %751, %c4_i32_498 : i32
      %c0_499 = arith.constant 0 : index
      %753 = arith.index_cast %752 : i32 to index
      %c2_500 = arith.constant 2 : index
      %c0_501 = arith.constant 0 : index
      %754 = vector.load %arg1[%c0_499, %753, %c2_500, %c0_501] : memref<1x28x28x1xf32, #tpu.memory_space<vmem>>, vector<1x1x24x1xf32>
      %755 = vector.shape_cast %754 : vector<1x1x24x1xf32> to vector<1x24x1xf32>
      %756 = vector.shape_cast %741 : vector<1x128xf32> to vector<1x1x128xf32>
      %757 = vector.broadcast %755 : vector<1x24x1xf32> to vector<1x24x128xf32>
      %758 = vector.broadcast %756 : vector<1x1x128xf32> to vector<1x24x128xf32>
      %759 = arith.mulf %757, %758 : vector<1x24x128xf32>
      %760 = arith.addf %739, %759 : vector<1x24x128xf32>
      %c23_502 = arith.constant 23 : index
      %c0_503 = arith.constant 0 : index
      %c0_504 = arith.constant 0 : index
      %761 = vector.load %arg2[%c23_502, %c0_503, %c0_504] : memref<25x1x128xf32, #tpu.memory_space<vmem>>, vector<1x1x128xf32>
      %762 = vector.shape_cast %761 : vector<1x1x128xf32> to vector<1x128xf32>
      %c4_i32_505 = arith.constant 4 : i32
      %763 = arith.addi %275, %c4_i32_505 : i32
      %c0_506 = arith.constant 0 : index
      %764 = arith.index_cast %763 : i32 to index
      %c3_507 = arith.constant 3 : index
      %c0_508 = arith.constant 0 : index
      %765 = vector.load %arg1[%c0_506, %764, %c3_507, %c0_508] : memref<1x28x28x1xf32, #tpu.memory_space<vmem>>, vector<1x1x24x1xf32>
      %766 = vector.shape_cast %765 : vector<1x1x24x1xf32> to vector<1x24x1xf32>
      %767 = vector.shape_cast %762 : vector<1x128xf32> to vector<1x1x128xf32>
      %768 = vector.broadcast %766 : vector<1x24x1xf32> to vector<1x24x128xf32>
      %769 = vector.broadcast %767 : vector<1x1x128xf32> to vector<1x24x128xf32>
      %770 = arith.mulf %768, %769 : vector<1x24x128xf32>
      %771 = arith.addf %750, %770 : vector<1x24x128xf32>
      %c1_i32_509 = arith.constant 1 : i32
      %772 = arith.addi %275, %c1_i32_509 : i32
      %c4_i32_510 = arith.constant 4 : i32
      %773 = arith.addi %772, %c4_i32_510 : i32
      %c0_511 = arith.constant 0 : index
      %774 = arith.index_cast %773 : i32 to index
      %c3_512 = arith.constant 3 : index
      %c0_513 = arith.constant 0 : index
      %775 = vector.load %arg1[%c0_511, %774, %c3_512, %c0_513] : memref<1x28x28x1xf32, #tpu.memory_space<vmem>>, vector<1x1x24x1xf32>
      %776 = vector.shape_cast %775 : vector<1x1x24x1xf32> to vector<1x24x1xf32>
      %777 = vector.shape_cast %762 : vector<1x128xf32> to vector<1x1x128xf32>
      %778 = vector.broadcast %776 : vector<1x24x1xf32> to vector<1x24x128xf32>
      %779 = vector.broadcast %777 : vector<1x1x128xf32> to vector<1x24x128xf32>
      %780 = arith.mulf %778, %779 : vector<1x24x128xf32>
      %781 = arith.addf %760, %780 : vector<1x24x128xf32>
      %c24_514 = arith.constant 24 : index
      %c0_515 = arith.constant 0 : index
      %c0_516 = arith.constant 0 : index
      %782 = vector.load %arg2[%c24_514, %c0_515, %c0_516] : memref<25x1x128xf32, #tpu.memory_space<vmem>>, vector<1x1x128xf32>
      %783 = vector.shape_cast %782 : vector<1x1x128xf32> to vector<1x128xf32>
      %c4_i32_517 = arith.constant 4 : i32
      %784 = arith.addi %275, %c4_i32_517 : i32
      %c0_518 = arith.constant 0 : index
      %785 = arith.index_cast %784 : i32 to index
      %c4_519 = arith.constant 4 : index
      %c0_520 = arith.constant 0 : index
      %786 = vector.load %arg1[%c0_518, %785, %c4_519, %c0_520] : memref<1x28x28x1xf32, #tpu.memory_space<vmem>>, vector<1x1x24x1xf32>
      %787 = vector.shape_cast %786 : vector<1x1x24x1xf32> to vector<1x24x1xf32>
      %788 = vector.shape_cast %783 : vector<1x128xf32> to vector<1x1x128xf32>
      %789 = vector.broadcast %787 : vector<1x24x1xf32> to vector<1x24x128xf32>
      %790 = vector.broadcast %788 : vector<1x1x128xf32> to vector<1x24x128xf32>
      %791 = arith.mulf %789, %790 : vector<1x24x128xf32>
      %792 = arith.addf %771, %791 : vector<1x24x128xf32>
      %c1_i32_521 = arith.constant 1 : i32
      %793 = arith.addi %275, %c1_i32_521 : i32
      %c4_i32_522 = arith.constant 4 : i32
      %794 = arith.addi %793, %c4_i32_522 : i32
      %c0_523 = arith.constant 0 : index
      %795 = arith.index_cast %794 : i32 to index
      %c4_524 = arith.constant 4 : index
      %c0_525 = arith.constant 0 : index
      %796 = vector.load %arg1[%c0_523, %795, %c4_524, %c0_525] : memref<1x28x28x1xf32, #tpu.memory_space<vmem>>, vector<1x1x24x1xf32>
      %797 = vector.shape_cast %796 : vector<1x1x24x1xf32> to vector<1x24x1xf32>
      %798 = vector.shape_cast %783 : vector<1x128xf32> to vector<1x1x128xf32>
      %799 = vector.broadcast %797 : vector<1x24x1xf32> to vector<1x24x128xf32>
      %800 = vector.broadcast %798 : vector<1x1x128xf32> to vector<1x24x128xf32>
      %801 = arith.mulf %799, %800 : vector<1x24x128xf32>
      %802 = arith.addf %781, %801 : vector<1x24x128xf32>
      %803 = arith.maximumf %792, %802 : vector<1x24x128xf32>
      %804 = vector.shape_cast %803 : vector<1x24x128xf32> to vector<1x12x2x128xf32>
      %cst_526 = arith.constant dense<0xFF800000> : vector<1x12x128xf32>
      %805 = vector.multi_reduction <maximumf>, %804, %cst_526 [2] : vector<1x12x2x128xf32> to vector<1x12x128xf32>
      %c0_527 = arith.constant 0 : index
      %c0_528 = arith.constant 0 : index
      %806 = vector.load %arg3[%c0_527, %c0_528] : memref<1x128xf32, #tpu.memory_space<vmem>>, vector<1x128xf32>
      %807 = vector.shape_cast %806 : vector<1x128xf32> to vector<1x1x128xf32>
      %808 = vector.broadcast %807 : vector<1x1x128xf32> to vector<1x12x128xf32>
      %809 = arith.addf %805, %808 : vector<1x12x128xf32>
      %cst_529 = arith.constant 0.000000e+00 : f32
      %810 = vector.broadcast %cst_529 : f32 to vector<1x12x128xf32>
      %811 = arith.maximumf %809, %810 : vector<1x12x128xf32>
      %c0_530 = arith.constant 0 : index
      %812 = arith.index_cast %arg15 : i32 to index
      %c0_531 = arith.constant 0 : index
      %c0_532 = arith.constant 0 : index
      %813 = vector.load %arg13[%c0_530, %812, %c0_531, %c0_532] : memref<1x12x12x128xf32, #tpu.memory_space<vmem>>, vector<1x1x12x128xf32>
      %814 = vector.shape_cast %813 : vector<1x1x12x128xf32> to vector<1x12x128xf32>
      %815 = vector.shape_cast %811 : vector<1x12x128xf32> to vector<1x1x12x128xf32>
      tpu.vector_store %arg13[%c0_530, %812, %c0_531, %c0_532], %815 {strides = array<i32>} : memref<1x12x12x128xf32, #tpu.memory_space<vmem>>, vector<1x1x12x128xf32>,
    }
    %c12_i32_0 = arith.constant 12 : i32
    %cst = arith.constant 0.000000e+00 : f32
    %1 = vector.broadcast %cst : f32 to vector<64x128xf32>
    %c0 = arith.constant 0 : index
    %c0_1 = arith.constant 0 : index
    %c0_2 = arith.constant 0 : index
    %c0_3 = arith.constant 0 : index
    %2 = vector.load %arg13[%c0, %c0_1, %c0_2, %c0_3] : memref<1x12x12x128xf32, #tpu.memory_space<vmem>>, vector<1x8x8x128xf32>
    %3 = vector.shape_cast %2 : vector<1x8x8x128xf32> to vector<64x128xf32>
    %4 = arith.truncf %3 : vector<64x128xf32> to vector<64x128xbf16>
    %c0_4 = arith.constant 0 : index
    %c0_5 = arith.constant 0 : index
    %c0_6 = arith.constant 0 : index
    %5 = vector.load %arg4[%c0_4, %c0_5, %c0_6] : memref<25x128x128xbf16, #tpu.memory_space<vmem>>, vector<1x128x128xbf16>
    %6 = vector.shape_cast %5 : vector<1x128x128xbf16> to vector<128x128xbf16>
    %cst_7 = arith.constant dense<0.000000e+00> : vector<64x128xf32>
    %7 = tpu.matmul %4, %6, %cst_7 {dimension_numbers = #tpu.dot_dimension_numbers<[1], [0], [0], [1], [0, 0, 1, 1], [], []>} : vector<64x128xbf16>, vector<128x128xbf16>, vector<64x128xf32> -> vector<64x128xf32>
    %8 = arith.addf %1, %7 : vector<64x128xf32>
    %c0_8 = arith.constant 0 : index
    %c0_9 = arith.constant 0 : index
    %c1 = arith.constant 1 : index
    %c0_10 = arith.constant 0 : index
    %9 = vector.load %arg13[%c0_8, %c0_9, %c1, %c0_10] : memref<1x12x12x128xf32, #tpu.memory_space<vmem>>, vector<1x8x8x128xf32>
    %10 = vector.shape_cast %9 : vector<1x8x8x128xf32> to vector<64x128xf32>
    %11 = arith.truncf %10 : vector<64x128xf32> to vector<64x128xbf16>
    %c1_11 = arith.constant 1 : index
    %c0_12 = arith.constant 0 : index
    %c0_13 = arith.constant 0 : index
    %12 = vector.load %arg4[%c1_11, %c0_12, %c0_13] : memref<25x128x128xbf16, #tpu.memory_space<vmem>>, vector<1x128x128xbf16>
    %13 = vector.shape_cast %12 : vector<1x128x128xbf16> to vector<128x128xbf16>
    %cst_14 = arith.constant dense<0.000000e+00> : vector<64x128xf32>
    %14 = tpu.matmul %11, %13, %cst_14 {dimension_numbers = #tpu.dot_dimension_numbers<[1], [0], [0], [1], [0, 0, 1, 1], [], []>} : vector<64x128xbf16>, vector<128x128xbf16>, vector<64x128xf32> -> vector<64x128xf32>
    %15 = arith.addf %8, %14 : vector<64x128xf32>
    %c0_15 = arith.constant 0 : index
    %c0_16 = arith.constant 0 : index
    %c2 = arith.constant 2 : index
    %c0_17 = arith.constant 0 : index
    %16 = vector.load %arg13[%c0_15, %c0_16, %c2, %c0_17] : memref<1x12x12x128xf32, #tpu.memory_space<vmem>>, vector<1x8x8x128xf32>
    %17 = vector.shape_cast %16 : vector<1x8x8x128xf32> to vector<64x128xf32>
    %18 = arith.truncf %17 : vector<64x128xf32> to vector<64x128xbf16>
    %c2_18 = arith.constant 2 : index
    %c0_19 = arith.constant 0 : index
    %c0_20 = arith.constant 0 : index
    %19 = vector.load %arg4[%c2_18, %c0_19, %c0_20] : memref<25x128x128xbf16, #tpu.memory_space<vmem>>, vector<1x128x128xbf16>
    %20 = vector.shape_cast %19 : vector<1x128x128xbf16> to vector<128x128xbf16>
    %cst_21 = arith.constant dense<0.000000e+00> : vector<64x128xf32>
    %21 = tpu.matmul %18, %20, %cst_21 {dimension_numbers = #tpu.dot_dimension_numbers<[1], [0], [0], [1], [0, 0, 1, 1], [], []>} : vector<64x128xbf16>, vector<128x128xbf16>, vector<64x128xf32> -> vector<64x128xf32>
    %22 = arith.addf %15, %21 : vector<64x128xf32>
    %c0_22 = arith.constant 0 : index
    %c0_23 = arith.constant 0 : index
    %c3 = arith.constant 3 : index
    %c0_24 = arith.constant 0 : index
    %23 = vector.load %arg13[%c0_22, %c0_23, %c3, %c0_24] : memref<1x12x12x128xf32, #tpu.memory_space<vmem>>, vector<1x8x8x128xf32>
    %24 = vector.shape_cast %23 : vector<1x8x8x128xf32> to vector<64x128xf32>
    %25 = arith.truncf %24 : vector<64x128xf32> to vector<64x128xbf16>
    %c3_25 = arith.constant 3 : index
    %c0_26 = arith.constant 0 : index
    %c0_27 = arith.constant 0 : index
    %26 = vector.load %arg4[%c3_25, %c0_26, %c0_27] : memref<25x128x128xbf16, #tpu.memory_space<vmem>>, vector<1x128x128xbf16>
    %27 = vector.shape_cast %26 : vector<1x128x128xbf16> to vector<128x128xbf16>
    %cst_28 = arith.constant dense<0.000000e+00> : vector<64x128xf32>
    %28 = tpu.matmul %25, %27, %cst_28 {dimension_numbers = #tpu.dot_dimension_numbers<[1], [0], [0], [1], [0, 0, 1, 1], [], []>} : vector<64x128xbf16>, vector<128x128xbf16>, vector<64x128xf32> -> vector<64x128xf32>
    %29 = arith.addf %22, %28 : vector<64x128xf32>
    %c0_29 = arith.constant 0 : index
    %c0_30 = arith.constant 0 : index
    %c4 = arith.constant 4 : index
    %c0_31 = arith.constant 0 : index
    %30 = vector.load %arg13[%c0_29, %c0_30, %c4, %c0_31] : memref<1x12x12x128xf32, #tpu.memory_space<vmem>>, vector<1x8x8x128xf32>
    %31 = vector.shape_cast %30 : vector<1x8x8x128xf32> to vector<64x128xf32>
    %32 = arith.truncf %31 : vector<64x128xf32> to vector<64x128xbf16>
    %c4_32 = arith.constant 4 : index
    %c0_33 = arith.constant 0 : index
    %c0_34 = arith.constant 0 : index
    %33 = vector.load %arg4[%c4_32, %c0_33, %c0_34] : memref<25x128x128xbf16, #tpu.memory_space<vmem>>, vector<1x128x128xbf16>
    %34 = vector.shape_cast %33 : vector<1x128x128xbf16> to vector<128x128xbf16>
    %cst_35 = arith.constant dense<0.000000e+00> : vector<64x128xf32>
    %35 = tpu.matmul %32, %34, %cst_35 {dimension_numbers = #tpu.dot_dimension_numbers<[1], [0], [0], [1], [0, 0, 1, 1], [], []>} : vector<64x128xbf16>, vector<128x128xbf16>, vector<64x128xf32> -> vector<64x128xf32>
    %36 = arith.addf %29, %35 : vector<64x128xf32>
    %c0_36 = arith.constant 0 : index
    %c1_37 = arith.constant 1 : index
    %c0_38 = arith.constant 0 : index
    %c0_39 = arith.constant 0 : index
    %37 = vector.load %arg13[%c0_36, %c1_37, %c0_38, %c0_39] : memref<1x12x12x128xf32, #tpu.memory_space<vmem>>, vector<1x8x8x128xf32>
    %38 = vector.shape_cast %37 : vector<1x8x8x128xf32> to vector<64x128xf32>
    %39 = arith.truncf %38 : vector<64x128xf32> to vector<64x128xbf16>
    %c5 = arith.constant 5 : index
    %c0_40 = arith.constant 0 : index
    %c0_41 = arith.constant 0 : index
    %40 = vector.load %arg4[%c5, %c0_40, %c0_41] : memref<25x128x128xbf16, #tpu.memory_space<vmem>>, vector<1x128x128xbf16>
    %41 = vector.shape_cast %40 : vector<1x128x128xbf16> to vector<128x128xbf16>
    %cst_42 = arith.constant dense<0.000000e+00> : vector<64x128xf32>
    %42 = tpu.matmul %39, %41, %cst_42 {dimension_numbers = #tpu.dot_dimension_numbers<[1], [0], [0], [1], [0, 0, 1, 1], [], []>} : vector<64x128xbf16>, vector<128x128xbf16>, vector<64x128xf32> -> vector<64x128xf32>
    %43 = arith.addf %36, %42 : vector<64x128xf32>
    %c0_43 = arith.constant 0 : index
    %c1_44 = arith.constant 1 : index
    %c1_45 = arith.constant 1 : index
    %c0_46 = arith.constant 0 : index
    %44 = vector.load %arg13[%c0_43, %c1_44, %c1_45, %c0_46] : memref<1x12x12x128xf32, #tpu.memory_space<vmem>>, vector<1x8x8x128xf32>
    %45 = vector.shape_cast %44 : vector<1x8x8x128xf32> to vector<64x128xf32>
    %46 = arith.truncf %45 : vector<64x128xf32> to vector<64x128xbf16>
    %c6 = arith.constant 6 : index
    %c0_47 = arith.constant 0 : index
    %c0_48 = arith.constant 0 : index
    %47 = vector.load %arg4[%c6, %c0_47, %c0_48] : memref<25x128x128xbf16, #tpu.memory_space<vmem>>, vector<1x128x128xbf16>
    %48 = vector.shape_cast %47 : vector<1x128x128xbf16> to vector<128x128xbf16>
    %cst_49 = arith.constant dense<0.000000e+00> : vector<64x128xf32>
    %49 = tpu.matmul %46, %48, %cst_49 {dimension_numbers = #tpu.dot_dimension_numbers<[1], [0], [0], [1], [0, 0, 1, 1], [], []>} : vector<64x128xbf16>, vector<128x128xbf16>, vector<64x128xf32> -> vector<64x128xf32>
    %50 = arith.addf %43, %49 : vector<64x128xf32>
    %c0_50 = arith.constant 0 : index
    %c1_51 = arith.constant 1 : index
    %c2_52 = arith.constant 2 : index
    %c0_53 = arith.constant 0 : index
    %51 = vector.load %arg13[%c0_50, %c1_51, %c2_52, %c0_53] : memref<1x12x12x128xf32, #tpu.memory_space<vmem>>, vector<1x8x8x128xf32>
    %52 = vector.shape_cast %51 : vector<1x8x8x128xf32> to vector<64x128xf32>
    %53 = arith.truncf %52 : vector<64x128xf32> to vector<64x128xbf16>
    %c7 = arith.constant 7 : index
    %c0_54 = arith.constant 0 : index
    %c0_55 = arith.constant 0 : index
    %54 = vector.load %arg4[%c7, %c0_54, %c0_55] : memref<25x128x128xbf16, #tpu.memory_space<vmem>>, vector<1x128x128xbf16>
    %55 = vector.shape_cast %54 : vector<1x128x128xbf16> to vector<128x128xbf16>
    %cst_56 = arith.constant dense<0.000000e+00> : vector<64x128xf32>
    %56 = tpu.matmul %53, %55, %cst_56 {dimension_numbers = #tpu.dot_dimension_numbers<[1], [0], [0], [1], [0, 0, 1, 1], [], []>} : vector<64x128xbf16>, vector<128x128xbf16>, vector<64x128xf32> -> vector<64x128xf32>
    %57 = arith.addf %50, %56 : vector<64x128xf32>
    %c0_57 = arith.constant 0 : index
    %c1_58 = arith.constant 1 : index
    %c3_59 = arith.constant 3 : index
    %c0_60 = arith.constant 0 : index
    %58 = vector.load %arg13[%c0_57, %c1_58, %c3_59, %c0_60] : memref<1x12x12x128xf32, #tpu.memory_space<vmem>>, vector<1x8x8x128xf32>
    %59 = vector.shape_cast %58 : vector<1x8x8x128xf32> to vector<64x128xf32>
    %60 = arith.truncf %59 : vector<64x128xf32> to vector<64x128xbf16>
    %c8 = arith.constant 8 : index
    %c0_61 = arith.constant 0 : index
    %c0_62 = arith.constant 0 : index
    %61 = vector.load %arg4[%c8, %c0_61, %c0_62] : memref<25x128x128xbf16, #tpu.memory_space<vmem>>, vector<1x128x128xbf16>
    %62 = vector.shape_cast %61 : vector<1x128x128xbf16> to vector<128x128xbf16>
    %cst_63 = arith.constant dense<0.000000e+00> : vector<64x128xf32>
    %63 = tpu.matmul %60, %62, %cst_63 {dimension_numbers = #tpu.dot_dimension_numbers<[1], [0], [0], [1], [0, 0, 1, 1], [], []>} : vector<64x128xbf16>, vector<128x128xbf16>, vector<64x128xf32> -> vector<64x128xf32>
    %64 = arith.addf %57, %63 : vector<64x128xf32>
    %c0_64 = arith.constant 0 : index
    %c1_65 = arith.constant 1 : index
    %c4_66 = arith.constant 4 : index
    %c0_67 = arith.constant 0 : index
    %65 = vector.load %arg13[%c0_64, %c1_65, %c4_66, %c0_67] : memref<1x12x12x128xf32, #tpu.memory_space<vmem>>, vector<1x8x8x128xf32>
    %66 = vector.shape_cast %65 : vector<1x8x8x128xf32> to vector<64x128xf32>
    %67 = arith.truncf %66 : vector<64x128xf32> to vector<64x128xbf16>
    %c9 = arith.constant 9 : index
    %c0_68 = arith.constant 0 : index
    %c0_69 = arith.constant 0 : index
    %68 = vector.load %arg4[%c9, %c0_68, %c0_69] : memref<25x128x128xbf16, #tpu.memory_space<vmem>>, vector<1x128x128xbf16>
    %69 = vector.shape_cast %68 : vector<1x128x128xbf16> to vector<128x128xbf16>
    %cst_70 = arith.constant dense<0.000000e+00> : vector<64x128xf32>
    %70 = tpu.matmul %67, %69, %cst_70 {dimension_numbers = #tpu.dot_dimension_numbers<[1], [0], [0], [1], [0, 0, 1, 1], [], []>} : vector<64x128xbf16>, vector<128x128xbf16>, vector<64x128xf32> -> vector<64x128xf32>
    %71 = arith.addf %64, %70 : vector<64x128xf32>
    %c0_71 = arith.constant 0 : index
    %c2_72 = arith.constant 2 : index
    %c0_73 = arith.constant 0 : index
    %c0_74 = arith.constant 0 : index
    %72 = vector.load %arg13[%c0_71, %c2_72, %c0_73, %c0_74] : memref<1x12x12x128xf32, #tpu.memory_space<vmem>>, vector<1x8x8x128xf32>
    %73 = vector.shape_cast %72 : vector<1x8x8x128xf32> to vector<64x128xf32>
    %74 = arith.truncf %73 : vector<64x128xf32> to vector<64x128xbf16>
    %c10 = arith.constant 10 : index
    %c0_75 = arith.constant 0 : index
    %c0_76 = arith.constant 0 : index
    %75 = vector.load %arg4[%c10, %c0_75, %c0_76] : memref<25x128x128xbf16, #tpu.memory_space<vmem>>, vector<1x128x128xbf16>
    %76 = vector.shape_cast %75 : vector<1x128x128xbf16> to vector<128x128xbf16>
    %cst_77 = arith.constant dense<0.000000e+00> : vector<64x128xf32>
    %77 = tpu.matmul %74, %76, %cst_77 {dimension_numbers = #tpu.dot_dimension_numbers<[1], [0], [0], [1], [0, 0, 1, 1], [], []>} : vector<64x128xbf16>, vector<128x128xbf16>, vector<64x128xf32> -> vector<64x128xf32>
    %78 = arith.addf %71, %77 : vector<64x128xf32>
    %c0_78 = arith.constant 0 : index
    %c2_79 = arith.constant 2 : index
    %c1_80 = arith.constant 1 : index
    %c0_81 = arith.constant 0 : index
    %79 = vector.load %arg13[%c0_78, %c2_79, %c1_80, %c0_81] : memref<1x12x12x128xf32, #tpu.memory_space<vmem>>, vector<1x8x8x128xf32>
    %80 = vector.shape_cast %79 : vector<1x8x8x128xf32> to vector<64x128xf32>
    %81 = arith.truncf %80 : vector<64x128xf32> to vector<64x128xbf16>
    %c11 = arith.constant 11 : index
    %c0_82 = arith.constant 0 : index
    %c0_83 = arith.constant 0 : index
    %82 = vector.load %arg4[%c11, %c0_82, %c0_83] : memref<25x128x128xbf16, #tpu.memory_space<vmem>>, vector<1x128x128xbf16>
    %83 = vector.shape_cast %82 : vector<1x128x128xbf16> to vector<128x128xbf16>
    %cst_84 = arith.constant dense<0.000000e+00> : vector<64x128xf32>
    %84 = tpu.matmul %81, %83, %cst_84 {dimension_numbers = #tpu.dot_dimension_numbers<[1], [0], [0], [1], [0, 0, 1, 1], [], []>} : vector<64x128xbf16>, vector<128x128xbf16>, vector<64x128xf32> -> vector<64x128xf32>
    %85 = arith.addf %78, %84 : vector<64x128xf32>
    %c0_85 = arith.constant 0 : index
    %c2_86 = arith.constant 2 : index
    %c2_87 = arith.constant 2 : index
    %c0_88 = arith.constant 0 : index
    %86 = vector.load %arg13[%c0_85, %c2_86, %c2_87, %c0_88] : memref<1x12x12x128xf32, #tpu.memory_space<vmem>>, vector<1x8x8x128xf32>
    %87 = vector.shape_cast %86 : vector<1x8x8x128xf32> to vector<64x128xf32>
    %88 = arith.truncf %87 : vector<64x128xf32> to vector<64x128xbf16>
    %c12 = arith.constant 12 : index
    %c0_89 = arith.constant 0 : index
    %c0_90 = arith.constant 0 : index
    %89 = vector.load %arg4[%c12, %c0_89, %c0_90] : memref<25x128x128xbf16, #tpu.memory_space<vmem>>, vector<1x128x128xbf16>
    %90 = vector.shape_cast %89 : vector<1x128x128xbf16> to vector<128x128xbf16>
    %cst_91 = arith.constant dense<0.000000e+00> : vector<64x128xf32>
    %91 = tpu.matmul %88, %90, %cst_91 {dimension_numbers = #tpu.dot_dimension_numbers<[1], [0], [0], [1], [0, 0, 1, 1], [], []>} : vector<64x128xbf16>, vector<128x128xbf16>, vector<64x128xf32> -> vector<64x128xf32>
    %92 = arith.addf %85, %91 : vector<64x128xf32>
    %c0_92 = arith.constant 0 : index
    %c2_93 = arith.constant 2 : index
    %c3_94 = arith.constant 3 : index
    %c0_95 = arith.constant 0 : index
    %93 = vector.load %arg13[%c0_92, %c2_93, %c3_94, %c0_95] : memref<1x12x12x128xf32, #tpu.memory_space<vmem>>, vector<1x8x8x128xf32>
    %94 = vector.shape_cast %93 : vector<1x8x8x128xf32> to vector<64x128xf32>
    %95 = arith.truncf %94 : vector<64x128xf32> to vector<64x128xbf16>
    %c13 = arith.constant 13 : index
    %c0_96 = arith.constant 0 : index
    %c0_97 = arith.constant 0 : index
    %96 = vector.load %arg4[%c13, %c0_96, %c0_97] : memref<25x128x128xbf16, #tpu.memory_space<vmem>>, vector<1x128x128xbf16>
    %97 = vector.shape_cast %96 : vector<1x128x128xbf16> to vector<128x128xbf16>
    %cst_98 = arith.constant dense<0.000000e+00> : vector<64x128xf32>
    %98 = tpu.matmul %95, %97, %cst_98 {dimension_numbers = #tpu.dot_dimension_numbers<[1], [0], [0], [1], [0, 0, 1, 1], [], []>} : vector<64x128xbf16>, vector<128x128xbf16>, vector<64x128xf32> -> vector<64x128xf32>
    %99 = arith.addf %92, %98 : vector<64x128xf32>
    %c0_99 = arith.constant 0 : index
    %c2_100 = arith.constant 2 : index
    %c4_101 = arith.constant 4 : index
    %c0_102 = arith.constant 0 : index
    %100 = vector.load %arg13[%c0_99, %c2_100, %c4_101, %c0_102] : memref<1x12x12x128xf32, #tpu.memory_space<vmem>>, vector<1x8x8x128xf32>
    %101 = vector.shape_cast %100 : vector<1x8x8x128xf32> to vector<64x128xf32>
    %102 = arith.truncf %101 : vector<64x128xf32> to vector<64x128xbf16>
    %c14 = arith.constant 14 : index
    %c0_103 = arith.constant 0 : index
    %c0_104 = arith.constant 0 : index
    %103 = vector.load %arg4[%c14, %c0_103, %c0_104] : memref<25x128x128xbf16, #tpu.memory_space<vmem>>, vector<1x128x128xbf16>
    %104 = vector.shape_cast %103 : vector<1x128x128xbf16> to vector<128x128xbf16>
    %cst_105 = arith.constant dense<0.000000e+00> : vector<64x128xf32>
    %105 = tpu.matmul %102, %104, %cst_105 {dimension_numbers = #tpu.dot_dimension_numbers<[1], [0], [0], [1], [0, 0, 1, 1], [], []>} : vector<64x128xbf16>, vector<128x128xbf16>, vector<64x128xf32> -> vector<64x128xf32>
    %106 = arith.addf %99, %105 : vector<64x128xf32>
    %c0_106 = arith.constant 0 : index
    %c3_107 = arith.constant 3 : index
    %c0_108 = arith.constant 0 : index
    %c0_109 = arith.constant 0 : index
    %107 = vector.load %arg13[%c0_106, %c3_107, %c0_108, %c0_109] : memref<1x12x12x128xf32, #tpu.memory_space<vmem>>, vector<1x8x8x128xf32>
    %108 = vector.shape_cast %107 : vector<1x8x8x128xf32> to vector<64x128xf32>
    %109 = arith.truncf %108 : vector<64x128xf32> to vector<64x128xbf16>
    %c15 = arith.constant 15 : index
    %c0_110 = arith.constant 0 : index
    %c0_111 = arith.constant 0 : index
    %110 = vector.load %arg4[%c15, %c0_110, %c0_111] : memref<25x128x128xbf16, #tpu.memory_space<vmem>>, vector<1x128x128xbf16>
    %111 = vector.shape_cast %110 : vector<1x128x128xbf16> to vector<128x128xbf16>
    %cst_112 = arith.constant dense<0.000000e+00> : vector<64x128xf32>
    %112 = tpu.matmul %109, %111, %cst_112 {dimension_numbers = #tpu.dot_dimension_numbers<[1], [0], [0], [1], [0, 0, 1, 1], [], []>} : vector<64x128xbf16>, vector<128x128xbf16>, vector<64x128xf32> -> vector<64x128xf32>
    %113 = arith.addf %106, %112 : vector<64x128xf32>
    %c0_113 = arith.constant 0 : index
    %c3_114 = arith.constant 3 : index
    %c1_115 = arith.constant 1 : index
    %c0_116 = arith.constant 0 : index
    %114 = vector.load %arg13[%c0_113, %c3_114, %c1_115, %c0_116] : memref<1x12x12x128xf32, #tpu.memory_space<vmem>>, vector<1x8x8x128xf32>
    %115 = vector.shape_cast %114 : vector<1x8x8x128xf32> to vector<64x128xf32>
    %116 = arith.truncf %115 : vector<64x128xf32> to vector<64x128xbf16>
    %c16 = arith.constant 16 : index
    %c0_117 = arith.constant 0 : index
    %c0_118 = arith.constant 0 : index
    %117 = vector.load %arg4[%c16, %c0_117, %c0_118] : memref<25x128x128xbf16, #tpu.memory_space<vmem>>, vector<1x128x128xbf16>
    %118 = vector.shape_cast %117 : vector<1x128x128xbf16> to vector<128x128xbf16>
    %cst_119 = arith.constant dense<0.000000e+00> : vector<64x128xf32>
    %119 = tpu.matmul %116, %118, %cst_119 {dimension_numbers = #tpu.dot_dimension_numbers<[1], [0], [0], [1], [0, 0, 1, 1], [], []>} : vector<64x128xbf16>, vector<128x128xbf16>, vector<64x128xf32> -> vector<64x128xf32>
    %120 = arith.addf %113, %119 : vector<64x128xf32>
    %c0_120 = arith.constant 0 : index
    %c3_121 = arith.constant 3 : index
    %c2_122 = arith.constant 2 : index
    %c0_123 = arith.constant 0 : index
    %121 = vector.load %arg13[%c0_120, %c3_121, %c2_122, %c0_123] : memref<1x12x12x128xf32, #tpu.memory_space<vmem>>, vector<1x8x8x128xf32>
    %122 = vector.shape_cast %121 : vector<1x8x8x128xf32> to vector<64x128xf32>
    %123 = arith.truncf %122 : vector<64x128xf32> to vector<64x128xbf16>
    %c17 = arith.constant 17 : index
    %c0_124 = arith.constant 0 : index
    %c0_125 = arith.constant 0 : index
    %124 = vector.load %arg4[%c17, %c0_124, %c0_125] : memref<25x128x128xbf16, #tpu.memory_space<vmem>>, vector<1x128x128xbf16>
    %125 = vector.shape_cast %124 : vector<1x128x128xbf16> to vector<128x128xbf16>
    %cst_126 = arith.constant dense<0.000000e+00> : vector<64x128xf32>
    %126 = tpu.matmul %123, %125, %cst_126 {dimension_numbers = #tpu.dot_dimension_numbers<[1], [0], [0], [1], [0, 0, 1, 1], [], []>} : vector<64x128xbf16>, vector<128x128xbf16>, vector<64x128xf32> -> vector<64x128xf32>
    %127 = arith.addf %120, %126 : vector<64x128xf32>
    %c0_127 = arith.constant 0 : index
    %c3_128 = arith.constant 3 : index
    %c3_129 = arith.constant 3 : index
    %c0_130 = arith.constant 0 : index
    %128 = vector.load %arg13[%c0_127, %c3_128, %c3_129, %c0_130] : memref<1x12x12x128xf32, #tpu.memory_space<vmem>>, vector<1x8x8x128xf32>
    %129 = vector.shape_cast %128 : vector<1x8x8x128xf32> to vector<64x128xf32>
    %130 = arith.truncf %129 : vector<64x128xf32> to vector<64x128xbf16>
    %c18 = arith.constant 18 : index
    %c0_131 = arith.constant 0 : index
    %c0_132 = arith.constant 0 : index
    %131 = vector.load %arg4[%c18, %c0_131, %c0_132] : memref<25x128x128xbf16, #tpu.memory_space<vmem>>, vector<1x128x128xbf16>
    %132 = vector.shape_cast %131 : vector<1x128x128xbf16> to vector<128x128xbf16>
    %cst_133 = arith.constant dense<0.000000e+00> : vector<64x128xf32>
    %133 = tpu.matmul %130, %132, %cst_133 {dimension_numbers = #tpu.dot_dimension_numbers<[1], [0], [0], [1], [0, 0, 1, 1], [], []>} : vector<64x128xbf16>, vector<128x128xbf16>, vector<64x128xf32> -> vector<64x128xf32>
    %134 = arith.addf %127, %133 : vector<64x128xf32>
    %c0_134 = arith.constant 0 : index
    %c3_135 = arith.constant 3 : index
    %c4_136 = arith.constant 4 : index
    %c0_137 = arith.constant 0 : index
    %135 = vector.load %arg13[%c0_134, %c3_135, %c4_136, %c0_137] : memref<1x12x12x128xf32, #tpu.memory_space<vmem>>, vector<1x8x8x128xf32>
    %136 = vector.shape_cast %135 : vector<1x8x8x128xf32> to vector<64x128xf32>
    %137 = arith.truncf %136 : vector<64x128xf32> to vector<64x128xbf16>
    %c19 = arith.constant 19 : index
    %c0_138 = arith.constant 0 : index
    %c0_139 = arith.constant 0 : index
    %138 = vector.load %arg4[%c19, %c0_138, %c0_139] : memref<25x128x128xbf16, #tpu.memory_space<vmem>>, vector<1x128x128xbf16>
    %139 = vector.shape_cast %138 : vector<1x128x128xbf16> to vector<128x128xbf16>
    %cst_140 = arith.constant dense<0.000000e+00> : vector<64x128xf32>
    %140 = tpu.matmul %137, %139, %cst_140 {dimension_numbers = #tpu.dot_dimension_numbers<[1], [0], [0], [1], [0, 0, 1, 1], [], []>} : vector<64x128xbf16>, vector<128x128xbf16>, vector<64x128xf32> -> vector<64x128xf32>
    %141 = arith.addf %134, %140 : vector<64x128xf32>
    %c0_141 = arith.constant 0 : index
    %c4_142 = arith.constant 4 : index
    %c0_143 = arith.constant 0 : index
    %c0_144 = arith.constant 0 : index
    %142 = vector.load %arg13[%c0_141, %c4_142, %c0_143, %c0_144] : memref<1x12x12x128xf32, #tpu.memory_space<vmem>>, vector<1x8x8x128xf32>
    %143 = vector.shape_cast %142 : vector<1x8x8x128xf32> to vector<64x128xf32>
    %144 = arith.truncf %143 : vector<64x128xf32> to vector<64x128xbf16>
    %c20 = arith.constant 20 : index
    %c0_145 = arith.constant 0 : index
    %c0_146 = arith.constant 0 : index
    %145 = vector.load %arg4[%c20, %c0_145, %c0_146] : memref<25x128x128xbf16, #tpu.memory_space<vmem>>, vector<1x128x128xbf16>
    %146 = vector.shape_cast %145 : vector<1x128x128xbf16> to vector<128x128xbf16>
    %cst_147 = arith.constant dense<0.000000e+00> : vector<64x128xf32>
    %147 = tpu.matmul %144, %146, %cst_147 {dimension_numbers = #tpu.dot_dimension_numbers<[1], [0], [0], [1], [0, 0, 1, 1], [], []>} : vector<64x128xbf16>, vector<128x128xbf16>, vector<64x128xf32> -> vector<64x128xf32>
    %148 = arith.addf %141, %147 : vector<64x128xf32>
    %c0_148 = arith.constant 0 : index
    %c4_149 = arith.constant 4 : index
    %c1_150 = arith.constant 1 : index
    %c0_151 = arith.constant 0 : index
    %149 = vector.load %arg13[%c0_148, %c4_149, %c1_150, %c0_151] : memref<1x12x12x128xf32, #tpu.memory_space<vmem>>, vector<1x8x8x128xf32>
    %150 = vector.shape_cast %149 : vector<1x8x8x128xf32> to vector<64x128xf32>
    %151 = arith.truncf %150 : vector<64x128xf32> to vector<64x128xbf16>
    %c21 = arith.constant 21 : index
    %c0_152 = arith.constant 0 : index
    %c0_153 = arith.constant 0 : index
    %152 = vector.load %arg4[%c21, %c0_152, %c0_153] : memref<25x128x128xbf16, #tpu.memory_space<vmem>>, vector<1x128x128xbf16>
    %153 = vector.shape_cast %152 : vector<1x128x128xbf16> to vector<128x128xbf16>
    %cst_154 = arith.constant dense<0.000000e+00> : vector<64x128xf32>
    %154 = tpu.matmul %151, %153, %cst_154 {dimension_numbers = #tpu.dot_dimension_numbers<[1], [0], [0], [1], [0, 0, 1, 1], [], []>} : vector<64x128xbf16>, vector<128x128xbf16>, vector<64x128xf32> -> vector<64x128xf32>
    %155 = arith.addf %148, %154 : vector<64x128xf32>
    %c0_155 = arith.constant 0 : index
    %c4_156 = arith.constant 4 : index
    %c2_157 = arith.constant 2 : index
    %c0_158 = arith.constant 0 : index
    %156 = vector.load %arg13[%c0_155, %c4_156, %c2_157, %c0_158] : memref<1x12x12x128xf32, #tpu.memory_space<vmem>>, vector<1x8x8x128xf32>
    %157 = vector.shape_cast %156 : vector<1x8x8x128xf32> to vector<64x128xf32>
    %158 = arith.truncf %157 : vector<64x128xf32> to vector<64x128xbf16>
    %c22 = arith.constant 22 : index
    %c0_159 = arith.constant 0 : index
    %c0_160 = arith.constant 0 : index
    %159 = vector.load %arg4[%c22, %c0_159, %c0_160] : memref<25x128x128xbf16, #tpu.memory_space<vmem>>, vector<1x128x128xbf16>
    %160 = vector.shape_cast %159 : vector<1x128x128xbf16> to vector<128x128xbf16>
    %cst_161 = arith.constant dense<0.000000e+00> : vector<64x128xf32>
    %161 = tpu.matmul %158, %160, %cst_161 {dimension_numbers = #tpu.dot_dimension_numbers<[1], [0], [0], [1], [0, 0, 1, 1], [], []>} : vector<64x128xbf16>, vector<128x128xbf16>, vector<64x128xf32> -> vector<64x128xf32>
    %162 = arith.addf %155, %161 : vector<64x128xf32>
    %c0_162 = arith.constant 0 : index
    %c4_163 = arith.constant 4 : index
    %c3_164 = arith.constant 3 : index
    %c0_165 = arith.constant 0 : index
    %163 = vector.load %arg13[%c0_162, %c4_163, %c3_164, %c0_165] : memref<1x12x12x128xf32, #tpu.memory_space<vmem>>, vector<1x8x8x128xf32>
    %164 = vector.shape_cast %163 : vector<1x8x8x128xf32> to vector<64x128xf32>
    %165 = arith.truncf %164 : vector<64x128xf32> to vector<64x128xbf16>
    %c23 = arith.constant 23 : index
    %c0_166 = arith.constant 0 : index
    %c0_167 = arith.constant 0 : index
    %166 = vector.load %arg4[%c23, %c0_166, %c0_167] : memref<25x128x128xbf16, #tpu.memory_space<vmem>>, vector<1x128x128xbf16>
    %167 = vector.shape_cast %166 : vector<1x128x128xbf16> to vector<128x128xbf16>
    %cst_168 = arith.constant dense<0.000000e+00> : vector<64x128xf32>
    %168 = tpu.matmul %165, %167, %cst_168 {dimension_numbers = #tpu.dot_dimension_numbers<[1], [0], [0], [1], [0, 0, 1, 1], [], []>} : vector<64x128xbf16>, vector<128x128xbf16>, vector<64x128xf32> -> vector<64x128xf32>
    %169 = arith.addf %162, %168 : vector<64x128xf32>
    %c0_169 = arith.constant 0 : index
    %c4_170 = arith.constant 4 : index
    %c4_171 = arith.constant 4 : index
    %c0_172 = arith.constant 0 : index
    %170 = vector.load %arg13[%c0_169, %c4_170, %c4_171, %c0_172] : memref<1x12x12x128xf32, #tpu.memory_space<vmem>>, vector<1x8x8x128xf32>
    %171 = vector.shape_cast %170 : vector<1x8x8x128xf32> to vector<64x128xf32>
    %172 = arith.truncf %171 : vector<64x128xf32> to vector<64x128xbf16>
    %c24 = arith.constant 24 : index
    %c0_173 = arith.constant 0 : index
    %c0_174 = arith.constant 0 : index
    %173 = vector.load %arg4[%c24, %c0_173, %c0_174] : memref<25x128x128xbf16, #tpu.memory_space<vmem>>, vector<1x128x128xbf16>
    %174 = vector.shape_cast %173 : vector<1x128x128xbf16> to vector<128x128xbf16>
    %cst_175 = arith.constant dense<0.000000e+00> : vector<64x128xf32>
    %175 = tpu.matmul %172, %174, %cst_175 {dimension_numbers = #tpu.dot_dimension_numbers<[1], [0], [0], [1], [0, 0, 1, 1], [], []>} : vector<64x128xbf16>, vector<128x128xbf16>, vector<64x128xf32> -> vector<64x128xf32>
    %176 = arith.addf %169, %175 : vector<64x128xf32>
    %177 = vector.shape_cast %176 : vector<64x128xf32> to vector<1x4x2x4x2x128xf32>
    %cst_176 = arith.constant dense<0xFF800000> : vector<1x4x2x4x128xf32>
    %178 = vector.multi_reduction <maximumf>, %177, %cst_176 [4] : vector<1x4x2x4x2x128xf32> to vector<1x4x2x4x128xf32>
    %cst_177 = arith.constant dense<0xFF800000> : vector<1x4x4x128xf32>
    %179 = vector.multi_reduction <maximumf>, %178, %cst_177 [2] : vector<1x4x2x4x128xf32> to vector<1x4x4x128xf32>
    %c0_178 = arith.constant 0 : index
    %c0_179 = arith.constant 0 : index
    %180 = vector.load %arg5[%c0_178, %c0_179] : memref<1x128xf32, #tpu.memory_space<vmem>>, vector<1x128xf32>
    %181 = vector.shape_cast %180 : vector<1x128xf32> to vector<1x1x1x128xf32>
    %182 = vector.broadcast %181 : vector<1x1x1x128xf32> to vector<1x4x4x128xf32>
    %183 = arith.addf %179, %182 : vector<1x4x4x128xf32>
    %cst_180 = arith.constant 0.000000e+00 : f32
    %184 = vector.broadcast %cst_180 : f32 to vector<1x4x4x128xf32>
    %185 = arith.maximumf %183, %184 : vector<1x4x4x128xf32>
    %186 = vector.extract_strided_slice %185 {offsets = [0, 0, 0, 0], sizes = [1, 1, 1, 16], strides = [1, 1, 1, 1]} : vector<1x4x4x128xf32> to vector<1x1x1x16xf32>
    %187 = vector.shape_cast %186 : vector<1x1x1x16xf32> to vector<1x16xf32>
    %c0_181 = arith.constant 0 : index
    %c0_182 = arith.constant 0 : index
    %188 = vector.load %arg14[%c0_181, %c0_182] : memref<1x256xf32, #tpu.memory_space<vmem>>, vector<1x16xf32>
    tpu.vector_store %arg14[%c0_181, %c0_182], %187 {strides = array<i32>} : memref<1x256xf32, #tpu.memory_space<vmem>>, vector<1x16xf32>,
    %189 = vector.extract_strided_slice %185 {offsets = [0, 0, 1, 0], sizes = [1, 1, 1, 16], strides = [1, 1, 1, 1]} : vector<1x4x4x128xf32> to vector<1x1x1x16xf32>
    %190 = vector.shape_cast %189 : vector<1x1x1x16xf32> to vector<1x16xf32>
    %c0_183 = arith.constant 0 : index
    %c16_184 = arith.constant 16 : index
    %191 = vector.load %arg14[%c0_183, %c16_184] : memref<1x256xf32, #tpu.memory_space<vmem>>, vector<1x16xf32>
    tpu.vector_store %arg14[%c0_183, %c16_184], %190 {strides = array<i32>} : memref<1x256xf32, #tpu.memory_space<vmem>>, vector<1x16xf32>,
    %192 = vector.extract_strided_slice %185 {offsets = [0, 0, 2, 0], sizes = [1, 1, 1, 16], strides = [1, 1, 1, 1]} : vector<1x4x4x128xf32> to vector<1x1x1x16xf32>
    %193 = vector.shape_cast %192 : vector<1x1x1x16xf32> to vector<1x16xf32>
    %c0_185 = arith.constant 0 : index
    %c32 = arith.constant 32 : index
    %194 = vector.load %arg14[%c0_185, %c32] : memref<1x256xf32, #tpu.memory_space<vmem>>, vector<1x16xf32>
    tpu.vector_store %arg14[%c0_185, %c32], %193 {strides = array<i32>} : memref<1x256xf32, #tpu.memory_space<vmem>>, vector<1x16xf32>,
    %195 = vector.extract_strided_slice %185 {offsets = [0, 0, 3, 0], sizes = [1, 1, 1, 16], strides = [1, 1, 1, 1]} : vector<1x4x4x128xf32> to vector<1x1x1x16xf32>
    %196 = vector.shape_cast %195 : vector<1x1x1x16xf32> to vector<1x16xf32>
    %c0_186 = arith.constant 0 : index
    %c48 = arith.constant 48 : index
    %197 = vector.load %arg14[%c0_186, %c48] : memref<1x256xf32, #tpu.memory_space<vmem>>, vector<1x16xf32>
    tpu.vector_store %arg14[%c0_186, %c48], %196 {strides = array<i32>} : memref<1x256xf32, #tpu.memory_space<vmem>>, vector<1x16xf32>,
    %198 = vector.extract_strided_slice %185 {offsets = [0, 1, 0, 0], sizes = [1, 1, 1, 16], strides = [1, 1, 1, 1]} : vector<1x4x4x128xf32> to vector<1x1x1x16xf32>
    %199 = vector.shape_cast %198 : vector<1x1x1x16xf32> to vector<1x16xf32>
    %c0_187 = arith.constant 0 : index
    %c64 = arith.constant 64 : index
    %200 = vector.load %arg14[%c0_187, %c64] : memref<1x256xf32, #tpu.memory_space<vmem>>, vector<1x16xf32>
    tpu.vector_store %arg14[%c0_187, %c64], %199 {strides = array<i32>} : memref<1x256xf32, #tpu.memory_space<vmem>>, vector<1x16xf32>,
    %201 = vector.extract_strided_slice %185 {offsets = [0, 1, 1, 0], sizes = [1, 1, 1, 16], strides = [1, 1, 1, 1]} : vector<1x4x4x128xf32> to vector<1x1x1x16xf32>
    %202 = vector.shape_cast %201 : vector<1x1x1x16xf32> to vector<1x16xf32>
    %c0_188 = arith.constant 0 : index
    %c80 = arith.constant 80 : index
    %203 = vector.load %arg14[%c0_188, %c80] : memref<1x256xf32, #tpu.memory_space<vmem>>, vector<1x16xf32>
    tpu.vector_store %arg14[%c0_188, %c80], %202 {strides = array<i32>} : memref<1x256xf32, #tpu.memory_space<vmem>>, vector<1x16xf32>,
    %204 = vector.extract_strided_slice %185 {offsets = [0, 1, 2, 0], sizes = [1, 1, 1, 16], strides = [1, 1, 1, 1]} : vector<1x4x4x128xf32> to vector<1x1x1x16xf32>
    %205 = vector.shape_cast %204 : vector<1x1x1x16xf32> to vector<1x16xf32>
    %c0_189 = arith.constant 0 : index
    %c96 = arith.constant 96 : index
    %206 = vector.load %arg14[%c0_189, %c96] : memref<1x256xf32, #tpu.memory_space<vmem>>, vector<1x16xf32>
    tpu.vector_store %arg14[%c0_189, %c96], %205 {strides = array<i32>} : memref<1x256xf32, #tpu.memory_space<vmem>>, vector<1x16xf32>,
    %207 = vector.extract_strided_slice %185 {offsets = [0, 1, 3, 0], sizes = [1, 1, 1, 16], strides = [1, 1, 1, 1]} : vector<1x4x4x128xf32> to vector<1x1x1x16xf32>
    %208 = vector.shape_cast %207 : vector<1x1x1x16xf32> to vector<1x16xf32>
    %c0_190 = arith.constant 0 : index
    %c112 = arith.constant 112 : index
    %209 = vector.load %arg14[%c0_190, %c112] : memref<1x256xf32, #tpu.memory_space<vmem>>, vector<1x16xf32>
    tpu.vector_store %arg14[%c0_190, %c112], %208 {strides = array<i32>} : memref<1x256xf32, #tpu.memory_space<vmem>>, vector<1x16xf32>,
    %210 = vector.extract_strided_slice %185 {offsets = [0, 2, 0, 0], sizes = [1, 1, 1, 16], strides = [1, 1, 1, 1]} : vector<1x4x4x128xf32> to vector<1x1x1x16xf32>
    %211 = vector.shape_cast %210 : vector<1x1x1x16xf32> to vector<1x16xf32>
    %c0_191 = arith.constant 0 : index
    %c128 = arith.constant 128 : index
    %212 = vector.load %arg14[%c0_191, %c128] : memref<1x256xf32, #tpu.memory_space<vmem>>, vector<1x16xf32>
    tpu.vector_store %arg14[%c0_191, %c128], %211 {strides = array<i32>} : memref<1x256xf32, #tpu.memory_space<vmem>>, vector<1x16xf32>,
    %213 = vector.extract_strided_slice %185 {offsets = [0, 2, 1, 0], sizes = [1, 1, 1, 16], strides = [1, 1, 1, 1]} : vector<1x4x4x128xf32> to vector<1x1x1x16xf32>
    %214 = vector.shape_cast %213 : vector<1x1x1x16xf32> to vector<1x16xf32>
    %c0_192 = arith.constant 0 : index
    %c144 = arith.constant 144 : index
    %215 = vector.load %arg14[%c0_192, %c144] : memref<1x256xf32, #tpu.memory_space<vmem>>, vector<1x16xf32>
    tpu.vector_store %arg14[%c0_192, %c144], %214 {strides = array<i32>} : memref<1x256xf32, #tpu.memory_space<vmem>>, vector<1x16xf32>,
    %216 = vector.extract_strided_slice %185 {offsets = [0, 2, 2, 0], sizes = [1, 1, 1, 16], strides = [1, 1, 1, 1]} : vector<1x4x4x128xf32> to vector<1x1x1x16xf32>
    %217 = vector.shape_cast %216 : vector<1x1x1x16xf32> to vector<1x16xf32>
    %c0_193 = arith.constant 0 : index
    %c160 = arith.constant 160 : index
    %218 = vector.load %arg14[%c0_193, %c160] : memref<1x256xf32, #tpu.memory_space<vmem>>, vector<1x16xf32>
    tpu.vector_store %arg14[%c0_193, %c160], %217 {strides = array<i32>} : memref<1x256xf32, #tpu.memory_space<vmem>>, vector<1x16xf32>,
    %219 = vector.extract_strided_slice %185 {offsets = [0, 2, 3, 0], sizes = [1, 1, 1, 16], strides = [1, 1, 1, 1]} : vector<1x4x4x128xf32> to vector<1x1x1x16xf32>
    %220 = vector.shape_cast %219 : vector<1x1x1x16xf32> to vector<1x16xf32>
    %c0_194 = arith.constant 0 : index
    %c176 = arith.constant 176 : index
    %221 = vector.load %arg14[%c0_194, %c176] : memref<1x256xf32, #tpu.memory_space<vmem>>, vector<1x16xf32>
    tpu.vector_store %arg14[%c0_194, %c176], %220 {strides = array<i32>} : memref<1x256xf32, #tpu.memory_space<vmem>>, vector<1x16xf32>,
    %222 = vector.extract_strided_slice %185 {offsets = [0, 3, 0, 0], sizes = [1, 1, 1, 16], strides = [1, 1, 1, 1]} : vector<1x4x4x128xf32> to vector<1x1x1x16xf32>
    %223 = vector.shape_cast %222 : vector<1x1x1x16xf32> to vector<1x16xf32>
    %c0_195 = arith.constant 0 : index
    %c192 = arith.constant 192 : index
    %224 = vector.load %arg14[%c0_195, %c192] : memref<1x256xf32, #tpu.memory_space<vmem>>, vector<1x16xf32>
    tpu.vector_store %arg14[%c0_195, %c192], %223 {strides = array<i32>} : memref<1x256xf32, #tpu.memory_space<vmem>>, vector<1x16xf32>,
    %225 = vector.extract_strided_slice %185 {offsets = [0, 3, 1, 0], sizes = [1, 1, 1, 16], strides = [1, 1, 1, 1]} : vector<1x4x4x128xf32> to vector<1x1x1x16xf32>
    %226 = vector.shape_cast %225 : vector<1x1x1x16xf32> to vector<1x16xf32>
    %c0_196 = arith.constant 0 : index
    %c208 = arith.constant 208 : index
    %227 = vector.load %arg14[%c0_196, %c208] : memref<1x256xf32, #tpu.memory_space<vmem>>, vector<1x16xf32>
    tpu.vector_store %arg14[%c0_196, %c208], %226 {strides = array<i32>} : memref<1x256xf32, #tpu.memory_space<vmem>>, vector<1x16xf32>,
    %228 = vector.extract_strided_slice %185 {offsets = [0, 3, 2, 0], sizes = [1, 1, 1, 16], strides = [1, 1, 1, 1]} : vector<1x4x4x128xf32> to vector<1x1x1x16xf32>
    %229 = vector.shape_cast %228 : vector<1x1x1x16xf32> to vector<1x16xf32>
    %c0_197 = arith.constant 0 : index
    %c224 = arith.constant 224 : index
    %230 = vector.load %arg14[%c0_197, %c224] : memref<1x256xf32, #tpu.memory_space<vmem>>, vector<1x16xf32>
    tpu.vector_store %arg14[%c0_197, %c224], %229 {strides = array<i32>} : memref<1x256xf32, #tpu.memory_space<vmem>>, vector<1x16xf32>,
    %231 = vector.extract_strided_slice %185 {offsets = [0, 3, 3, 0], sizes = [1, 1, 1, 16], strides = [1, 1, 1, 1]} : vector<1x4x4x128xf32> to vector<1x1x1x16xf32>
    %232 = vector.shape_cast %231 : vector<1x1x1x16xf32> to vector<1x16xf32>
    %c0_198 = arith.constant 0 : index
    %c240 = arith.constant 240 : index
    %233 = vector.load %arg14[%c0_198, %c240] : memref<1x256xf32, #tpu.memory_space<vmem>>, vector<1x16xf32>
    tpu.vector_store %arg14[%c0_198, %c240], %232 {strides = array<i32>} : memref<1x256xf32, #tpu.memory_space<vmem>>, vector<1x16xf32>,
    %c0_199 = arith.constant 0 : index
    %c0_200 = arith.constant 0 : index
    %234 = vector.load %arg14[%c0_199, %c0_200] : memref<1x256xf32, #tpu.memory_space<vmem>>, vector<1x256xf32>
    %235 = arith.truncf %234 : vector<1x256xf32> to vector<1x256xbf16>
    %c0_201 = arith.constant 0 : index
    %c0_202 = arith.constant 0 : index
    %236 = vector.load %arg6[%c0_201, %c0_202] : memref<256x128xbf16, #tpu.memory_space<vmem>>, vector<256x128xbf16>
    %cst_203 = arith.constant dense<0.000000e+00> : vector<1x128xf32>
    %237 = tpu.matmul %235, %236, %cst_203 {dimension_numbers = #tpu.dot_dimension_numbers<[1], [0], [0], [1], [0, 0, 1, 1], [], []>} : vector<1x256xbf16>, vector<256x128xbf16>, vector<1x128xf32> -> vector<1x128xf32>
    %c0_204 = arith.constant 0 : index
    %c0_205 = arith.constant 0 : index
    %238 = vector.load %arg7[%c0_204, %c0_205] : memref<1x128xf32, #tpu.memory_space<vmem>>, vector<1x128xf32>
    %239 = arith.addf %237, %238 : vector<1x128xf32>
    %cst_206 = arith.constant 0.000000e+00 : f32
    %240 = vector.broadcast %cst_206 : f32 to vector<1x128xf32>
    %241 = arith.maximumf %239, %240 : vector<1x128xf32>
    %242 = arith.truncf %241 : vector<1x128xf32> to vector<1x128xbf16>
    %c0_207 = arith.constant 0 : index
    %c0_208 = arith.constant 0 : index
    %243 = vector.load %arg8[%c0_207, %c0_208] : memref<128x128xbf16, #tpu.memory_space<vmem>>, vector<128x128xbf16>
    %cst_209 = arith.constant dense<0.000000e+00> : vector<1x128xf32>
    %244 = tpu.matmul %242, %243, %cst_209 {dimension_numbers = #tpu.dot_dimension_numbers<[1], [0], [0], [1], [0, 0, 1, 1], [], []>} : vector<1x128xbf16>, vector<128x128xbf16>, vector<1x128xf32> -> vector<1x128xf32>
    %c0_210 = arith.constant 0 : index
    %c0_211 = arith.constant 0 : index
    %245 = vector.load %arg9[%c0_210, %c0_211] : memref<1x128xf32, #tpu.memory_space<vmem>>, vector<1x128xf32>
    %246 = arith.addf %244, %245 : vector<1x128xf32>
    %cst_212 = arith.constant 0.000000e+00 : f32
    %247 = vector.broadcast %cst_212 : f32 to vector<1x128xf32>
    %248 = arith.maximumf %246, %247 : vector<1x128xf32>
    %249 = arith.truncf %248 : vector<1x128xf32> to vector<1x128xbf16>
    %c0_213 = arith.constant 0 : index
    %c0_214 = arith.constant 0 : index
    %250 = vector.load %arg10[%c0_213, %c0_214] : memref<128x128xbf16, #tpu.memory_space<vmem>>, vector<128x128xbf16>
    %cst_215 = arith.constant dense<0.000000e+00> : vector<1x128xf32>
    %251 = tpu.matmul %249, %250, %cst_215 {dimension_numbers = #tpu.dot_dimension_numbers<[1], [0], [0], [1], [0, 0, 1, 1], [], []>} : vector<1x128xbf16>, vector<128x128xbf16>, vector<1x128xf32> -> vector<1x128xf32>
    %c0_216 = arith.constant 0 : index
    %c0_217 = arith.constant 0 : index
    %252 = vector.load %arg11[%c0_216, %c0_217] : memref<1x128xf32, #tpu.memory_space<vmem>>, vector<1x128xf32>
    %253 = arith.addf %251, %252 : vector<1x128xf32>
    %254 = tpu.iota {dimensions = array<i32: 1>} : vector<1x128xi32>
    %c10_i32 = arith.constant 10 : i32
    %255 = vector.broadcast %c10_i32 : i32 to vector<1x128xi32>
    %256 = arith.cmpi slt, %254, %255 : vector<1x128xi32>
    %cst_218 = arith.constant -1.000000e+30 : f32
    %257 = vector.broadcast %cst_218 : f32 to vector<1x128xf32>
    %258 = arith.select %256, %253, %257 : vector<1x128xi1>, vector<1x128xf32>
    %cst_219 = arith.constant dense<0xFF800000> : vector<1xf32>
    %259 = vector.multi_reduction <maximumf>, %258, %cst_219 [1] : vector<1x128xf32> to vector<1xf32>
    %260 = vector.shape_cast %259 : vector<1xf32> to vector<1x1xf32>
    %261 = vector.broadcast %260 : vector<1x1xf32> to vector<1x128xf32>
    %262 = arith.subf %253, %261 : vector<1x128xf32>
    %cst_220 = arith.constant 0.000000e+00 : f32
    %263 = vector.broadcast %cst_220 : f32 to vector<1x128xf32>
    %264 = arith.select %256, %262, %263 : vector<1x128xi1>, vector<1x128xf32>
    %265 = math.exp %264 : vector<1x128xf32>
    %cst_221 = arith.constant 0.000000e+00 : f32
    %266 = vector.broadcast %cst_221 : f32 to vector<1x128xf32>
    %267 = arith.select %256, %265, %266 : vector<1x128xi1>, vector<1x128xf32>
    %cst_222 = arith.constant dense<0.000000e+00> : vector<1xf32>
    %268 = vector.multi_reduction <add>, %267, %cst_222 [1] : vector<1x128xf32> to vector<1xf32>
    %269 = vector.shape_cast %268 : vector<1xf32> to vector<1x1xf32>
    %270 = vector.broadcast %269 : vector<1x1xf32> to vector<1x128xf32>
    %271 = arith.divf %267, %270 : vector<1x128xf32>
    %c0_223 = arith.constant 0 : index
    %c0_224 = arith.constant 0 : index
    %c0_225 = arith.constant 0 : index
    %272 = vector.load %arg12[%c0_223, %c0_224, %c0_225] : memref<1x1x128xf32, #tpu.memory_space<vmem>>, vector<1x1x128xf32>
    %273 = vector.shape_cast %272 : vector<1x1x128xf32> to vector<1x128xf32>
    %274 = vector.shape_cast %271 : vector<1x128xf32> to vector<1x1x128xf32>
    tpu.vector_store %arg12[%c0_223, %c0_224, %c0_225], %274 {strides = array<i32>} : memref<1x1x128xf32, #tpu.memory_space<vmem>>, vector<1x1x128xf32>,
    return
  }
  func.func @transform_0(%arg0: i32) -> (i32, i32, i32, i32) {
    %c0_i32 = arith.constant 0 : i32
    %c0_i32_0 = arith.constant 0 : i32
    %c0_i32_1 = arith.constant 0 : i32
    %c0_i32_2 = arith.constant 0 : i32
    return %arg0, %c0_i32, %c0_i32_0, %c0_i32_1 : i32, i32, i32, i32
  }
  func.func @transform_1(%arg0: i32) -> (i32, i32, i32) {
    %c0_i32 = arith.constant 0 : i32
    %c0_i32_0 = arith.constant 0 : i32
    %c0_i32_1 = arith.constant 0 : i32
    %c0_i32_2 = arith.constant 0 : i32
    return %c0_i32, %c0_i32_0, %c0_i32_1 : i32, i32, i32
  }
  func.func @transform_2(%arg0: i32) -> (i32, i32) {
    %c0_i32 = arith.constant 0 : i32
    %c0_i32_0 = arith.constant 0 : i32
    %c0_i32_1 = arith.constant 0 : i32
    return %c0_i32, %c0_i32_0 : i32, i32
  }
  func.func @transform_3(%arg0: i32) -> (i32, i32, i32) {
    %c0_i32 = arith.constant 0 : i32
    %c0_i32_0 = arith.constant 0 : i32
    %c0_i32_1 = arith.constant 0 : i32
    %c0_i32_2 = arith.constant 0 : i32
    return %c0_i32, %c0_i32_0, %c0_i32_1 : i32, i32, i32
  }
  func.func @transform_4(%arg0: i32) -> (i32, i32) {
    %c0_i32 = arith.constant 0 : i32
    %c0_i32_0 = arith.constant 0 : i32
    %c0_i32_1 = arith.constant 0 : i32
    return %c0_i32, %c0_i32_0 : i32, i32
  }
  func.func @transform_5(%arg0: i32) -> (i32, i32) {
    %c0_i32 = arith.constant 0 : i32
    %c0_i32_0 = arith.constant 0 : i32
    %c0_i32_1 = arith.constant 0 : i32
    return %c0_i32, %c0_i32_0 : i32, i32
  }
  func.func @transform_6(%arg0: i32) -> (i32, i32) {
    %c0_i32 = arith.constant 0 : i32
    %c0_i32_0 = arith.constant 0 : i32
    %c0_i32_1 = arith.constant 0 : i32
    return %c0_i32, %c0_i32_0 : i32, i32
  }
  func.func @transform_7(%arg0: i32) -> (i32, i32) {
    %c0_i32 = arith.constant 0 : i32
    %c0_i32_0 = arith.constant 0 : i32
    %c0_i32_1 = arith.constant 0 : i32
    return %c0_i32, %c0_i32_0 : i32, i32
  }
  func.func @transform_8(%arg0: i32) -> (i32, i32) {
    %c0_i32 = arith.constant 0 : i32
    %c0_i32_0 = arith.constant 0 : i32
    %c0_i32_1 = arith.constant 0 : i32
    return %c0_i32, %c0_i32_0 : i32, i32
  }
  func.func @transform_9(%arg0: i32) -> (i32, i32) {
    %c0_i32 = arith.constant 0 : i32
    %c0_i32_0 = arith.constant 0 : i32
    %c0_i32_1 = arith.constant 0 : i32
    return %c0_i32, %c0_i32_0 : i32, i32
  }
  func.func @transform_10(%arg0: i32) -> (i32, i32) {
    %c0_i32 = arith.constant 0 : i32
    %c0_i32_0 = arith.constant 0 : i32
    %c0_i32_1 = arith.constant 0 : i32
    return %c0_i32, %c0_i32_0 : i32, i32
  }
  func.func @transform_11(%arg0: i32) -> (i32, i32, i32) {
    %c0_i32 = arith.constant 0 : i32
    %c0_i32_0 = arith.constant 0 : i32
    %c0_i32_1 = arith.constant 0 : i32
    return %arg0, %c0_i32, %c0_i32_0 : i32, i32, i32
  }
}

</mosaic_0001>

<llo_original>
// kernel: net_dropout_forward.1
$region0: #{net_dropout_forward.1}
  #allocation0 [shape = 'u32[]', space=smem, size = 0x4, offset = 0x4, fixed_abs, tag = 'smem constant byte address 0x4 - core index']
  #allocation1 [shape = 'u32[144,128]{1,0:T(1,128)}', space=vmem, size = 0x12000, scoped, tag = 'internal scratch']
  #allocation2 [shape = 'f32[1,12,12,128]{3,2,1,0:T(8,128)}', space=vmem, size = 0x18000, scoped, tag = 'scratch operand']
  #allocation3 [shape = 'f32[1,256]{1,0:T(1,128)}', space=vmem, size = 0x400, scoped, tag = 'scratch operand']
  %s0 = inlined_call_operand.vmem [shape: f32[2,28,28,1], index: 0, kind: input, shape index: {}]
  %s1 = inlined_call_operand.vmem [shape: f32[25,1,128], index: 1, kind: input, shape index: {}]
  %s2 = inlined_call_operand.vmem [shape: f32[1,128], index: 2, kind: input, shape index: {}]
  %s3 = inlined_call_operand.vmem [shape: bf16[25,128,128], index: 3, kind: input, shape index: {}]
  %s4 = inlined_call_operand.vmem [shape: f32[1,128], index: 4, kind: input, shape index: {}]
  %s5 = inlined_call_operand.vmem [shape: bf16[256,128], index: 5, kind: input, shape index: {}]
  %s6 = inlined_call_operand.vmem [shape: f32[1,128], index: 6, kind: input, shape index: {}]
  %s7 = inlined_call_operand.vmem [shape: bf16[128,128], index: 7, kind: input, shape index: {}]
  %s8 = inlined_call_operand.vmem [shape: f32[1,128], index: 8, kind: input, shape index: {}]
  %s9 = inlined_call_operand.vmem [shape: bf16[128,128], index: 9, kind: input, shape index: {}]
  %s10 = inlined_call_operand.vmem [shape: f32[1,128], index: 10, kind: input, shape index: {}]
  %s11 = inlined_call_operand.hbm [shape: f32[2,1,128], index: 11, kind: output, shape index: {}]
  %s12 = sld [smem:[#allocation0]]
  $region84: #{net_dropout_forward.1} parent=0
    _
  %s14 = ssub.s32 1, %s12
  %s15 = scalar_select 0, %s14, %s12
  $region1: #{net_dropout_forward.1} parent=0
    #allocation4 [shape = 'u8[1024]{0}', space=vmem, size = 0x400, scoped, tag = 'output window, operand 0']
    #allocation5 [shape = 's32[2]{0}', space=sflag, size = 0x8, scoped, tag = 'scoped memory for net_dropout_forward.1']
    %16 = vsyncpa [#allocation5], 0
    %s17 = scalar_lea.sflag [#allocation5], 1
    %18 = vsyncpa %s17, 0
    loop: start=0, step=1, limit=4
    $region2: #{net_dropout_forward.1} parent=1 // loop_pre_header
      _
    $region3: #{net_dropout_forward.1} parent=1 // loop_header
      %s20 = sphi 0, %s24
      %p21 = scmp.ge.s32.totalorder %s20, 4
      %s30 = sphi 0, %s32
      %s33 = sphi 0, %s30
      %s34 = sphi 0, %s33
      %s50 = sphi 0, %s34
      %s54 = sphi 0, %s54
      %s56 = sphi 0, %s54
      %s57 = sphi 0, %s56
      %s71 = sphi 0, %s57
      %s75 = sphi 0, %s75
      %s77 = sphi 0, %s75
      %s78 = sphi 0, %s77
      %s92 = sphi 0, %s78
      %s96 = sphi 0, %s96
      %s98 = sphi 0, %s96
      %s99 = sphi 0, %s98
      %s113 = sphi 0, %s99
      %s117 = sphi 0, %s117
      %s119 = sphi 0, %s117
      %s120 = sphi 0, %s119
      %s134 = sphi 0, %s120
      %s138 = sphi 0, %s138
      %s140 = sphi 0, %s138
      %s141 = sphi 0, %s140
      %s155 = sphi 0, %s141
      %s159 = sphi 0, %s159
      %s161 = sphi 0, %s159
      %s162 = sphi 0, %s161
      %s176 = sphi 0, %s162
      %s180 = sphi 0, %s180
      %s182 = sphi 0, %s180
      %s183 = sphi 0, %s182
      %s197 = sphi 0, %s183
      %s201 = sphi 0, %s201
      %s203 = sphi 0, %s201
      %s204 = sphi 0, %s203
      %s218 = sphi 0, %s204
      %s222 = sphi 0, %s222
      %s224 = sphi 0, %s222
      %s225 = sphi 0, %s224
      %s239 = sphi 0, %s225
      %s243 = sphi 0, %s243
      %s245 = sphi 0, %s243
      %s246 = sphi 0, %s245
      %s260 = sphi 0, %s246
      %s266 = sphi 0, %s268
      %s269 = sphi 0, %s266
      %s270 = sphi 0, %s269
      %s286 = sphi 0, %s270
    $region4: #{net_dropout_forward.1} parent=1 // loop_header_branch
      %23 = sbr.rel (%p21) target = $region8
    $region5: #{net_dropout_forward.1} parent=1 // loop_body
      %s25 = ssub.s32 %s20, 1
      %s26 = ssub.s32 %s20, 2
      %s27 = sadd.s32 %s20, 1
      %s28 = ssub.s32 %s20, %s27
      %p29 = scmp.eq.s32.totalorder %s28, 0
      %s31 = sadd.s32 %s30, 1
      %s32 = scalar_select %p29, %s30, %s31
      %p35 = pneg %p29
      %p36 = scmp.eq.s32.totalorder %s20, 1
      %p37 = por %p35, %p36
      %p38 = scmp.ne.s32.totalorder %s30, %s33
      %p39 = scmp.eq.s32.totalorder %s20, 0
      %p40 = por %p38, %p39
      %p41 = scmp.ne.s32.totalorder %s30, %s33
      %p42 = scmp.eq.s32.totalorder %s25, 1
      %p43 = por %p41, %p42
      %p44 = scmp.ne.s32.totalorder %s33, %s34
      %p45 = scmp.eq.s32.totalorder %s25, 0
      %p46 = por %p44, %p45
      %p47 = scmp.ne.s32.totalorder %s33, %s34
      %p48 = scmp.eq.s32.totalorder %s26, 1
      %p49 = por %p47, %p48
      %p51 = scmp.ne.s32.totalorder %s34, %s50
      %p52 = scmp.eq.s32.totalorder %s26, 0
      %p53 = por %p51, %p52
      %s55 = sadd.s32 %s54, 1
      %p58 = scmp.eq.s32.totalorder %s20, 1
      %p59 = scmp.ne.s32.totalorder %s54, %s56
      %p60 = scmp.eq.s32.totalorder %s20, 0
      %p61 = por %p59, %p60
      %p62 = scmp.ne.s32.totalorder %s54, %s56
      %p63 = scmp.eq.s32.totalorder %s25, 1
      %p64 = por %p62, %p63
      %p65 = scmp.ne.s32.totalorder %s56, %s57
      %p66 = scmp.eq.s32.totalorder %s25, 0
      %p67 = por %p65, %p66
      %p68 = scmp.ne.s32.totalorder %s56, %s57
      %p69 = scmp.eq.s32.totalorder %s26, 1
      %p70 = por %p68, %p69
      %p72 = scmp.ne.s32.totalorder %s57, %s71
      %p73 = scmp.eq.s32.totalorder %s26, 0
      %p74 = por %p72, %p73
      %s76 = sadd.s32 %s75, 1
      %p79 = scmp.eq.s32.totalorder %s20, 1
      %p80 = scmp.ne.s32.totalorder %s75, %s77
      %p81 = scmp.eq.s32.totalorder %s20, 0
      %p82 = por %p80, %p81
      %p83 = scmp.ne.s32.totalorder %s75, %s77
      %p84 = scmp.eq.s32.totalorder %s25, 1
      %p85 = por %p83, %p84
      %p86 = scmp.ne.s32.totalorder %s77, %s78
      %p87 = scmp.eq.s32.totalorder %s25, 0
      %p88 = por %p86, %p87
      %p89 = scmp.ne.s32.totalorder %s77, %s78
      %p90 = scmp.eq.s32.totalorder %s26, 1
      %p91 = por %p89, %p90
      %p93 = scmp.ne.s32.totalorder %s78, %s92
      %p94 = scmp.eq.s32.totalorder %s26, 0
      %p95 = por %p93, %p94
      %s97 = sadd.s32 %s96, 1
      %p100 = scmp.eq.s32.totalorder %s20, 1
      %p101 = scmp.ne.s32.totalorder %s96, %s98
      %p102 = scmp.eq.s32.totalorder %s20, 0
      %p103 = por %p101, %p102
      %p104 = scmp.ne.s32.totalorder %s96, %s98
      %p105 = scmp.eq.s32.totalorder %s25, 1
      %p106 = por %p104, %p105
      %p107 = scmp.ne.s32.totalorder %s98, %s99
      %p108 = scmp.eq.s32.totalorder %s25, 0
      %p109 = por %p107, %p108
      %p110 = scmp.ne.s32.totalorder %s98, %s99
      %p111 = scmp.eq.s32.totalorder %s26, 1
      %p112 = por %p110, %p111
      %p114 = scmp.ne.s32.totalorder %s99, %s113
      %p115 = scmp.eq.s32.totalorder %s26, 0
      %p116 = por %p114, %p115
      %s118 = sadd.s32 %s117, 1
      %p121 = scmp.eq.s32.totalorder %s20, 1
      %p122 = scmp.ne.s32.totalorder %s117, %s119
      %p123 = scmp.eq.s32.totalorder %s20, 0
      %p124 = por %p122, %p123
      %p125 = scmp.ne.s32.totalorder %s117, %s119
      %p126 = scmp.eq.s32.totalorder %s25, 1
      %p127 = por %p125, %p126
      %p128 = scmp.ne.s32.totalorder %s119, %s120
      %p129 = scmp.eq.s32.totalorder %s25, 0
      %p130 = por %p128, %p129
      %p131 = scmp.ne.s32.totalorder %s119, %s120
      %p132 = scmp.eq.s32.totalorder %s26, 1
      %p133 = por %p131, %p132
      %p135 = scmp.ne.s32.totalorder %s120, %s134
      %p136 = scmp.eq.s32.totalorder %s26, 0
      %p137 = por %p135, %p136
      %s139 = sadd.s32 %s138, 1
      %p142 = scmp.eq.s32.totalorder %s20, 1
      %p143 = scmp.ne.s32.totalorder %s138, %s140
      %p144 = scmp.eq.s32.totalorder %s20, 0
      %p145 = por %p143, %p144
      %p146 = scmp.ne.s32.totalorder %s138, %s140
      %p147 = scmp.eq.s32.totalorder %s25, 1
      %p148 = por %p146, %p147
      %p149 = scmp.ne.s32.totalorder %s140, %s141
      %p150 = scmp.eq.s32.totalorder %s25, 0
      %p151 = por %p149, %p150
      %p152 = scmp.ne.s32.totalorder %s140, %s141
      %p153 = scmp.eq.s32.totalorder %s26, 1
      %p154 = por %p152, %p153
      %p156 = scmp.ne.s32.totalorder %s141, %s155
      %p157 = scmp.eq.s32.totalorder %s26, 0
      %p158 = por %p156, %p157
      %s160 = sadd.s32 %s159, 1
      %p163 = scmp.eq.s32.totalorder %s20, 1
      %p164 = scmp.ne.s32.totalorder %s159, %s161
      %p165 = scmp.eq.s32.totalorder %s20, 0
      %p166 = por %p164, %p165
      %p167 = scmp.ne.s32.totalorder %s159, %s161
      %p168 = scmp.eq.s32.totalorder %s25, 1
      %p169 = por %p167, %p168
      %p170 = scmp.ne.s32.totalorder %s161, %s162
      %p171 = scmp.eq.s32.totalorder %s25, 0
      %p172 = por %p170, %p171
      %p173 = scmp.ne.s32.totalorder %s161, %s162
      %p174 = scmp.eq.s32.totalorder %s26, 1
      %p175 = por %p173, %p174
      %p177 = scmp.ne.s32.totalorder %s162, %s176
      %p178 = scmp.eq.s32.totalorder %s26, 0
      %p179 = por %p177, %p178
      %s181 = sadd.s32 %s180, 1
      %p184 = scmp.eq.s32.totalorder %s20, 1
      %p185 = scmp.ne.s32.totalorder %s180, %s182
      %p186 = scmp.eq.s32.totalorder %s20, 0
      %p187 = por %p185, %p186
      %p188 = scmp.ne.s32.totalorder %s180, %s182
      %p189 = scmp.eq.s32.totalorder %s25, 1
      %p190 = por %p188, %p189
      %p191 = scmp.ne.s32.totalorder %s182, %s183
      %p192 = scmp.eq.s32.totalorder %s25, 0
      %p193 = por %p191, %p192
      %p194 = scmp.ne.s32.totalorder %s182, %s183
      %p195 = scmp.eq.s32.totalorder %s26, 1
      %p196 = por %p194, %p195
      %p198 = scmp.ne.s32.totalorder %s183, %s197
      %p199 = scmp.eq.s32.totalorder %s26, 0
      %p200 = por %p198, %p199
      %s202 = sadd.s32 %s201, 1
      %p205 = scmp.eq.s32.totalorder %s20, 1
      %p206 = scmp.ne.s32.totalorder %s201, %s203
      %p207 = scmp.eq.s32.totalorder %s20, 0
      %p208 = por %p206, %p207
      %p209 = scmp.ne.s32.totalorder %s201, %s203
      %p210 = scmp.eq.s32.totalorder %s25, 1
      %p211 = por %p209, %p210
      %p212 = scmp.ne.s32.totalorder %s203, %s204
      %p213 = scmp.eq.s32.totalorder %s25, 0
      %p214 = por %p212, %p213
      %p215 = scmp.ne.s32.totalorder %s203, %s204
      %p216 = scmp.eq.s32.totalorder %s26, 1
      %p217 = por %p215, %p216
      %p219 = scmp.ne.s32.totalorder %s204, %s218
      %p220 = scmp.eq.s32.totalorder %s26, 0
      %p221 = por %p219, %p220
      %s223 = sadd.s32 %s222, 1
      %p226 = scmp.eq.s32.totalorder %s20, 1
      %p227 = scmp.ne.s32.totalorder %s222, %s224
      %p228 = scmp.eq.s32.totalorder %s20, 0
      %p229 = por %p227, %p228
      %p230 = scmp.ne.s32.totalorder %s222, %s224
      %p231 = scmp.eq.s32.totalorder %s25, 1
      %p232 = por %p230, %p231
      %p233 = scmp.ne.s32.totalorder %s224, %s225
      %p234 = scmp.eq.s32.totalorder %s25, 0
      %p235 = por %p233, %p234
      %p236 = scmp.ne.s32.totalorder %s224, %s225
      %p237 = scmp.eq.s32.totalorder %s26, 1
      %p238 = por %p236, %p237
      %p240 = scmp.ne.s32.totalorder %s225, %s239
      %p241 = scmp.eq.s32.totalorder %s26, 0
      %p242 = por %p240, %p241
      %s244 = sadd.s32 %s243, 1
      %p247 = scmp.eq.s32.totalorder %s20, 1
      %p248 = scmp.ne.s32.totalorder %s243, %s245
      %p249 = scmp.eq.s32.totalorder %s20, 0
      %p250 = por %p248, %p249
      %p251 = scmp.ne.s32.totalorder %s243, %s245
      %p252 = scmp.eq.s32.totalorder %s25, 1
      %p253 = por %p251, %p252
      %p254 = scmp.ne.s32.totalorder %s245, %s246
      %p255 = scmp.eq.s32.totalorder %s25, 0
      %p256 = por %p254, %p255
      %p257 = scmp.ne.s32.totalorder %s245, %s246
      %p258 = scmp.eq.s32.totalorder %s26, 1
      %p259 = por %p257, %p258
      %p261 = scmp.ne.s32.totalorder %s246, %s260
      %p262 = scmp.eq.s32.totalorder %s26, 0
      %p263 = por %p261, %p262
      %s264 = ssub.s32 %s20, %s27
      %p265 = scmp.eq.s32.totalorder %s264, 0
      %s267 = sadd.s32 %s266, 1
      %s268 = scalar_select %p265, %s266, %s267
      %p271 = pneg %p265
      %p272 = scmp.eq.s32.totalorder %s20, 1
      %p273 = por %p271, %p272
      %p274 = scmp.ne.s32.totalorder %s266, %s269
      %p275 = scmp.eq.s32.totalorder %s20, 0
      %p276 = por %p274, %p275
      %p277 = scmp.ne.s32.totalorder %s266, %s269
      %p278 = scmp.eq.s32.totalorder %s25, 1
      %p279 = por %p277, %p278
      %p280 = scmp.ne.s32.totalorder %s269, %s270
      %p281 = scmp.eq.s32.totalorder %s25, 0
      %p282 = por %p280, %p281
      %p283 = scmp.ne.s32.totalorder %s269, %s270
      %p284 = scmp.eq.s32.totalorder %s26, 1
      %p285 = por %p283, %p284
      %p287 = scmp.ne.s32.totalorder %s270, %s286
      %p288 = scmp.eq.s32.totalorder %s26, 0
      %p289 = por %p287, %p288
      %p290 = scmp.le.s32.totalorder 1, %s20
      %p291 = scmp.lt.s32.totalorder %s20, 3
      %p292 = pnand %p290, %p291
      %p293 = pneg %p292
      // Predicated region
      $region9: #{net_dropout_forward.1} parent=5 // pred_check
        _
      $region10: #{net_dropout_forward.1} parent=5 // pred_check_branch
        %295 = sbr.rel (%p292) target = $region12
      $region11: #{net_dropout_forward.1} parent=5 // pred_region
        %s296 = ssub.s32 %s20, 1
        // Predicated region
        $region13: #{net_dropout_forward.1} parent=11 // pred_check
          %p297 = pneg %p67
        $region14: #{net_dropout_forward.1} parent=11 // pred_check_branch
          %299 = sbr.rel (%p297) target = $region16
        $region15: #{net_dropout_forward.1} parent=11 // pred_region
          _
        $region16: #{net_dropout_forward.1} parent=11 // pred_fallthru
          _
        // Predicated region
        $region17: #{net_dropout_forward.1} parent=11 // pred_check
          %p300 = pneg %p88
        $region18: #{net_dropout_forward.1} parent=11 // pred_check_branch
          %302 = sbr.rel (%p300) target = $region20
        $region19: #{net_dropout_forward.1} parent=11 // pred_region
          _
        $region20: #{net_dropout_forward.1} parent=11 // pred_fallthru
          _
        // Predicated region
        $region21: #{net_dropout_forward.1} parent=11 // pred_check
          %p303 = pneg %p109
        $region22: #{net_dropout_forward.1} parent=11 // pred_check_branch
          %305 = sbr.rel (%p303) target = $region24
        $region23: #{net_dropout_forward.1} parent=11 // pred_region
          _
        $region24: #{net_dropout_forward.1} parent=11 // pred_fallthru
          _
        // Predicated region
        $region25: #{net_dropout_forward.1} parent=11 // pred_check
          %p306 = pneg %p130
        $region26: #{net_dropout_forward.1} parent=11 // pred_check_branch
          %308 = sbr.rel (%p306) target = $region28
        $region27: #{net_dropout_forward.1} parent=11 // pred_region
          _
        $region28: #{net_dropout_forward.1} parent=11 // pred_fallthru
          _
        // Predicated region
        $region29: #{net_dropout_forward.1} parent=11 // pred_check
          %p309 = pneg %p151
        $region30: #{net_dropout_forward.1} parent=11 // pred_check_branch
          %311 = sbr.rel (%p309) target = $region32
        $region31: #{net_dropout_forward.1} parent=11 // pred_region
          _
        $region32: #{net_dropout_forward.1} parent=11 // pred_fallthru
          _
        // Predicated region
        $region33: #{net_dropout_forward.1} parent=11 // pred_check
          %p312 = pneg %p172
        $region34: #{net_dropout_forward.1} parent=11 // pred_check_branch
          %314 = sbr.rel (%p312) target = $region36
        $region35: #{net_dropout_forward.1} parent=11 // pred_region
          _
        $region36: #{net_dropout_forward.1} parent=11 // pred_fallthru
          _
        // Predicated region
        $region37: #{net_dropout_forward.1} parent=11 // pred_check
          %p315 = pneg %p193
        $region38: #{net_dropout_forward.1} parent=11 // pred_check_branch
          %317 = sbr.rel (%p315) target = $region40
        $region39: #{net_dropout_forward.1} parent=11 // pred_region
          _
        $region40: #{net_dropout_forward.1} parent=11 // pred_fallthru
          _
        // Predicated region
        $region41: #{net_dropout_forward.1} parent=11 // pred_check
          %p318 = pneg %p214
        $region42: #{net_dropout_forward.1} parent=11 // pred_check_branch
          %320 = sbr.rel (%p318) target = $region44
        $region43: #{net_dropout_forward.1} parent=11 // pred_region
          _
        $region44: #{net_dropout_forward.1} parent=11 // pred_fallthru
          _
        // Predicated region
        $region45: #{net_dropout_forward.1} parent=11 // pred_check
          %p321 = pneg %p235
        $region46: #{net_dropout_forward.1} parent=11 // pred_check_branch
          %323 = sbr.rel (%p321) target = $region48
        $region47: #{net_dropout_forward.1} parent=11 // pred_region
          _
        $region48: #{net_dropout_forward.1} parent=11 // pred_fallthru
          _
        // Predicated region
        $region49: #{net_dropout_forward.1} parent=11 // pred_check
          %p324 = pneg %p256
        $region50: #{net_dropout_forward.1} parent=11 // pred_check_branch
          %326 = sbr.rel (%p324) target = $region52
        $region51: #{net_dropout_forward.1} parent=11 // pred_region
          _
        $region52: #{net_dropout_forward.1} parent=11 // pred_fallthru
          _
      $region12: #{net_dropout_forward.1} parent=5 // pred_fallthru
        _
      %p327 = scmp.lt.s32.totalorder %s20, 2
      // Predicated region
      $region53: #{net_dropout_forward.1} parent=5 // pred_check
        %p328 = pneg %p327
      $region54: #{net_dropout_forward.1} parent=5 // pred_check_branch
        %330 = sbr.rel (%p328) target = $region56
      $region55: #{net_dropout_forward.1} parent=5 // pred_region
        // Predicated region
        $region57: #{net_dropout_forward.1} parent=55 // pred_check
          %p331 = pneg %p40
        $region58: #{net_dropout_forward.1} parent=55 // pred_check_branch
          %333 = sbr.rel (%p331) target = $region60
        $region59: #{net_dropout_forward.1} parent=55 // pred_region
          %p334 = scmp.lt.s32.totalorder %s20, 1
          %s335 = scalar_select %p334, %s20, 1
          %s336 = smul.addr %s335, 112
          %s337 = smul.addr %s336, 8
          %s338 = scalar_lea.vmem %s0, %s337
        $region60: #{net_dropout_forward.1} parent=55 // pred_fallthru
          _
      $region56: #{net_dropout_forward.1} parent=5 // pred_fallthru
        _
      %p339 = scmp.le.s32.totalorder 1, %s20
      %p340 = scmp.lt.s32.totalorder %s20, 3
      %p341 = pnand %p339, %p340
      %p342 = pneg %p341
      // Predicated region
      $region61: #{net_dropout_forward.1} parent=5 // pred_check
        _
      $region62: #{net_dropout_forward.1} parent=5 // pred_check_branch
        %344 = sbr.rel (%p341) target = $region64
      $region63: #{net_dropout_forward.1} parent=5 // pred_region
        %s345 = ssub.s32 %s20, 1
        %p346 = scmp.lt.s32.totalorder %s25, 1
        %s347 = scalar_select %p346, %s25, 1
        %s348 = smul.addr %s347, 112
        %s349 = smul.addr %s348, 8
        %s350 = scalar_lea.vmem %s0, %s349
        %p351 = pneg %p46
        %p352 = pneg %p43
        %p353 = pneg %p67
        %p354 = pneg %p64
        %p355 = pneg %p88
        %p356 = pneg %p85
        %p357 = pneg %p109
        %p358 = pneg %p106
        %p359 = pneg %p130
        %p360 = pneg %p127
        %p361 = pneg %p151
        %p362 = pneg %p148
        %p363 = pneg %p172
        %p364 = pneg %p169
        %p365 = pneg %p193
        %p366 = pneg %p190
        %p367 = pneg %p214
        %p368 = pneg %p211
        %p369 = pneg %p235
        %p370 = pneg %p232
        %p371 = pneg %p256
        %p372 = pneg %p253
        %p373 = pneg %p282
        %p374 = pneg %p279
        %s375 = sand.u32 %s269, 1
        %s376 = scalar_lea.sflag [#allocation5], %s375
        %s377 = sand.u32 %s269, 1
        %s378 = scalar_lea.vmem [#allocation4], %s377
        %p379 = scmp.lt.s32.totalorder %s25, 1
        %s380 = scalar_select %p379, %s25, 1
        %s381 = smul.addr %s380, 112
        %s382 = smul.addr %s381, 8
        %s383 = scalar_lea.vmem %s0, %s382
        loop: start=0, step=1, limit=12
        $region65: #{net_dropout_forward.1} parent=63 // loop_pre_header
          _
        $region66: #{net_dropout_forward.1} parent=63 // loop_header
          %s386 = sphi 0, %s390
          %p387 = scmp.ge.s32.totalorder %s386, 12
        $region67: #{net_dropout_forward.1} parent=63 // loop_header_branch
          %389 = sbr.rel (%p387) target = $region71
        $region68: #{net_dropout_forward.1} parent=63 // loop_body
          %s391 = smul.u32 %s386, 2
          %v392 = vld [vmem:[%s1] sm:$0x1]
          %s393 = smul.u32 %s391, 32
          %s394 = scalar_lea.vmem %s383, %s393
          %v395 = vld [vmem:[%s394] sm:$0xff]
          %v396 = vld [vmem:[%s394 + $0x8] sm:$0xff]
          %v397 = vld [vmem:[%s394 + $0x10] sm:$0xff]
          %399 = vset.pattern.permute.xlu0 0
          %400 = vperm.xlu0 %399, %v395
          %v401 = vpop.permute.xlu0 %400
          %404 = vset.pattern.permute.xlu0 0
          %405 = vperm.xlu0 %404, %v396
          %v406 = vpop.permute.xlu0 %405
          %409 = vset.pattern.permute.xlu0 0
          %410 = vperm.xlu0 %409, %v397
          %v411 = vpop.permute.xlu0 %410
          %v414 = vlaneseq
          %v415 = vshrl.u32 %v414, 7
          %v416 = vsub.s32 0, %v415
          %v417 = vrot.slane %v392, %v416
          %v419 = vmul.f32 %v401, %v417
          %v420 = vmul.f32 %v406, %v417
          %v421 = vmul.f32 %v411, %v417
          %v422 = vadd.f32 %v419, 0.0
          %v423 = vadd.f32 %v420, 0.0
          %v424 = vadd.f32 %v421, 0.0
          %s425 = sadd.s32 %s391, 1
          %s426 = smul.u32 %s425, 32
          %s427 = scalar_lea.vmem %s383, %s426
          %v428 = vld [vmem:[%s427] sm:$0xff]
          %v429 = vld [vmem:[%s427 + $0x8] sm:$0xff]
          %v430 = vld [vmem:[%s427 + $0x10] sm:$0xff]
          %432 = vset.pattern.permute.xlu0 0
          %433 = vperm.xlu0 %432, %v428
          %v434 = vpop.permute.xlu0 %433
          %437 = vset.pattern.permute.xlu0 0
          %438 = vperm.xlu0 %437, %v429
          %v439 = vpop.permute.xlu0 %438
          %442 = vset.pattern.permute.xlu0 0
          %443 = vperm.xlu0 %442, %v430
          %v444 = vpop.permute.xlu0 %443
          %v446 = vmul.f32 %v434, %v417
          %v447 = vmul.f32 %v439, %v417
          %v448 = vmul.f32 %v444, %v417
          %v449 = vadd.f32 %v446, 0.0
          %v450 = vadd.f32 %v447, 0.0
          %v451 = vadd.f32 %v448, 0.0
          %s452 = scalar_lea.vmem %s1, 1
          %v453 = vld [vmem:[%s452] sm:$0x1]
          %v454 = vld [vmem:[%s394 + $0x1] sm:$0xff]
          %v455 = vld [vmem:[%s394 + $0x9] sm:$0xff]
          %v456 = vld [vmem:[%s394 + $0x11] sm:$0xff]
          %458 = vset.pattern.permute.xlu0 0
          %459 = vperm.xlu0 %458, %v454
          %v460 = vpop.permute.xlu0 %459
          %463 = vset.pattern.permute.xlu0 0
          %464 = vperm.xlu0 %463, %v455
          %v465 = vpop.permute.xlu0 %464
          %468 = vset.pattern.permute.xlu0 0
          %469 = vperm.xlu0 %468, %v456
          %v470 = vpop.permute.xlu0 %469
          %v473 = vlaneseq
          %v474 = vshrl.u32 %v473, 7
          %v475 = vsub.s32 0, %v474
          %v476 = vrot.slane %v453, %v475
          %v478 = vmul.f32 %v460, %v476
          %v479 = vmul.f32 %v465, %v476
          %v480 = vmul.f32 %v470, %v476
          %v481 = vadd.f32 %v422, %v478
          %v482 = vadd.f32 %v423, %v479
          %v483 = vadd.f32 %v424, %v480
          %v484 = vld [vmem:[%s427 + $0x1] sm:$0xff]
          %v485 = vld [vmem:[%s427 + $0x9] sm:$0xff]
          %v486 = vld [vmem:[%s427 + $0x11] sm:$0xff]
          %488 = vset.pattern.permute.xlu0 0
          %489 = vperm.xlu0 %488, %v484
          %v490 = vpop.permute.xlu0 %489
          %493 = vset.pattern.permute.xlu0 0
          %494 = vperm.xlu0 %493, %v485
          %v495 = vpop.permute.xlu0 %494
          %498 = vset.pattern.permute.xlu0 0
          %499 = vperm.xlu0 %498, %v486
          %v500 = vpop.permute.xlu0 %499
          %v502 = vmul.f32 %v490, %v476
          %v503 = vmul.f32 %v495, %v476
          %v504 = vmul.f32 %v500, %v476
          %v505 = vadd.f32 %v449, %v502
          %v506 = vadd.f32 %v450, %v503
          %v507 = vadd.f32 %v451, %v504
          %s508 = scalar_lea.vmem %s1, 2
          %v509 = vld [vmem:[%s508] sm:$0x1]
          %v510 = vld [vmem:[%s394 + $0x2] sm:$0xff]
          %v511 = vld [vmem:[%s394 + $0xa] sm:$0xff]
          %v512 = vld [vmem:[%s394 + $0x12] sm:$0xff]
          %514 = vset.pattern.permute.xlu0 0
          %515 = vperm.xlu0 %514, %v510
          %v516 = vpop.permute.xlu0 %515
          %519 = vset.pattern.permute.xlu0 0
          %520 = vperm.xlu0 %519, %v511
          %v521 = vpop.permute.xlu0 %520
          %524 = vset.pattern.permute.xlu0 0
          %525 = vperm.xlu0 %524, %v512
          %v526 = vpop.permute.xlu0 %525
          %v529 = vlaneseq
          %v530 = vshrl.u32 %v529, 7
          %v531 = vsub.s32 0, %v530
          %v532 = vrot.slane %v509, %v531
          %v534 = vmul.f32 %v516, %v532
          %v535 = vmul.f32 %v521, %v532
          %v536 = vmul.f32 %v526, %v532
          %v537 = vadd.f32 %v481, %v534
          %v538 = vadd.f32 %v482, %v535
          %v539 = vadd.f32 %v483, %v536
          %v540 = vld [vmem:[%s427 + $0x2] sm:$0xff]
          %v541 = vld [vmem:[%s427 + $0xa] sm:$0xff]
          %v542 = vld [vmem:[%s427 + $0x12] sm:$0xff]
          %544 = vset.pattern.permute.xlu0 0
          %545 = vperm.xlu0 %544, %v540
          %v546 = vpop.permute.xlu0 %545
          %549 = vset.pattern.permute.xlu0 0
          %550 = vperm.xlu0 %549, %v541
          %v551 = vpop.permute.xlu0 %550
          %554 = vset.pattern.permute.xlu0 0
          %555 = vperm.xlu0 %554, %v542
          %v556 = vpop.permute.xlu0 %555
          %v558 = vmul.f32 %v546, %v532
          %v559 = vmul.f32 %v551, %v532
          %v560 = vmul.f32 %v556, %v532
          %v561 = vadd.f32 %v505, %v558
          %v562 = vadd.f32 %v506, %v559
          %v563 = vadd.f32 %v507, %v560
          %s564 = scalar_lea.vmem %s1, 3
          %v565 = vld [vmem:[%s564] sm:$0x1]
          %v566 = vld [vmem:[%s394 + $0x3] sm:$0xff]
          %v567 = vld [vmem:[%s394 + $0xb] sm:$0xff]
          %v568 = vld [vmem:[%s394 + $0x13] sm:$0xff]
          %570 = vset.pattern.permute.xlu0 0
          %571 = vperm.xlu0 %570, %v566
          %v572 = vpop.permute.xlu0 %571
          %575 = vset.pattern.permute.xlu0 0
          %576 = vperm.xlu0 %575, %v567
          %v577 = vpop.permute.xlu0 %576
          %580 = vset.pattern.permute.xlu0 0
          %581 = vperm.xlu0 %580, %v568
          %v582 = vpop.permute.xlu0 %581
          %v585 = vlaneseq
          %v586 = vshrl.u32 %v585, 7
          %v587 = vsub.s32 0, %v586
          %v588 = vrot.slane %v565, %v587
          %v590 = vmul.f32 %v572, %v588
          %v591 = vmul.f32 %v577, %v588
          %v592 = vmul.f32 %v582, %v588
          %v593 = vadd.f32 %v537, %v590
          %v594 = vadd.f32 %v538, %v591
          %v595 = vadd.f32 %v539, %v592
          %v596 = vld [vmem:[%s427 + $0x3] sm:$0xff]
          %v597 = vld [vmem:[%s427 + $0xb] sm:$0xff]
          %v598 = vld [vmem:[%s427 + $0x13] sm:$0xff]
          %600 = vset.pattern.permute.xlu0 0
          %601 = vperm.xlu0 %600, %v596
          %v602 = vpop.permute.xlu0 %601
          %605 = vset.pattern.permute.xlu0 0
          %606 = vperm.xlu0 %605, %v597
          %v607 = vpop.permute.xlu0 %606
          %610 = vset.pattern.permute.xlu0 0
          %611 = vperm.xlu0 %610, %v598
          %v612 = vpop.permute.xlu0 %611
          %v614 = vmul.f32 %v602, %v588
          %v615 = vmul.f32 %v607, %v588
          %v616 = vmul.f32 %v612, %v588
          %v617 = vadd.f32 %v561, %v614
          %v618 = vadd.f32 %v562, %v615
          %v619 = vadd.f32 %v563, %v616
          %s620 = scalar_lea.vmem %s1, 4
          %v621 = vld [vmem:[%s620] sm:$0x1]
          %v622 = vld [vmem:[%s394 + $0x4] sm:$0xff]
          %v623 = vld [vmem:[%s394 + $0xc] sm:$0xff]
          %v624 = vld [vmem:[%s394 + $0x14] sm:$0xff]
          %626 = vset.pattern.permute.xlu0 0
          %627 = vperm.xlu0 %626, %v622
          %v628 = vpop.permute.xlu0 %627
          %631 = vset.pattern.permute.xlu0 0
          %632 = vperm.xlu0 %631, %v623
          %v633 = vpop.permute.xlu0 %632
          %636 = vset.pattern.permute.xlu0 0
          %637 = vperm.xlu0 %636, %v624
          %v638 = vpop.permute.xlu0 %637
          %v641 = vlaneseq
          %v642 = vshrl.u32 %v641, 7
          %v643 = vsub.s32 0, %v642
          %v644 = vrot.slane %v621, %v643
          %v646 = vmul.f32 %v628, %v644
          %v647 = vmul.f32 %v633, %v644
          %v648 = vmul.f32 %v638, %v644
          %v649 = vadd.f32 %v593, %v646
          %v650 = vadd.f32 %v594, %v647
          %v651 = vadd.f32 %v595, %v648
          %v652 = vld [vmem:[%s427 + $0x4] sm:$0xff]
          %v653 = vld [vmem:[%s427 + $0xc] sm:$0xff]
          %v654 = vld [vmem:[%s427 + $0x14] sm:$0xff]
          %656 = vset.pattern.permute.xlu0 0
          %657 = vperm.xlu0 %656, %v652
          %v658 = vpop.permute.xlu0 %657
          %661 = vset.pattern.permute.xlu0 0
          %662 = vperm.xlu0 %661, %v653
          %v663 = vpop.permute.xlu0 %662
          %666 = vset.pattern.permute.xlu0 0
          %667 = vperm.xlu0 %666, %v654
          %v668 = vpop.permute.xlu0 %667
          %v670 = vmul.f32 %v658, %v644
          %v671 = vmul.f32 %v663, %v644
          %v672 = vmul.f32 %v668, %v644
          %v673 = vadd.f32 %v617, %v670
          %v674 = vadd.f32 %v618, %v671
          %v675 = vadd.f32 %v619, %v672
          %s676 = scalar_lea.vmem %s1, 5
          %v677 = vld [vmem:[%s676] sm:$0x1]
          %v679 = vlaneseq
          %v680 = vshrl.u32 %v679, 7
          %v681 = vsub.s32 0, %v680
          %v682 = vrot.slane %v677, %v681
          %v684 = vmul.f32 %v434, %v682
          %v685 = vmul.f32 %v439, %v682
          %v686 = vmul.f32 %v444, %v682
          %v687 = vadd.f32 %v649, %v684
          %v688 = vadd.f32 %v650, %v685
          %v689 = vadd.f32 %v651, %v686
          %s690 = sadd.s32 %s391, 2
          %s691 = smul.u32 %s690, 32
          %s692 = scalar_lea.vmem %s383, %s691
          %v693 = vld [vmem:[%s692] sm:$0xff]
          %v694 = vld [vmem:[%s692 + $0x8] sm:$0xff]
          %v695 = vld [vmem:[%s692 + $0x10] sm:$0xff]
          %697 = vset.pattern.permute.xlu0 0
          %698 = vperm.xlu0 %697, %v693
          %v699 = vpop.permute.xlu0 %698
          %702 = vset.pattern.permute.xlu0 0
          %703 = vperm.xlu0 %702, %v694
          %v704 = vpop.permute.xlu0 %703
          %707 = vset.pattern.permute.xlu0 0
          %708 = vperm.xlu0 %707, %v695
          %v709 = vpop.permute.xlu0 %708
          %v711 = vmul.f32 %v699, %v682
          %v712 = vmul.f32 %v704, %v682
          %v713 = vmul.f32 %v709, %v682
          %v714 = vadd.f32 %v673, %v711
          %v715 = vadd.f32 %v674, %v712
          %v716 = vadd.f32 %v675, %v713
          %s717 = scalar_lea.vmem %s1, 6
          %v718 = vld [vmem:[%s717] sm:$0x1]
          %v720 = vlaneseq
          %v721 = vshrl.u32 %v720, 7
          %v722 = vsub.s32 0, %v721
          %v723 = vrot.slane %v718, %v722
          %v725 = vmul.f32 %v490, %v723
          %v726 = vmul.f32 %v495, %v723
          %v727 = vmul.f32 %v500, %v723
          %v728 = vadd.f32 %v687, %v725
          %v729 = vadd.f32 %v688, %v726
          %v730 = vadd.f32 %v689, %v727
          %v731 = vld [vmem:[%s692 + $0x1] sm:$0xff]
          %v732 = vld [vmem:[%s692 + $0x9] sm:$0xff]
          %v733 = vld [vmem:[%s692 + $0x11] sm:$0xff]
          %735 = vset.pattern.permute.xlu0 0
          %736 = vperm.xlu0 %735, %v731
          %v737 = vpop.permute.xlu0 %736
          %740 = vset.pattern.permute.xlu0 0
          %741 = vperm.xlu0 %740, %v732
          %v742 = vpop.permute.xlu0 %741
          %745 = vset.pattern.permute.xlu0 0
          %746 = vperm.xlu0 %745, %v733
          %v747 = vpop.permute.xlu0 %746
          %v749 = vmul.f32 %v737, %v723
          %v750 = vmul.f32 %v742, %v723
          %v751 = vmul.f32 %v747, %v723
          %v752 = vadd.f32 %v714, %v749
          %v753 = vadd.f32 %v715, %v750
          %v754 = vadd.f32 %v716, %v751
          %s755 = scalar_lea.vmem %s1, 7
          %v756 = vld [vmem:[%s755] sm:$0x1]
          %v758 = vlaneseq
          %v759 = vshrl.u32 %v758, 7
          %v760 = vsub.s32 0, %v759
          %v761 = vrot.slane %v756, %v760
          %v763 = vmul.f32 %v546, %v761
          %v764 = vmul.f32 %v551, %v761
          %v765 = vmul.f32 %v556, %v761
          %v766 = vadd.f32 %v728, %v763
          %v767 = vadd.f32 %v729, %v764
          %v768 = vadd.f32 %v730, %v765
          %v769 = vld [vmem:[%s692 + $0x2] sm:$0xff]
          %v770 = vld [vmem:[%s692 + $0xa] sm:$0xff]
          %v771 = vld [vmem:[%s692 + $0x12] sm:$0xff]
          %773 = vset.pattern.permute.xlu0 0
          %774 = vperm.xlu0 %773, %v769
          %v775 = vpop.permute.xlu0 %774
          %778 = vset.pattern.permute.xlu0 0
          %779 = vperm.xlu0 %778, %v770
          %v780 = vpop.permute.xlu0 %779
          %783 = vset.pattern.permute.xlu0 0
          %784 = vperm.xlu0 %783, %v771
          %v785 = vpop.permute.xlu0 %784
          %v787 = vmul.f32 %v775, %v761
          %v788 = vmul.f32 %v780, %v761
          %v789 = vmul.f32 %v785, %v761
          %v790 = vadd.f32 %v752, %v787
          %v791 = vadd.f32 %v753, %v788
          %v792 = vadd.f32 %v754, %v789
          %s793 = scalar_lea.vmem %s1, 8
          %v794 = vld [vmem:[%s793] sm:$0x1]
          %v796 = vlaneseq
          %v797 = vshrl.u32 %v796, 7
          %v798 = vsub.s32 0, %v797
          %v799 = vrot.slane %v794, %v798
          %v801 = vmul.f32 %v602, %v799
          %v802 = vmul.f32 %v607, %v799
          %v803 = vmul.f32 %v612, %v799
          %v804 = vadd.f32 %v766, %v801
          %v805 = vadd.f32 %v767, %v802
          %v806 = vadd.f32 %v768, %v803
          %v807 = vld [vmem:[%s692 + $0x3] sm:$0xff]
          %v808 = vld [vmem:[%s692 + $0xb] sm:$0xff]
          %v809 = vld [vmem:[%s692 + $0x13] sm:$0xff]
          %811 = vset.pattern.permute.xlu0 0
          %812 = vperm.xlu0 %811, %v807
          %v813 = vpop.permute.xlu0 %812
          %816 = vset.pattern.permute.xlu0 0
          %817 = vperm.xlu0 %816, %v808
          %v818 = vpop.permute.xlu0 %817
          %821 = vset.pattern.permute.xlu0 0
          %822 = vperm.xlu0 %821, %v809
          %v823 = vpop.permute.xlu0 %822
          %v825 = vmul.f32 %v813, %v799
          %v826 = vmul.f32 %v818, %v799
          %v827 = vmul.f32 %v823, %v799
          %v828 = vadd.f32 %v790, %v825
          %v829 = vadd.f32 %v791, %v826
          %v830 = vadd.f32 %v792, %v827
          %s831 = scalar_lea.vmem %s1, 9
          %v832 = vld [vmem:[%s831] sm:$0x1]
          %v834 = vlaneseq
          %v835 = vshrl.u32 %v834, 7
          %v836 = vsub.s32 0, %v835
          %v837 = vrot.slane %v832, %v836
          %v839 = vmul.f32 %v658, %v837
          %v840 = vmul.f32 %v663, %v837
          %v841 = vmul.f32 %v668, %v837
          %v842 = vadd.f32 %v804, %v839
          %v843 = vadd.f32 %v805, %v840
          %v844 = vadd.f32 %v806, %v841
          %v845 = vld [vmem:[%s692 + $0x4] sm:$0xff]
          %v846 = vld [vmem:[%s692 + $0xc] sm:$0xff]
          %v847 = vld [vmem:[%s692 + $0x14] sm:$0xff]
          %849 = vset.pattern.permute.xlu0 0
          %850 = vperm.xlu0 %849, %v845
          %v851 = vpop.permute.xlu0 %850
          %854 = vset.pattern.permute.xlu0 0
          %855 = vperm.xlu0 %854, %v846
          %v856 = vpop.permute.xlu0 %855
          %859 = vset.pattern.permute.xlu0 0
          %860 = vperm.xlu0 %859, %v847
          %v861 = vpop.permute.xlu0 %860
          %v863 = vmul.f32 %v851, %v837
          %v864 = vmul.f32 %v856, %v837
          %v865 = vmul.f32 %v861, %v837
          %v866 = vadd.f32 %v828, %v863
          %v867 = vadd.f32 %v829, %v864
          %v868 = vadd.f32 %v830, %v865
          %s869 = scalar_lea.vmem %s1, 10
          %v870 = vld [vmem:[%s869] sm:$0x1]
          %v872 = vlaneseq
          %v873 = vshrl.u32 %v872, 7
          %v874 = vsub.s32 0, %v873
          %v875 = vrot.slane %v870, %v874
          %v877 = vmul.f32 %v699, %v875
          %v878 = vmul.f32 %v704, %v875
          %v879 = vmul.f32 %v709, %v875
          %v880 = vadd.f32 %v842, %v877
          %v881 = vadd.f32 %v843, %v878
          %v882 = vadd.f32 %v844, %v879
          %s883 = sadd.s32 %s391, 3
          %s884 = smul.u32 %s883, 32
          %s885 = scalar_lea.vmem %s383, %s884
          %v886 = vld [vmem:[%s885] sm:$0xff]
          %v887 = vld [vmem:[%s885 + $0x8] sm:$0xff]
          %v888 = vld [vmem:[%s885 + $0x10] sm:$0xff]
          %890 = vset.pattern.permute.xlu0 0
          %891 = vperm.xlu0 %890, %v886
          %v892 = vpop.permute.xlu0 %891
          %895 = vset.pattern.permute.xlu0 0
          %896 = vperm.xlu0 %895, %v887
          %v897 = vpop.permute.xlu0 %896
          %900 = vset.pattern.permute.xlu0 0
          %901 = vperm.xlu0 %900, %v888
          %v902 = vpop.permute.xlu0 %901
          %v904 = vmul.f32 %v892, %v875
          %v905 = vmul.f32 %v897, %v875
          %v906 = vmul.f32 %v902, %v875
          %v907 = vadd.f32 %v866, %v904
          %v908 = vadd.f32 %v867, %v905
          %v909 = vadd.f32 %v868, %v906
          %s910 = scalar_lea.vmem %s1, 11
          %v911 = vld [vmem:[%s910] sm:$0x1]
          %v913 = vlaneseq
          %v914 = vshrl.u32 %v913, 7
          %v915 = vsub.s32 0, %v914
          %v916 = vrot.slane %v911, %v915
          %v918 = vmul.f32 %v737, %v916
          %v919 = vmul.f32 %v742, %v916
          %v920 = vmul.f32 %v747, %v916
          %v921 = vadd.f32 %v880, %v918
          %v922 = vadd.f32 %v881, %v919
          %v923 = vadd.f32 %v882, %v920
          %v924 = vld [vmem:[%s885 + $0x1] sm:$0xff]
          %v925 = vld [vmem:[%s885 + $0x9] sm:$0xff]
          %v926 = vld [vmem:[%s885 + $0x11] sm:$0xff]
          %928 = vset.pattern.permute.xlu0 0
          %929 = vperm.xlu0 %928, %v924
          %v930 = vpop.permute.xlu0 %929
          %933 = vset.pattern.permute.xlu0 0
          %934 = vperm.xlu0 %933, %v925
          %v935 = vpop.permute.xlu0 %934
          %938 = vset.pattern.permute.xlu0 0
          %939 = vperm.xlu0 %938, %v926
          %v940 = vpop.permute.xlu0 %939
          %v942 = vmul.f32 %v930, %v916
          %v943 = vmul.f32 %v935, %v916
          %v944 = vmul.f32 %v940, %v916
          %v945 = vadd.f32 %v907, %v942
          %v946 = vadd.f32 %v908, %v943
          %v947 = vadd.f32 %v909, %v944
          %s948 = scalar_lea.vmem %s1, 12
          %v949 = vld [vmem:[%s948] sm:$0x1]
          %v951 = vlaneseq
          %v952 = vshrl.u32 %v951, 7
          %v953 = vsub.s32 0, %v952
          %v954 = vrot.slane %v949, %v953
          %v956 = vmul.f32 %v775, %v954
          %v957 = vmul.f32 %v780, %v954
          %v958 = vmul.f32 %v785, %v954
          %v959 = vadd.f32 %v921, %v956
          %v960 = vadd.f32 %v922, %v957
          %v961 = vadd.f32 %v923, %v958
          %v962 = vld [vmem:[%s885 + $0x2] sm:$0xff]
          %v963 = vld [vmem:[%s885 + $0xa] sm:$0xff]
          %v964 = vld [vmem:[%s885 + $0x12] sm:$0xff]
          %966 = vset.pattern.permute.xlu0 0
          %967 = vperm.xlu0 %966, %v962
          %v968 = vpop.permute.xlu0 %967
          %971 = vset.pattern.permute.xlu0 0
          %972 = vperm.xlu0 %971, %v963
          %v973 = vpop.permute.xlu0 %972
          %976 = vset.pattern.permute.xlu0 0
          %977 = vperm.xlu0 %976, %v964
          %v978 = vpop.permute.xlu0 %977
          %v980 = vmul.f32 %v968, %v954
          %v981 = vmul.f32 %v973, %v954
          %v982 = vmul.f32 %v978, %v954
          %v983 = vadd.f32 %v945, %v980
          %v984 = vadd.f32 %v946, %v981
          %v985 = vadd.f32 %v947, %v982
          %s986 = scalar_lea.vmem %s1, 13
          %v987 = vld [vmem:[%s986] sm:$0x1]
          %v989 = vlaneseq
          %v990 = vshrl.u32 %v989, 7
          %v991 = vsub.s32 0, %v990
          %v992 = vrot.slane %v987, %v991
          %v994 = vmul.f32 %v813, %v992
          %v995 = vmul.f32 %v818, %v992
          %v996 = vmul.f32 %v823, %v992
          %v997 = vadd.f32 %v959, %v994
          %v998 = vadd.f32 %v960, %v995
          %v999 = vadd.f32 %v961, %v996
          %v1000 = vld [vmem:[%s885 + $0x3] sm:$0xff]
          %v1001 = vld [vmem:[%s885 + $0xb] sm:$0xff]
          %v1002 = vld [vmem:[%s885 + $0x13] sm:$0xff]
          %1004 = vset.pattern.permute.xlu0 0
          %1005 = vperm.xlu0 %1004, %v1000
          %v1006 = vpop.permute.xlu0 %1005
          %1009 = vset.pattern.permute.xlu0 0
          %1010 = vperm.xlu0 %1009, %v1001
          %v1011 = vpop.permute.xlu0 %1010
          %1014 = vset.pattern.permute.xlu0 0
          %1015 = vperm.xlu0 %1014, %v1002
          %v1016 = vpop.permute.xlu0 %1015
          %v1018 = vmul.f32 %v1006, %v992
          %v1019 = vmul.f32 %v1011, %v992
          %v1020 = vmul.f32 %v1016, %v992
          %v1021 = vadd.f32 %v983, %v1018
          %v1022 = vadd.f32 %v984, %v1019
          %v1023 = vadd.f32 %v985, %v1020
          %s1024 = scalar_lea.vmem %s1, 14
          %v1025 = vld [vmem:[%s1024] sm:$0x1]
          %v1027 = vlaneseq
          %v1028 = vshrl.u32 %v1027, 7
          %v1029 = vsub.s32 0, %v1028
          %v1030 = vrot.slane %v1025, %v1029
          %v1032 = vmul.f32 %v851, %v1030
          %v1033 = vmul.f32 %v856, %v1030
          %v1034 = vmul.f32 %v861, %v1030
          %v1035 = vadd.f32 %v997, %v1032
          %v1036 = vadd.f32 %v998, %v1033
          %v1037 = vadd.f32 %v999, %v1034
          %v1038 = vld [vmem:[%s885 + $0x4] sm:$0xff]
          %v1039 = vld [vmem:[%s885 + $0xc] sm:$0xff]
          %v1040 = vld [vmem:[%s885 + $0x14] sm:$0xff]
          %1042 = vset.pattern.permute.xlu0 0
          %1043 = vperm.xlu0 %1042, %v1038
          %v1044 = vpop.permute.xlu0 %1043
          %1047 = vset.pattern.permute.xlu0 0
          %1048 = vperm.xlu0 %1047, %v1039
          %v1049 = vpop.permute.xlu0 %1048
          %1052 = vset.pattern.permute.xlu0 0
          %1053 = vperm.xlu0 %1052, %v1040
          %v1054 = vpop.permute.xlu0 %1053
          %v1056 = vmul.f32 %v1044, %v1030
          %v1057 = vmul.f32 %v1049, %v1030
          %v1058 = vmul.f32 %v1054, %v1030
          %v1059 = vadd.f32 %v1021, %v1056
          %v1060 = vadd.f32 %v1022, %v1057
          %v1061 = vadd.f32 %v1023, %v1058
          %s1062 = scalar_lea.vmem %s1, 15
          %v1063 = vld [vmem:[%s1062] sm:$0x1]
          %v1065 = vlaneseq
          %v1066 = vshrl.u32 %v1065, 7
          %v1067 = vsub.s32 0, %v1066
          %v1068 = vrot.slane %v1063, %v1067
          %v1070 = vmul.f32 %v892, %v1068
          %v1071 = vmul.f32 %v897, %v1068
          %v1072 = vmul.f32 %v902, %v1068
          %v1073 = vadd.f32 %v1035, %v1070
          %v1074 = vadd.f32 %v1036, %v1071
          %v1075 = vadd.f32 %v1037, %v1072
          %s1076 = sadd.s32 %s391, 4
          %s1077 = smul.u32 %s1076, 32
          %s1078 = scalar_lea.vmem %s383, %s1077
          %v1079 = vld [vmem:[%s1078] sm:$0xff]
          %v1080 = vld [vmem:[%s1078 + $0x8] sm:$0xff]
          %v1081 = vld [vmem:[%s1078 + $0x10] sm:$0xff]
          %1083 = vset.pattern.permute.xlu0 0
          %1084 = vperm.xlu0 %1083, %v1079
          %v1085 = vpop.permute.xlu0 %1084
          %1088 = vset.pattern.permute.xlu0 0
          %1089 = vperm.xlu0 %1088, %v1080
          %v1090 = vpop.permute.xlu0 %1089
          %1093 = vset.pattern.permute.xlu0 0
          %1094 = vperm.xlu0 %1093, %v1081
          %v1095 = vpop.permute.xlu0 %1094
          %v1097 = vmul.f32 %v1085, %v1068
          %v1098 = vmul.f32 %v1090, %v1068
          %v1099 = vmul.f32 %v1095, %v1068
          %v1100 = vadd.f32 %v1059, %v1097
          %v1101 = vadd.f32 %v1060, %v1098
          %v1102 = vadd.f32 %v1061, %v1099
          %s1103 = scalar_lea.vmem %s1, 16
          %v1104 = vld [vmem:[%s1103] sm:$0x1]
          %v1106 = vlaneseq
          %v1107 = vshrl.u32 %v1106, 7
          %v1108 = vsub.s32 0, %v1107
          %v1109 = vrot.slane %v1104, %v1108
          %v1111 = vmul.f32 %v930, %v1109
          %v1112 = vmul.f32 %v935, %v1109
          %v1113 = vmul.f32 %v940, %v1109
          %v1114 = vadd.f32 %v1073, %v1111
          %v1115 = vadd.f32 %v1074, %v1112
          %v1116 = vadd.f32 %v1075, %v1113
          %v1117 = vld [vmem:[%s1078 + $0x1] sm:$0xff]
          %v1118 = vld [vmem:[%s1078 + $0x9] sm:$0xff]
          %v1119 = vld [vmem:[%s1078 + $0x11] sm:$0xff]
          %1121 = vset.pattern.permute.xlu0 0
          %1122 = vperm.xlu0 %1121, %v1117
          %v1123 = vpop.permute.xlu0 %1122
          %1126 = vset.pattern.permute.xlu0 0
          %1127 = vperm.xlu0 %1126, %v1118
          %v1128 = vpop.permute.xlu0 %1127
          %1131 = vset.pattern.permute.xlu0 0
          %1132 = vperm.xlu0 %1131, %v1119
          %v1133 = vpop.permute.xlu0 %1132
          %v1135 = vmul.f32 %v1123, %v1109
          %v1136 = vmul.f32 %v1128, %v1109
          %v1137 = vmul.f32 %v1133, %v1109
          %v1138 = vadd.f32 %v1100, %v1135
          %v1139 = vadd.f32 %v1101, %v1136
          %v1140 = vadd.f32 %v1102, %v1137
          %s1141 = scalar_lea.vmem %s1, 17
          %v1142 = vld [vmem:[%s1141] sm:$0x1]
          %v1144 = vlaneseq
          %v1145 = vshrl.u32 %v1144, 7
          %v1146 = vsub.s32 0, %v1145
          %v1147 = vrot.slane %v1142, %v1146
          %v1149 = vmul.f32 %v968, %v1147
          %v1150 = vmul.f32 %v973, %v1147
          %v1151 = vmul.f32 %v978, %v1147
          %v1152 = vadd.f32 %v1114, %v1149
          %v1153 = vadd.f32 %v1115, %v1150
          %v1154 = vadd.f32 %v1116, %v1151
          %v1155 = vld [vmem:[%s1078 + $0x2] sm:$0xff]
          %v1156 = vld [vmem:[%s1078 + $0xa] sm:$0xff]
          %v1157 = vld [vmem:[%s1078 + $0x12] sm:$0xff]
          %1159 = vset.pattern.permute.xlu0 0
          %1160 = vperm.xlu0 %1159, %v1155
          %v1161 = vpop.permute.xlu0 %1160
          %1164 = vset.pattern.permute.xlu0 0
          %1165 = vperm.xlu0 %1164, %v1156
          %v1166 = vpop.permute.xlu0 %1165
          %1169 = vset.pattern.permute.xlu0 0
          %1170 = vperm.xlu0 %1169, %v1157
          %v1171 = vpop.permute.xlu0 %1170
          %v1173 = vmul.f32 %v1161, %v1147
          %v1174 = vmul.f32 %v1166, %v1147
          %v1175 = vmul.f32 %v1171, %v1147
          %v1176 = vadd.f32 %v1138, %v1173
          %v1177 = vadd.f32 %v1139, %v1174
          %v1178 = vadd.f32 %v1140, %v1175
          %s1179 = scalar_lea.vmem %s1, 18
          %v1180 = vld [vmem:[%s1179] sm:$0x1]
          %v1182 = vlaneseq
          %v1183 = vshrl.u32 %v1182, 7
          %v1184 = vsub.s32 0, %v1183
          %v1185 = vrot.slane %v1180, %v1184
          %v1187 = vmul.f32 %v1006, %v1185
          %v1188 = vmul.f32 %v1011, %v1185
          %v1189 = vmul.f32 %v1016, %v1185
          %v1190 = vadd.f32 %v1152, %v1187
          %v1191 = vadd.f32 %v1153, %v1188
          %v1192 = vadd.f32 %v1154, %v1189
          %v1193 = vld [vmem:[%s1078 + $0x3] sm:$0xff]
          %v1194 = vld [vmem:[%s1078 + $0xb] sm:$0xff]
          %v1195 = vld [vmem:[%s1078 + $0x13] sm:$0xff]
          %1197 = vset.pattern.permute.xlu0 0
          %1198 = vperm.xlu0 %1197, %v1193
          %v1199 = vpop.permute.xlu0 %1198
          %1202 = vset.pattern.permute.xlu0 0
          %1203 = vperm.xlu0 %1202, %v1194
          %v1204 = vpop.permute.xlu0 %1203
          %1207 = vset.pattern.permute.xlu0 0
          %1208 = vperm.xlu0 %1207, %v1195
          %v1209 = vpop.permute.xlu0 %1208
          %v1211 = vmul.f32 %v1199, %v1185
          %v1212 = vmul.f32 %v1204, %v1185
          %v1213 = vmul.f32 %v1209, %v1185
          %v1214 = vadd.f32 %v1176, %v1211
          %v1215 = vadd.f32 %v1177, %v1212
          %v1216 = vadd.f32 %v1178, %v1213
          %s1217 = scalar_lea.vmem %s1, 19
          %v1218 = vld [vmem:[%s1217] sm:$0x1]
          %v1220 = vlaneseq
          %v1221 = vshrl.u32 %v1220, 7
          %v1222 = vsub.s32 0, %v1221
          %v1223 = vrot.slane %v1218, %v1222
          %v1225 = vmul.f32 %v1044, %v1223
          %v1226 = vmul.f32 %v1049, %v1223
          %v1227 = vmul.f32 %v1054, %v1223
          %v1228 = vadd.f32 %v1190, %v1225
          %v1229 = vadd.f32 %v1191, %v1226
          %v1230 = vadd.f32 %v1192, %v1227
          %v1231 = vld [vmem:[%s1078 + $0x4] sm:$0xff]
          %v1232 = vld [vmem:[%s1078 + $0xc] sm:$0xff]
          %v1233 = vld [vmem:[%s1078 + $0x14] sm:$0xff]
          %1235 = vset.pattern.permute.xlu0 0
          %1236 = vperm.xlu0 %1235, %v1231
          %v1237 = vpop.permute.xlu0 %1236
          %1240 = vset.pattern.permute.xlu0 0
          %1241 = vperm.xlu0 %1240, %v1232
          %v1242 = vpop.permute.xlu0 %1241
          %1245 = vset.pattern.permute.xlu0 0
          %1246 = vperm.xlu0 %1245, %v1233
          %v1247 = vpop.permute.xlu0 %1246
          %v1249 = vmul.f32 %v1237, %v1223
          %v1250 = vmul.f32 %v1242, %v1223
          %v1251 = vmul.f32 %v1247, %v1223
          %v1252 = vadd.f32 %v1214, %v1249
          %v1253 = vadd.f32 %v1215, %v1250
          %v1254 = vadd.f32 %v1216, %v1251
          %s1255 = scalar_lea.vmem %s1, 20
          %v1256 = vld [vmem:[%s1255] sm:$0x1]
          %v1258 = vlaneseq
          %v1259 = vshrl.u32 %v1258, 7
          %v1260 = vsub.s32 0, %v1259
          %v1261 = vrot.slane %v1256, %v1260
          %v1263 = vmul.f32 %v1085, %v1261
          %v1264 = vmul.f32 %v1090, %v1261
          %v1265 = vmul.f32 %v1095, %v1261
          %v1266 = vadd.f32 %v1228, %v1263
          %v1267 = vadd.f32 %v1229, %v1264
          %v1268 = vadd.f32 %v1230, %v1265
          %s1269 = sadd.s32 %s391, 5
          %s1270 = smul.u32 %s1269, 32
          %s1271 = scalar_lea.vmem %s383, %s1270
          %v1272 = vld [vmem:[%s1271] sm:$0xff]
          %v1273 = vld [vmem:[%s1271 + $0x8] sm:$0xff]
          %v1274 = vld [vmem:[%s1271 + $0x10] sm:$0xff]
          %1276 = vset.pattern.permute.xlu0 0
          %1277 = vperm.xlu0 %1276, %v1272
          %v1278 = vpop.permute.xlu0 %1277
          %1281 = vset.pattern.permute.xlu0 0
          %1282 = vperm.xlu0 %1281, %v1273
          %v1283 = vpop.permute.xlu0 %1282
          %1286 = vset.pattern.permute.xlu0 0
          %1287 = vperm.xlu0 %1286, %v1274
          %v1288 = vpop.permute.xlu0 %1287
          %v1290 = vmul.f32 %v1278, %v1261
          %v1291 = vmul.f32 %v1283, %v1261
          %v1292 = vmul.f32 %v1288, %v1261
          %v1293 = vadd.f32 %v1252, %v1290
          %v1294 = vadd.f32 %v1253, %v1291
          %v1295 = vadd.f32 %v1254, %v1292
          %s1296 = scalar_lea.vmem %s1, 21
          %v1297 = vld [vmem:[%s1296] sm:$0x1]
          %v1299 = vlaneseq
          %v1300 = vshrl.u32 %v1299, 7
          %v1301 = vsub.s32 0, %v1300
          %v1302 = vrot.slane %v1297, %v1301
          %v1304 = vmul.f32 %v1123, %v1302
          %v1305 = vmul.f32 %v1128, %v1302
          %v1306 = vmul.f32 %v1133, %v1302
          %v1307 = vadd.f32 %v1266, %v1304
          %v1308 = vadd.f32 %v1267, %v1305
          %v1309 = vadd.f32 %v1268, %v1306
          %v1310 = vld [vmem:[%s1271 + $0x1] sm:$0xff]
          %v1311 = vld [vmem:[%s1271 + $0x9] sm:$0xff]
          %v1312 = vld [vmem:[%s1271 + $0x11] sm:$0xff]
          %1314 = vset.pattern.permute.xlu0 0
          %1315 = vperm.xlu0 %1314, %v1310
          %v1316 = vpop.permute.xlu0 %1315
          %1319 = vset.pattern.permute.xlu0 0
          %1320 = vperm.xlu0 %1319, %v1311
          %v1321 = vpop.permute.xlu0 %1320
          %1324 = vset.pattern.permute.xlu0 0
          %1325 = vperm.xlu0 %1324, %v1312
          %v1326 = vpop.permute.xlu0 %1325
          %v1328 = vmul.f32 %v1316, %v1302
          %v1329 = vmul.f32 %v1321, %v1302
          %v1330 = vmul.f32 %v1326, %v1302
          %v1331 = vadd.f32 %v1293, %v1328
          %v1332 = vadd.f32 %v1294, %v1329
          %v1333 = vadd.f32 %v1295, %v1330
          %s1334 = scalar_lea.vmem %s1, 22
          %v1335 = vld [vmem:[%s1334] sm:$0x1]
          %v1337 = vlaneseq
          %v1338 = vshrl.u32 %v1337, 7
          %v1339 = vsub.s32 0, %v1338
          %v1340 = vrot.slane %v1335, %v1339
          %v1342 = vmul.f32 %v1161, %v1340
          %v1343 = vmul.f32 %v1166, %v1340
          %v1344 = vmul.f32 %v1171, %v1340
          %v1345 = vadd.f32 %v1307, %v1342
          %v1346 = vadd.f32 %v1308, %v1343
          %v1347 = vadd.f32 %v1309, %v1344
          %v1348 = vld [vmem:[%s1271 + $0x2] sm:$0xff]
          %v1349 = vld [vmem:[%s1271 + $0xa] sm:$0xff]
          %v1350 = vld [vmem:[%s1271 + $0x12] sm:$0xff]
          %1352 = vset.pattern.permute.xlu0 0
          %1353 = vperm.xlu0 %1352, %v1348
          %v1354 = vpop.permute.xlu0 %1353
          %1357 = vset.pattern.permute.xlu0 0
          %1358 = vperm.xlu0 %1357, %v1349
          %v1359 = vpop.permute.xlu0 %1358
          %1362 = vset.pattern.permute.xlu0 0
          %1363 = vperm.xlu0 %1362, %v1350
          %v1364 = vpop.permute.xlu0 %1363
          %v1366 = vmul.f32 %v1354, %v1340
          %v1367 = vmul.f32 %v1359, %v1340
          %v1368 = vmul.f32 %v1364, %v1340
          %v1369 = vadd.f32 %v1331, %v1366
          %v1370 = vadd.f32 %v1332, %v1367
          %v1371 = vadd.f32 %v1333, %v1368
          %s1372 = scalar_lea.vmem %s1, 23
          %v1373 = vld [vmem:[%s1372] sm:$0x1]
          %v1375 = vlaneseq
          %v1376 = vshrl.u32 %v1375, 7
          %v1377 = vsub.s32 0, %v1376
          %v1378 = vrot.slane %v1373, %v1377
          %v1380 = vmul.f32 %v1199, %v1378
          %v1381 = vmul.f32 %v1204, %v1378
          %v1382 = vmul.f32 %v1209, %v1378
          %v1383 = vadd.f32 %v1345, %v1380
          %v1384 = vadd.f32 %v1346, %v1381
          %v1385 = vadd.f32 %v1347, %v1382
          %v1386 = vld [vmem:[%s1271 + $0x3] sm:$0xff]
          %v1387 = vld [vmem:[%s1271 + $0xb] sm:$0xff]
          %v1388 = vld [vmem:[%s1271 + $0x13] sm:$0xff]
          %1390 = vset.pattern.permute.xlu0 0
          %1391 = vperm.xlu0 %1390, %v1386
          %v1392 = vpop.permute.xlu0 %1391
          %1395 = vset.pattern.permute.xlu0 0
          %1396 = vperm.xlu0 %1395, %v1387
          %v1397 = vpop.permute.xlu0 %1396
          %1400 = vset.pattern.permute.xlu0 0
          %1401 = vperm.xlu0 %1400, %v1388
          %v1402 = vpop.permute.xlu0 %1401
          %v1404 = vmul.f32 %v1392, %v1378
          %v1405 = vmul.f32 %v1397, %v1378
          %v1406 = vmul.f32 %v1402, %v1378
          %v1407 = vadd.f32 %v1369, %v1404
          %v1408 = vadd.f32 %v1370, %v1405
          %v1409 = vadd.f32 %v1371, %v1406
          %s1410 = scalar_lea.vmem %s1, 24
          %v1411 = vld [vmem:[%s1410] sm:$0x1]
          %v1413 = vlaneseq
          %v1414 = vshrl.u32 %v1413, 7
          %v1415 = vsub.s32 0, %v1414
          %v1416 = vrot.slane %v1411, %v1415
          %v1418 = vmul.f32 %v1237, %v1416
          %v1419 = vmul.f32 %v1242, %v1416
          %v1420 = vmul.f32 %v1247, %v1416
          %v1421 = vadd.f32 %v1383, %v1418
          %v1422 = vadd.f32 %v1384, %v1419
          %v1423 = vadd.f32 %v1385, %v1420
          %v1424 = vld [vmem:[%s1271 + $0x4] sm:$0xff]
          %v1425 = vld [vmem:[%s1271 + $0xc] sm:$0xff]
          %v1426 = vld [vmem:[%s1271 + $0x14] sm:$0xff]
          %1428 = vset.pattern.permute.xlu0 0
          %1429 = vperm.xlu0 %1428, %v1424
          %v1430 = vpop.permute.xlu0 %1429
          %1433 = vset.pattern.permute.xlu0 0
          %1434 = vperm.xlu0 %1433, %v1425
          %v1435 = vpop.permute.xlu0 %1434
          %1438 = vset.pattern.permute.xlu0 0
          %1439 = vperm.xlu0 %1438, %v1426
          %v1440 = vpop.permute.xlu0 %1439
          %v1442 = vmul.f32 %v1430, %v1416
          %v1443 = vmul.f32 %v1435, %v1416
          %v1444 = vmul.f32 %v1440, %v1416
          %v1445 = vadd.f32 %v1407, %v1442
          %v1446 = vadd.f32 %v1408, %v1443
          %v1447 = vadd.f32 %v1409, %v1444
          %v1448 = vmax.f32 %v1421, %v1445
          %v1449 = vmax.f32 %v1422, %v1446
          %v1450 = vmax.f32 %v1423, %v1447
          %v1454 = vcombine.high %v1448, %v1448
          %v1456 = vunpack.c.l.s4 1983009808
          %v1457 = vunpack.c.0.s8 %v1456
          %v1458 = vlaneseq
          %v1459 = vshrl.u32 %v1458, 7
          %v1460 = vsub.s32 %v1457, %v1459
          %v1461 = vrot.slane %v1448, %v1460
          %v1463 = vunpack.c.l.s4 1983009808
          %v1464 = vunpack.c.0.s8 %v1463
          %v1465 = vlaneseq
          %v1466 = vshrl.u32 %v1465, 7
          %v1467 = vsub.s32 %v1464, %v1466
          %v1468 = vrot.slane %v1454, %v1467
          %v1469 = vcombine.high %v1461, %v1461
          %v1470 = vcombine.high %v1468, %v1468
          %v1471 = vcombine.high %v1449, %v1449
          %v1473 = vunpack.c.l.s4 1983009808
          %v1474 = vunpack.c.0.s8 %v1473
          %v1475 = vlaneseq
          %v1476 = vshrl.u32 %v1475, 7
          %v1477 = vsub.s32 %v1474, %v1476
          %v1478 = vrot.slane %v1449, %v1477
          %v1480 = vunpack.c.l.s4 1983009808
          %v1481 = vunpack.c.0.s8 %v1480
          %v1482 = vlaneseq
          %v1483 = vshrl.u32 %v1482, 7
          %v1484 = vsub.s32 %v1481, %v1483
          %v1485 = vrot.slane %v1471, %v1484
          %v1486 = vcombine.high %v1478, %v1478
          %v1487 = vcombine.high %v1485, %v1485
          %v1488 = vcombine.high %v1450, %v1450
          %v1490 = vunpack.c.l.s4 1983009808
          %v1491 = vunpack.c.0.s8 %v1490
          %v1492 = vlaneseq
          %v1493 = vshrl.u32 %v1492, 7
          %v1494 = vsub.s32 %v1491, %v1493
          %v1495 = vrot.slane %v1450, %v1494
          %v1497 = vunpack.c.l.s4 1983009808
          %v1498 = vunpack.c.0.s8 %v1497
          %v1499 = vlaneseq
          %v1500 = vshrl.u32 %v1499, 7
          %v1501 = vsub.s32 %v1498, %v1500
          %v1502 = vrot.slane %v1488, %v1501
          %v1503 = vcombine.high %v1495, %v1495
          %v1504 = vcombine.high %v1502, %v1502
          %vm1517 = vcmask 1041408
          %v1518 = vsel %vm1517, %v1461, -inf
          %v1519 = vrot.slane %v1518, 4
          %v1520 = vmax.f32 %v1518, %v1519
          %v1521 = vrot.slane %v1520, 2
          %v1522 = vmax.f32 %v1520, %v1521
          %v1523 = vrot.slane %v1522, 1
          %v1524 = vmax.f32 %v1522, %v1523
          %v1525 = vsel %vm1517, %v1469, -inf
          %v1526 = vrot.slane %v1525, 4
          %v1527 = vmax.f32 %v1525, %v1526
          %v1528 = vrot.slane %v1527, 2
          %v1529 = vmax.f32 %v1527, %v1528
          %v1530 = vrot.slane %v1529, 1
          %v1531 = vmax.f32 %v1529, %v1530
          %v1532 = vsel %vm1517, %v1468, -inf
          %v1533 = vrot.slane %v1532, 4
          %v1534 = vmax.f32 %v1532, %v1533
          %v1535 = vrot.slane %v1534, 2
          %v1536 = vmax.f32 %v1534, %v1535
          %v1537 = vrot.slane %v1536, 1
          %v1538 = vmax.f32 %v1536, %v1537
          %v1539 = vsel %vm1517, %v1470, -inf
          %v1540 = vrot.slane %v1539, 4
          %v1541 = vmax.f32 %v1539, %v1540
          %v1542 = vrot.slane %v1541, 2
          %v1543 = vmax.f32 %v1541, %v1542
          %v1544 = vrot.slane %v1543, 1
          %v1545 = vmax.f32 %v1543, %v1544
          %v1546 = vsel %vm1517, %v1478, -inf
          %v1547 = vrot.slane %v1546, 4
          %v1548 = vmax.f32 %v1546, %v1547
          %v1549 = vrot.slane %v1548, 2
          %v1550 = vmax.f32 %v1548, %v1549
          %v1551 = vrot.slane %v1550, 1
          %v1552 = vmax.f32 %v1550, %v1551
          %v1553 = vsel %vm1517, %v1486, -inf
          %v1554 = vrot.slane %v1553, 4
          %v1555 = vmax.f32 %v1553, %v1554
          %v1556 = vrot.slane %v1555, 2
          %v1557 = vmax.f32 %v1555, %v1556
          %v1558 = vrot.slane %v1557, 1
          %v1559 = vmax.f32 %v1557, %v1558
          %v1560 = vsel %vm1517, %v1485, -inf
          %v1561 = vrot.slane %v1560, 4
          %v1562 = vmax.f32 %v1560, %v1561
          %v1563 = vrot.slane %v1562, 2
          %v1564 = vmax.f32 %v1562, %v1563
          %v1565 = vrot.slane %v1564, 1
          %v1566 = vmax.f32 %v1564, %v1565
          %v1567 = vsel %vm1517, %v1487, -inf
          %v1568 = vrot.slane %v1567, 4
          %v1569 = vmax.f32 %v1567, %v1568
          %v1570 = vrot.slane %v1569, 2
          %v1571 = vmax.f32 %v1569, %v1570
          %v1572 = vrot.slane %v1571, 1
          %v1573 = vmax.f32 %v1571, %v1572
          %v1574 = vsel %vm1517, %v1495, -inf
          %v1575 = vrot.slane %v1574, 4
          %v1576 = vmax.f32 %v1574, %v1575
          %v1577 = vrot.slane %v1576, 2
          %v1578 = vmax.f32 %v1576, %v1577
          %v1579 = vrot.slane %v1578, 1
          %v1580 = vmax.f32 %v1578, %v1579
          %v1581 = vsel %vm1517, %v1503, -inf
          %v1582 = vrot.slane %v1581, 4
          %v1583 = vmax.f32 %v1581, %v1582
          %v1584 = vrot.slane %v1583, 2
          %v1585 = vmax.f32 %v1583, %v1584
          %v1586 = vrot.slane %v1585, 1
          %v1587 = vmax.f32 %v1585, %v1586
          %v1588 = vsel %vm1517, %v1502, -inf
          %v1589 = vrot.slane %v1588, 4
          %v1590 = vmax.f32 %v1588, %v1589
          %v1591 = vrot.slane %v1590, 2
          %v1592 = vmax.f32 %v1590, %v1591
          %v1593 = vrot.slane %v1592, 1
          %v1594 = vmax.f32 %v1592, %v1593
          %v1595 = vsel %vm1517, %v1504, -inf
          %v1596 = vrot.slane %v1595, 4
          %v1597 = vmax.f32 %v1595, %v1596
          %v1598 = vrot.slane %v1597, 2
          %v1599 = vmax.f32 %v1597, %v1598
          %v1600 = vrot.slane %v1599, 1
          %v1601 = vmax.f32 %v1599, %v1600
          %v1602 = vld [vmem:[%s2] sm:$0x1]
          %v1604 = vlaneseq
          %v1605 = vshrl.u32 %v1604, 7
          %v1606 = vsub.s32 0, %v1605
          %v1607 = vrot.slane %v1602, %v1606
          %v1609 = vadd.f32 %v1524, %v1607
          %v1610 = vadd.f32 %v1531, %v1607
          %v1611 = vadd.f32 %v1538, %v1607
          %v1612 = vadd.f32 %v1545, %v1607
          %v1613 = vadd.f32 %v1552, %v1607
          %v1614 = vadd.f32 %v1559, %v1607
          %v1615 = vadd.f32 %v1566, %v1607
          %v1616 = vadd.f32 %v1573, %v1607
          %v1617 = vadd.f32 %v1580, %v1607
          %v1618 = vadd.f32 %v1587, %v1607
          %v1619 = vadd.f32 %v1594, %v1607
          %v1620 = vadd.f32 %v1601, %v1607
          %v1621 = vmax.f32 %v1609, 0.0
          %v1622 = vmax.f32 %v1610, 0.0
          %v1623 = vmax.f32 %v1611, 0.0
          %v1624 = vmax.f32 %v1612, 0.0
          %v1625 = vmax.f32 %v1613, 0.0
          %v1626 = vmax.f32 %v1614, 0.0
          %v1627 = vmax.f32 %v1615, 0.0
          %v1628 = vmax.f32 %v1616, 0.0
          %v1629 = vmax.f32 %v1617, 0.0
          %v1630 = vmax.f32 %v1618, 0.0
          %v1631 = vmax.f32 %v1619, 0.0
          %v1632 = vmax.f32 %v1620, 0.0
          %v1645 = vrot.slane %v1622, 7
          %vm1646 = vcmask 1041409
          %v1647 = vsel %vm1646, %v1645, %v1621
          %v1648 = vrot.slane %v1623, 6
          %vm1649 = vcmask 1042434
          %v1650 = vsel %vm1649, %v1648, %v1647
          %v1651 = vrot.slane %v1624, 5
          %vm1652 = vcmask 1043459
          %v1653 = vsel %vm1652, %v1651, %v1650
          %v1654 = vrot.slane %v1625, 4
          %vm1655 = vcmask 1044484
          %v1656 = vsel %vm1655, %v1654, %v1653
          %v1657 = vrot.slane %v1626, 3
          %vm1658 = vcmask 1045509
          %v1659 = vsel %vm1658, %v1657, %v1656
          %v1660 = vrot.slane %v1627, 2
          %vm1661 = vcmask 1046534
          %v1662 = vsel %vm1661, %v1660, %v1659
          %v1663 = vrot.slane %v1628, 1
          %vm1664 = vcmask 1047559
          %v1665 = vsel %vm1664, %v1663, %v1662
          %v1666 = vrot.slane %v1630, 7
          %v1667 = vsel %vm1646, %v1666, %v1629
          %v1668 = vrot.slane %v1631, 6
          %v1669 = vsel %vm1649, %v1668, %v1667
          %v1670 = vrot.slane %v1632, 5
          %v1671 = vsel %vm1652, %v1670, %v1669
          %s1674 = smul.u32 %s386, 16
          %s1675 = scalar_lea.vmem [#allocation2], %s1674
          %1676 = vst [vmem:[%s1675] sm:$0xff] %v1665
          %1677 = vst [vmem:[%s1675 + $0x8] sm:$0xf] %v1671
        $region69: #{net_dropout_forward.1} parent=63 // loop_footer
          %s390 = sadd.s32 1, %s386
        $region70: #{net_dropout_forward.1} parent=63 // loop_footer_branch
          %385 = sbr.rel target = $region66
        $region71: #{net_dropout_forward.1} parent=63 // loop_exit
          _
        %v1678 = vld [vmem:[#allocation2] sm:$0xff]
        %v1679 = vld [vmem:[#allocation2 + $0x10] sm:$0xff]
        %v1680 = vld [vmem:[#allocation2 + $0x20] sm:$0xff]
        %v1681 = vld [vmem:[#allocation2 + $0x30] sm:$0xff]
        %v1682 = vld [vmem:[#allocation2 + $0x40] sm:$0xff]
        %v1683 = vld [vmem:[#allocation2 + $0x50] sm:$0xff]
        %v1684 = vld [vmem:[#allocation2 + $0x60] sm:$0xff]
        %v1685 = vld [vmem:[#allocation2 + $0x70] sm:$0xff]
        %v1686 = vpack.c.bf16 %v1679, %v1678
        %v1687 = vpack.c.bf16 %v1681, %v1680
        %v1688 = vpack.c.bf16 %v1683, %v1682
        %v1689 = vpack.c.bf16 %v1685, %v1684
        %v1690 = vld [vmem:[%s3] sm:$0xf]
        %v1691 = vld [vmem:[%s3 + $0x4] sm:$0xf]
        %v1692 = vld [vmem:[%s3 + $0x8] sm:$0xf]
        %v1693 = vld [vmem:[%s3 + $0xc] sm:$0xf]
        %v1694 = vld [vmem:[%s3 + $0x10] sm:$0xf]
        %v1695 = vld [vmem:[%s3 + $0x14] sm:$0xf]
        %v1696 = vld [vmem:[%s3 + $0x18] sm:$0xf]
        %v1697 = vld [vmem:[%s3 + $0x1c] sm:$0xf]
        %v1698 = vld [vmem:[%s3 + $0x20] sm:$0xf]
        %v1699 = vld [vmem:[%s3 + $0x24] sm:$0xf]
        %v1700 = vld [vmem:[%s3 + $0x28] sm:$0xf]
        %v1701 = vld [vmem:[%s3 + $0x2c] sm:$0xf]
        %v1702 = vld [vmem:[%s3 + $0x30] sm:$0xf]
        %v1703 = vld [vmem:[%s3 + $0x34] sm:$0xf]
        %v1704 = vld [vmem:[%s3 + $0x38] sm:$0xf]
        %v1705 = vld [vmem:[%s3 + $0x3c] sm:$0xf]
        %v1706 = vld [vmem:[#allocation2 + $0x1] sm:$0xff]
        %v1707 = vld [vmem:[#allocation2 + $0x11] sm:$0xff]
        %v1708 = vld [vmem:[#allocation2 + $0x21] sm:$0xff]
        %v1709 = vld [vmem:[#allocation2 + $0x31] sm:$0xff]
        %v1710 = vld [vmem:[#allocation2 + $0x41] sm:$0xff]
        %v1711 = vld [vmem:[#allocation2 + $0x51] sm:$0xff]
        %v1712 = vld [vmem:[#allocation2 + $0x61] sm:$0xff]
        %v1713 = vld [vmem:[#allocation2 + $0x71] sm:$0xff]
        %v1714 = vpack.c.bf16 %v1707, %v1706
        %v1715 = vpack.c.bf16 %v1709, %v1708
        %v1716 = vpack.c.bf16 %v1711, %v1710
        %v1717 = vpack.c.bf16 %v1713, %v1712
        %s1718 = scalar_lea.vmem %s3, 64
        %v1719 = vld [vmem:[%s1718] sm:$0xf]
        %v1720 = vld [vmem:[%s1718 + $0x4] sm:$0xf]
        %v1721 = vld [vmem:[%s1718 + $0x8] sm:$0xf]
        %v1722 = vld [vmem:[%s1718 + $0xc] sm:$0xf]
        %v1723 = vld [vmem:[%s1718 + $0x10] sm:$0xf]
        %v1724 = vld [vmem:[%s1718 + $0x14] sm:$0xf]
        %v1725 = vld [vmem:[%s1718 + $0x18] sm:$0xf]
        %v1726 = vld [vmem:[%s1718 + $0x1c] sm:$0xf]
        %v1727 = vld [vmem:[%s1718 + $0x20] sm:$0xf]
        %v1728 = vld [vmem:[%s1718 + $0x24] sm:$0xf]
        %v1729 = vld [vmem:[%s1718 + $0x28] sm:$0xf]
        %v1730 = vld [vmem:[%s1718 + $0x2c] sm:$0xf]
        %v1731 = vld [vmem:[%s1718 + $0x30] sm:$0xf]
        %v1732 = vld [vmem:[%s1718 + $0x34] sm:$0xf]
        %v1733 = vld [vmem:[%s1718 + $0x38] sm:$0xf]
        %v1734 = vld [vmem:[%s1718 + $0x3c] sm:$0xf]
        %v1751 = vunpack.c.l.b16 %v1719
        %v1752 = vunpack.c.l.b16 %v1720
        %v1753 = vunpack.c.l.b16 %v1721
        %v1754 = vunpack.c.l.b16 %v1722
        %v1755 = vunpack.c.l.b16 %v1723
        %v1756 = vunpack.c.l.b16 %v1724
        %v1757 = vunpack.c.l.b16 %v1725
        %v1758 = vunpack.c.l.b16 %v1726
        %v1759 = vunpack.c.l.b16 %v1727
        %v1760 = vunpack.c.l.b16 %v1728
        %v1761 = vunpack.c.l.b16 %v1729
        %v1762 = vunpack.c.l.b16 %v1730
        %v1763 = vunpack.c.l.b16 %v1731
        %v1764 = vunpack.c.l.b16 %v1732
        %v1765 = vunpack.c.l.b16 %v1733
        %v1766 = vunpack.c.l.b16 %v1734
        %v1767 = vpack.c.b16 %v1752, %v1751
        %v1768 = vpack.c.b16 %v1754, %v1753
        %v1769 = vpack.c.b16 %v1756, %v1755
        %v1770 = vpack.c.b16 %v1758, %v1757
        %v1771 = vpack.c.b16 %v1760, %v1759
        %v1772 = vpack.c.b16 %v1762, %v1761
        %v1773 = vpack.c.b16 %v1764, %v1763
        %v1774 = vpack.c.b16 %v1766, %v1765
        %1783 = vmatprep.subr.bf16.mxu0 0
        %1784 = vmatpush1.bf16.msra.mxu0 %v1767
        %1785 = vmatprep.subr.bf16.mxu0 0
        %1786 = vmatpush1.bf16.msra.mxu0 %v1768
        %1787 = vmatprep.subr.bf16.mxu0 0
        %1788 = vmatpush1.bf16.msra.mxu0 %v1769
        %1789 = vmatprep.subr.bf16.mxu0 0
        %1790 = vmatpush1.bf16.msra.mxu0 %v1770
        %1791 = vmatprep.subr.bf16.mxu0 0
        %1792 = vmatpush1.bf16.msra.mxu0 %v1771
        %1793 = vmatprep.subr.bf16.mxu0 0
        %1794 = vmatpush1.bf16.msra.mxu0 %v1772
        %1795 = vmatprep.subr.bf16.mxu0 0
        %1796 = vmatpush1.bf16.msra.mxu0 %v1773
        %1797 = vmatprep.subr.bf16.mxu0 0
        %1798 = vmatpush1.bf16.msra.mxu0 %v1774
        %1799 = vmatprep.subr.bf16.mxu0 0
        %1800 = vmatpush1.bf16.msra.mxu0 0
        %1801 = vmatprep.subr.bf16.mxu0 0
        %1802 = vmatpush1.bf16.msra.mxu0 0
        %1803 = vmatprep.subr.bf16.mxu0 0
        %1804 = vmatpush1.bf16.msra.mxu0 0
        %1805 = vmatprep.subr.bf16.mxu0 0
        %1806 = vmatpush1.bf16.msra.mxu0 0
        %1807 = vmatprep.subr.bf16.mxu0 0
        %1808 = vmatpush1.bf16.msra.mxu0 0
        %1809 = vmatprep.subr.bf16.mxu0 0
        %1810 = vmatpush1.bf16.msra.mxu0 0
        %1811 = vmatprep.subr.bf16.mxu0 0
        %1812 = vmatpush1.bf16.msra.mxu0 0
        %1813 = vmatprep.subr.bf16.mxu0 0
        %1814 = vmatpush1.bf16.msra.mxu0 0
        %1815 = vmatprep.mubr.bf16.mxu0 0
        %1816 = vmatmul.mubr.bf16.gmra.mrb[0].mxu0 %v1714
        %v1817 = vpop.f32.mrb[0].mxu0
        %v1818 = vadd.f32 0.0, %v1817
        %v1819 = vpop.f32.mrb[0].mxu0
        %v1820 = vpop.f32.mrb[0].mxu0
        %v1821 = vadd.f32 0.0, %v1820
        %v1822 = vpop.f32.mrb[0].mxu0
        %1823 = vmatprep.mubr.bf16.mxu0 0
        %1824 = vmatmul.mubr.bf16.gmra.mrb[0].mxu0 %v1715
        %v1825 = vpop.f32.mrb[0].mxu0
        %v1826 = vadd.f32 0.0, %v1825
        %v1827 = vpop.f32.mrb[0].mxu0
        %v1828 = vpop.f32.mrb[0].mxu0
        %v1829 = vadd.f32 0.0, %v1828
        %v1830 = vpop.f32.mrb[0].mxu0
        %1831 = vmatprep.mubr.bf16.mxu0 0
        %1832 = vmatmul.mubr.bf16.gmra.mrb[0].mxu0 %v1716
        %v1833 = vpop.f32.mrb[0].mxu0
        %v1834 = vadd.f32 0.0, %v1833
        %v1835 = vpop.f32.mrb[0].mxu0
        %v1836 = vpop.f32.mrb[0].mxu0
        %v1837 = vadd.f32 0.0, %v1836
        %v1838 = vpop.f32.mrb[0].mxu0
        %1839 = vmatprep.mubr.bf16.mxu0 0
        %1840 = vmatmul.mubr.bf16.gmra.mrb[0].mxu0 %v1717
        %v1841 = vpop.f32.mrb[0].mxu0
        %v1842 = vadd.f32 0.0, %v1841
        %v1843 = vpop.f32.mrb[0].mxu0
        %v1844 = vpop.f32.mrb[0].mxu0
        %v1845 = vadd.f32 0.0, %v1844
        %v1846 = vpop.f32.mrb[0].mxu0
        %1847 = vdwg.mxu0
        %v1864 = vunpack.c.l.b16 %v1690
        %v1865 = vunpack.c.l.b16 %v1691
        %v1866 = vunpack.c.l.b16 %v1692
        %v1867 = vunpack.c.l.b16 %v1693
        %v1868 = vunpack.c.l.b16 %v1694
        %v1869 = vunpack.c.l.b16 %v1695
        %v1870 = vunpack.c.l.b16 %v1696
        %v1871 = vunpack.c.l.b16 %v1697
        %v1872 = vunpack.c.l.b16 %v1698
        %v1873 = vunpack.c.l.b16 %v1699
        %v1874 = vunpack.c.l.b16 %v1700
        %v1875 = vunpack.c.l.b16 %v1701
        %v1876 = vunpack.c.l.b16 %v1702
        %v1877 = vunpack.c.l.b16 %v1703
        %v1878 = vunpack.c.l.b16 %v1704
        %v1879 = vunpack.c.l.b16 %v1705
        %v1880 = vpack.c.b16 %v1865, %v1864
        %v1881 = vpack.c.b16 %v1867, %v1866
        %v1882 = vpack.c.b16 %v1869, %v1868
        %v1883 = vpack.c.b16 %v1871, %v1870
        %v1884 = vpack.c.b16 %v1873, %v1872
        %v1885 = vpack.c.b16 %v1875, %v1874
        %v1886 = vpack.c.b16 %v1877, %v1876
        %v1887 = vpack.c.b16 %v1879, %v1878
        %1896 = vmatprep.subr.bf16.mxu0 0
        %1897 = vmatpush1.bf16.msra.mxu0 %v1880
        %1898 = vmatprep.subr.bf16.mxu0 0
        %1899 = vmatpush1.bf16.msra.mxu0 %v1881
        %1900 = vmatprep.subr.bf16.mxu0 0
        %1901 = vmatpush1.bf16.msra.mxu0 %v1882
        %1902 = vmatprep.subr.bf16.mxu0 0
        %1903 = vmatpush1.bf16.msra.mxu0 %v1883
        %1904 = vmatprep.subr.bf16.mxu0 0
        %1905 = vmatpush1.bf16.msra.mxu0 %v1884
        %1906 = vmatprep.subr.bf16.mxu0 0
        %1907 = vmatpush1.bf16.msra.mxu0 %v1885
        %1908 = vmatprep.subr.bf16.mxu0 0
        %1909 = vmatpush1.bf16.msra.mxu0 %v1886
        %1910 = vmatprep.subr.bf16.mxu0 0
        %1911 = vmatpush1.bf16.msra.mxu0 %v1887
        %1912 = vmatprep.subr.bf16.mxu0 0
        %1913 = vmatpush1.bf16.msra.mxu0 0
        %1914 = vmatprep.subr.bf16.mxu0 0
        %1915 = vmatpush1.bf16.msra.mxu0 0
        %1916 = vmatprep.subr.bf16.mxu0 0
        %1917 = vmatpush1.bf16.msra.mxu0 0
        %1918 = vmatprep.subr.bf16.mxu0 0
        %1919 = vmatpush1.bf16.msra.mxu0 0
        %1920 = vmatprep.subr.bf16.mxu0 0
        %1921 = vmatpush1.bf16.msra.mxu0 0
        %1922 = vmatprep.subr.bf16.mxu0 0
        %1923 = vmatpush1.bf16.msra.mxu0 0
        %1924 = vmatprep.subr.bf16.mxu0 0
        %1925 = vmatpush1.bf16.msra.mxu0 0
        %1926 = vmatprep.subr.bf16.mxu0 0
        %1927 = vmatpush1.bf16.msra.mxu0 0
        %1928 = vmatprep.mubr.bf16.mxu0 0
        %1929 = vmatmul.mubr.bf16.gmra.mrb[0].mxu0 %v1686
        %v1930 = vpop.f32.mrb[0].mxu0
        %v1931 = vadd.f32 %v1818, %v1930
        %v1932 = vpop.f32.mrb[0].mxu0
        %v1933 = vpop.f32.mrb[0].mxu0
        %v1934 = vadd.f32 %v1821, %v1933
        %v1935 = vpop.f32.mrb[0].mxu0
        %1936 = vmatprep.mubr.bf16.mxu0 0
        %1937 = vmatmul.mubr.bf16.gmra.mrb[0].mxu0 %v1687
        %v1938 = vpop.f32.mrb[0].mxu0
        %v1939 = vadd.f32 %v1826, %v1938
        %v1940 = vpop.f32.mrb[0].mxu0
        %v1941 = vpop.f32.mrb[0].mxu0
        %v1942 = vadd.f32 %v1829, %v1941
        %v1943 = vpop.f32.mrb[0].mxu0
        %1944 = vmatprep.mubr.bf16.mxu0 0
        %1945 = vmatmul.mubr.bf16.gmra.mrb[0].mxu0 %v1688
        %v1946 = vpop.f32.mrb[0].mxu0
        %v1947 = vadd.f32 %v1834, %v1946
        %v1948 = vpop.f32.mrb[0].mxu0
        %v1949 = vpop.f32.mrb[0].mxu0
        %v1950 = vadd.f32 %v1837, %v1949
        %v1951 = vpop.f32.mrb[0].mxu0
        %1952 = vmatprep.mubr.bf16.mxu0 0
        %1953 = vmatmul.mubr.bf16.gmra.mrb[0].mxu0 %v1689
        %v1954 = vpop.f32.mrb[0].mxu0
        %v1955 = vadd.f32 %v1842, %v1954
        %v1956 = vpop.f32.mrb[0].mxu0
        %v1957 = vpop.f32.mrb[0].mxu0
        %v1958 = vadd.f32 %v1845, %v1957
        %v1959 = vpop.f32.mrb[0].mxu0
        %1960 = vdwg.mxu0
        %v1961 = vld [vmem:[#allocation2 + $0x2] sm:$0xff]
        %v1962 = vld [vmem:[#allocation2 + $0x12] sm:$0xff]
        %v1963 = vld [vmem:[#allocation2 + $0x22] sm:$0xff]
        %v1964 = vld [vmem:[#allocation2 + $0x32] sm:$0xff]
        %v1965 = vld [vmem:[#allocation2 + $0x42] sm:$0xff]
        %v1966 = vld [vmem:[#allocation2 + $0x52] sm:$0xff]
        %v1967 = vld [vmem:[#allocation2 + $0x62] sm:$0xff]
        %v1968 = vld [vmem:[#allocation2 + $0x72] sm:$0xff]
        %v1969 = vpack.c.bf16 %v1962, %v1961
        %v1970 = vpack.c.bf16 %v1964, %v1963
        %v1971 = vpack.c.bf16 %v1966, %v1965
        %v1972 = vpack.c.bf16 %v1968, %v1967
        %s1973 = scalar_lea.vmem %s3, 128
        %v1974 = vld [vmem:[%s1973] sm:$0xf]
        %v1975 = vld [vmem:[%s1973 + $0x4] sm:$0xf]
        %v1976 = vld [vmem:[%s1973 + $0x8] sm:$0xf]
        %v1977 = vld [vmem:[%s1973 + $0xc] sm:$0xf]
        %v1978 = vld [vmem:[%s1973 + $0x10] sm:$0xf]
        %v1979 = vld [vmem:[%s1973 + $0x14] sm:$0xf]
        %v1980 = vld [vmem:[%s1973 + $0x18] sm:$0xf]
        %v1981 = vld [vmem:[%s1973 + $0x1c] sm:$0xf]
        %v1982 = vld [vmem:[%s1973 + $0x20] sm:$0xf]
        %v1983 = vld [vmem:[%s1973 + $0x24] sm:$0xf]
        %v1984 = vld [vmem:[%s1973 + $0x28] sm:$0xf]
        %v1985 = vld [vmem:[%s1973 + $0x2c] sm:$0xf]
        %v1986 = vld [vmem:[%s1973 + $0x30] sm:$0xf]
        %v1987 = vld [vmem:[%s1973 + $0x34] sm:$0xf]
        %v1988 = vld [vmem:[%s1973 + $0x38] sm:$0xf]
        %v1989 = vld [vmem:[%s1973 + $0x3c] sm:$0xf]
        %v2006 = vunpack.c.l.b16 %v1974
        %v2007 = vunpack.c.l.b16 %v1975
        %v2008 = vunpack.c.l.b16 %v1976
        %v2009 = vunpack.c.l.b16 %v1977
        %v2010 = vunpack.c.l.b16 %v1978
        %v2011 = vunpack.c.l.b16 %v1979
        %v2012 = vunpack.c.l.b16 %v1980
        %v2013 = vunpack.c.l.b16 %v1981
        %v2014 = vunpack.c.l.b16 %v1982
        %v2015 = vunpack.c.l.b16 %v1983
        %v2016 = vunpack.c.l.b16 %v1984
        %v2017 = vunpack.c.l.b16 %v1985
        %v2018 = vunpack.c.l.b16 %v1986
        %v2019 = vunpack.c.l.b16 %v1987
        %v2020 = vunpack.c.l.b16 %v1988
        %v2021 = vunpack.c.l.b16 %v1989
        %v2022 = vpack.c.b16 %v2007, %v2006
        %v2023 = vpack.c.b16 %v2009, %v2008
        %v2024 = vpack.c.b16 %v2011, %v2010
        %v2025 = vpack.c.b16 %v2013, %v2012
        %v2026 = vpack.c.b16 %v2015, %v2014
        %v2027 = vpack.c.b16 %v2017, %v2016
        %v2028 = vpack.c.b16 %v2019, %v2018
        %v2029 = vpack.c.b16 %v2021, %v2020
        %2038 = vmatprep.subr.bf16.mxu0 0
        %2039 = vmatpush1.bf16.msra.mxu0 %v2022
        %2040 = vmatprep.subr.bf16.mxu0 0
        %2041 = vmatpush1.bf16.msra.mxu0 %v2023
        %2042 = vmatprep.subr.bf16.mxu0 0
        %2043 = vmatpush1.bf16.msra.mxu0 %v2024
        %2044 = vmatprep.subr.bf16.mxu0 0
        %2045 = vmatpush1.bf16.msra.mxu0 %v2025
        %2046 = vmatprep.subr.bf16.mxu0 0
        %2047 = vmatpush1.bf16.msra.mxu0 %v2026
        %2048 = vmatprep.subr.bf16.mxu0 0
        %2049 = vmatpush1.bf16.msra.mxu0 %v2027
        %2050 = vmatprep.subr.bf16.mxu0 0
        %2051 = vmatpush1.bf16.msra.mxu0 %v2028
        %2052 = vmatprep.subr.bf16.mxu0 0
        %2053 = vmatpush1.bf16.msra.mxu0 %v2029
        %2054 = vmatprep.subr.bf16.mxu0 0
        %2055 = vmatpush1.bf16.msra.mxu0 0
        %2056 = vmatprep.subr.bf16.mxu0 0
        %2057 = vmatpush1.bf16.msra.mxu0 0
        %2058 = vmatprep.subr.bf16.mxu0 0
        %2059 = vmatpush1.bf16.msra.mxu0 0
        %2060 = vmatprep.subr.bf16.mxu0 0
        %2061 = vmatpush1.bf16.msra.mxu0 0
        %2062 = vmatprep.subr.bf16.mxu0 0
        %2063 = vmatpush1.bf16.msra.mxu0 0
        %2064 = vmatprep.subr.bf16.mxu0 0
        %2065 = vmatpush1.bf16.msra.mxu0 0
        %2066 = vmatprep.subr.bf16.mxu0 0
        %2067 = vmatpush1.bf16.msra.mxu0 0
        %2068 = vmatprep.subr.bf16.mxu0 0
        %2069 = vmatpush1.bf16.msra.mxu0 0
        %2070 = vmatprep.mubr.bf16.mxu0 0
        %2071 = vmatmul.mubr.bf16.gmra.mrb[0].mxu0 %v1969
        %v2072 = vpop.f32.mrb[0].mxu0
        %v2073 = vadd.f32 0.0, %v2072
        %v2074 = vpop.f32.mrb[0].mxu0
        %v2075 = vpop.f32.mrb[0].mxu0
        %v2076 = vadd.f32 0.0, %v2075
        %v2077 = vpop.f32.mrb[0].mxu0
        %2078 = vmatprep.mubr.bf16.mxu0 0
        %2079 = vmatmul.mubr.bf16.gmra.mrb[0].mxu0 %v1970
        %v2080 = vpop.f32.mrb[0].mxu0
        %v2081 = vadd.f32 0.0, %v2080
        %v2082 = vpop.f32.mrb[0].mxu0
        %v2083 = vpop.f32.mrb[0].mxu0
        %v2084 = vadd.f32 0.0, %v2083
        %v2085 = vpop.f32.mrb[0].mxu0
        %2086 = vmatprep.mubr.bf16.mxu0 0
        %2087 = vmatmul.mubr.bf16.gmra.mrb[0].mxu0 %v1971
        %v2088 = vpop.f32.mrb[0].mxu0
        %v2089 = vadd.f32 0.0, %v2088
        %v2090 = vpop.f32.mrb[0].mxu0
        %v2091 = vpop.f32.mrb[0].mxu0
        %v2092 = vadd.f32 0.0, %v2091
        %v2093 = vpop.f32.mrb[0].mxu0
        %2094 = vmatprep.mubr.bf16.mxu0 0
        %2095 = vmatmul.mubr.bf16.gmra.mrb[0].mxu0 %v1972
        %v2096 = vpop.f32.mrb[0].mxu0
        %v2097 = vadd.f32 0.0, %v2096
        %v2098 = vpop.f32.mrb[0].mxu0
        %v2099 = vpop.f32.mrb[0].mxu0
        %v2100 = vadd.f32 0.0, %v2099
        %v2101 = vpop.f32.mrb[0].mxu0
        %2102 = vdwg.mxu0
        %v2103 = vadd.f32 %v1931, %v2073
        %v2104 = vadd.f32 %v1934, %v2076
        %v2105 = vadd.f32 %v1939, %v2081
        %v2106 = vadd.f32 %v1942, %v2084
        %v2107 = vadd.f32 %v1947, %v2089
        %v2108 = vadd.f32 %v1950, %v2092
        %v2109 = vadd.f32 %v1955, %v2097
        %v2110 = vadd.f32 %v1958, %v2100
        %v2111 = vld [vmem:[#allocation2 + $0x3] sm:$0xff]
        %v2112 = vld [vmem:[#allocation2 + $0x13] sm:$0xff]
        %v2113 = vld [vmem:[#allocation2 + $0x23] sm:$0xff]
        %v2114 = vld [vmem:[#allocation2 + $0x33] sm:$0xff]
        %v2115 = vld [vmem:[#allocation2 + $0x43] sm:$0xff]
        %v2116 = vld [vmem:[#allocation2 + $0x53] sm:$0xff]
        %v2117 = vld [vmem:[#allocation2 + $0x63] sm:$0xff]
        %v2118 = vld [vmem:[#allocation2 + $0x73] sm:$0xff]
        %v2119 = vpack.c.bf16 %v2112, %v2111
        %v2120 = vpack.c.bf16 %v2114, %v2113
        %v2121 = vpack.c.bf16 %v2116, %v2115
        %v2122 = vpack.c.bf16 %v2118, %v2117
        %s2123 = scalar_lea.vmem %s3, 192
        %v2124 = vld [vmem:[%s2123] sm:$0xf]
        %v2125 = vld [vmem:[%s2123 + $0x4] sm:$0xf]
        %v2126 = vld [vmem:[%s2123 + $0x8] sm:$0xf]
        %v2127 = vld [vmem:[%s2123 + $0xc] sm:$0xf]
        %v2128 = vld [vmem:[%s2123 + $0x10] sm:$0xf]
        %v2129 = vld [vmem:[%s2123 + $0x14] sm:$0xf]
        %v2130 = vld [vmem:[%s2123 + $0x18] sm:$0xf]
        %v2131 = vld [vmem:[%s2123 + $0x1c] sm:$0xf]
        %v2132 = vld [vmem:[%s2123 + $0x20] sm:$0xf]
        %v2133 = vld [vmem:[%s2123 + $0x24] sm:$0xf]
        %v2134 = vld [vmem:[%s2123 + $0x28] sm:$0xf]
        %v2135 = vld [vmem:[%s2123 + $0x2c] sm:$0xf]
        %v2136 = vld [vmem:[%s2123 + $0x30] sm:$0xf]
        %v2137 = vld [vmem:[%s2123 + $0x34] sm:$0xf]
        %v2138 = vld [vmem:[%s2123 + $0x38] sm:$0xf]
        %v2139 = vld [vmem:[%s2123 + $0x3c] sm:$0xf]
        %v2156 = vunpack.c.l.b16 %v2124
        %v2157 = vunpack.c.l.b16 %v2125
        %v2158 = vunpack.c.l.b16 %v2126
        %v2159 = vunpack.c.l.b16 %v2127
        %v2160 = vunpack.c.l.b16 %v2128
        %v2161 = vunpack.c.l.b16 %v2129
        %v2162 = vunpack.c.l.b16 %v2130
        %v2163 = vunpack.c.l.b16 %v2131
        %v2164 = vunpack.c.l.b16 %v2132
        %v2165 = vunpack.c.l.b16 %v2133
        %v2166 = vunpack.c.l.b16 %v2134
        %v2167 = vunpack.c.l.b16 %v2135
        %v2168 = vunpack.c.l.b16 %v2136
        %v2169 = vunpack.c.l.b16 %v2137
        %v2170 = vunpack.c.l.b16 %v2138
        %v2171 = vunpack.c.l.b16 %v2139
        %v2172 = vpack.c.b16 %v2157, %v2156
        %v2173 = vpack.c.b16 %v2159, %v2158
        %v2174 = vpack.c.b16 %v2161, %v2160
        %v2175 = vpack.c.b16 %v2163, %v2162
        %v2176 = vpack.c.b16 %v2165, %v2164
        %v2177 = vpack.c.b16 %v2167, %v2166
        %v2178 = vpack.c.b16 %v2169, %v2168
        %v2179 = vpack.c.b16 %v2171, %v2170
        %2188 = vmatprep.subr.bf16.mxu0 0
        %2189 = vmatpush1.bf16.msra.mxu0 %v2172
        %2190 = vmatprep.subr.bf16.mxu0 0
        %2191 = vmatpush1.bf16.msra.mxu0 %v2173
        %2192 = vmatprep.subr.bf16.mxu0 0
        %2193 = vmatpush1.bf16.msra.mxu0 %v2174
        %2194 = vmatprep.subr.bf16.mxu0 0
        %2195 = vmatpush1.bf16.msra.mxu0 %v2175
        %2196 = vmatprep.subr.bf16.mxu0 0
        %2197 = vmatpush1.bf16.msra.mxu0 %v2176
        %2198 = vmatprep.subr.bf16.mxu0 0
        %2199 = vmatpush1.bf16.msra.mxu0 %v2177
        %2200 = vmatprep.subr.bf16.mxu0 0
        %2201 = vmatpush1.bf16.msra.mxu0 %v2178
        %2202 = vmatprep.subr.bf16.mxu0 0
        %2203 = vmatpush1.bf16.msra.mxu0 %v2179
        %2204 = vmatprep.subr.bf16.mxu0 0
        %2205 = vmatpush1.bf16.msra.mxu0 0
        %2206 = vmatprep.subr.bf16.mxu0 0
        %2207 = vmatpush1.bf16.msra.mxu0 0
        %2208 = vmatprep.subr.bf16.mxu0 0
        %2209 = vmatpush1.bf16.msra.mxu0 0
        %2210 = vmatprep.subr.bf16.mxu0 0
        %2211 = vmatpush1.bf16.msra.mxu0 0
        %2212 = vmatprep.subr.bf16.mxu0 0
        %2213 = vmatpush1.bf16.msra.mxu0 0
        %2214 = vmatprep.subr.bf16.mxu0 0
        %2215 = vmatpush1.bf16.msra.mxu0 0
        %2216 = vmatprep.subr.bf16.mxu0 0
        %2217 = vmatpush1.bf16.msra.mxu0 0
        %2218 = vmatprep.subr.bf16.mxu0 0
        %2219 = vmatpush1.bf16.msra.mxu0 0
        %2220 = vmatprep.mubr.bf16.mxu0 0
        %2221 = vmatmul.mubr.bf16.gmra.mrb[0].mxu0 %v2119
        %v2222 = vpop.f32.mrb[0].mxu0
        %v2223 = vadd.f32 0.0, %v2222
        %v2224 = vpop.f32.mrb[0].mxu0
        %v2225 = vpop.f32.mrb[0].mxu0
        %v2226 = vadd.f32 0.0, %v2225
        %v2227 = vpop.f32.mrb[0].mxu0
        %2228 = vmatprep.mubr.bf16.mxu0 0
        %2229 = vmatmul.mubr.bf16.gmra.mrb[0].mxu0 %v2120
        %v2230 = vpop.f32.mrb[0].mxu0
        %v2231 = vadd.f32 0.0, %v2230
        %v2232 = vpop.f32.mrb[0].mxu0
        %v2233 = vpop.f32.mrb[0].mxu0
        %v2234 = vadd.f32 0.0, %v2233
        %v2235 = vpop.f32.mrb[0].mxu0
        %2236 = vmatprep.mubr.bf16.mxu0 0
        %2237 = vmatmul.mubr.bf16.gmra.mrb[0].mxu0 %v2121
        %v2238 = vpop.f32.mrb[0].mxu0
        %v2239 = vadd.f32 0.0, %v2238
        %v2240 = vpop.f32.mrb[0].mxu0
        %v2241 = vpop.f32.mrb[0].mxu0
        %v2242 = vadd.f32 0.0, %v2241
        %v2243 = vpop.f32.mrb[0].mxu0
        %2244 = vmatprep.mubr.bf16.mxu0 0
        %2245 = vmatmul.mubr.bf16.gmra.mrb[0].mxu0 %v2122
        %v2246 = vpop.f32.mrb[0].mxu0
        %v2247 = vadd.f32 0.0, %v2246
        %v2248 = vpop.f32.mrb[0].mxu0
        %v2249 = vpop.f32.mrb[0].mxu0
        %v2250 = vadd.f32 0.0, %v2249
        %v2251 = vpop.f32.mrb[0].mxu0
        %2252 = vdwg.mxu0
        %v2253 = vadd.f32 %v2103, %v2223
        %v2254 = vadd.f32 %v2104, %v2226
        %v2255 = vadd.f32 %v2105, %v2231
        %v2256 = vadd.f32 %v2106, %v2234
        %v2257 = vadd.f32 %v2107, %v2239
        %v2258 = vadd.f32 %v2108, %v2242
        %v2259 = vadd.f32 %v2109, %v2247
        %v2260 = vadd.f32 %v2110, %v2250
        %v2261 = vld [vmem:[#allocation2 + $0x4] sm:$0xff]
        %v2262 = vld [vmem:[#allocation2 + $0x14] sm:$0xff]
        %v2263 = vld [vmem:[#allocation2 + $0x24] sm:$0xff]
        %v2264 = vld [vmem:[#allocation2 + $0x34] sm:$0xff]
        %v2265 = vld [vmem:[#allocation2 + $0x44] sm:$0xff]
        %v2266 = vld [vmem:[#allocation2 + $0x54] sm:$0xff]
        %v2267 = vld [vmem:[#allocation2 + $0x64] sm:$0xff]
        %v2268 = vld [vmem:[#allocation2 + $0x74] sm:$0xff]
        %v2269 = vpack.c.bf16 %v2262, %v2261
        %v2270 = vpack.c.bf16 %v2264, %v2263
        %v2271 = vpack.c.bf16 %v2266, %v2265
        %v2272 = vpack.c.bf16 %v2268, %v2267
        %s2273 = scalar_lea.vmem %s3, 256
        %v2274 = vld [vmem:[%s2273] sm:$0xf]
        %v2275 = vld [vmem:[%s2273 + $0x4] sm:$0xf]
        %v2276 = vld [vmem:[%s2273 + $0x8] sm:$0xf]
        %v2277 = vld [vmem:[%s2273 + $0xc] sm:$0xf]
        %v2278 = vld [vmem:[%s2273 + $0x10] sm:$0xf]
        %v2279 = vld [vmem:[%s2273 + $0x14] sm:$0xf]
        %v2280 = vld [vmem:[%s2273 + $0x18] sm:$0xf]
        %v2281 = vld [vmem:[%s2273 + $0x1c] sm:$0xf]
        %v2282 = vld [vmem:[%s2273 + $0x20] sm:$0xf]
        %v2283 = vld [vmem:[%s2273 + $0x24] sm:$0xf]
        %v2284 = vld [vmem:[%s2273 + $0x28] sm:$0xf]
        %v2285 = vld [vmem:[%s2273 + $0x2c] sm:$0xf]
        %v2286 = vld [vmem:[%s2273 + $0x30] sm:$0xf]
        %v2287 = vld [vmem:[%s2273 + $0x34] sm:$0xf]
        %v2288 = vld [vmem:[%s2273 + $0x38] sm:$0xf]
        %v2289 = vld [vmem:[%s2273 + $0x3c] sm:$0xf]
        %v2306 = vunpack.c.l.b16 %v2274
        %v2307 = vunpack.c.l.b16 %v2275
        %v2308 = vunpack.c.l.b16 %v2276
        %v2309 = vunpack.c.l.b16 %v2277
        %v2310 = vunpack.c.l.b16 %v2278
        %v2311 = vunpack.c.l.b16 %v2279
        %v2312 = vunpack.c.l.b16 %v2280
        %v2313 = vunpack.c.l.b16 %v2281
        %v2314 = vunpack.c.l.b16 %v2282
        %v2315 = vunpack.c.l.b16 %v2283
        %v2316 = vunpack.c.l.b16 %v2284
        %v2317 = vunpack.c.l.b16 %v2285
        %v2318 = vunpack.c.l.b16 %v2286
        %v2319 = vunpack.c.l.b16 %v2287
        %v2320 = vunpack.c.l.b16 %v2288
        %v2321 = vunpack.c.l.b16 %v2289
        %v2322 = vpack.c.b16 %v2307, %v2306
        %v2323 = vpack.c.b16 %v2309, %v2308
        %v2324 = vpack.c.b16 %v2311, %v2310
        %v2325 = vpack.c.b16 %v2313, %v2312
        %v2326 = vpack.c.b16 %v2315, %v2314
        %v2327 = vpack.c.b16 %v2317, %v2316
        %v2328 = vpack.c.b16 %v2319, %v2318
        %v2329 = vpack.c.b16 %v2321, %v2320
        %2338 = vmatprep.subr.bf16.mxu0 0
        %2339 = vmatpush1.bf16.msra.mxu0 %v2322
        %2340 = vmatprep.subr.bf16.mxu0 0
        %2341 = vmatpush1.bf16.msra.mxu0 %v2323
        %2342 = vmatprep.subr.bf16.mxu0 0
        %2343 = vmatpush1.bf16.msra.mxu0 %v2324
        %2344 = vmatprep.subr.bf16.mxu0 0
        %2345 = vmatpush1.bf16.msra.mxu0 %v2325
        %2346 = vmatprep.subr.bf16.mxu0 0
        %2347 = vmatpush1.bf16.msra.mxu0 %v2326
        %2348 = vmatprep.subr.bf16.mxu0 0
        %2349 = vmatpush1.bf16.msra.mxu0 %v2327
        %2350 = vmatprep.subr.bf16.mxu0 0
        %2351 = vmatpush1.bf16.msra.mxu0 %v2328
        %2352 = vmatprep.subr.bf16.mxu0 0
        %2353 = vmatpush1.bf16.msra.mxu0 %v2329
        %2354 = vmatprep.subr.bf16.mxu0 0
        %2355 = vmatpush1.bf16.msra.mxu0 0
        %2356 = vmatprep.subr.bf16.mxu0 0
        %2357 = vmatpush1.bf16.msra.mxu0 0
        %2358 = vmatprep.subr.bf16.mxu0 0
        %2359 = vmatpush1.bf16.msra.mxu0 0
        %2360 = vmatprep.subr.bf16.mxu0 0
        %2361 = vmatpush1.bf16.msra.mxu0 0
        %2362 = vmatprep.subr.bf16.mxu0 0
        %2363 = vmatpush1.bf16.msra.mxu0 0
        %2364 = vmatprep.subr.bf16.mxu0 0
        %2365 = vmatpush1.bf16.msra.mxu0 0
        %2366 = vmatprep.subr.bf16.mxu0 0
        %2367 = vmatpush1.bf16.msra.mxu0 0
        %2368 = vmatprep.subr.bf16.mxu0 0
        %2369 = vmatpush1.bf16.msra.mxu0 0
        %2370 = vmatprep.mubr.bf16.mxu0 0
        %2371 = vmatmul.mubr.bf16.gmra.mrb[0].mxu0 %v2269
        %v2372 = vpop.f32.mrb[0].mxu0
        %v2373 = vadd.f32 0.0, %v2372
        %v2374 = vpop.f32.mrb[0].mxu0
        %v2375 = vpop.f32.mrb[0].mxu0
        %v2376 = vadd.f32 0.0, %v2375
        %v2377 = vpop.f32.mrb[0].mxu0
        %2378 = vmatprep.mubr.bf16.mxu0 0
        %2379 = vmatmul.mubr.bf16.gmra.mrb[0].mxu0 %v2270
        %v2380 = vpop.f32.mrb[0].mxu0
        %v2381 = vadd.f32 0.0, %v2380
        %v2382 = vpop.f32.mrb[0].mxu0
        %v2383 = vpop.f32.mrb[0].mxu0
        %v2384 = vadd.f32 0.0, %v2383
        %v2385 = vpop.f32.mrb[0].mxu0
        %2386 = vmatprep.mubr.bf16.mxu0 0
        %2387 = vmatmul.mubr.bf16.gmra.mrb[0].mxu0 %v2271
        %v2388 = vpop.f32.mrb[0].mxu0
        %v2389 = vadd.f32 0.0, %v2388
        %v2390 = vpop.f32.mrb[0].mxu0
        %v2391 = vpop.f32.mrb[0].mxu0
        %v2392 = vadd.f32 0.0, %v2391
        %v2393 = vpop.f32.mrb[0].mxu0
        %2394 = vmatprep.mubr.bf16.mxu0 0
        %2395 = vmatmul.mubr.bf16.gmra.mrb[0].mxu0 %v2272
        %v2396 = vpop.f32.mrb[0].mxu0
        %v2397 = vadd.f32 0.0, %v2396
        %v2398 = vpop.f32.mrb[0].mxu0
        %v2399 = vpop.f32.mrb[0].mxu0
        %v2400 = vadd.f32 0.0, %v2399
        %v2401 = vpop.f32.mrb[0].mxu0
        %2402 = vdwg.mxu0
        %v2403 = vadd.f32 %v2253, %v2373
        %v2404 = vadd.f32 %v2254, %v2376
        %v2405 = vadd.f32 %v2255, %v2381
        %v2406 = vadd.f32 %v2256, %v2384
        %v2407 = vadd.f32 %v2257, %v2389
        %v2408 = vadd.f32 %v2258, %v2392
        %v2409 = vadd.f32 %v2259, %v2397
        %v2410 = vadd.f32 %v2260, %v2400
        %s2411 = scalar_lea.vmem [#allocation2], 16
        %v2412 = vld [vmem:[%s2411] sm:$0xff]
        %v2413 = vld [vmem:[%s2411 + $0x10] sm:$0xff]
        %v2414 = vld [vmem:[%s2411 + $0x20] sm:$0xff]
        %v2415 = vld [vmem:[%s2411 + $0x30] sm:$0xff]
        %v2416 = vld [vmem:[%s2411 + $0x40] sm:$0xff]
        %v2417 = vld [vmem:[%s2411 + $0x50] sm:$0xff]
        %v2418 = vld [vmem:[%s2411 + $0x60] sm:$0xff]
        %v2419 = vld [vmem:[%s2411 + $0x70] sm:$0xff]
        %v2420 = vpack.c.bf16 %v2413, %v2412
        %v2421 = vpack.c.bf16 %v2415, %v2414
        %v2422 = vpack.c.bf16 %v2417, %v2416
        %v2423 = vpack.c.bf16 %v2419, %v2418
        %s2424 = scalar_lea.vmem %s3, 320
        %v2425 = vld [vmem:[%s2424] sm:$0xf]
        %v2426 = vld [vmem:[%s2424 + $0x4] sm:$0xf]
        %v2427 = vld [vmem:[%s2424 + $0x8] sm:$0xf]
        %v2428 = vld [vmem:[%s2424 + $0xc] sm:$0xf]
        %v2429 = vld [vmem:[%s2424 + $0x10] sm:$0xf]
        %v2430 = vld [vmem:[%s2424 + $0x14] sm:$0xf]
        %v2431 = vld [vmem:[%s2424 + $0x18] sm:$0xf]
        %v2432 = vld [vmem:[%s2424 + $0x1c] sm:$0xf]
        %v2433 = vld [vmem:[%s2424 + $0x20] sm:$0xf]
        %v2434 = vld [vmem:[%s2424 + $0x24] sm:$0xf]
        %v2435 = vld [vmem:[%s2424 + $0x28] sm:$0xf]
        %v2436 = vld [vmem:[%s2424 + $0x2c] sm:$0xf]
        %v2437 = vld [vmem:[%s2424 + $0x30] sm:$0xf]
        %v2438 = vld [vmem:[%s2424 + $0x34] sm:$0xf]
        %v2439 = vld [vmem:[%s2424 + $0x38] sm:$0xf]
        %v2440 = vld [vmem:[%s2424 + $0x3c] sm:$0xf]
        %v2457 = vunpack.c.l.b16 %v2425
        %v2458 = vunpack.c.l.b16 %v2426
        %v2459 = vunpack.c.l.b16 %v2427
        %v2460 = vunpack.c.l.b16 %v2428
        %v2461 = vunpack.c.l.b16 %v2429
        %v2462 = vunpack.c.l.b16 %v2430
        %v2463 = vunpack.c.l.b16 %v2431
        %v2464 = vunpack.c.l.b16 %v2432
        %v2465 = vunpack.c.l.b16 %v2433
        %v2466 = vunpack.c.l.b16 %v2434
        %v2467 = vunpack.c.l.b16 %v2435
        %v2468 = vunpack.c.l.b16 %v2436
        %v2469 = vunpack.c.l.b16 %v2437
        %v2470 = vunpack.c.l.b16 %v2438
        %v2471 = vunpack.c.l.b16 %v2439
        %v2472 = vunpack.c.l.b16 %v2440
        %v2473 = vpack.c.b16 %v2458, %v2457
        %v2474 = vpack.c.b16 %v2460, %v2459
        %v2475 = vpack.c.b16 %v2462, %v2461
        %v2476 = vpack.c.b16 %v2464, %v2463
        %v2477 = vpack.c.b16 %v2466, %v2465
        %v2478 = vpack.c.b16 %v2468, %v2467
        %v2479 = vpack.c.b16 %v2470, %v2469
        %v2480 = vpack.c.b16 %v2472, %v2471
        %2489 = vmatprep.subr.bf16.mxu0 0
        %2490 = vmatpush1.bf16.msra.mxu0 %v2473
        %2491 = vmatprep.subr.bf16.mxu0 0
        %2492 = vmatpush1.bf16.msra.mxu0 %v2474
        %2493 = vmatprep.subr.bf16.mxu0 0
        %2494 = vmatpush1.bf16.msra.mxu0 %v2475
        %2495 = vmatprep.subr.bf16.mxu0 0
        %2496 = vmatpush1.bf16.msra.mxu0 %v2476
        %2497 = vmatprep.subr.bf16.mxu0 0
        %2498 = vmatpush1.bf16.msra.mxu0 %v2477
        %2499 = vmatprep.subr.bf16.mxu0 0
        %2500 = vmatpush1.bf16.msra.mxu0 %v2478
        %2501 = vmatprep.subr.bf16.mxu0 0
        %2502 = vmatpush1.bf16.msra.mxu0 %v2479
        %2503 = vmatprep.subr.bf16.mxu0 0
        %2504 = vmatpush1.bf16.msra.mxu0 %v2480
        %2505 = vmatprep.subr.bf16.mxu0 0
        %2506 = vmatpush1.bf16.msra.mxu0 0
        %2507 = vmatprep.subr.bf16.mxu0 0
        %2508 = vmatpush1.bf16.msra.mxu0 0
        %2509 = vmatprep.subr.bf16.mxu0 0
        %2510 = vmatpush1.bf16.msra.mxu0 0
        %2511 = vmatprep.subr.bf16.mxu0 0
        %2512 = vmatpush1.bf16.msra.mxu0 0
        %2513 = vmatprep.subr.bf16.mxu0 0
        %2514 = vmatpush1.bf16.msra.mxu0 0
        %2515 = vmatprep.subr.bf16.mxu0 0
        %2516 = vmatpush1.bf16.msra.mxu0 0
        %2517 = vmatprep.subr.bf16.mxu0 0
        %2518 = vmatpush1.bf16.msra.mxu0 0
        %2519 = vmatprep.subr.bf16.mxu0 0
        %2520 = vmatpush1.bf16.msra.mxu0 0
        %2521 = vmatprep.mubr.bf16.mxu0 0
        %2522 = vmatmul.mubr.bf16.gmra.mrb[0].mxu0 %v2420
        %v2523 = vpop.f32.mrb[0].mxu0
        %v2524 = vadd.f32 0.0, %v2523
        %v2525 = vpop.f32.mrb[0].mxu0
        %v2526 = vpop.f32.mrb[0].mxu0
        %v2527 = vadd.f32 0.0, %v2526
        %v2528 = vpop.f32.mrb[0].mxu0
        %2529 = vmatprep.mubr.bf16.mxu0 0
        %2530 = vmatmul.mubr.bf16.gmra.mrb[0].mxu0 %v2421
        %v2531 = vpop.f32.mrb[0].mxu0
        %v2532 = vadd.f32 0.0, %v2531
        %v2533 = vpop.f32.mrb[0].mxu0
        %v2534 = vpop.f32.mrb[0].mxu0
        %v2535 = vadd.f32 0.0, %v2534
        %v2536 = vpop.f32.mrb[0].mxu0
        %2537 = vmatprep.mubr.bf16.mxu0 0
        %2538 = vmatmul.mubr.bf16.gmra.mrb[0].mxu0 %v2422
        %v2539 = vpop.f32.mrb[0].mxu0
        %v2540 = vadd.f32 0.0, %v2539
        %v2541 = vpop.f32.mrb[0].mxu0
        %v2542 = vpop.f32.mrb[0].mxu0
        %v2543 = vadd.f32 0.0, %v2542
        %v2544 = vpop.f32.mrb[0].mxu0
        %2545 = vmatprep.mubr.bf16.mxu0 0
        %2546 = vmatmul.mubr.bf16.gmra.mrb[0].mxu0 %v2423
        %v2547 = vpop.f32.mrb[0].mxu0
        %v2548 = vadd.f32 0.0, %v2547
        %v2549 = vpop.f32.mrb[0].mxu0
        %v2550 = vpop.f32.mrb[0].mxu0
        %v2551 = vadd.f32 0.0, %v2550
        %v2552 = vpop.f32.mrb[0].mxu0
        %2553 = vdwg.mxu0
        %v2554 = vadd.f32 %v2403, %v2524
        %v2555 = vadd.f32 %v2404, %v2527
        %v2556 = vadd.f32 %v2405, %v2532
        %v2557 = vadd.f32 %v2406, %v2535
        %v2558 = vadd.f32 %v2407, %v2540
        %v2559 = vadd.f32 %v2408, %v2543
        %v2560 = vadd.f32 %v2409, %v2548
        %v2561 = vadd.f32 %v2410, %v2551
        %v2562 = vld [vmem:[%s2411 + $0x1] sm:$0xff]
        %v2563 = vld [vmem:[%s2411 + $0x11] sm:$0xff]
        %v2564 = vld [vmem:[%s2411 + $0x21] sm:$0xff]
        %v2565 = vld [vmem:[%s2411 + $0x31] sm:$0xff]
        %v2566 = vld [vmem:[%s2411 + $0x41] sm:$0xff]
        %v2567 = vld [vmem:[%s2411 + $0x51] sm:$0xff]
        %v2568 = vld [vmem:[%s2411 + $0x61] sm:$0xff]
        %v2569 = vld [vmem:[%s2411 + $0x71] sm:$0xff]
        %v2570 = vpack.c.bf16 %v2563, %v2562
        %v2571 = vpack.c.bf16 %v2565, %v2564
        %v2572 = vpack.c.bf16 %v2567, %v2566
        %v2573 = vpack.c.bf16 %v2569, %v2568
        %s2574 = scalar_lea.vmem %s3, 384
        %v2575 = vld [vmem:[%s2574] sm:$0xf]
        %v2576 = vld [vmem:[%s2574 + $0x4] sm:$0xf]
        %v2577 = vld [vmem:[%s2574 + $0x8] sm:$0xf]
        %v2578 = vld [vmem:[%s2574 + $0xc] sm:$0xf]
        %v2579 = vld [vmem:[%s2574 + $0x10] sm:$0xf]
        %v2580 = vld [vmem:[%s2574 + $0x14] sm:$0xf]
        %v2581 = vld [vmem:[%s2574 + $0x18] sm:$0xf]
        %v2582 = vld [vmem:[%s2574 + $0x1c] sm:$0xf]
        %v2583 = vld [vmem:[%s2574 + $0x20] sm:$0xf]
        %v2584 = vld [vmem:[%s2574 + $0x24] sm:$0xf]
        %v2585 = vld [vmem:[%s2574 + $0x28] sm:$0xf]
        %v2586 = vld [vmem:[%s2574 + $0x2c] sm:$0xf]
        %v2587 = vld [vmem:[%s2574 + $0x30] sm:$0xf]
        %v2588 = vld [vmem:[%s2574 + $0x34] sm:$0xf]
        %v2589 = vld [vmem:[%s2574 + $0x38] sm:$0xf]
        %v2590 = vld [vmem:[%s2574 + $0x3c] sm:$0xf]
        %v2607 = vunpack.c.l.b16 %v2575
        %v2608 = vunpack.c.l.b16 %v2576
        %v2609 = vunpack.c.l.b16 %v2577
        %v2610 = vunpack.c.l.b16 %v2578
        %v2611 = vunpack.c.l.b16 %v2579
        %v2612 = vunpack.c.l.b16 %v2580
        %v2613 = vunpack.c.l.b16 %v2581
        %v2614 = vunpack.c.l.b16 %v2582
        %v2615 = vunpack.c.l.b16 %v2583
        %v2616 = vunpack.c.l.b16 %v2584
        %v2617 = vunpack.c.l.b16 %v2585
        %v2618 = vunpack.c.l.b16 %v2586
        %v2619 = vunpack.c.l.b16 %v2587
        %v2620 = vunpack.c.l.b16 %v2588
        %v2621 = vunpack.c.l.b16 %v2589
        %v2622 = vunpack.c.l.b16 %v2590
        %v2623 = vpack.c.b16 %v2608, %v2607
        %v2624 = vpack.c.b16 %v2610, %v2609
        %v2625 = vpack.c.b16 %v2612, %v2611
        %v2626 = vpack.c.b16 %v2614, %v2613
        %v2627 = vpack.c.b16 %v2616, %v2615
        %v2628 = vpack.c.b16 %v2618, %v2617
        %v2629 = vpack.c.b16 %v2620, %v2619
        %v2630 = vpack.c.b16 %v2622, %v2621
        %2639 = vmatprep.subr.bf16.mxu0 0
        %2640 = vmatpush1.bf16.msra.mxu0 %v2623
        %2641 = vmatprep.subr.bf16.mxu0 0
        %2642 = vmatpush1.bf16.msra.mxu0 %v2624
        %2643 = vmatprep.subr.bf16.mxu0 0
        %2644 = vmatpush1.bf16.msra.mxu0 %v2625
        %2645 = vmatprep.subr.bf16.mxu0 0
        %2646 = vmatpush1.bf16.msra.mxu0 %v2626
        %2647 = vmatprep.subr.bf16.mxu0 0
        %2648 = vmatpush1.bf16.msra.mxu0 %v2627
        %2649 = vmatprep.subr.bf16.mxu0 0
        %2650 = vmatpush1.bf16.msra.mxu0 %v2628
        %2651 = vmatprep.subr.bf16.mxu0 0
        %2652 = vmatpush1.bf16.msra.mxu0 %v2629
        %2653 = vmatprep.subr.bf16.mxu0 0
        %2654 = vmatpush1.bf16.msra.mxu0 %v2630
        %2655 = vmatprep.subr.bf16.mxu0 0
        %2656 = vmatpush1.bf16.msra.mxu0 0
        %2657 = vmatprep.subr.bf16.mxu0 0
        %2658 = vmatpush1.bf16.msra.mxu0 0
        %2659 = vmatprep.subr.bf16.mxu0 0
        %2660 = vmatpush1.bf16.msra.mxu0 0
        %2661 = vmatprep.subr.bf16.mxu0 0
        %2662 = vmatpush1.bf16.msra.mxu0 0
        %2663 = vmatprep.subr.bf16.mxu0 0
        %2664 = vmatpush1.bf16.msra.mxu0 0
        %2665 = vmatprep.subr.bf16.mxu0 0
        %2666 = vmatpush1.bf16.msra.mxu0 0
        %2667 = vmatprep.subr.bf16.mxu0 0
        %2668 = vmatpush1.bf16.msra.mxu0 0
        %2669 = vmatprep.subr.bf16.mxu0 0
        %2670 = vmatpush1.bf16.msra.mxu0 0
        %2671 = vmatprep.mubr.bf16.mxu0 0
        %2672 = vmatmul.mubr.bf16.gmra.mrb[0].mxu0 %v2570
        %v2673 = vpop.f32.mrb[0].mxu0
        %v2674 = vadd.f32 0.0, %v2673
        %v2675 = vpop.f32.mrb[0].mxu0
        %v2676 = vpop.f32.mrb[0].mxu0
        %v2677 = vadd.f32 0.0, %v2676
        %v2678 = vpop.f32.mrb[0].mxu0
        %2679 = vmatprep.mubr.bf16.mxu0 0
        %2680 = vmatmul.mubr.bf16.gmra.mrb[0].mxu0 %v2571
        %v2681 = vpop.f32.mrb[0].mxu0
        %v2682 = vadd.f32 0.0, %v2681
        %v2683 = vpop.f32.mrb[0].mxu0
        %v2684 = vpop.f32.mrb[0].mxu0
        %v2685 = vadd.f32 0.0, %v2684
        %v2686 = vpop.f32.mrb[0].mxu0
        %2687 = vmatprep.mubr.bf16.mxu0 0
        %2688 = vmatmul.mubr.bf16.gmra.mrb[0].mxu0 %v2572
        %v2689 = vpop.f32.mrb[0].mxu0
        %v2690 = vadd.f32 0.0, %v2689
        %v2691 = vpop.f32.mrb[0].mxu0
        %v2692 = vpop.f32.mrb[0].mxu0
        %v2693 = vadd.f32 0.0, %v2692
        %v2694 = vpop.f32.mrb[0].mxu0
        %2695 = vmatprep.mubr.bf16.mxu0 0
        %2696 = vmatmul.mubr.bf16.gmra.mrb[0].mxu0 %v2573
        %v2697 = vpop.f32.mrb[0].mxu0
        %v2698 = vadd.f32 0.0, %v2697
        %v2699 = vpop.f32.mrb[0].mxu0
        %v2700 = vpop.f32.mrb[0].mxu0
        %v2701 = vadd.f32 0.0, %v2700
        %v2702 = vpop.f32.mrb[0].mxu0
        %2703 = vdwg.mxu0
        %v2704 = vadd.f32 %v2554, %v2674
        %v2705 = vadd.f32 %v2555, %v2677
        %v2706 = vadd.f32 %v2556, %v2682
        %v2707 = vadd.f32 %v2557, %v2685
        %v2708 = vadd.f32 %v2558, %v2690
        %v2709 = vadd.f32 %v2559, %v2693
        %v2710 = vadd.f32 %v2560, %v2698
        %v2711 = vadd.f32 %v2561, %v2701
        %v2712 = vld [vmem:[%s2411 + $0x2] sm:$0xff]
        %v2713 = vld [vmem:[%s2411 + $0x12] sm:$0xff]
        %v2714 = vld [vmem:[%s2411 + $0x22] sm:$0xff]
        %v2715 = vld [vmem:[%s2411 + $0x32] sm:$0xff]
        %v2716 = vld [vmem:[%s2411 + $0x42] sm:$0xff]
        %v2717 = vld [vmem:[%s2411 + $0x52] sm:$0xff]
        %v2718 = vld [vmem:[%s2411 + $0x62] sm:$0xff]
        %v2719 = vld [vmem:[%s2411 + $0x72] sm:$0xff]
        %v2720 = vpack.c.bf16 %v2713, %v2712
        %v2721 = vpack.c.bf16 %v2715, %v2714
        %v2722 = vpack.c.bf16 %v2717, %v2716
        %v2723 = vpack.c.bf16 %v2719, %v2718
        %s2724 = scalar_lea.vmem %s3, 448
        %v2725 = vld [vmem:[%s2724] sm:$0xf]
        %v2726 = vld [vmem:[%s2724 + $0x4] sm:$0xf]
        %v2727 = vld [vmem:[%s2724 + $0x8] sm:$0xf]
        %v2728 = vld [vmem:[%s2724 + $0xc] sm:$0xf]
        %v2729 = vld [vmem:[%s2724 + $0x10] sm:$0xf]
        %v2730 = vld [vmem:[%s2724 + $0x14] sm:$0xf]
        %v2731 = vld [vmem:[%s2724 + $0x18] sm:$0xf]
        %v2732 = vld [vmem:[%s2724 + $0x1c] sm:$0xf]
        %v2733 = vld [vmem:[%s2724 + $0x20] sm:$0xf]
        %v2734 = vld [vmem:[%s2724 + $0x24] sm:$0xf]
        %v2735 = vld [vmem:[%s2724 + $0x28] sm:$0xf]
        %v2736 = vld [vmem:[%s2724 + $0x2c] sm:$0xf]
        %v2737 = vld [vmem:[%s2724 + $0x30] sm:$0xf]
        %v2738 = vld [vmem:[%s2724 + $0x34] sm:$0xf]
        %v2739 = vld [vmem:[%s2724 + $0x38] sm:$0xf]
        %v2740 = vld [vmem:[%s2724 + $0x3c] sm:$0xf]
        %v2757 = vunpack.c.l.b16 %v2725
        %v2758 = vunpack.c.l.b16 %v2726
        %v2759 = vunpack.c.l.b16 %v2727
        %v2760 = vunpack.c.l.b16 %v2728
        %v2761 = vunpack.c.l.b16 %v2729
        %v2762 = vunpack.c.l.b16 %v2730
        %v2763 = vunpack.c.l.b16 %v2731
        %v2764 = vunpack.c.l.b16 %v2732
        %v2765 = vunpack.c.l.b16 %v2733
        %v2766 = vunpack.c.l.b16 %v2734
        %v2767 = vunpack.c.l.b16 %v2735
        %v2768 = vunpack.c.l.b16 %v2736
        %v2769 = vunpack.c.l.b16 %v2737
        %v2770 = vunpack.c.l.b16 %v2738
        %v2771 = vunpack.c.l.b16 %v2739
        %v2772 = vunpack.c.l.b16 %v2740
        %v2773 = vpack.c.b16 %v2758, %v2757
        %v2774 = vpack.c.b16 %v2760, %v2759
        %v2775 = vpack.c.b16 %v2762, %v2761
        %v2776 = vpack.c.b16 %v2764, %v2763
        %v2777 = vpack.c.b16 %v2766, %v2765
        %v2778 = vpack.c.b16 %v2768, %v2767
        %v2779 = vpack.c.b16 %v2770, %v2769
        %v2780 = vpack.c.b16 %v2772, %v2771
        %2789 = vmatprep.subr.bf16.mxu0 0
        %2790 = vmatpush1.bf16.msra.mxu0 %v2773
        %2791 = vmatprep.subr.bf16.mxu0 0
        %2792 = vmatpush1.bf16.msra.mxu0 %v2774
        %2793 = vmatprep.subr.bf16.mxu0 0
        %2794 = vmatpush1.bf16.msra.mxu0 %v2775
        %2795 = vmatprep.subr.bf16.mxu0 0
        %2796 = vmatpush1.bf16.msra.mxu0 %v2776
        %2797 = vmatprep.subr.bf16.mxu0 0
        %2798 = vmatpush1.bf16.msra.mxu0 %v2777
        %2799 = vmatprep.subr.bf16.mxu0 0
        %2800 = vmatpush1.bf16.msra.mxu0 %v2778
        %2801 = vmatprep.subr.bf16.mxu0 0
        %2802 = vmatpush1.bf16.msra.mxu0 %v2779
        %2803 = vmatprep.subr.bf16.mxu0 0
        %2804 = vmatpush1.bf16.msra.mxu0 %v2780
        %2805 = vmatprep.subr.bf16.mxu0 0
        %2806 = vmatpush1.bf16.msra.mxu0 0
        %2807 = vmatprep.subr.bf16.mxu0 0
        %2808 = vmatpush1.bf16.msra.mxu0 0
        %2809 = vmatprep.subr.bf16.mxu0 0
        %2810 = vmatpush1.bf16.msra.mxu0 0
        %2811 = vmatprep.subr.bf16.mxu0 0
        %2812 = vmatpush1.bf16.msra.mxu0 0
        %2813 = vmatprep.subr.bf16.mxu0 0
        %2814 = vmatpush1.bf16.msra.mxu0 0
        %2815 = vmatprep.subr.bf16.mxu0 0
        %2816 = vmatpush1.bf16.msra.mxu0 0
        %2817 = vmatprep.subr.bf16.mxu0 0
        %2818 = vmatpush1.bf16.msra.mxu0 0
        %2819 = vmatprep.subr.bf16.mxu0 0
        %2820 = vmatpush1.bf16.msra.mxu0 0
        %2821 = vmatprep.mubr.bf16.mxu0 0
        %2822 = vmatmul.mubr.bf16.gmra.mrb[0].mxu0 %v2720
        %v2823 = vpop.f32.mrb[0].mxu0
        %v2824 = vadd.f32 0.0, %v2823
        %v2825 = vpop.f32.mrb[0].mxu0
        %v2826 = vpop.f32.mrb[0].mxu0
        %v2827 = vadd.f32 0.0, %v2826
        %v2828 = vpop.f32.mrb[0].mxu0
        %2829 = vmatprep.mubr.bf16.mxu0 0
        %2830 = vmatmul.mubr.bf16.gmra.mrb[0].mxu0 %v2721
        %v2831 = vpop.f32.mrb[0].mxu0
        %v2832 = vadd.f32 0.0, %v2831
        %v2833 = vpop.f32.mrb[0].mxu0
        %v2834 = vpop.f32.mrb[0].mxu0
        %v2835 = vadd.f32 0.0, %v2834
        %v2836 = vpop.f32.mrb[0].mxu0
        %2837 = vmatprep.mubr.bf16.mxu0 0
        %2838 = vmatmul.mubr.bf16.gmra.mrb[0].mxu0 %v2722
        %v2839 = vpop.f32.mrb[0].mxu0
        %v2840 = vadd.f32 0.0, %v2839
        %v2841 = vpop.f32.mrb[0].mxu0
        %v2842 = vpop.f32.mrb[0].mxu0
        %v2843 = vadd.f32 0.0, %v2842
        %v2844 = vpop.f32.mrb[0].mxu0
        %2845 = vmatprep.mubr.bf16.mxu0 0
        %2846 = vmatmul.mubr.bf16.gmra.mrb[0].mxu0 %v2723
        %v2847 = vpop.f32.mrb[0].mxu0
        %v2848 = vadd.f32 0.0, %v2847
        %v2849 = vpop.f32.mrb[0].mxu0
        %v2850 = vpop.f32.mrb[0].mxu0
        %v2851 = vadd.f32 0.0, %v2850
        %v2852 = vpop.f32.mrb[0].mxu0
        %2853 = vdwg.mxu0
        %v2854 = vadd.f32 %v2704, %v2824
        %v2855 = vadd.f32 %v2705, %v2827
        %v2856 = vadd.f32 %v2706, %v2832
        %v2857 = vadd.f32 %v2707, %v2835
        %v2858 = vadd.f32 %v2708, %v2840
        %v2859 = vadd.f32 %v2709, %v2843
        %v2860 = vadd.f32 %v2710, %v2848
        %v2861 = vadd.f32 %v2711, %v2851
        %v2862 = vld [vmem:[%s2411 + $0x3] sm:$0xff]
        %v2863 = vld [vmem:[%s2411 + $0x13] sm:$0xff]
        %v2864 = vld [vmem:[%s2411 + $0x23] sm:$0xff]
        %v2865 = vld [vmem:[%s2411 + $0x33] sm:$0xff]
        %v2866 = vld [vmem:[%s2411 + $0x43] sm:$0xff]
        %v2867 = vld [vmem:[%s2411 + $0x53] sm:$0xff]
        %v2868 = vld [vmem:[%s2411 + $0x63] sm:$0xff]
        %v2869 = vld [vmem:[%s2411 + $0x73] sm:$0xff]
        %v2870 = vpack.c.bf16 %v2863, %v2862
        %v2871 = vpack.c.bf16 %v2865, %v2864
        %v2872 = vpack.c.bf16 %v2867, %v2866
        %v2873 = vpack.c.bf16 %v2869, %v2868
        %s2874 = scalar_lea.vmem %s3, 512
        %v2875 = vld [vmem:[%s2874] sm:$0xf]
        %v2876 = vld [vmem:[%s2874 + $0x4] sm:$0xf]
        %v2877 = vld [vmem:[%s2874 + $0x8] sm:$0xf]
        %v2878 = vld [vmem:[%s2874 + $0xc] sm:$0xf]
        %v2879 = vld [vmem:[%s2874 + $0x10] sm:$0xf]
        %v2880 = vld [vmem:[%s2874 + $0x14] sm:$0xf]
        %v2881 = vld [vmem:[%s2874 + $0x18] sm:$0xf]
        %v2882 = vld [vmem:[%s2874 + $0x1c] sm:$0xf]
        %v2883 = vld [vmem:[%s2874 + $0x20] sm:$0xf]
        %v2884 = vld [vmem:[%s2874 + $0x24] sm:$0xf]
        %v2885 = vld [vmem:[%s2874 + $0x28] sm:$0xf]
        %v2886 = vld [vmem:[%s2874 + $0x2c] sm:$0xf]
        %v2887 = vld [vmem:[%s2874 + $0x30] sm:$0xf]
        %v2888 = vld [vmem:[%s2874 + $0x34] sm:$0xf]
        %v2889 = vld [vmem:[%s2874 + $0x38] sm:$0xf]
        %v2890 = vld [vmem:[%s2874 + $0x3c] sm:$0xf]
        %v2907 = vunpack.c.l.b16 %v2875
        %v2908 = vunpack.c.l.b16 %v2876
        %v2909 = vunpack.c.l.b16 %v2877
        %v2910 = vunpack.c.l.b16 %v2878
        %v2911 = vunpack.c.l.b16 %v2879
        %v2912 = vunpack.c.l.b16 %v2880
        %v2913 = vunpack.c.l.b16 %v2881
        %v2914 = vunpack.c.l.b16 %v2882
        %v2915 = vunpack.c.l.b16 %v2883
        %v2916 = vunpack.c.l.b16 %v2884
        %v2917 = vunpack.c.l.b16 %v2885
        %v2918 = vunpack.c.l.b16 %v2886
        %v2919 = vunpack.c.l.b16 %v2887
        %v2920 = vunpack.c.l.b16 %v2888
        %v2921 = vunpack.c.l.b16 %v2889
        %v2922 = vunpack.c.l.b16 %v2890
        %v2923 = vpack.c.b16 %v2908, %v2907
        %v2924 = vpack.c.b16 %v2910, %v2909
        %v2925 = vpack.c.b16 %v2912, %v2911
        %v2926 = vpack.c.b16 %v2914, %v2913
        %v2927 = vpack.c.b16 %v2916, %v2915
        %v2928 = vpack.c.b16 %v2918, %v2917
        %v2929 = vpack.c.b16 %v2920, %v2919
        %v2930 = vpack.c.b16 %v2922, %v2921
        %2939 = vmatprep.subr.bf16.mxu0 0
        %2940 = vmatpush1.bf16.msra.mxu0 %v2923
        %2941 = vmatprep.subr.bf16.mxu0 0
        %2942 = vmatpush1.bf16.msra.mxu0 %v2924
        %2943 = vmatprep.subr.bf16.mxu0 0
        %2944 = vmatpush1.bf16.msra.mxu0 %v2925
        %2945 = vmatprep.subr.bf16.mxu0 0
        %2946 = vmatpush1.bf16.msra.mxu0 %v2926
        %2947 = vmatprep.subr.bf16.mxu0 0
        %2948 = vmatpush1.bf16.msra.mxu0 %v2927
        %2949 = vmatprep.subr.bf16.mxu0 0
        %2950 = vmatpush1.bf16.msra.mxu0 %v2928
        %2951 = vmatprep.subr.bf16.mxu0 0
        %2952 = vmatpush1.bf16.msra.mxu0 %v2929
        %2953 = vmatprep.subr.bf16.mxu0 0
        %2954 = vmatpush1.bf16.msra.mxu0 %v2930
        %2955 = vmatprep.subr.bf16.mxu0 0
        %2956 = vmatpush1.bf16.msra.mxu0 0
        %2957 = vmatprep.subr.bf16.mxu0 0
        %2958 = vmatpush1.bf16.msra.mxu0 0
        %2959 = vmatprep.subr.bf16.mxu0 0
        %2960 = vmatpush1.bf16.msra.mxu0 0
        %2961 = vmatprep.subr.bf16.mxu0 0
        %2962 = vmatpush1.bf16.msra.mxu0 0
        %2963 = vmatprep.subr.bf16.mxu0 0
        %2964 = vmatpush1.bf16.msra.mxu0 0
        %2965 = vmatprep.subr.bf16.mxu0 0
        %2966 = vmatpush1.bf16.msra.mxu0 0
        %2967 = vmatprep.subr.bf16.mxu0 0
        %2968 = vmatpush1.bf16.msra.mxu0 0
        %2969 = vmatprep.subr.bf16.mxu0 0
        %2970 = vmatpush1.bf16.msra.mxu0 0
        %2971 = vmatprep.mubr.bf16.mxu0 0
        %2972 = vmatmul.mubr.bf16.gmra.mrb[0].mxu0 %v2870
        %v2973 = vpop.f32.mrb[0].mxu0
        %v2974 = vadd.f32 0.0, %v2973
        %v2975 = vpop.f32.mrb[0].mxu0
        %v2976 = vpop.f32.mrb[0].mxu0
        %v2977 = vadd.f32 0.0, %v2976
        %v2978 = vpop.f32.mrb[0].mxu0
        %2979 = vmatprep.mubr.bf16.mxu0 0
        %2980 = vmatmul.mubr.bf16.gmra.mrb[0].mxu0 %v2871
        %v2981 = vpop.f32.mrb[0].mxu0
        %v2982 = vadd.f32 0.0, %v2981
        %v2983 = vpop.f32.mrb[0].mxu0
        %v2984 = vpop.f32.mrb[0].mxu0
        %v2985 = vadd.f32 0.0, %v2984
        %v2986 = vpop.f32.mrb[0].mxu0
        %2987 = vmatprep.mubr.bf16.mxu0 0
        %2988 = vmatmul.mubr.bf16.gmra.mrb[0].mxu0 %v2872
        %v2989 = vpop.f32.mrb[0].mxu0
        %v2990 = vadd.f32 0.0, %v2989
        %v2991 = vpop.f32.mrb[0].mxu0
        %v2992 = vpop.f32.mrb[0].mxu0
        %v2993 = vadd.f32 0.0, %v2992
        %v2994 = vpop.f32.mrb[0].mxu0
        %2995 = vmatprep.mubr.bf16.mxu0 0
        %2996 = vmatmul.mubr.bf16.gmra.mrb[0].mxu0 %v2873
        %v2997 = vpop.f32.mrb[0].mxu0
        %v2998 = vadd.f32 0.0, %v2997
        %v2999 = vpop.f32.mrb[0].mxu0
        %v3000 = vpop.f32.mrb[0].mxu0
        %v3001 = vadd.f32 0.0, %v3000
        %v3002 = vpop.f32.mrb[0].mxu0
        %3003 = vdwg.mxu0
        %v3004 = vadd.f32 %v2854, %v2974
        %v3005 = vadd.f32 %v2855, %v2977
        %v3006 = vadd.f32 %v2856, %v2982
        %v3007 = vadd.f32 %v2857, %v2985
        %v3008 = vadd.f32 %v2858, %v2990
        %v3009 = vadd.f32 %v2859, %v2993
        %v3010 = vadd.f32 %v2860, %v2998
        %v3011 = vadd.f32 %v2861, %v3001
        %v3012 = vld [vmem:[%s2411 + $0x4] sm:$0xff]
        %v3013 = vld [vmem:[%s2411 + $0x14] sm:$0xff]
        %v3014 = vld [vmem:[%s2411 + $0x24] sm:$0xff]
        %v3015 = vld [vmem:[%s2411 + $0x34] sm:$0xff]
        %v3016 = vld [vmem:[%s2411 + $0x44] sm:$0xff]
        %v3017 = vld [vmem:[%s2411 + $0x54] sm:$0xff]
        %v3018 = vld [vmem:[%s2411 + $0x64] sm:$0xff]
        %v3019 = vld [vmem:[%s2411 + $0x74] sm:$0xff]
        %v3020 = vpack.c.bf16 %v3013, %v3012
        %v3021 = vpack.c.bf16 %v3015, %v3014
        %v3022 = vpack.c.bf16 %v3017, %v3016
        %v3023 = vpack.c.bf16 %v3019, %v3018
        %s3024 = scalar_lea.vmem %s3, 576
        %v3025 = vld [vmem:[%s3024] sm:$0xf]
        %v3026 = vld [vmem:[%s3024 + $0x4] sm:$0xf]
        %v3027 = vld [vmem:[%s3024 + $0x8] sm:$0xf]
        %v3028 = vld [vmem:[%s3024 + $0xc] sm:$0xf]
        %v3029 = vld [vmem:[%s3024 + $0x10] sm:$0xf]
        %v3030 = vld [vmem:[%s3024 + $0x14] sm:$0xf]
        %v3031 = vld [vmem:[%s3024 + $0x18] sm:$0xf]
        %v3032 = vld [vmem:[%s3024 + $0x1c] sm:$0xf]
        %v3033 = vld [vmem:[%s3024 + $0x20] sm:$0xf]
        %v3034 = vld [vmem:[%s3024 + $0x24] sm:$0xf]
        %v3035 = vld [vmem:[%s3024 + $0x28] sm:$0xf]
        %v3036 = vld [vmem:[%s3024 + $0x2c] sm:$0xf]
        %v3037 = vld [vmem:[%s3024 + $0x30] sm:$0xf]
        %v3038 = vld [vmem:[%s3024 + $0x34] sm:$0xf]
        %v3039 = vld [vmem:[%s3024 + $0x38] sm:$0xf]
        %v3040 = vld [vmem:[%s3024 + $0x3c] sm:$0xf]
        %v3057 = vunpack.c.l.b16 %v3025
        %v3058 = vunpack.c.l.b16 %v3026
        %v3059 = vunpack.c.l.b16 %v3027
        %v3060 = vunpack.c.l.b16 %v3028
        %v3061 = vunpack.c.l.b16 %v3029
        %v3062 = vunpack.c.l.b16 %v3030
        %v3063 = vunpack.c.l.b16 %v3031
        %v3064 = vunpack.c.l.b16 %v3032
        %v3065 = vunpack.c.l.b16 %v3033
        %v3066 = vunpack.c.l.b16 %v3034
        %v3067 = vunpack.c.l.b16 %v3035
        %v3068 = vunpack.c.l.b16 %v3036
        %v3069 = vunpack.c.l.b16 %v3037
        %v3070 = vunpack.c.l.b16 %v3038
        %v3071 = vunpack.c.l.b16 %v3039
        %v3072 = vunpack.c.l.b16 %v3040
        %v3073 = vpack.c.b16 %v3058, %v3057
        %v3074 = vpack.c.b16 %v3060, %v3059
        %v3075 = vpack.c.b16 %v3062, %v3061
        %v3076 = vpack.c.b16 %v3064, %v3063
        %v3077 = vpack.c.b16 %v3066, %v3065
        %v3078 = vpack.c.b16 %v3068, %v3067
        %v3079 = vpack.c.b16 %v3070, %v3069
        %v3080 = vpack.c.b16 %v3072, %v3071
        %3089 = vmatprep.subr.bf16.mxu0 0
        %3090 = vmatpush1.bf16.msra.mxu0 %v3073
        %3091 = vmatprep.subr.bf16.mxu0 0
        %3092 = vmatpush1.bf16.msra.mxu0 %v3074
        %3093 = vmatprep.subr.bf16.mxu0 0
        %3094 = vmatpush1.bf16.msra.mxu0 %v3075
        %3095 = vmatprep.subr.bf16.mxu0 0
        %3096 = vmatpush1.bf16.msra.mxu0 %v3076
        %3097 = vmatprep.subr.bf16.mxu0 0
        %3098 = vmatpush1.bf16.msra.mxu0 %v3077
        %3099 = vmatprep.subr.bf16.mxu0 0
        %3100 = vmatpush1.bf16.msra.mxu0 %v3078
        %3101 = vmatprep.subr.bf16.mxu0 0
        %3102 = vmatpush1.bf16.msra.mxu0 %v3079
        %3103 = vmatprep.subr.bf16.mxu0 0
        %3104 = vmatpush1.bf16.msra.mxu0 %v3080
        %3105 = vmatprep.subr.bf16.mxu0 0
        %3106 = vmatpush1.bf16.msra.mxu0 0
        %3107 = vmatprep.subr.bf16.mxu0 0
        %3108 = vmatpush1.bf16.msra.mxu0 0
        %3109 = vmatprep.subr.bf16.mxu0 0
        %3110 = vmatpush1.bf16.msra.mxu0 0
        %3111 = vmatprep.subr.bf16.mxu0 0
        %3112 = vmatpush1.bf16.msra.mxu0 0
        %3113 = vmatprep.subr.bf16.mxu0 0
        %3114 = vmatpush1.bf16.msra.mxu0 0
        %3115 = vmatprep.subr.bf16.mxu0 0
        %3116 = vmatpush1.bf16.msra.mxu0 0
        %3117 = vmatprep.subr.bf16.mxu0 0
        %3118 = vmatpush1.bf16.msra.mxu0 0
        %3119 = vmatprep.subr.bf16.mxu0 0
        %3120 = vmatpush1.bf16.msra.mxu0 0
        %3121 = vmatprep.mubr.bf16.mxu0 0
        %3122 = vmatmul.mubr.bf16.gmra.mrb[0].mxu0 %v3020
        %v3123 = vpop.f32.mrb[0].mxu0
        %v3124 = vadd.f32 0.0, %v3123
        %v3125 = vpop.f32.mrb[0].mxu0
        %v3126 = vpop.f32.mrb[0].mxu0
        %v3127 = vadd.f32 0.0, %v3126
        %v3128 = vpop.f32.mrb[0].mxu0
        %3129 = vmatprep.mubr.bf16.mxu0 0
        %3130 = vmatmul.mubr.bf16.gmra.mrb[0].mxu0 %v3021
        %v3131 = vpop.f32.mrb[0].mxu0
        %v3132 = vadd.f32 0.0, %v3131
        %v3133 = vpop.f32.mrb[0].mxu0
        %v3134 = vpop.f32.mrb[0].mxu0
        %v3135 = vadd.f32 0.0, %v3134
        %v3136 = vpop.f32.mrb[0].mxu0
        %3137 = vmatprep.mubr.bf16.mxu0 0
        %3138 = vmatmul.mubr.bf16.gmra.mrb[0].mxu0 %v3022
        %v3139 = vpop.f32.mrb[0].mxu0
        %v3140 = vadd.f32 0.0, %v3139
        %v3141 = vpop.f32.mrb[0].mxu0
        %v3142 = vpop.f32.mrb[0].mxu0
        %v3143 = vadd.f32 0.0, %v3142
        %v3144 = vpop.f32.mrb[0].mxu0
        %3145 = vmatprep.mubr.bf16.mxu0 0
        %3146 = vmatmul.mubr.bf16.gmra.mrb[0].mxu0 %v3023
        %v3147 = vpop.f32.mrb[0].mxu0
        %v3148 = vadd.f32 0.0, %v3147
        %v3149 = vpop.f32.mrb[0].mxu0
        %v3150 = vpop.f32.mrb[0].mxu0
        %v3151 = vadd.f32 0.0, %v3150
        %v3152 = vpop.f32.mrb[0].mxu0
        %3153 = vdwg.mxu0
        %v3154 = vadd.f32 %v3004, %v3124
        %v3155 = vadd.f32 %v3005, %v3127
        %v3156 = vadd.f32 %v3006, %v3132
        %v3157 = vadd.f32 %v3007, %v3135
        %v3158 = vadd.f32 %v3008, %v3140
        %v3159 = vadd.f32 %v3009, %v3143
        %v3160 = vadd.f32 %v3010, %v3148
        %v3161 = vadd.f32 %v3011, %v3151
        %s3162 = scalar_lea.vmem [#allocation2], 32
        %v3163 = vld [vmem:[%s3162] sm:$0xff]
        %v3164 = vld [vmem:[%s3162 + $0x10] sm:$0xff]
        %v3165 = vld [vmem:[%s3162 + $0x20] sm:$0xff]
        %v3166 = vld [vmem:[%s3162 + $0x30] sm:$0xff]
        %v3167 = vld [vmem:[%s3162 + $0x40] sm:$0xff]
        %v3168 = vld [vmem:[%s3162 + $0x50] sm:$0xff]
        %v3169 = vld [vmem:[%s3162 + $0x60] sm:$0xff]
        %v3170 = vld [vmem:[%s3162 + $0x70] sm:$0xff]
        %v3171 = vpack.c.bf16 %v3164, %v3163
        %v3172 = vpack.c.bf16 %v3166, %v3165
        %v3173 = vpack.c.bf16 %v3168, %v3167
        %v3174 = vpack.c.bf16 %v3170, %v3169
        %s3175 = scalar_lea.vmem %s3, 640
        %v3176 = vld [vmem:[%s3175] sm:$0xf]
        %v3177 = vld [vmem:[%s3175 + $0x4] sm:$0xf]
        %v3178 = vld [vmem:[%s3175 + $0x8] sm:$0xf]
        %v3179 = vld [vmem:[%s3175 + $0xc] sm:$0xf]
        %v3180 = vld [vmem:[%s3175 + $0x10] sm:$0xf]
        %v3181 = vld [vmem:[%s3175 + $0x14] sm:$0xf]
        %v3182 = vld [vmem:[%s3175 + $0x18] sm:$0xf]
        %v3183 = vld [vmem:[%s3175 + $0x1c] sm:$0xf]
        %v3184 = vld [vmem:[%s3175 + $0x20] sm:$0xf]
        %v3185 = vld [vmem:[%s3175 + $0x24] sm:$0xf]
        %v3186 = vld [vmem:[%s3175 + $0x28] sm:$0xf]
        %v3187 = vld [vmem:[%s3175 + $0x2c] sm:$0xf]
        %v3188 = vld [vmem:[%s3175 + $0x30] sm:$0xf]
        %v3189 = vld [vmem:[%s3175 + $0x34] sm:$0xf]
        %v3190 = vld [vmem:[%s3175 + $0x38] sm:$0xf]
        %v3191 = vld [vmem:[%s3175 + $0x3c] sm:$0xf]
        %v3208 = vunpack.c.l.b16 %v3176
        %v3209 = vunpack.c.l.b16 %v3177
        %v3210 = vunpack.c.l.b16 %v3178
        %v3211 = vunpack.c.l.b16 %v3179
        %v3212 = vunpack.c.l.b16 %v3180
        %v3213 = vunpack.c.l.b16 %v3181
        %v3214 = vunpack.c.l.b16 %v3182
        %v3215 = vunpack.c.l.b16 %v3183
        %v3216 = vunpack.c.l.b16 %v3184
        %v3217 = vunpack.c.l.b16 %v3185
        %v3218 = vunpack.c.l.b16 %v3186
        %v3219 = vunpack.c.l.b16 %v3187
        %v3220 = vunpack.c.l.b16 %v3188
        %v3221 = vunpack.c.l.b16 %v3189
        %v3222 = vunpack.c.l.b16 %v3190
        %v3223 = vunpack.c.l.b16 %v3191
        %v3224 = vpack.c.b16 %v3209, %v3208
        %v3225 = vpack.c.b16 %v3211, %v3210
        %v3226 = vpack.c.b16 %v3213, %v3212
        %v3227 = vpack.c.b16 %v3215, %v3214
        %v3228 = vpack.c.b16 %v3217, %v3216
        %v3229 = vpack.c.b16 %v3219, %v3218
        %v3230 = vpack.c.b16 %v3221, %v3220
        %v3231 = vpack.c.b16 %v3223, %v3222
        %3240 = vmatprep.subr.bf16.mxu0 0
        %3241 = vmatpush1.bf16.msra.mxu0 %v3224
        %3242 = vmatprep.subr.bf16.mxu0 0
        %3243 = vmatpush1.bf16.msra.mxu0 %v3225
        %3244 = vmatprep.subr.bf16.mxu0 0
        %3245 = vmatpush1.bf16.msra.mxu0 %v3226
        %3246 = vmatprep.subr.bf16.mxu0 0
        %3247 = vmatpush1.bf16.msra.mxu0 %v3227
        %3248 = vmatprep.subr.bf16.mxu0 0
        %3249 = vmatpush1.bf16.msra.mxu0 %v3228
        %3250 = vmatprep.subr.bf16.mxu0 0
        %3251 = vmatpush1.bf16.msra.mxu0 %v3229
        %3252 = vmatprep.subr.bf16.mxu0 0
        %3253 = vmatpush1.bf16.msra.mxu0 %v3230
        %3254 = vmatprep.subr.bf16.mxu0 0
        %3255 = vmatpush1.bf16.msra.mxu0 %v3231
        %3256 = vmatprep.subr.bf16.mxu0 0
        %3257 = vmatpush1.bf16.msra.mxu0 0
        %3258 = vmatprep.subr.bf16.mxu0 0
        %3259 = vmatpush1.bf16.msra.mxu0 0
        %3260 = vmatprep.subr.bf16.mxu0 0
        %3261 = vmatpush1.bf16.msra.mxu0 0
        %3262 = vmatprep.subr.bf16.mxu0 0
        %3263 = vmatpush1.bf16.msra.mxu0 0
        %3264 = vmatprep.subr.bf16.mxu0 0
        %3265 = vmatpush1.bf16.msra.mxu0 0
        %3266 = vmatprep.subr.bf16.mxu0 0
        %3267 = vmatpush1.bf16.msra.mxu0 0
        %3268 = vmatprep.subr.bf16.mxu0 0
        %3269 = vmatpush1.bf16.msra.mxu0 0
        %3270 = vmatprep.subr.bf16.mxu0 0
        %3271 = vmatpush1.bf16.msra.mxu0 0
        %3272 = vmatprep.mubr.bf16.mxu0 0
        %3273 = vmatmul.mubr.bf16.gmra.mrb[0].mxu0 %v3171
        %v3274 = vpop.f32.mrb[0].mxu0
        %v3275 = vadd.f32 0.0, %v3274
        %v3276 = vpop.f32.mrb[0].mxu0
        %v3277 = vpop.f32.mrb[0].mxu0
        %v3278 = vadd.f32 0.0, %v3277
        %v3279 = vpop.f32.mrb[0].mxu0
        %3280 = vmatprep.mubr.bf16.mxu0 0
        %3281 = vmatmul.mubr.bf16.gmra.mrb[0].mxu0 %v3172
        %v3282 = vpop.f32.mrb[0].mxu0
        %v3283 = vadd.f32 0.0, %v3282
        %v3284 = vpop.f32.mrb[0].mxu0
        %v3285 = vpop.f32.mrb[0].mxu0
        %v3286 = vadd.f32 0.0, %v3285
        %v3287 = vpop.f32.mrb[0].mxu0
        %3288 = vmatprep.mubr.bf16.mxu0 0
        %3289 = vmatmul.mubr.bf16.gmra.mrb[0].mxu0 %v3173
        %v3290 = vpop.f32.mrb[0].mxu0
        %v3291 = vadd.f32 0.0, %v3290
        %v3292 = vpop.f32.mrb[0].mxu0
        %v3293 = vpop.f32.mrb[0].mxu0
        %v3294 = vadd.f32 0.0, %v3293
        %v3295 = vpop.f32.mrb[0].mxu0
        %3296 = vmatprep.mubr.bf16.mxu0 0
        %3297 = vmatmul.mubr.bf16.gmra.mrb[0].mxu0 %v3174
        %v3298 = vpop.f32.mrb[0].mxu0
        %v3299 = vadd.f32 0.0, %v3298
        %v3300 = vpop.f32.mrb[0].mxu0
        %v3301 = vpop.f32.mrb[0].mxu0
        %v3302 = vadd.f32 0.0, %v3301
        %v3303 = vpop.f32.mrb[0].mxu0
        %3304 = vdwg.mxu0
        %v3305 = vadd.f32 %v3154, %v3275
        %v3306 = vadd.f32 %v3155, %v3278
        %v3307 = vadd.f32 %v3156, %v3283
        %v3308 = vadd.f32 %v3157, %v3286
        %v3309 = vadd.f32 %v3158, %v3291
        %v3310 = vadd.f32 %v3159, %v3294
        %v3311 = vadd.f32 %v3160, %v3299
        %v3312 = vadd.f32 %v3161, %v3302
        %v3313 = vld [vmem:[%s3162 + $0x1] sm:$0xff]
        %v3314 = vld [vmem:[%s3162 + $0x11] sm:$0xff]
        %v3315 = vld [vmem:[%s3162 + $0x21] sm:$0xff]
        %v3316 = vld [vmem:[%s3162 + $0x31] sm:$0xff]
        %v3317 = vld [vmem:[%s3162 + $0x41] sm:$0xff]
        %v3318 = vld [vmem:[%s3162 + $0x51] sm:$0xff]
        %v3319 = vld [vmem:[%s3162 + $0x61] sm:$0xff]
        %v3320 = vld [vmem:[%s3162 + $0x71] sm:$0xff]
        %v3321 = vpack.c.bf16 %v3314, %v3313
        %v3322 = vpack.c.bf16 %v3316, %v3315
        %v3323 = vpack.c.bf16 %v3318, %v3317
        %v3324 = vpack.c.bf16 %v3320, %v3319
        %s3325 = scalar_lea.vmem %s3, 704
        %v3326 = vld [vmem:[%s3325] sm:$0xf]
        %v3327 = vld [vmem:[%s3325 + $0x4] sm:$0xf]
        %v3328 = vld [vmem:[%s3325 + $0x8] sm:$0xf]
        %v3329 = vld [vmem:[%s3325 + $0xc] sm:$0xf]
        %v3330 = vld [vmem:[%s3325 + $0x10] sm:$0xf]
        %v3331 = vld [vmem:[%s3325 + $0x14] sm:$0xf]
        %v3332 = vld [vmem:[%s3325 + $0x18] sm:$0xf]
        %v3333 = vld [vmem:[%s3325 + $0x1c] sm:$0xf]
        %v3334 = vld [vmem:[%s3325 + $0x20] sm:$0xf]
        %v3335 = vld [vmem:[%s3325 + $0x24] sm:$0xf]
        %v3336 = vld [vmem:[%s3325 + $0x28] sm:$0xf]
        %v3337 = vld [vmem:[%s3325 + $0x2c] sm:$0xf]
        %v3338 = vld [vmem:[%s3325 + $0x30] sm:$0xf]
        %v3339 = vld [vmem:[%s3325 + $0x34] sm:$0xf]
        %v3340 = vld [vmem:[%s3325 + $0x38] sm:$0xf]
        %v3341 = vld [vmem:[%s3325 + $0x3c] sm:$0xf]
        %v3358 = vunpack.c.l.b16 %v3326
        %v3359 = vunpack.c.l.b16 %v3327
        %v3360 = vunpack.c.l.b16 %v3328
        %v3361 = vunpack.c.l.b16 %v3329
        %v3362 = vunpack.c.l.b16 %v3330
        %v3363 = vunpack.c.l.b16 %v3331
        %v3364 = vunpack.c.l.b16 %v3332
        %v3365 = vunpack.c.l.b16 %v3333
        %v3366 = vunpack.c.l.b16 %v3334
        %v3367 = vunpack.c.l.b16 %v3335
        %v3368 = vunpack.c.l.b16 %v3336
        %v3369 = vunpack.c.l.b16 %v3337
        %v3370 = vunpack.c.l.b16 %v3338
        %v3371 = vunpack.c.l.b16 %v3339
        %v3372 = vunpack.c.l.b16 %v3340
        %v3373 = vunpack.c.l.b16 %v3341
        %v3374 = vpack.c.b16 %v3359, %v3358
        %v3375 = vpack.c.b16 %v3361, %v3360
        %v3376 = vpack.c.b16 %v3363, %v3362
        %v3377 = vpack.c.b16 %v3365, %v3364
        %v3378 = vpack.c.b16 %v3367, %v3366
        %v3379 = vpack.c.b16 %v3369, %v3368
        %v3380 = vpack.c.b16 %v3371, %v3370
        %v3381 = vpack.c.b16 %v3373, %v3372
        %3390 = vmatprep.subr.bf16.mxu0 0
        %3391 = vmatpush1.bf16.msra.mxu0 %v3374
        %3392 = vmatprep.subr.bf16.mxu0 0
        %3393 = vmatpush1.bf16.msra.mxu0 %v3375
        %3394 = vmatprep.subr.bf16.mxu0 0
        %3395 = vmatpush1.bf16.msra.mxu0 %v3376
        %3396 = vmatprep.subr.bf16.mxu0 0
        %3397 = vmatpush1.bf16.msra.mxu0 %v3377
        %3398 = vmatprep.subr.bf16.mxu0 0
        %3399 = vmatpush1.bf16.msra.mxu0 %v3378
        %3400 = vmatprep.subr.bf16.mxu0 0
        %3401 = vmatpush1.bf16.msra.mxu0 %v3379
        %3402 = vmatprep.subr.bf16.mxu0 0
        %3403 = vmatpush1.bf16.msra.mxu0 %v3380
        %3404 = vmatprep.subr.bf16.mxu0 0
        %3405 = vmatpush1.bf16.msra.mxu0 %v3381
        %3406 = vmatprep.subr.bf16.mxu0 0
        %3407 = vmatpush1.bf16.msra.mxu0 0
        %3408 = vmatprep.subr.bf16.mxu0 0
        %3409 = vmatpush1.bf16.msra.mxu0 0
        %3410 = vmatprep.subr.bf16.mxu0 0
        %3411 = vmatpush1.bf16.msra.mxu0 0
        %3412 = vmatprep.subr.bf16.mxu0 0
        %3413 = vmatpush1.bf16.msra.mxu0 0
        %3414 = vmatprep.subr.bf16.mxu0 0
        %3415 = vmatpush1.bf16.msra.mxu0 0
        %3416 = vmatprep.subr.bf16.mxu0 0
        %3417 = vmatpush1.bf16.msra.mxu0 0
        %3418 = vmatprep.subr.bf16.mxu0 0
        %3419 = vmatpush1.bf16.msra.mxu0 0
        %3420 = vmatprep.subr.bf16.mxu0 0
        %3421 = vmatpush1.bf16.msra.mxu0 0
        %3422 = vmatprep.mubr.bf16.mxu0 0
        %3423 = vmatmul.mubr.bf16.gmra.mrb[0].mxu0 %v3321
        %v3424 = vpop.f32.mrb[0].mxu0
        %v3425 = vadd.f32 0.0, %v3424
        %v3426 = vpop.f32.mrb[0].mxu0
        %v3427 = vpop.f32.mrb[0].mxu0
        %v3428 = vadd.f32 0.0, %v3427
        %v3429 = vpop.f32.mrb[0].mxu0
        %3430 = vmatprep.mubr.bf16.mxu0 0
        %3431 = vmatmul.mubr.bf16.gmra.mrb[0].mxu0 %v3322
        %v3432 = vpop.f32.mrb[0].mxu0
        %v3433 = vadd.f32 0.0, %v3432
        %v3434 = vpop.f32.mrb[0].mxu0
        %v3435 = vpop.f32.mrb[0].mxu0
        %v3436 = vadd.f32 0.0, %v3435
        %v3437 = vpop.f32.mrb[0].mxu0
        %3438 = vmatprep.mubr.bf16.mxu0 0
        %3439 = vmatmul.mubr.bf16.gmra.mrb[0].mxu0 %v3323
        %v3440 = vpop.f32.mrb[0].mxu0
        %v3441 = vadd.f32 0.0, %v3440
        %v3442 = vpop.f32.mrb[0].mxu0
        %v3443 = vpop.f32.mrb[0].mxu0
        %v3444 = vadd.f32 0.0, %v3443
        %v3445 = vpop.f32.mrb[0].mxu0
        %3446 = vmatprep.mubr.bf16.mxu0 0
        %3447 = vmatmul.mubr.bf16.gmra.mrb[0].mxu0 %v3324
        %v3448 = vpop.f32.mrb[0].mxu0
        %v3449 = vadd.f32 0.0, %v3448
        %v3450 = vpop.f32.mrb[0].mxu0
        %v3451 = vpop.f32.mrb[0].mxu0
        %v3452 = vadd.f32 0.0, %v3451
        %v3453 = vpop.f32.mrb[0].mxu0
        %3454 = vdwg.mxu0
        %v3455 = vadd.f32 %v3305, %v3425
        %v3456 = vadd.f32 %v3306, %v3428
        %v3457 = vadd.f32 %v3307, %v3433
        %v3458 = vadd.f32 %v3308, %v3436
        %v3459 = vadd.f32 %v3309, %v3441
        %v3460 = vadd.f32 %v3310, %v3444
        %v3461 = vadd.f32 %v3311, %v3449
        %v3462 = vadd.f32 %v3312, %v3452
        %v3463 = vld [vmem:[%s3162 + $0x2] sm:$0xff]
        %v3464 = vld [vmem:[%s3162 + $0x12] sm:$0xff]
        %v3465 = vld [vmem:[%s3162 + $0x22] sm:$0xff]
        %v3466 = vld [vmem:[%s3162 + $0x32] sm:$0xff]
        %v3467 = vld [vmem:[%s3162 + $0x42] sm:$0xff]
        %v3468 = vld [vmem:[%s3162 + $0x52] sm:$0xff]
        %v3469 = vld [vmem:[%s3162 + $0x62] sm:$0xff]
        %v3470 = vld [vmem:[%s3162 + $0x72] sm:$0xff]
        %v3471 = vpack.c.bf16 %v3464, %v3463
        %v3472 = vpack.c.bf16 %v3466, %v3465
        %v3473 = vpack.c.bf16 %v3468, %v3467
        %v3474 = vpack.c.bf16 %v3470, %v3469
        %s3475 = scalar_lea.vmem %s3, 768
        %v3476 = vld [vmem:[%s3475] sm:$0xf]
        %v3477 = vld [vmem:[%s3475 + $0x4] sm:$0xf]
        %v3478 = vld [vmem:[%s3475 + $0x8] sm:$0xf]
        %v3479 = vld [vmem:[%s3475 + $0xc] sm:$0xf]
        %v3480 = vld [vmem:[%s3475 + $0x10] sm:$0xf]
        %v3481 = vld [vmem:[%s3475 + $0x14] sm:$0xf]
        %v3482 = vld [vmem:[%s3475 + $0x18] sm:$0xf]
        %v3483 = vld [vmem:[%s3475 + $0x1c] sm:$0xf]
        %v3484 = vld [vmem:[%s3475 + $0x20] sm:$0xf]
        %v3485 = vld [vmem:[%s3475 + $0x24] sm:$0xf]
        %v3486 = vld [vmem:[%s3475 + $0x28] sm:$0xf]
        %v3487 = vld [vmem:[%s3475 + $0x2c] sm:$0xf]
        %v3488 = vld [vmem:[%s3475 + $0x30] sm:$0xf]
        %v3489 = vld [vmem:[%s3475 + $0x34] sm:$0xf]
        %v3490 = vld [vmem:[%s3475 + $0x38] sm:$0xf]
        %v3491 = vld [vmem:[%s3475 + $0x3c] sm:$0xf]
        %v3508 = vunpack.c.l.b16 %v3476
        %v3509 = vunpack.c.l.b16 %v3477
        %v3510 = vunpack.c.l.b16 %v3478
        %v3511 = vunpack.c.l.b16 %v3479
        %v3512 = vunpack.c.l.b16 %v3480
        %v3513 = vunpack.c.l.b16 %v3481
        %v3514 = vunpack.c.l.b16 %v3482
        %v3515 = vunpack.c.l.b16 %v3483
        %v3516 = vunpack.c.l.b16 %v3484
        %v3517 = vunpack.c.l.b16 %v3485
        %v3518 = vunpack.c.l.b16 %v3486
        %v3519 = vunpack.c.l.b16 %v3487
        %v3520 = vunpack.c.l.b16 %v3488
        %v3521 = vunpack.c.l.b16 %v3489
        %v3522 = vunpack.c.l.b16 %v3490
        %v3523 = vunpack.c.l.b16 %v3491
        %v3524 = vpack.c.b16 %v3509, %v3508
        %v3525 = vpack.c.b16 %v3511, %v3510
        %v3526 = vpack.c.b16 %v3513, %v3512
        %v3527 = vpack.c.b16 %v3515, %v3514
        %v3528 = vpack.c.b16 %v3517, %v3516
        %v3529 = vpack.c.b16 %v3519, %v3518
        %v3530 = vpack.c.b16 %v3521, %v3520
        %v3531 = vpack.c.b16 %v3523, %v3522
        %3540 = vmatprep.subr.bf16.mxu0 0
        %3541 = vmatpush1.bf16.msra.mxu0 %v3524
        %3542 = vmatprep.subr.bf16.mxu0 0
        %3543 = vmatpush1.bf16.msra.mxu0 %v3525
        %3544 = vmatprep.subr.bf16.mxu0 0
        %3545 = vmatpush1.bf16.msra.mxu0 %v3526
        %3546 = vmatprep.subr.bf16.mxu0 0
        %3547 = vmatpush1.bf16.msra.mxu0 %v3527
        %3548 = vmatprep.subr.bf16.mxu0 0
        %3549 = vmatpush1.bf16.msra.mxu0 %v3528
        %3550 = vmatprep.subr.bf16.mxu0 0
        %3551 = vmatpush1.bf16.msra.mxu0 %v3529
        %3552 = vmatprep.subr.bf16.mxu0 0
        %3553 = vmatpush1.bf16.msra.mxu0 %v3530
        %3554 = vmatprep.subr.bf16.mxu0 0
        %3555 = vmatpush1.bf16.msra.mxu0 %v3531
        %3556 = vmatprep.subr.bf16.mxu0 0
        %3557 = vmatpush1.bf16.msra.mxu0 0
        %3558 = vmatprep.subr.bf16.mxu0 0
        %3559 = vmatpush1.bf16.msra.mxu0 0
        %3560 = vmatprep.subr.bf16.mxu0 0
        %3561 = vmatpush1.bf16.msra.mxu0 0
        %3562 = vmatprep.subr.bf16.mxu0 0
        %3563 = vmatpush1.bf16.msra.mxu0 0
        %3564 = vmatprep.subr.bf16.mxu0 0
        %3565 = vmatpush1.bf16.msra.mxu0 0
        %3566 = vmatprep.subr.bf16.mxu0 0
        %3567 = vmatpush1.bf16.msra.mxu0 0
        %3568 = vmatprep.subr.bf16.mxu0 0
        %3569 = vmatpush1.bf16.msra.mxu0 0
        %3570 = vmatprep.subr.bf16.mxu0 0
        %3571 = vmatpush1.bf16.msra.mxu0 0
        %3572 = vmatprep.mubr.bf16.mxu0 0
        %3573 = vmatmul.mubr.bf16.gmra.mrb[0].mxu0 %v3471
        %v3574 = vpop.f32.mrb[0].mxu0
        %v3575 = vadd.f32 0.0, %v3574
        %v3576 = vpop.f32.mrb[0].mxu0
        %v3577 = vpop.f32.mrb[0].mxu0
        %v3578 = vadd.f32 0.0, %v3577
        %v3579 = vpop.f32.mrb[0].mxu0
        %3580 = vmatprep.mubr.bf16.mxu0 0
        %3581 = vmatmul.mubr.bf16.gmra.mrb[0].mxu0 %v3472
        %v3582 = vpop.f32.mrb[0].mxu0
        %v3583 = vadd.f32 0.0, %v3582
        %v3584 = vpop.f32.mrb[0].mxu0
        %v3585 = vpop.f32.mrb[0].mxu0
        %v3586 = vadd.f32 0.0, %v3585
        %v3587 = vpop.f32.mrb[0].mxu0
        %3588 = vmatprep.mubr.bf16.mxu0 0
        %3589 = vmatmul.mubr.bf16.gmra.mrb[0].mxu0 %v3473
        %v3590 = vpop.f32.mrb[0].mxu0
        %v3591 = vadd.f32 0.0, %v3590
        %v3592 = vpop.f32.mrb[0].mxu0
        %v3593 = vpop.f32.mrb[0].mxu0
        %v3594 = vadd.f32 0.0, %v3593
        %v3595 = vpop.f32.mrb[0].mxu0
        %3596 = vmatprep.mubr.bf16.mxu0 0
        %3597 = vmatmul.mubr.bf16.gmra.mrb[0].mxu0 %v3474
        %v3598 = vpop.f32.mrb[0].mxu0
        %v3599 = vadd.f32 0.0, %v3598
        %v3600 = vpop.f32.mrb[0].mxu0
        %v3601 = vpop.f32.mrb[0].mxu0
        %v3602 = vadd.f32 0.0, %v3601
        %v3603 = vpop.f32.mrb[0].mxu0
        %3604 = vdwg.mxu0
        %v3605 = vadd.f32 %v3455, %v3575
        %v3606 = vadd.f32 %v3456, %v3578
        %v3607 = vadd.f32 %v3457, %v3583
        %v3608 = vadd.f32 %v3458, %v3586
        %v3609 = vadd.f32 %v3459, %v3591
        %v3610 = vadd.f32 %v3460, %v3594
        %v3611 = vadd.f32 %v3461, %v3599
        %v3612 = vadd.f32 %v3462, %v3602
        %v3613 = vld [vmem:[%s3162 + $0x3] sm:$0xff]
        %v3614 = vld [vmem:[%s3162 + $0x13] sm:$0xff]
        %v3615 = vld [vmem:[%s3162 + $0x23] sm:$0xff]
        %v3616 = vld [vmem:[%s3162 + $0x33] sm:$0xff]
        %v3617 = vld [vmem:[%s3162 + $0x43] sm:$0xff]
        %v3618 = vld [vmem:[%s3162 + $0x53] sm:$0xff]
        %v3619 = vld [vmem:[%s3162 + $0x63] sm:$0xff]
        %v3620 = vld [vmem:[%s3162 + $0x73] sm:$0xff]
        %v3621 = vpack.c.bf16 %v3614, %v3613
        %v3622 = vpack.c.bf16 %v3616, %v3615
        %v3623 = vpack.c.bf16 %v3618, %v3617
        %v3624 = vpack.c.bf16 %v3620, %v3619
        %s3625 = scalar_lea.vmem %s3, 832
        %v3626 = vld [vmem:[%s3625] sm:$0xf]
        %v3627 = vld [vmem:[%s3625 + $0x4] sm:$0xf]
        %v3628 = vld [vmem:[%s3625 + $0x8] sm:$0xf]
        %v3629 = vld [vmem:[%s3625 + $0xc] sm:$0xf]
        %v3630 = vld [vmem:[%s3625 + $0x10] sm:$0xf]
        %v3631 = vld [vmem:[%s3625 + $0x14] sm:$0xf]
        %v3632 = vld [vmem:[%s3625 + $0x18] sm:$0xf]
        %v3633 = vld [vmem:[%s3625 + $0x1c] sm:$0xf]
        %v3634 = vld [vmem:[%s3625 + $0x20] sm:$0xf]
        %v3635 = vld [vmem:[%s3625 + $0x24] sm:$0xf]
        %v3636 = vld [vmem:[%s3625 + $0x28] sm:$0xf]
        %v3637 = vld [vmem:[%s3625 + $0x2c] sm:$0xf]
        %v3638 = vld [vmem:[%s3625 + $0x30] sm:$0xf]
        %v3639 = vld [vmem:[%s3625 + $0x34] sm:$0xf]
        %v3640 = vld [vmem:[%s3625 + $0x38] sm:$0xf]
        %v3641 = vld [vmem:[%s3625 + $0x3c] sm:$0xf]
        %v3658 = vunpack.c.l.b16 %v3626
        %v3659 = vunpack.c.l.b16 %v3627
        %v3660 = vunpack.c.l.b16 %v3628
        %v3661 = vunpack.c.l.b16 %v3629
        %v3662 = vunpack.c.l.b16 %v3630
        %v3663 = vunpack.c.l.b16 %v3631
        %v3664 = vunpack.c.l.b16 %v3632
        %v3665 = vunpack.c.l.b16 %v3633
        %v3666 = vunpack.c.l.b16 %v3634
        %v3667 = vunpack.c.l.b16 %v3635
        %v3668 = vunpack.c.l.b16 %v3636
        %v3669 = vunpack.c.l.b16 %v3637
        %v3670 = vunpack.c.l.b16 %v3638
        %v3671 = vunpack.c.l.b16 %v3639
        %v3672 = vunpack.c.l.b16 %v3640
        %v3673 = vunpack.c.l.b16 %v3641
        %v3674 = vpack.c.b16 %v3659, %v3658
        %v3675 = vpack.c.b16 %v3661, %v3660
        %v3676 = vpack.c.b16 %v3663, %v3662
        %v3677 = vpack.c.b16 %v3665, %v3664
        %v3678 = vpack.c.b16 %v3667, %v3666
        %v3679 = vpack.c.b16 %v3669, %v3668
        %v3680 = vpack.c.b16 %v3671, %v3670
        %v3681 = vpack.c.b16 %v3673, %v3672
        %3690 = vmatprep.subr.bf16.mxu0 0
        %3691 = vmatpush1.bf16.msra.mxu0 %v3674
        %3692 = vmatprep.subr.bf16.mxu0 0
        %3693 = vmatpush1.bf16.msra.mxu0 %v3675
        %3694 = vmatprep.subr.bf16.mxu0 0
        %3695 = vmatpush1.bf16.msra.mxu0 %v3676
        %3696 = vmatprep.subr.bf16.mxu0 0
        %3697 = vmatpush1.bf16.msra.mxu0 %v3677
        %3698 = vmatprep.subr.bf16.mxu0 0
        %3699 = vmatpush1.bf16.msra.mxu0 %v3678
        %3700 = vmatprep.subr.bf16.mxu0 0
        %3701 = vmatpush1.bf16.msra.mxu0 %v3679
        %3702 = vmatprep.subr.bf16.mxu0 0
        %3703 = vmatpush1.bf16.msra.mxu0 %v3680
        %3704 = vmatprep.subr.bf16.mxu0 0
        %3705 = vmatpush1.bf16.msra.mxu0 %v3681
        %3706 = vmatprep.subr.bf16.mxu0 0
        %3707 = vmatpush1.bf16.msra.mxu0 0
        %3708 = vmatprep.subr.bf16.mxu0 0
        %3709 = vmatpush1.bf16.msra.mxu0 0
        %3710 = vmatprep.subr.bf16.mxu0 0
        %3711 = vmatpush1.bf16.msra.mxu0 0
        %3712 = vmatprep.subr.bf16.mxu0 0
        %3713 = vmatpush1.bf16.msra.mxu0 0
        %3714 = vmatprep.subr.bf16.mxu0 0
        %3715 = vmatpush1.bf16.msra.mxu0 0
        %3716 = vmatprep.subr.bf16.mxu0 0
        %3717 = vmatpush1.bf16.msra.mxu0 0
        %3718 = vmatprep.subr.bf16.mxu0 0
        %3719 = vmatpush1.bf16.msra.mxu0 0
        %3720 = vmatprep.subr.bf16.mxu0 0
        %3721 = vmatpush1.bf16.msra.mxu0 0
        %3722 = vmatprep.mubr.bf16.mxu0 0
        %3723 = vmatmul.mubr.bf16.gmra.mrb[0].mxu0 %v3621
        %v3724 = vpop.f32.mrb[0].mxu0
        %v3725 = vadd.f32 0.0, %v3724
        %v3726 = vpop.f32.mrb[0].mxu0
        %v3727 = vpop.f32.mrb[0].mxu0
        %v3728 = vadd.f32 0.0, %v3727
        %v3729 = vpop.f32.mrb[0].mxu0
        %3730 = vmatprep.mubr.bf16.mxu0 0
        %3731 = vmatmul.mubr.bf16.gmra.mrb[0].mxu0 %v3622
        %v3732 = vpop.f32.mrb[0].mxu0
        %v3733 = vadd.f32 0.0, %v3732
        %v3734 = vpop.f32.mrb[0].mxu0
        %v3735 = vpop.f32.mrb[0].mxu0
        %v3736 = vadd.f32 0.0, %v3735
        %v3737 = vpop.f32.mrb[0].mxu0
        %3738 = vmatprep.mubr.bf16.mxu0 0
        %3739 = vmatmul.mubr.bf16.gmra.mrb[0].mxu0 %v3623
        %v3740 = vpop.f32.mrb[0].mxu0
        %v3741 = vadd.f32 0.0, %v3740
        %v3742 = vpop.f32.mrb[0].mxu0
        %v3743 = vpop.f32.mrb[0].mxu0
        %v3744 = vadd.f32 0.0, %v3743
        %v3745 = vpop.f32.mrb[0].mxu0
        %3746 = vmatprep.mubr.bf16.mxu0 0
        %3747 = vmatmul.mubr.bf16.gmra.mrb[0].mxu0 %v3624
        %v3748 = vpop.f32.mrb[0].mxu0
        %v3749 = vadd.f32 0.0, %v3748
        %v3750 = vpop.f32.mrb[0].mxu0
        %v3751 = vpop.f32.mrb[0].mxu0
        %v3752 = vadd.f32 0.0, %v3751
        %v3753 = vpop.f32.mrb[0].mxu0
        %3754 = vdwg.mxu0
        %v3755 = vadd.f32 %v3605, %v3725
        %v3756 = vadd.f32 %v3606, %v3728
        %v3757 = vadd.f32 %v3607, %v3733
        %v3758 = vadd.f32 %v3608, %v3736
        %v3759 = vadd.f32 %v3609, %v3741
        %v3760 = vadd.f32 %v3610, %v3744
        %v3761 = vadd.f32 %v3611, %v3749
        %v3762 = vadd.f32 %v3612, %v3752
        %v3763 = vld [vmem:[%s3162 + $0x4] sm:$0xff]
        %v3764 = vld [vmem:[%s3162 + $0x14] sm:$0xff]
        %v3765 = vld [vmem:[%s3162 + $0x24] sm:$0xff]
        %v3766 = vld [vmem:[%s3162 + $0x34] sm:$0xff]
        %v3767 = vld [vmem:[%s3162 + $0x44] sm:$0xff]
        %v3768 = vld [vmem:[%s3162 + $0x54] sm:$0xff]
        %v3769 = vld [vmem:[%s3162 + $0x64] sm:$0xff]
        %v3770 = vld [vmem:[%s3162 + $0x74] sm:$0xff]
        %v3771 = vpack.c.bf16 %v3764, %v3763
        %v3772 = vpack.c.bf16 %v3766, %v3765
        %v3773 = vpack.c.bf16 %v3768, %v3767
        %v3774 = vpack.c.bf16 %v3770, %v3769
        %s3775 = scalar_lea.vmem %s3, 896
        %v3776 = vld [vmem:[%s3775] sm:$0xf]
        %v3777 = vld [vmem:[%s3775 + $0x4] sm:$0xf]
        %v3778 = vld [vmem:[%s3775 + $0x8] sm:$0xf]
        %v3779 = vld [vmem:[%s3775 + $0xc] sm:$0xf]
        %v3780 = vld [vmem:[%s3775 + $0x10] sm:$0xf]
        %v3781 = vld [vmem:[%s3775 + $0x14] sm:$0xf]
        %v3782 = vld [vmem:[%s3775 + $0x18] sm:$0xf]
        %v3783 = vld [vmem:[%s3775 + $0x1c] sm:$0xf]
        %v3784 = vld [vmem:[%s3775 + $0x20] sm:$0xf]
        %v3785 = vld [vmem:[%s3775 + $0x24] sm:$0xf]
        %v3786 = vld [vmem:[%s3775 + $0x28] sm:$0xf]
        %v3787 = vld [vmem:[%s3775 + $0x2c] sm:$0xf]
        %v3788 = vld [vmem:[%s3775 + $0x30] sm:$0xf]
        %v3789 = vld [vmem:[%s3775 + $0x34] sm:$0xf]
        %v3790 = vld [vmem:[%s3775 + $0x38] sm:$0xf]
        %v3791 = vld [vmem:[%s3775 + $0x3c] sm:$0xf]
        %v3808 = vunpack.c.l.b16 %v3776
        %v3809 = vunpack.c.l.b16 %v3777
        %v3810 = vunpack.c.l.b16 %v3778
        %v3811 = vunpack.c.l.b16 %v3779
        %v3812 = vunpack.c.l.b16 %v3780
        %v3813 = vunpack.c.l.b16 %v3781
        %v3814 = vunpack.c.l.b16 %v3782
        %v3815 = vunpack.c.l.b16 %v3783
        %v3816 = vunpack.c.l.b16 %v3784
        %v3817 = vunpack.c.l.b16 %v3785
        %v3818 = vunpack.c.l.b16 %v3786
        %v3819 = vunpack.c.l.b16 %v3787
        %v3820 = vunpack.c.l.b16 %v3788
        %v3821 = vunpack.c.l.b16 %v3789
        %v3822 = vunpack.c.l.b16 %v3790
        %v3823 = vunpack.c.l.b16 %v3791
        %v3824 = vpack.c.b16 %v3809, %v3808
        %v3825 = vpack.c.b16 %v3811, %v3810
        %v3826 = vpack.c.b16 %v3813, %v3812
        %v3827 = vpack.c.b16 %v3815, %v3814
        %v3828 = vpack.c.b16 %v3817, %v3816
        %v3829 = vpack.c.b16 %v3819, %v3818
        %v3830 = vpack.c.b16 %v3821, %v3820
        %v3831 = vpack.c.b16 %v3823, %v3822
        %3840 = vmatprep.subr.bf16.mxu0 0
        %3841 = vmatpush1.bf16.msra.mxu0 %v3824
        %3842 = vmatprep.subr.bf16.mxu0 0
        %3843 = vmatpush1.bf16.msra.mxu0 %v3825
        %3844 = vmatprep.subr.bf16.mxu0 0
        %3845 = vmatpush1.bf16.msra.mxu0 %v3826
        %3846 = vmatprep.subr.bf16.mxu0 0
        %3847 = vmatpush1.bf16.msra.mxu0 %v3827
        %3848 = vmatprep.subr.bf16.mxu0 0
        %3849 = vmatpush1.bf16.msra.mxu0 %v3828
        %3850 = vmatprep.subr.bf16.mxu0 0
        %3851 = vmatpush1.bf16.msra.mxu0 %v3829
        %3852 = vmatprep.subr.bf16.mxu0 0
        %3853 = vmatpush1.bf16.msra.mxu0 %v3830
        %3854 = vmatprep.subr.bf16.mxu0 0
        %3855 = vmatpush1.bf16.msra.mxu0 %v3831
        %3856 = vmatprep.subr.bf16.mxu0 0
        %3857 = vmatpush1.bf16.msra.mxu0 0
        %3858 = vmatprep.subr.bf16.mxu0 0
        %3859 = vmatpush1.bf16.msra.mxu0 0
        %3860 = vmatprep.subr.bf16.mxu0 0
        %3861 = vmatpush1.bf16.msra.mxu0 0
        %3862 = vmatprep.subr.bf16.mxu0 0
        %3863 = vmatpush1.bf16.msra.mxu0 0
        %3864 = vmatprep.subr.bf16.mxu0 0
        %3865 = vmatpush1.bf16.msra.mxu0 0
        %3866 = vmatprep.subr.bf16.mxu0 0
        %3867 = vmatpush1.bf16.msra.mxu0 0
        %3868 = vmatprep.subr.bf16.mxu0 0
        %3869 = vmatpush1.bf16.msra.mxu0 0
        %3870 = vmatprep.subr.bf16.mxu0 0
        %3871 = vmatpush1.bf16.msra.mxu0 0
        %3872 = vmatprep.mubr.bf16.mxu0 0
        %3873 = vmatmul.mubr.bf16.gmra.mrb[0].mxu0 %v3771
        %v3874 = vpop.f32.mrb[0].mxu0
        %v3875 = vadd.f32 0.0, %v3874
        %v3876 = vpop.f32.mrb[0].mxu0
        %v3877 = vpop.f32.mrb[0].mxu0
        %v3878 = vadd.f32 0.0, %v3877
        %v3879 = vpop.f32.mrb[0].mxu0
        %3880 = vmatprep.mubr.bf16.mxu0 0
        %3881 = vmatmul.mubr.bf16.gmra.mrb[0].mxu0 %v3772
        %v3882 = vpop.f32.mrb[0].mxu0
        %v3883 = vadd.f32 0.0, %v3882
        %v3884 = vpop.f32.mrb[0].mxu0
        %v3885 = vpop.f32.mrb[0].mxu0
        %v3886 = vadd.f32 0.0, %v3885
        %v3887 = vpop.f32.mrb[0].mxu0
        %3888 = vmatprep.mubr.bf16.mxu0 0
        %3889 = vmatmul.mubr.bf16.gmra.mrb[0].mxu0 %v3773
        %v3890 = vpop.f32.mrb[0].mxu0
        %v3891 = vadd.f32 0.0, %v3890
        %v3892 = vpop.f32.mrb[0].mxu0
        %v3893 = vpop.f32.mrb[0].mxu0
        %v3894 = vadd.f32 0.0, %v3893
        %v3895 = vpop.f32.mrb[0].mxu0
        %3896 = vmatprep.mubr.bf16.mxu0 0
        %3897 = vmatmul.mubr.bf16.gmra.mrb[0].mxu0 %v3774
        %v3898 = vpop.f32.mrb[0].mxu0
        %v3899 = vadd.f32 0.0, %v3898
        %v3900 = vpop.f32.mrb[0].mxu0
        %v3901 = vpop.f32.mrb[0].mxu0
        %v3902 = vadd.f32 0.0, %v3901
        %v3903 = vpop.f32.mrb[0].mxu0
        %3904 = vdwg.mxu0
        %v3905 = vadd.f32 %v3755, %v3875
        %v3906 = vadd.f32 %v3756, %v3878
        %v3907 = vadd.f32 %v3757, %v3883
        %v3908 = vadd.f32 %v3758, %v3886
        %v3909 = vadd.f32 %v3759, %v3891
        %v3910 = vadd.f32 %v3760, %v3894
        %v3911 = vadd.f32 %v3761, %v3899
        %v3912 = vadd.f32 %v3762, %v3902
        %s3913 = scalar_lea.vmem [#allocation2], 48
        %v3914 = vld [vmem:[%s3913] sm:$0xff]
        %v3915 = vld [vmem:[%s3913 + $0x10] sm:$0xff]
        %v3916 = vld [vmem:[%s3913 + $0x20] sm:$0xff]
        %v3917 = vld [vmem:[%s3913 + $0x30] sm:$0xff]
        %v3918 = vld [vmem:[%s3913 + $0x40] sm:$0xff]
        %v3919 = vld [vmem:[%s3913 + $0x50] sm:$0xff]
        %v3920 = vld [vmem:[%s3913 + $0x60] sm:$0xff]
        %v3921 = vld [vmem:[%s3913 + $0x70] sm:$0xff]
        %v3922 = vpack.c.bf16 %v3915, %v3914
        %v3923 = vpack.c.bf16 %v3917, %v3916
        %v3924 = vpack.c.bf16 %v3919, %v3918
        %v3925 = vpack.c.bf16 %v3921, %v3920
        %s3926 = scalar_lea.vmem %s3, 960
        %v3927 = vld [vmem:[%s3926] sm:$0xf]
        %v3928 = vld [vmem:[%s3926 + $0x4] sm:$0xf]
        %v3929 = vld [vmem:[%s3926 + $0x8] sm:$0xf]
        %v3930 = vld [vmem:[%s3926 + $0xc] sm:$0xf]
        %v3931 = vld [vmem:[%s3926 + $0x10] sm:$0xf]
        %v3932 = vld [vmem:[%s3926 + $0x14] sm:$0xf]
        %v3933 = vld [vmem:[%s3926 + $0x18] sm:$0xf]
        %v3934 = vld [vmem:[%s3926 + $0x1c] sm:$0xf]
        %v3935 = vld [vmem:[%s3926 + $0x20] sm:$0xf]
        %v3936 = vld [vmem:[%s3926 + $0x24] sm:$0xf]
        %v3937 = vld [vmem:[%s3926 + $0x28] sm:$0xf]
        %v3938 = vld [vmem:[%s3926 + $0x2c] sm:$0xf]
        %v3939 = vld [vmem:[%s3926 + $0x30] sm:$0xf]
        %v3940 = vld [vmem:[%s3926 + $0x34] sm:$0xf]
        %v3941 = vld [vmem:[%s3926 + $0x38] sm:$0xf]
        %v3942 = vld [vmem:[%s3926 + $0x3c] sm:$0xf]
        %v3959 = vunpack.c.l.b16 %v3927
        %v3960 = vunpack.c.l.b16 %v3928
        %v3961 = vunpack.c.l.b16 %v3929
        %v3962 = vunpack.c.l.b16 %v3930
        %v3963 = vunpack.c.l.b16 %v3931
        %v3964 = vunpack.c.l.b16 %v3932
        %v3965 = vunpack.c.l.b16 %v3933
        %v3966 = vunpack.c.l.b16 %v3934
        %v3967 = vunpack.c.l.b16 %v3935
        %v3968 = vunpack.c.l.b16 %v3936
        %v3969 = vunpack.c.l.b16 %v3937
        %v3970 = vunpack.c.l.b16 %v3938
        %v3971 = vunpack.c.l.b16 %v3939
        %v3972 = vunpack.c.l.b16 %v3940
        %v3973 = vunpack.c.l.b16 %v3941
        %v3974 = vunpack.c.l.b16 %v3942
        %v3975 = vpack.c.b16 %v3960, %v3959
        %v3976 = vpack.c.b16 %v3962, %v3961
        %v3977 = vpack.c.b16 %v3964, %v3963
        %v3978 = vpack.c.b16 %v3966, %v3965
        %v3979 = vpack.c.b16 %v3968, %v3967
        %v3980 = vpack.c.b16 %v3970, %v3969
        %v3981 = vpack.c.b16 %v3972, %v3971
        %v3982 = vpack.c.b16 %v3974, %v3973
        %3991 = vmatprep.subr.bf16.mxu0 0
        %3992 = vmatpush1.bf16.msra.mxu0 %v3975
        %3993 = vmatprep.subr.bf16.mxu0 0
        %3994 = vmatpush1.bf16.msra.mxu0 %v3976
        %3995 = vmatprep.subr.bf16.mxu0 0
        %3996 = vmatpush1.bf16.msra.mxu0 %v3977
        %3997 = vmatprep.subr.bf16.mxu0 0
        %3998 = vmatpush1.bf16.msra.mxu0 %v3978
        %3999 = vmatprep.subr.bf16.mxu0 0
        %4000 = vmatpush1.bf16.msra.mxu0 %v3979
        %4001 = vmatprep.subr.bf16.mxu0 0
        %4002 = vmatpush1.bf16.msra.mxu0 %v3980
        %4003 = vmatprep.subr.bf16.mxu0 0
        %4004 = vmatpush1.bf16.msra.mxu0 %v3981
        %4005 = vmatprep.subr.bf16.mxu0 0
        %4006 = vmatpush1.bf16.msra.mxu0 %v3982
        %4007 = vmatprep.subr.bf16.mxu0 0
        %4008 = vmatpush1.bf16.msra.mxu0 0
        %4009 = vmatprep.subr.bf16.mxu0 0
        %4010 = vmatpush1.bf16.msra.mxu0 0
        %4011 = vmatprep.subr.bf16.mxu0 0
        %4012 = vmatpush1.bf16.msra.mxu0 0
        %4013 = vmatprep.subr.bf16.mxu0 0
        %4014 = vmatpush1.bf16.msra.mxu0 0
        %4015 = vmatprep.subr.bf16.mxu0 0
        %4016 = vmatpush1.bf16.msra.mxu0 0
        %4017 = vmatprep.subr.bf16.mxu0 0
        %4018 = vmatpush1.bf16.msra.mxu0 0
        %4019 = vmatprep.subr.bf16.mxu0 0
        %4020 = vmatpush1.bf16.msra.mxu0 0
        %4021 = vmatprep.subr.bf16.mxu0 0
        %4022 = vmatpush1.bf16.msra.mxu0 0
        %4023 = vmatprep.mubr.bf16.mxu0 0
        %4024 = vmatmul.mubr.bf16.gmra.mrb[0].mxu0 %v3922
        %v4025 = vpop.f32.mrb[0].mxu0
        %v4026 = vadd.f32 0.0, %v4025
        %v4027 = vpop.f32.mrb[0].mxu0
        %v4028 = vpop.f32.mrb[0].mxu0
        %v4029 = vadd.f32 0.0, %v4028
        %v4030 = vpop.f32.mrb[0].mxu0
        %4031 = vmatprep.mubr.bf16.mxu0 0
        %4032 = vmatmul.mubr.bf16.gmra.mrb[0].mxu0 %v3923
        %v4033 = vpop.f32.mrb[0].mxu0
        %v4034 = vadd.f32 0.0, %v4033
        %v4035 = vpop.f32.mrb[0].mxu0
        %v4036 = vpop.f32.mrb[0].mxu0
        %v4037 = vadd.f32 0.0, %v4036
        %v4038 = vpop.f32.mrb[0].mxu0
        %4039 = vmatprep.mubr.bf16.mxu0 0
        %4040 = vmatmul.mubr.bf16.gmra.mrb[0].mxu0 %v3924
        %v4041 = vpop.f32.mrb[0].mxu0
        %v4042 = vadd.f32 0.0, %v4041
        %v4043 = vpop.f32.mrb[0].mxu0
        %v4044 = vpop.f32.mrb[0].mxu0
        %v4045 = vadd.f32 0.0, %v4044
        %v4046 = vpop.f32.mrb[0].mxu0
        %4047 = vmatprep.mubr.bf16.mxu0 0
        %4048 = vmatmul.mubr.bf16.gmra.mrb[0].mxu0 %v3925
        %v4049 = vpop.f32.mrb[0].mxu0
        %v4050 = vadd.f32 0.0, %v4049
        %v4051 = vpop.f32.mrb[0].mxu0
        %v4052 = vpop.f32.mrb[0].mxu0
        %v4053 = vadd.f32 0.0, %v4052
        %v4054 = vpop.f32.mrb[0].mxu0
        %4055 = vdwg.mxu0
        %v4056 = vadd.f32 %v3905, %v4026
        %v4057 = vadd.f32 %v3906, %v4029
        %v4058 = vadd.f32 %v3907, %v4034
        %v4059 = vadd.f32 %v3908, %v4037
        %v4060 = vadd.f32 %v3909, %v4042
        %v4061 = vadd.f32 %v3910, %v4045
        %v4062 = vadd.f32 %v3911, %v4050
        %v4063 = vadd.f32 %v3912, %v4053
        %v4064 = vld [vmem:[%s3913 + $0x1] sm:$0xff]
        %v4065 = vld [vmem:[%s3913 + $0x11] sm:$0xff]
        %v4066 = vld [vmem:[%s3913 + $0x21] sm:$0xff]
        %v4067 = vld [vmem:[%s3913 + $0x31] sm:$0xff]
        %v4068 = vld [vmem:[%s3913 + $0x41] sm:$0xff]
        %v4069 = vld [vmem:[%s3913 + $0x51] sm:$0xff]
        %v4070 = vld [vmem:[%s3913 + $0x61] sm:$0xff]
        %v4071 = vld [vmem:[%s3913 + $0x71] sm:$0xff]
        %v4072 = vpack.c.bf16 %v4065, %v4064
        %v4073 = vpack.c.bf16 %v4067, %v4066
        %v4074 = vpack.c.bf16 %v4069, %v4068
        %v4075 = vpack.c.bf16 %v4071, %v4070
        %s4076 = scalar_lea.vmem %s3, 1024
        %v4077 = vld [vmem:[%s4076] sm:$0xf]
        %v4078 = vld [vmem:[%s4076 + $0x4] sm:$0xf]
        %v4079 = vld [vmem:[%s4076 + $0x8] sm:$0xf]
        %v4080 = vld [vmem:[%s4076 + $0xc] sm:$0xf]
        %v4081 = vld [vmem:[%s4076 + $0x10] sm:$0xf]
        %v4082 = vld [vmem:[%s4076 + $0x14] sm:$0xf]
        %v4083 = vld [vmem:[%s4076 + $0x18] sm:$0xf]
        %v4084 = vld [vmem:[%s4076 + $0x1c] sm:$0xf]
        %v4085 = vld [vmem:[%s4076 + $0x20] sm:$0xf]
        %v4086 = vld [vmem:[%s4076 + $0x24] sm:$0xf]
        %v4087 = vld [vmem:[%s4076 + $0x28] sm:$0xf]
        %v4088 = vld [vmem:[%s4076 + $0x2c] sm:$0xf]
        %v4089 = vld [vmem:[%s4076 + $0x30] sm:$0xf]
        %v4090 = vld [vmem:[%s4076 + $0x34] sm:$0xf]
        %v4091 = vld [vmem:[%s4076 + $0x38] sm:$0xf]
        %v4092 = vld [vmem:[%s4076 + $0x3c] sm:$0xf]
        %v4109 = vunpack.c.l.b16 %v4077
        %v4110 = vunpack.c.l.b16 %v4078
        %v4111 = vunpack.c.l.b16 %v4079
        %v4112 = vunpack.c.l.b16 %v4080
        %v4113 = vunpack.c.l.b16 %v4081
        %v4114 = vunpack.c.l.b16 %v4082
        %v4115 = vunpack.c.l.b16 %v4083
        %v4116 = vunpack.c.l.b16 %v4084
        %v4117 = vunpack.c.l.b16 %v4085
        %v4118 = vunpack.c.l.b16 %v4086
        %v4119 = vunpack.c.l.b16 %v4087
        %v4120 = vunpack.c.l.b16 %v4088
        %v4121 = vunpack.c.l.b16 %v4089
        %v4122 = vunpack.c.l.b16 %v4090
        %v4123 = vunpack.c.l.b16 %v4091
        %v4124 = vunpack.c.l.b16 %v4092
        %v4125 = vpack.c.b16 %v4110, %v4109
        %v4126 = vpack.c.b16 %v4112, %v4111
        %v4127 = vpack.c.b16 %v4114, %v4113
        %v4128 = vpack.c.b16 %v4116, %v4115
        %v4129 = vpack.c.b16 %v4118, %v4117
        %v4130 = vpack.c.b16 %v4120, %v4119
        %v4131 = vpack.c.b16 %v4122, %v4121
        %v4132 = vpack.c.b16 %v4124, %v4123
        %4141 = vmatprep.subr.bf16.mxu0 0
        %4142 = vmatpush1.bf16.msra.mxu0 %v4125
        %4143 = vmatprep.subr.bf16.mxu0 0
        %4144 = vmatpush1.bf16.msra.mxu0 %v4126
        %4145 = vmatprep.subr.bf16.mxu0 0
        %4146 = vmatpush1.bf16.msra.mxu0 %v4127
        %4147 = vmatprep.subr.bf16.mxu0 0
        %4148 = vmatpush1.bf16.msra.mxu0 %v4128
        %4149 = vmatprep.subr.bf16.mxu0 0
        %4150 = vmatpush1.bf16.msra.mxu0 %v4129
        %4151 = vmatprep.subr.bf16.mxu0 0
        %4152 = vmatpush1.bf16.msra.mxu0 %v4130
        %4153 = vmatprep.subr.bf16.mxu0 0
        %4154 = vmatpush1.bf16.msra.mxu0 %v4131
        %4155 = vmatprep.subr.bf16.mxu0 0
        %4156 = vmatpush1.bf16.msra.mxu0 %v4132
        %4157 = vmatprep.subr.bf16.mxu0 0
        %4158 = vmatpush1.bf16.msra.mxu0 0
        %4159 = vmatprep.subr.bf16.mxu0 0
        %4160 = vmatpush1.bf16.msra.mxu0 0
        %4161 = vmatprep.subr.bf16.mxu0 0
        %4162 = vmatpush1.bf16.msra.mxu0 0
        %4163 = vmatprep.subr.bf16.mxu0 0
        %4164 = vmatpush1.bf16.msra.mxu0 0
        %4165 = vmatprep.subr.bf16.mxu0 0
        %4166 = vmatpush1.bf16.msra.mxu0 0
        %4167 = vmatprep.subr.bf16.mxu0 0
        %4168 = vmatpush1.bf16.msra.mxu0 0
        %4169 = vmatprep.subr.bf16.mxu0 0
        %4170 = vmatpush1.bf16.msra.mxu0 0
        %4171 = vmatprep.subr.bf16.mxu0 0
        %4172 = vmatpush1.bf16.msra.mxu0 0
        %4173 = vmatprep.mubr.bf16.mxu0 0
        %4174 = vmatmul.mubr.bf16.gmra.mrb[0].mxu0 %v4072
        %v4175 = vpop.f32.mrb[0].mxu0
        %v4176 = vadd.f32 0.0, %v4175
        %v4177 = vpop.f32.mrb[0].mxu0
        %v4178 = vpop.f32.mrb[0].mxu0
        %v4179 = vadd.f32 0.0, %v4178
        %v4180 = vpop.f32.mrb[0].mxu0
        %4181 = vmatprep.mubr.bf16.mxu0 0
        %4182 = vmatmul.mubr.bf16.gmra.mrb[0].mxu0 %v4073
        %v4183 = vpop.f32.mrb[0].mxu0
        %v4184 = vadd.f32 0.0, %v4183
        %v4185 = vpop.f32.mrb[0].mxu0
        %v4186 = vpop.f32.mrb[0].mxu0
        %v4187 = vadd.f32 0.0, %v4186
        %v4188 = vpop.f32.mrb[0].mxu0
        %4189 = vmatprep.mubr.bf16.mxu0 0
        %4190 = vmatmul.mubr.bf16.gmra.mrb[0].mxu0 %v4074
        %v4191 = vpop.f32.mrb[0].mxu0
        %v4192 = vadd.f32 0.0, %v4191
        %v4193 = vpop.f32.mrb[0].mxu0
        %v4194 = vpop.f32.mrb[0].mxu0
        %v4195 = vadd.f32 0.0, %v4194
        %v4196 = vpop.f32.mrb[0].mxu0
        %4197 = vmatprep.mubr.bf16.mxu0 0
        %4198 = vmatmul.mubr.bf16.gmra.mrb[0].mxu0 %v4075
        %v4199 = vpop.f32.mrb[0].mxu0
        %v4200 = vadd.f32 0.0, %v4199
        %v4201 = vpop.f32.mrb[0].mxu0
        %v4202 = vpop.f32.mrb[0].mxu0
        %v4203 = vadd.f32 0.0, %v4202
        %v4204 = vpop.f32.mrb[0].mxu0
        %4205 = vdwg.mxu0
        %v4206 = vadd.f32 %v4056, %v4176
        %v4207 = vadd.f32 %v4057, %v4179
        %v4208 = vadd.f32 %v4058, %v4184
        %v4209 = vadd.f32 %v4059, %v4187
        %v4210 = vadd.f32 %v4060, %v4192
        %v4211 = vadd.f32 %v4061, %v4195
        %v4212 = vadd.f32 %v4062, %v4200
        %v4213 = vadd.f32 %v4063, %v4203
        %v4214 = vld [vmem:[%s3913 + $0x2] sm:$0xff]
        %v4215 = vld [vmem:[%s3913 + $0x12] sm:$0xff]
        %v4216 = vld [vmem:[%s3913 + $0x22] sm:$0xff]
        %v4217 = vld [vmem:[%s3913 + $0x32] sm:$0xff]
        %v4218 = vld [vmem:[%s3913 + $0x42] sm:$0xff]
        %v4219 = vld [vmem:[%s3913 + $0x52] sm:$0xff]
        %v4220 = vld [vmem:[%s3913 + $0x62] sm:$0xff]
        %v4221 = vld [vmem:[%s3913 + $0x72] sm:$0xff]
        %v4222 = vpack.c.bf16 %v4215, %v4214
        %v4223 = vpack.c.bf16 %v4217, %v4216
        %v4224 = vpack.c.bf16 %v4219, %v4218
        %v4225 = vpack.c.bf16 %v4221, %v4220
        %s4226 = scalar_lea.vmem %s3, 1088
        %v4227 = vld [vmem:[%s4226] sm:$0xf]
        %v4228 = vld [vmem:[%s4226 + $0x4] sm:$0xf]
        %v4229 = vld [vmem:[%s4226 + $0x8] sm:$0xf]
        %v4230 = vld [vmem:[%s4226 + $0xc] sm:$0xf]
        %v4231 = vld [vmem:[%s4226 + $0x10] sm:$0xf]
        %v4232 = vld [vmem:[%s4226 + $0x14] sm:$0xf]
        %v4233 = vld [vmem:[%s4226 + $0x18] sm:$0xf]
        %v4234 = vld [vmem:[%s4226 + $0x1c] sm:$0xf]
        %v4235 = vld [vmem:[%s4226 + $0x20] sm:$0xf]
        %v4236 = vld [vmem:[%s4226 + $0x24] sm:$0xf]
        %v4237 = vld [vmem:[%s4226 + $0x28] sm:$0xf]
        %v4238 = vld [vmem:[%s4226 + $0x2c] sm:$0xf]
        %v4239 = vld [vmem:[%s4226 + $0x30] sm:$0xf]
        %v4240 = vld [vmem:[%s4226 + $0x34] sm:$0xf]
        %v4241 = vld [vmem:[%s4226 + $0x38] sm:$0xf]
        %v4242 = vld [vmem:[%s4226 + $0x3c] sm:$0xf]
        %v4259 = vunpack.c.l.b16 %v4227
        %v4260 = vunpack.c.l.b16 %v4228
        %v4261 = vunpack.c.l.b16 %v4229
        %v4262 = vunpack.c.l.b16 %v4230
        %v4263 = vunpack.c.l.b16 %v4231
        %v4264 = vunpack.c.l.b16 %v4232
        %v4265 = vunpack.c.l.b16 %v4233
        %v4266 = vunpack.c.l.b16 %v4234
        %v4267 = vunpack.c.l.b16 %v4235
        %v4268 = vunpack.c.l.b16 %v4236
        %v4269 = vunpack.c.l.b16 %v4237
        %v4270 = vunpack.c.l.b16 %v4238
        %v4271 = vunpack.c.l.b16 %v4239
        %v4272 = vunpack.c.l.b16 %v4240
        %v4273 = vunpack.c.l.b16 %v4241
        %v4274 = vunpack.c.l.b16 %v4242
        %v4275 = vpack.c.b16 %v4260, %v4259
        %v4276 = vpack.c.b16 %v4262, %v4261
        %v4277 = vpack.c.b16 %v4264, %v4263
        %v4278 = vpack.c.b16 %v4266, %v4265
        %v4279 = vpack.c.b16 %v4268, %v4267
        %v4280 = vpack.c.b16 %v4270, %v4269
        %v4281 = vpack.c.b16 %v4272, %v4271
        %v4282 = vpack.c.b16 %v4274, %v4273
        %4291 = vmatprep.subr.bf16.mxu0 0
        %4292 = vmatpush1.bf16.msra.mxu0 %v4275
        %4293 = vmatprep.subr.bf16.mxu0 0
        %4294 = vmatpush1.bf16.msra.mxu0 %v4276
        %4295 = vmatprep.subr.bf16.mxu0 0
        %4296 = vmatpush1.bf16.msra.mxu0 %v4277
        %4297 = vmatprep.subr.bf16.mxu0 0
        %4298 = vmatpush1.bf16.msra.mxu0 %v4278
        %4299 = vmatprep.subr.bf16.mxu0 0
        %4300 = vmatpush1.bf16.msra.mxu0 %v4279
        %4301 = vmatprep.subr.bf16.mxu0 0
        %4302 = vmatpush1.bf16.msra.mxu0 %v4280
        %4303 = vmatprep.subr.bf16.mxu0 0
        %4304 = vmatpush1.bf16.msra.mxu0 %v4281
        %4305 = vmatprep.subr.bf16.mxu0 0
        %4306 = vmatpush1.bf16.msra.mxu0 %v4282
        %4307 = vmatprep.subr.bf16.mxu0 0
        %4308 = vmatpush1.bf16.msra.mxu0 0
        %4309 = vmatprep.subr.bf16.mxu0 0
        %4310 = vmatpush1.bf16.msra.mxu0 0
        %4311 = vmatprep.subr.bf16.mxu0 0
        %4312 = vmatpush1.bf16.msra.mxu0 0
        %4313 = vmatprep.subr.bf16.mxu0 0
        %4314 = vmatpush1.bf16.msra.mxu0 0
        %4315 = vmatprep.subr.bf16.mxu0 0
        %4316 = vmatpush1.bf16.msra.mxu0 0
        %4317 = vmatprep.subr.bf16.mxu0 0
        %4318 = vmatpush1.bf16.msra.mxu0 0
        %4319 = vmatprep.subr.bf16.mxu0 0
        %4320 = vmatpush1.bf16.msra.mxu0 0
        %4321 = vmatprep.subr.bf16.mxu0 0
        %4322 = vmatpush1.bf16.msra.mxu0 0
        %4323 = vmatprep.mubr.bf16.mxu0 0
        %4324 = vmatmul.mubr.bf16.gmra.mrb[0].mxu0 %v4222
        %v4325 = vpop.f32.mrb[0].mxu0
        %v4326 = vadd.f32 0.0, %v4325
        %v4327 = vpop.f32.mrb[0].mxu0
        %v4328 = vpop.f32.mrb[0].mxu0
        %v4329 = vadd.f32 0.0, %v4328
        %v4330 = vpop.f32.mrb[0].mxu0
        %4331 = vmatprep.mubr.bf16.mxu0 0
        %4332 = vmatmul.mubr.bf16.gmra.mrb[0].mxu0 %v4223
        %v4333 = vpop.f32.mrb[0].mxu0
        %v4334 = vadd.f32 0.0, %v4333
        %v4335 = vpop.f32.mrb[0].mxu0
        %v4336 = vpop.f32.mrb[0].mxu0
        %v4337 = vadd.f32 0.0, %v4336
        %v4338 = vpop.f32.mrb[0].mxu0
        %4339 = vmatprep.mubr.bf16.mxu0 0
        %4340 = vmatmul.mubr.bf16.gmra.mrb[0].mxu0 %v4224
        %v4341 = vpop.f32.mrb[0].mxu0
        %v4342 = vadd.f32 0.0, %v4341
        %v4343 = vpop.f32.mrb[0].mxu0
        %v4344 = vpop.f32.mrb[0].mxu0
        %v4345 = vadd.f32 0.0, %v4344
        %v4346 = vpop.f32.mrb[0].mxu0
        %4347 = vmatprep.mubr.bf16.mxu0 0
        %4348 = vmatmul.mubr.bf16.gmra.mrb[0].mxu0 %v4225
        %v4349 = vpop.f32.mrb[0].mxu0
        %v4350 = vadd.f32 0.0, %v4349
        %v4351 = vpop.f32.mrb[0].mxu0
        %v4352 = vpop.f32.mrb[0].mxu0
        %v4353 = vadd.f32 0.0, %v4352
        %v4354 = vpop.f32.mrb[0].mxu0
        %4355 = vdwg.mxu0
        %v4356 = vadd.f32 %v4206, %v4326
        %v4357 = vadd.f32 %v4207, %v4329
        %v4358 = vadd.f32 %v4208, %v4334
        %v4359 = vadd.f32 %v4209, %v4337
        %v4360 = vadd.f32 %v4210, %v4342
        %v4361 = vadd.f32 %v4211, %v4345
        %v4362 = vadd.f32 %v4212, %v4350
        %v4363 = vadd.f32 %v4213, %v4353
        %v4364 = vld [vmem:[%s3913 + $0x3] sm:$0xff]
        %v4365 = vld [vmem:[%s3913 + $0x13] sm:$0xff]
        %v4366 = vld [vmem:[%s3913 + $0x23] sm:$0xff]
        %v4367 = vld [vmem:[%s3913 + $0x33] sm:$0xff]
        %v4368 = vld [vmem:[%s3913 + $0x43] sm:$0xff]
        %v4369 = vld [vmem:[%s3913 + $0x53] sm:$0xff]
        %v4370 = vld [vmem:[%s3913 + $0x63] sm:$0xff]
        %v4371 = vld [vmem:[%s3913 + $0x73] sm:$0xff]
        %v4372 = vpack.c.bf16 %v4365, %v4364
        %v4373 = vpack.c.bf16 %v4367, %v4366
        %v4374 = vpack.c.bf16 %v4369, %v4368
        %v4375 = vpack.c.bf16 %v4371, %v4370
        %s4376 = scalar_lea.vmem %s3, 1152
        %v4377 = vld [vmem:[%s4376] sm:$0xf]
        %v4378 = vld [vmem:[%s4376 + $0x4] sm:$0xf]
        %v4379 = vld [vmem:[%s4376 + $0x8] sm:$0xf]
        %v4380 = vld [vmem:[%s4376 + $0xc] sm:$0xf]
        %v4381 = vld [vmem:[%s4376 + $0x10] sm:$0xf]
        %v4382 = vld [vmem:[%s4376 + $0x14] sm:$0xf]
        %v4383 = vld [vmem:[%s4376 + $0x18] sm:$0xf]
        %v4384 = vld [vmem:[%s4376 + $0x1c] sm:$0xf]
        %v4385 = vld [vmem:[%s4376 + $0x20] sm:$0xf]
        %v4386 = vld [vmem:[%s4376 + $0x24] sm:$0xf]
        %v4387 = vld [vmem:[%s4376 + $0x28] sm:$0xf]
        %v4388 = vld [vmem:[%s4376 + $0x2c] sm:$0xf]
        %v4389 = vld [vmem:[%s4376 + $0x30] sm:$0xf]
        %v4390 = vld [vmem:[%s4376 + $0x34] sm:$0xf]
        %v4391 = vld [vmem:[%s4376 + $0x38] sm:$0xf]
        %v4392 = vld [vmem:[%s4376 + $0x3c] sm:$0xf]
        %v4409 = vunpack.c.l.b16 %v4377
        %v4410 = vunpack.c.l.b16 %v4378
        %v4411 = vunpack.c.l.b16 %v4379
        %v4412 = vunpack.c.l.b16 %v4380
        %v4413 = vunpack.c.l.b16 %v4381
        %v4414 = vunpack.c.l.b16 %v4382
        %v4415 = vunpack.c.l.b16 %v4383
        %v4416 = vunpack.c.l.b16 %v4384
        %v4417 = vunpack.c.l.b16 %v4385
        %v4418 = vunpack.c.l.b16 %v4386
        %v4419 = vunpack.c.l.b16 %v4387
        %v4420 = vunpack.c.l.b16 %v4388
        %v4421 = vunpack.c.l.b16 %v4389
        %v4422 = vunpack.c.l.b16 %v4390
        %v4423 = vunpack.c.l.b16 %v4391
        %v4424 = vunpack.c.l.b16 %v4392
        %v4425 = vpack.c.b16 %v4410, %v4409
        %v4426 = vpack.c.b16 %v4412, %v4411
        %v4427 = vpack.c.b16 %v4414, %v4413
        %v4428 = vpack.c.b16 %v4416, %v4415
        %v4429 = vpack.c.b16 %v4418, %v4417
        %v4430 = vpack.c.b16 %v4420, %v4419
        %v4431 = vpack.c.b16 %v4422, %v4421
        %v4432 = vpack.c.b16 %v4424, %v4423
        %4441 = vmatprep.subr.bf16.mxu0 0
        %4442 = vmatpush1.bf16.msra.mxu0 %v4425
        %4443 = vmatprep.subr.bf16.mxu0 0
        %4444 = vmatpush1.bf16.msra.mxu0 %v4426
        %4445 = vmatprep.subr.bf16.mxu0 0
        %4446 = vmatpush1.bf16.msra.mxu0 %v4427
        %4447 = vmatprep.subr.bf16.mxu0 0
        %4448 = vmatpush1.bf16.msra.mxu0 %v4428
        %4449 = vmatprep.subr.bf16.mxu0 0
        %4450 = vmatpush1.bf16.msra.mxu0 %v4429
        %4451 = vmatprep.subr.bf16.mxu0 0
        %4452 = vmatpush1.bf16.msra.mxu0 %v4430
        %4453 = vmatprep.subr.bf16.mxu0 0
        %4454 = vmatpush1.bf16.msra.mxu0 %v4431
        %4455 = vmatprep.subr.bf16.mxu0 0
        %4456 = vmatpush1.bf16.msra.mxu0 %v4432
        %4457 = vmatprep.subr.bf16.mxu0 0
        %4458 = vmatpush1.bf16.msra.mxu0 0
        %4459 = vmatprep.subr.bf16.mxu0 0
        %4460 = vmatpush1.bf16.msra.mxu0 0
        %4461 = vmatprep.subr.bf16.mxu0 0
        %4462 = vmatpush1.bf16.msra.mxu0 0
        %4463 = vmatprep.subr.bf16.mxu0 0
        %4464 = vmatpush1.bf16.msra.mxu0 0
        %4465 = vmatprep.subr.bf16.mxu0 0
        %4466 = vmatpush1.bf16.msra.mxu0 0
        %4467 = vmatprep.subr.bf16.mxu0 0
        %4468 = vmatpush1.bf16.msra.mxu0 0
        %4469 = vmatprep.subr.bf16.mxu0 0
        %4470 = vmatpush1.bf16.msra.mxu0 0
        %4471 = vmatprep.subr.bf16.mxu0 0
        %4472 = vmatpush1.bf16.msra.mxu0 0
        %4473 = vmatprep.mubr.bf16.mxu0 0
        %4474 = vmatmul.mubr.bf16.gmra.mrb[0].mxu0 %v4372
        %v4475 = vpop.f32.mrb[0].mxu0
        %v4476 = vadd.f32 0.0, %v4475
        %v4477 = vpop.f32.mrb[0].mxu0
        %v4478 = vpop.f32.mrb[0].mxu0
        %v4479 = vadd.f32 0.0, %v4478
        %v4480 = vpop.f32.mrb[0].mxu0
        %4481 = vmatprep.mubr.bf16.mxu0 0
        %4482 = vmatmul.mubr.bf16.gmra.mrb[0].mxu0 %v4373
        %v4483 = vpop.f32.mrb[0].mxu0
        %v4484 = vadd.f32 0.0, %v4483
        %v4485 = vpop.f32.mrb[0].mxu0
        %v4486 = vpop.f32.mrb[0].mxu0
        %v4487 = vadd.f32 0.0, %v4486
        %v4488 = vpop.f32.mrb[0].mxu0
        %4489 = vmatprep.mubr.bf16.mxu0 0
        %4490 = vmatmul.mubr.bf16.gmra.mrb[0].mxu0 %v4374
        %v4491 = vpop.f32.mrb[0].mxu0
        %v4492 = vadd.f32 0.0, %v4491
        %v4493 = vpop.f32.mrb[0].mxu0
        %v4494 = vpop.f32.mrb[0].mxu0
        %v4495 = vadd.f32 0.0, %v4494
        %v4496 = vpop.f32.mrb[0].mxu0
        %4497 = vmatprep.mubr.bf16.mxu0 0
        %4498 = vmatmul.mubr.bf16.gmra.mrb[0].mxu0 %v4375
        %v4499 = vpop.f32.mrb[0].mxu0
        %v4500 = vadd.f32 0.0, %v4499
        %v4501 = vpop.f32.mrb[0].mxu0
        %v4502 = vpop.f32.mrb[0].mxu0
        %v4503 = vadd.f32 0.0, %v4502
        %v4504 = vpop.f32.mrb[0].mxu0
        %4505 = vdwg.mxu0
        %v4506 = vadd.f32 %v4356, %v4476
        %v4507 = vadd.f32 %v4357, %v4479
        %v4508 = vadd.f32 %v4358, %v4484
        %v4509 = vadd.f32 %v4359, %v4487
        %v4510 = vadd.f32 %v4360, %v4492
        %v4511 = vadd.f32 %v4361, %v4495
        %v4512 = vadd.f32 %v4362, %v4500
        %v4513 = vadd.f32 %v4363, %v4503
        %v4514 = vld [vmem:[%s3913 + $0x4] sm:$0xff]
        %v4515 = vld [vmem:[%s3913 + $0x14] sm:$0xff]
        %v4516 = vld [vmem:[%s3913 + $0x24] sm:$0xff]
        %v4517 = vld [vmem:[%s3913 + $0x34] sm:$0xff]
        %v4518 = vld [vmem:[%s3913 + $0x44] sm:$0xff]
        %v4519 = vld [vmem:[%s3913 + $0x54] sm:$0xff]
        %v4520 = vld [vmem:[%s3913 + $0x64] sm:$0xff]
        %v4521 = vld [vmem:[%s3913 + $0x74] sm:$0xff]
        %v4522 = vpack.c.bf16 %v4515, %v4514
        %v4523 = vpack.c.bf16 %v4517, %v4516
        %v4524 = vpack.c.bf16 %v4519, %v4518
        %v4525 = vpack.c.bf16 %v4521, %v4520
        %s4526 = scalar_lea.vmem %s3, 1216
        %v4527 = vld [vmem:[%s4526] sm:$0xf]
        %v4528 = vld [vmem:[%s4526 + $0x4] sm:$0xf]
        %v4529 = vld [vmem:[%s4526 + $0x8] sm:$0xf]
        %v4530 = vld [vmem:[%s4526 + $0xc] sm:$0xf]
        %v4531 = vld [vmem:[%s4526 + $0x10] sm:$0xf]
        %v4532 = vld [vmem:[%s4526 + $0x14] sm:$0xf]
        %v4533 = vld [vmem:[%s4526 + $0x18] sm:$0xf]
        %v4534 = vld [vmem:[%s4526 + $0x1c] sm:$0xf]
        %v4535 = vld [vmem:[%s4526 + $0x20] sm:$0xf]
        %v4536 = vld [vmem:[%s4526 + $0x24] sm:$0xf]
        %v4537 = vld [vmem:[%s4526 + $0x28] sm:$0xf]
        %v4538 = vld [vmem:[%s4526 + $0x2c] sm:$0xf]
        %v4539 = vld [vmem:[%s4526 + $0x30] sm:$0xf]
        %v4540 = vld [vmem:[%s4526 + $0x34] sm:$0xf]
        %v4541 = vld [vmem:[%s4526 + $0x38] sm:$0xf]
        %v4542 = vld [vmem:[%s4526 + $0x3c] sm:$0xf]
        %v4559 = vunpack.c.l.b16 %v4527
        %v4560 = vunpack.c.l.b16 %v4528
        %v4561 = vunpack.c.l.b16 %v4529
        %v4562 = vunpack.c.l.b16 %v4530
        %v4563 = vunpack.c.l.b16 %v4531
        %v4564 = vunpack.c.l.b16 %v4532
        %v4565 = vunpack.c.l.b16 %v4533
        %v4566 = vunpack.c.l.b16 %v4534
        %v4567 = vunpack.c.l.b16 %v4535
        %v4568 = vunpack.c.l.b16 %v4536
        %v4569 = vunpack.c.l.b16 %v4537
        %v4570 = vunpack.c.l.b16 %v4538
        %v4571 = vunpack.c.l.b16 %v4539
        %v4572 = vunpack.c.l.b16 %v4540
        %v4573 = vunpack.c.l.b16 %v4541
        %v4574 = vunpack.c.l.b16 %v4542
        %v4575 = vpack.c.b16 %v4560, %v4559
        %v4576 = vpack.c.b16 %v4562, %v4561
        %v4577 = vpack.c.b16 %v4564, %v4563
        %v4578 = vpack.c.b16 %v4566, %v4565
        %v4579 = vpack.c.b16 %v4568, %v4567
        %v4580 = vpack.c.b16 %v4570, %v4569
        %v4581 = vpack.c.b16 %v4572, %v4571
        %v4582 = vpack.c.b16 %v4574, %v4573
        %4591 = vmatprep.subr.bf16.mxu0 0
        %4592 = vmatpush1.bf16.msra.mxu0 %v4575
        %4593 = vmatprep.subr.bf16.mxu0 0
        %4594 = vmatpush1.bf16.msra.mxu0 %v4576
        %4595 = vmatprep.subr.bf16.mxu0 0
        %4596 = vmatpush1.bf16.msra.mxu0 %v4577
        %4597 = vmatprep.subr.bf16.mxu0 0
        %4598 = vmatpush1.bf16.msra.mxu0 %v4578
        %4599 = vmatprep.subr.bf16.mxu0 0
        %4600 = vmatpush1.bf16.msra.mxu0 %v4579
        %4601 = vmatprep.subr.bf16.mxu0 0
        %4602 = vmatpush1.bf16.msra.mxu0 %v4580
        %4603 = vmatprep.subr.bf16.mxu0 0
        %4604 = vmatpush1.bf16.msra.mxu0 %v4581
        %4605 = vmatprep.subr.bf16.mxu0 0
        %4606 = vmatpush1.bf16.msra.mxu0 %v4582
        %4607 = vmatprep.subr.bf16.mxu0 0
        %4608 = vmatpush1.bf16.msra.mxu0 0
        %4609 = vmatprep.subr.bf16.mxu0 0
        %4610 = vmatpush1.bf16.msra.mxu0 0
        %4611 = vmatprep.subr.bf16.mxu0 0
        %4612 = vmatpush1.bf16.msra.mxu0 0
        %4613 = vmatprep.subr.bf16.mxu0 0
        %4614 = vmatpush1.bf16.msra.mxu0 0
        %4615 = vmatprep.subr.bf16.mxu0 0
        %4616 = vmatpush1.bf16.msra.mxu0 0
        %4617 = vmatprep.subr.bf16.mxu0 0
        %4618 = vmatpush1.bf16.msra.mxu0 0
        %4619 = vmatprep.subr.bf16.mxu0 0
        %4620 = vmatpush1.bf16.msra.mxu0 0
        %4621 = vmatprep.subr.bf16.mxu0 0
        %4622 = vmatpush1.bf16.msra.mxu0 0
        %4623 = vmatprep.mubr.bf16.mxu0 0
        %4624 = vmatmul.mubr.bf16.gmra.mrb[0].mxu0 %v4522
        %v4625 = vpop.f32.mrb[0].mxu0
        %v4626 = vadd.f32 0.0, %v4625
        %v4627 = vpop.f32.mrb[0].mxu0
        %v4628 = vpop.f32.mrb[0].mxu0
        %v4629 = vadd.f32 0.0, %v4628
        %v4630 = vpop.f32.mrb[0].mxu0
        %4631 = vmatprep.mubr.bf16.mxu0 0
        %4632 = vmatmul.mubr.bf16.gmra.mrb[0].mxu0 %v4523
        %v4633 = vpop.f32.mrb[0].mxu0
        %v4634 = vadd.f32 0.0, %v4633
        %v4635 = vpop.f32.mrb[0].mxu0
        %v4636 = vpop.f32.mrb[0].mxu0
        %v4637 = vadd.f32 0.0, %v4636
        %v4638 = vpop.f32.mrb[0].mxu0
        %4639 = vmatprep.mubr.bf16.mxu0 0
        %4640 = vmatmul.mubr.bf16.gmra.mrb[0].mxu0 %v4524
        %v4641 = vpop.f32.mrb[0].mxu0
        %v4642 = vadd.f32 0.0, %v4641
        %v4643 = vpop.f32.mrb[0].mxu0
        %v4644 = vpop.f32.mrb[0].mxu0
        %v4645 = vadd.f32 0.0, %v4644
        %v4646 = vpop.f32.mrb[0].mxu0
        %4647 = vmatprep.mubr.bf16.mxu0 0
        %4648 = vmatmul.mubr.bf16.gmra.mrb[0].mxu0 %v4525
        %v4649 = vpop.f32.mrb[0].mxu0
        %v4650 = vadd.f32 0.0, %v4649
        %v4651 = vpop.f32.mrb[0].mxu0
        %v4652 = vpop.f32.mrb[0].mxu0
        %v4653 = vadd.f32 0.0, %v4652
        %v4654 = vpop.f32.mrb[0].mxu0
        %4655 = vdwg.mxu0
        %v4656 = vadd.f32 %v4506, %v4626
        %v4657 = vadd.f32 %v4507, %v4629
        %v4658 = vadd.f32 %v4508, %v4634
        %v4659 = vadd.f32 %v4509, %v4637
        %v4660 = vadd.f32 %v4510, %v4642
        %v4661 = vadd.f32 %v4511, %v4645
        %v4662 = vadd.f32 %v4512, %v4650
        %v4663 = vadd.f32 %v4513, %v4653
        %s4664 = scalar_lea.vmem [#allocation2], 64
        %v4665 = vld [vmem:[%s4664] sm:$0xff]
        %v4666 = vld [vmem:[%s4664 + $0x10] sm:$0xff]
        %v4667 = vld [vmem:[%s4664 + $0x20] sm:$0xff]
        %v4668 = vld [vmem:[%s4664 + $0x30] sm:$0xff]
        %v4669 = vld [vmem:[%s4664 + $0x40] sm:$0xff]
        %v4670 = vld [vmem:[%s4664 + $0x50] sm:$0xff]
        %v4671 = vld [vmem:[%s4664 + $0x60] sm:$0xff]
        %v4672 = vld [vmem:[%s4664 + $0x70] sm:$0xff]
        %v4673 = vpack.c.bf16 %v4666, %v4665
        %v4674 = vpack.c.bf16 %v4668, %v4667
        %v4675 = vpack.c.bf16 %v4670, %v4669
        %v4676 = vpack.c.bf16 %v4672, %v4671
        %s4677 = scalar_lea.vmem %s3, 1280
        %v4678 = vld [vmem:[%s4677] sm:$0xf]
        %v4679 = vld [vmem:[%s4677 + $0x4] sm:$0xf]
        %v4680 = vld [vmem:[%s4677 + $0x8] sm:$0xf]
        %v4681 = vld [vmem:[%s4677 + $0xc] sm:$0xf]
        %v4682 = vld [vmem:[%s4677 + $0x10] sm:$0xf]
        %v4683 = vld [vmem:[%s4677 + $0x14] sm:$0xf]
        %v4684 = vld [vmem:[%s4677 + $0x18] sm:$0xf]
        %v4685 = vld [vmem:[%s4677 + $0x1c] sm:$0xf]
        %v4686 = vld [vmem:[%s4677 + $0x20] sm:$0xf]
        %v4687 = vld [vmem:[%s4677 + $0x24] sm:$0xf]
        %v4688 = vld [vmem:[%s4677 + $0x28] sm:$0xf]
        %v4689 = vld [vmem:[%s4677 + $0x2c] sm:$0xf]
        %v4690 = vld [vmem:[%s4677 + $0x30] sm:$0xf]
        %v4691 = vld [vmem:[%s4677 + $0x34] sm:$0xf]
        %v4692 = vld [vmem:[%s4677 + $0x38] sm:$0xf]
        %v4693 = vld [vmem:[%s4677 + $0x3c] sm:$0xf]
        %v4710 = vunpack.c.l.b16 %v4678
        %v4711 = vunpack.c.l.b16 %v4679
        %v4712 = vunpack.c.l.b16 %v4680
        %v4713 = vunpack.c.l.b16 %v4681
        %v4714 = vunpack.c.l.b16 %v4682
        %v4715 = vunpack.c.l.b16 %v4683
        %v4716 = vunpack.c.l.b16 %v4684
        %v4717 = vunpack.c.l.b16 %v4685
        %v4718 = vunpack.c.l.b16 %v4686
        %v4719 = vunpack.c.l.b16 %v4687
        %v4720 = vunpack.c.l.b16 %v4688
        %v4721 = vunpack.c.l.b16 %v4689
        %v4722 = vunpack.c.l.b16 %v4690
        %v4723 = vunpack.c.l.b16 %v4691
        %v4724 = vunpack.c.l.b16 %v4692
        %v4725 = vunpack.c.l.b16 %v4693
        %v4726 = vpack.c.b16 %v4711, %v4710
        %v4727 = vpack.c.b16 %v4713, %v4712
        %v4728 = vpack.c.b16 %v4715, %v4714
        %v4729 = vpack.c.b16 %v4717, %v4716
        %v4730 = vpack.c.b16 %v4719, %v4718
        %v4731 = vpack.c.b16 %v4721, %v4720
        %v4732 = vpack.c.b16 %v4723, %v4722
        %v4733 = vpack.c.b16 %v4725, %v4724
        %4742 = vmatprep.subr.bf16.mxu0 0
        %4743 = vmatpush1.bf16.msra.mxu0 %v4726
        %4744 = vmatprep.subr.bf16.mxu0 0
        %4745 = vmatpush1.bf16.msra.mxu0 %v4727
        %4746 = vmatprep.subr.bf16.mxu0 0
        %4747 = vmatpush1.bf16.msra.mxu0 %v4728
        %4748 = vmatprep.subr.bf16.mxu0 0
        %4749 = vmatpush1.bf16.msra.mxu0 %v4729
        %4750 = vmatprep.subr.bf16.mxu0 0
        %4751 = vmatpush1.bf16.msra.mxu0 %v4730
        %4752 = vmatprep.subr.bf16.mxu0 0
        %4753 = vmatpush1.bf16.msra.mxu0 %v4731
        %4754 = vmatprep.subr.bf16.mxu0 0
        %4755 = vmatpush1.bf16.msra.mxu0 %v4732
        %4756 = vmatprep.subr.bf16.mxu0 0
        %4757 = vmatpush1.bf16.msra.mxu0 %v4733
        %4758 = vmatprep.subr.bf16.mxu0 0
        %4759 = vmatpush1.bf16.msra.mxu0 0
        %4760 = vmatprep.subr.bf16.mxu0 0
        %4761 = vmatpush1.bf16.msra.mxu0 0
        %4762 = vmatprep.subr.bf16.mxu0 0
        %4763 = vmatpush1.bf16.msra.mxu0 0
        %4764 = vmatprep.subr.bf16.mxu0 0
        %4765 = vmatpush1.bf16.msra.mxu0 0
        %4766 = vmatprep.subr.bf16.mxu0 0
        %4767 = vmatpush1.bf16.msra.mxu0 0
        %4768 = vmatprep.subr.bf16.mxu0 0
        %4769 = vmatpush1.bf16.msra.mxu0 0
        %4770 = vmatprep.subr.bf16.mxu0 0
        %4771 = vmatpush1.bf16.msra.mxu0 0
        %4772 = vmatprep.subr.bf16.mxu0 0
        %4773 = vmatpush1.bf16.msra.mxu0 0
        %4774 = vmatprep.mubr.bf16.mxu0 0
        %4775 = vmatmul.mubr.bf16.gmra.mrb[0].mxu0 %v4673
        %v4776 = vpop.f32.mrb[0].mxu0
        %v4777 = vadd.f32 0.0, %v4776
        %v4778 = vpop.f32.mrb[0].mxu0
        %v4779 = vpop.f32.mrb[0].mxu0
        %v4780 = vadd.f32 0.0, %v4779
        %v4781 = vpop.f32.mrb[0].mxu0
        %4782 = vmatprep.mubr.bf16.mxu0 0
        %4783 = vmatmul.mubr.bf16.gmra.mrb[0].mxu0 %v4674
        %v4784 = vpop.f32.mrb[0].mxu0
        %v4785 = vadd.f32 0.0, %v4784
        %v4786 = vpop.f32.mrb[0].mxu0
        %v4787 = vpop.f32.mrb[0].mxu0
        %v4788 = vadd.f32 0.0, %v4787
        %v4789 = vpop.f32.mrb[0].mxu0
        %4790 = vmatprep.mubr.bf16.mxu0 0
        %4791 = vmatmul.mubr.bf16.gmra.mrb[0].mxu0 %v4675
        %v4792 = vpop.f32.mrb[0].mxu0
        %v4793 = vadd.f32 0.0, %v4792
        %v4794 = vpop.f32.mrb[0].mxu0
        %v4795 = vpop.f32.mrb[0].mxu0
        %v4796 = vadd.f32 0.0, %v4795
        %v4797 = vpop.f32.mrb[0].mxu0
        %4798 = vmatprep.mubr.bf16.mxu0 0
        %4799 = vmatmul.mubr.bf16.gmra.mrb[0].mxu0 %v4676
        %v4800 = vpop.f32.mrb[0].mxu0
        %v4801 = vadd.f32 0.0, %v4800
        %v4802 = vpop.f32.mrb[0].mxu0
        %v4803 = vpop.f32.mrb[0].mxu0
        %v4804 = vadd.f32 0.0, %v4803
        %v4805 = vpop.f32.mrb[0].mxu0
        %4806 = vdwg.mxu0
        %v4807 = vadd.f32 %v4656, %v4777
        %v4808 = vadd.f32 %v4657, %v4780
        %v4809 = vadd.f32 %v4658, %v4785
        %v4810 = vadd.f32 %v4659, %v4788
        %v4811 = vadd.f32 %v4660, %v4793
        %v4812 = vadd.f32 %v4661, %v4796
        %v4813 = vadd.f32 %v4662, %v4801
        %v4814 = vadd.f32 %v4663, %v4804
        %v4815 = vld [vmem:[%s4664 + $0x1] sm:$0xff]
        %v4816 = vld [vmem:[%s4664 + $0x11] sm:$0xff]
        %v4817 = vld [vmem:[%s4664 + $0x21] sm:$0xff]
        %v4818 = vld [vmem:[%s4664 + $0x31] sm:$0xff]
        %v4819 = vld [vmem:[%s4664 + $0x41] sm:$0xff]
        %v4820 = vld [vmem:[%s4664 + $0x51] sm:$0xff]
        %v4821 = vld [vmem:[%s4664 + $0x61] sm:$0xff]
        %v4822 = vld [vmem:[%s4664 + $0x71] sm:$0xff]
        %v4823 = vpack.c.bf16 %v4816, %v4815
        %v4824 = vpack.c.bf16 %v4818, %v4817
        %v4825 = vpack.c.bf16 %v4820, %v4819
        %v4826 = vpack.c.bf16 %v4822, %v4821
        %s4827 = scalar_lea.vmem %s3, 1344
        %v4828 = vld [vmem:[%s4827] sm:$0xf]
        %v4829 = vld [vmem:[%s4827 + $0x4] sm:$0xf]
        %v4830 = vld [vmem:[%s4827 + $0x8] sm:$0xf]
        %v4831 = vld [vmem:[%s4827 + $0xc] sm:$0xf]
        %v4832 = vld [vmem:[%s4827 + $0x10] sm:$0xf]
        %v4833 = vld [vmem:[%s4827 + $0x14] sm:$0xf]
        %v4834 = vld [vmem:[%s4827 + $0x18] sm:$0xf]
        %v4835 = vld [vmem:[%s4827 + $0x1c] sm:$0xf]
        %v4836 = vld [vmem:[%s4827 + $0x20] sm:$0xf]
        %v4837 = vld [vmem:[%s4827 + $0x24] sm:$0xf]
        %v4838 = vld [vmem:[%s4827 + $0x28] sm:$0xf]
        %v4839 = vld [vmem:[%s4827 + $0x2c] sm:$0xf]
        %v4840 = vld [vmem:[%s4827 + $0x30] sm:$0xf]
        %v4841 = vld [vmem:[%s4827 + $0x34] sm:$0xf]
        %v4842 = vld [vmem:[%s4827 + $0x38] sm:$0xf]
        %v4843 = vld [vmem:[%s4827 + $0x3c] sm:$0xf]
        %v4860 = vunpack.c.l.b16 %v4828
        %v4861 = vunpack.c.l.b16 %v4829
        %v4862 = vunpack.c.l.b16 %v4830
        %v4863 = vunpack.c.l.b16 %v4831
        %v4864 = vunpack.c.l.b16 %v4832
        %v4865 = vunpack.c.l.b16 %v4833
        %v4866 = vunpack.c.l.b16 %v4834
        %v4867 = vunpack.c.l.b16 %v4835
        %v4868 = vunpack.c.l.b16 %v4836
        %v4869 = vunpack.c.l.b16 %v4837
        %v4870 = vunpack.c.l.b16 %v4838
        %v4871 = vunpack.c.l.b16 %v4839
        %v4872 = vunpack.c.l.b16 %v4840
        %v4873 = vunpack.c.l.b16 %v4841
        %v4874 = vunpack.c.l.b16 %v4842
        %v4875 = vunpack.c.l.b16 %v4843
        %v4876 = vpack.c.b16 %v4861, %v4860
        %v4877 = vpack.c.b16 %v4863, %v4862
        %v4878 = vpack.c.b16 %v4865, %v4864
        %v4879 = vpack.c.b16 %v4867, %v4866
        %v4880 = vpack.c.b16 %v4869, %v4868
        %v4881 = vpack.c.b16 %v4871, %v4870
        %v4882 = vpack.c.b16 %v4873, %v4872
        %v4883 = vpack.c.b16 %v4875, %v4874
        %4892 = vmatprep.subr.bf16.mxu0 0
        %4893 = vmatpush1.bf16.msra.mxu0 %v4876
        %4894 = vmatprep.subr.bf16.mxu0 0
        %4895 = vmatpush1.bf16.msra.mxu0 %v4877
        %4896 = vmatprep.subr.bf16.mxu0 0
        %4897 = vmatpush1.bf16.msra.mxu0 %v4878
        %4898 = vmatprep.subr.bf16.mxu0 0
        %4899 = vmatpush1.bf16.msra.mxu0 %v4879
        %4900 = vmatprep.subr.bf16.mxu0 0
        %4901 = vmatpush1.bf16.msra.mxu0 %v4880
        %4902 = vmatprep.subr.bf16.mxu0 0
        %4903 = vmatpush1.bf16.msra.mxu0 %v4881
        %4904 = vmatprep.subr.bf16.mxu0 0
        %4905 = vmatpush1.bf16.msra.mxu0 %v4882
        %4906 = vmatprep.subr.bf16.mxu0 0
        %4907 = vmatpush1.bf16.msra.mxu0 %v4883
        %4908 = vmatprep.subr.bf16.mxu0 0
        %4909 = vmatpush1.bf16.msra.mxu0 0
        %4910 = vmatprep.subr.bf16.mxu0 0
        %4911 = vmatpush1.bf16.msra.mxu0 0
        %4912 = vmatprep.subr.bf16.mxu0 0
        %4913 = vmatpush1.bf16.msra.mxu0 0
        %4914 = vmatprep.subr.bf16.mxu0 0
        %4915 = vmatpush1.bf16.msra.mxu0 0
        %4916 = vmatprep.subr.bf16.mxu0 0
        %4917 = vmatpush1.bf16.msra.mxu0 0
        %4918 = vmatprep.subr.bf16.mxu0 0
        %4919 = vmatpush1.bf16.msra.mxu0 0
        %4920 = vmatprep.subr.bf16.mxu0 0
        %4921 = vmatpush1.bf16.msra.mxu0 0
        %4922 = vmatprep.subr.bf16.mxu0 0
        %4923 = vmatpush1.bf16.msra.mxu0 0
        %4924 = vmatprep.mubr.bf16.mxu0 0
        %4925 = vmatmul.mubr.bf16.gmra.mrb[0].mxu0 %v4823
        %v4926 = vpop.f32.mrb[0].mxu0
        %v4927 = vadd.f32 0.0, %v4926
        %v4928 = vpop.f32.mrb[0].mxu0
        %v4929 = vpop.f32.mrb[0].mxu0
        %v4930 = vadd.f32 0.0, %v4929
        %v4931 = vpop.f32.mrb[0].mxu0
        %4932 = vmatprep.mubr.bf16.mxu0 0
        %4933 = vmatmul.mubr.bf16.gmra.mrb[0].mxu0 %v4824
        %v4934 = vpop.f32.mrb[0].mxu0
        %v4935 = vadd.f32 0.0, %v4934
        %v4936 = vpop.f32.mrb[0].mxu0
        %v4937 = vpop.f32.mrb[0].mxu0
        %v4938 = vadd.f32 0.0, %v4937
        %v4939 = vpop.f32.mrb[0].mxu0
        %4940 = vmatprep.mubr.bf16.mxu0 0
        %4941 = vmatmul.mubr.bf16.gmra.mrb[0].mxu0 %v4825
        %v4942 = vpop.f32.mrb[0].mxu0
        %v4943 = vadd.f32 0.0, %v4942
        %v4944 = vpop.f32.mrb[0].mxu0
        %v4945 = vpop.f32.mrb[0].mxu0
        %v4946 = vadd.f32 0.0, %v4945
        %v4947 = vpop.f32.mrb[0].mxu0
        %4948 = vmatprep.mubr.bf16.mxu0 0
        %4949 = vmatmul.mubr.bf16.gmra.mrb[0].mxu0 %v4826
        %v4950 = vpop.f32.mrb[0].mxu0
        %v4951 = vadd.f32 0.0, %v4950
        %v4952 = vpop.f32.mrb[0].mxu0
        %v4953 = vpop.f32.mrb[0].mxu0
        %v4954 = vadd.f32 0.0, %v4953
        %v4955 = vpop.f32.mrb[0].mxu0
        %4956 = vdwg.mxu0
        %v4957 = vadd.f32 %v4807, %v4927
        %v4958 = vadd.f32 %v4808, %v4930
        %v4959 = vadd.f32 %v4809, %v4935
        %v4960 = vadd.f32 %v4810, %v4938
        %v4961 = vadd.f32 %v4811, %v4943
        %v4962 = vadd.f32 %v4812, %v4946
        %v4963 = vadd.f32 %v4813, %v4951
        %v4964 = vadd.f32 %v4814, %v4954
        %v4965 = vld [vmem:[%s4664 + $0x2] sm:$0xff]
        %v4966 = vld [vmem:[%s4664 + $0x12] sm:$0xff]
        %v4967 = vld [vmem:[%s4664 + $0x22] sm:$0xff]
        %v4968 = vld [vmem:[%s4664 + $0x32] sm:$0xff]
        %v4969 = vld [vmem:[%s4664 + $0x42] sm:$0xff]
        %v4970 = vld [vmem:[%s4664 + $0x52] sm:$0xff]
        %v4971 = vld [vmem:[%s4664 + $0x62] sm:$0xff]
        %v4972 = vld [vmem:[%s4664 + $0x72] sm:$0xff]
        %v4973 = vpack.c.bf16 %v4966, %v4965
        %v4974 = vpack.c.bf16 %v4968, %v4967
        %v4975 = vpack.c.bf16 %v4970, %v4969
        %v4976 = vpack.c.bf16 %v4972, %v4971
        %s4977 = scalar_lea.vmem %s3, 1408
        %v4978 = vld [vmem:[%s4977] sm:$0xf]
        %v4979 = vld [vmem:[%s4977 + $0x4] sm:$0xf]
        %v4980 = vld [vmem:[%s4977 + $0x8] sm:$0xf]
        %v4981 = vld [vmem:[%s4977 + $0xc] sm:$0xf]
        %v4982 = vld [vmem:[%s4977 + $0x10] sm:$0xf]
        %v4983 = vld [vmem:[%s4977 + $0x14] sm:$0xf]
        %v4984 = vld [vmem:[%s4977 + $0x18] sm:$0xf]
        %v4985 = vld [vmem:[%s4977 + $0x1c] sm:$0xf]
        %v4986 = vld [vmem:[%s4977 + $0x20] sm:$0xf]
        %v4987 = vld [vmem:[%s4977 + $0x24] sm:$0xf]
        %v4988 = vld [vmem:[%s4977 + $0x28] sm:$0xf]
        %v4989 = vld [vmem:[%s4977 + $0x2c] sm:$0xf]
        %v4990 = vld [vmem:[%s4977 + $0x30] sm:$0xf]
        %v4991 = vld [vmem:[%s4977 + $0x34] sm:$0xf]
        %v4992 = vld [vmem:[%s4977 + $0x38] sm:$0xf]
        %v4993 = vld [vmem:[%s4977 + $0x3c] sm:$0xf]
        %v5010 = vunpack.c.l.b16 %v4978
        %v5011 = vunpack.c.l.b16 %v4979
        %v5012 = vunpack.c.l.b16 %v4980
        %v5013 = vunpack.c.l.b16 %v4981
        %v5014 = vunpack.c.l.b16 %v4982
        %v5015 = vunpack.c.l.b16 %v4983
        %v5016 = vunpack.c.l.b16 %v4984
        %v5017 = vunpack.c.l.b16 %v4985
        %v5018 = vunpack.c.l.b16 %v4986
        %v5019 = vunpack.c.l.b16 %v4987
        %v5020 = vunpack.c.l.b16 %v4988
        %v5021 = vunpack.c.l.b16 %v4989
        %v5022 = vunpack.c.l.b16 %v4990
        %v5023 = vunpack.c.l.b16 %v4991
        %v5024 = vunpack.c.l.b16 %v4992
        %v5025 = vunpack.c.l.b16 %v4993
        %v5026 = vpack.c.b16 %v5011, %v5010
        %v5027 = vpack.c.b16 %v5013, %v5012
        %v5028 = vpack.c.b16 %v5015, %v5014
        %v5029 = vpack.c.b16 %v5017, %v5016
        %v5030 = vpack.c.b16 %v5019, %v5018
        %v5031 = vpack.c.b16 %v5021, %v5020
        %v5032 = vpack.c.b16 %v5023, %v5022
        %v5033 = vpack.c.b16 %v5025, %v5024
        %5042 = vmatprep.subr.bf16.mxu0 0
        %5043 = vmatpush1.bf16.msra.mxu0 %v5026
        %5044 = vmatprep.subr.bf16.mxu0 0
        %5045 = vmatpush1.bf16.msra.mxu0 %v5027
        %5046 = vmatprep.subr.bf16.mxu0 0
        %5047 = vmatpush1.bf16.msra.mxu0 %v5028
        %5048 = vmatprep.subr.bf16.mxu0 0
        %5049 = vmatpush1.bf16.msra.mxu0 %v5029
        %5050 = vmatprep.subr.bf16.mxu0 0
        %5051 = vmatpush1.bf16.msra.mxu0 %v5030
        %5052 = vmatprep.subr.bf16.mxu0 0
        %5053 = vmatpush1.bf16.msra.mxu0 %v5031
        %5054 = vmatprep.subr.bf16.mxu0 0
        %5055 = vmatpush1.bf16.msra.mxu0 %v5032
        %5056 = vmatprep.subr.bf16.mxu0 0
        %5057 = vmatpush1.bf16.msra.mxu0 %v5033
        %5058 = vmatprep.subr.bf16.mxu0 0
        %5059 = vmatpush1.bf16.msra.mxu0 0
        %5060 = vmatprep.subr.bf16.mxu0 0
        %5061 = vmatpush1.bf16.msra.mxu0 0
        %5062 = vmatprep.subr.bf16.mxu0 0
        %5063 = vmatpush1.bf16.msra.mxu0 0
        %5064 = vmatprep.subr.bf16.mxu0 0
        %5065 = vmatpush1.bf16.msra.mxu0 0
        %5066 = vmatprep.subr.bf16.mxu0 0
        %5067 = vmatpush1.bf16.msra.mxu0 0
        %5068 = vmatprep.subr.bf16.mxu0 0
        %5069 = vmatpush1.bf16.msra.mxu0 0
        %5070 = vmatprep.subr.bf16.mxu0 0
        %5071 = vmatpush1.bf16.msra.mxu0 0
        %5072 = vmatprep.subr.bf16.mxu0 0
        %5073 = vmatpush1.bf16.msra.mxu0 0
        %5074 = vmatprep.mubr.bf16.mxu0 0
        %5075 = vmatmul.mubr.bf16.gmra.mrb[0].mxu0 %v4973
        %v5076 = vpop.f32.mrb[0].mxu0
        %v5077 = vadd.f32 0.0, %v5076
        %v5078 = vpop.f32.mrb[0].mxu0
        %v5079 = vpop.f32.mrb[0].mxu0
        %v5080 = vadd.f32 0.0, %v5079
        %v5081 = vpop.f32.mrb[0].mxu0
        %5082 = vmatprep.mubr.bf16.mxu0 0
        %5083 = vmatmul.mubr.bf16.gmra.mrb[0].mxu0 %v4974
        %v5084 = vpop.f32.mrb[0].mxu0
        %v5085 = vadd.f32 0.0, %v5084
        %v5086 = vpop.f32.mrb[0].mxu0
        %v5087 = vpop.f32.mrb[0].mxu0
        %v5088 = vadd.f32 0.0, %v5087
        %v5089 = vpop.f32.mrb[0].mxu0
        %5090 = vmatprep.mubr.bf16.mxu0 0
        %5091 = vmatmul.mubr.bf16.gmra.mrb[0].mxu0 %v4975
        %v5092 = vpop.f32.mrb[0].mxu0
        %v5093 = vadd.f32 0.0, %v5092
        %v5094 = vpop.f32.mrb[0].mxu0
        %v5095 = vpop.f32.mrb[0].mxu0
        %v5096 = vadd.f32 0.0, %v5095
        %v5097 = vpop.f32.mrb[0].mxu0
        %5098 = vmatprep.mubr.bf16.mxu0 0
        %5099 = vmatmul.mubr.bf16.gmra.mrb[0].mxu0 %v4976
        %v5100 = vpop.f32.mrb[0].mxu0
        %v5101 = vadd.f32 0.0, %v5100
        %v5102 = vpop.f32.mrb[0].mxu0
        %v5103 = vpop.f32.mrb[0].mxu0
        %v5104 = vadd.f32 0.0, %v5103
        %v5105 = vpop.f32.mrb[0].mxu0
        %5106 = vdwg.mxu0
        %v5107 = vadd.f32 %v4957, %v5077
        %v5108 = vadd.f32 %v4958, %v5080
        %v5109 = vadd.f32 %v4959, %v5085
        %v5110 = vadd.f32 %v4960, %v5088
        %v5111 = vadd.f32 %v4961, %v5093
        %v5112 = vadd.f32 %v4962, %v5096
        %v5113 = vadd.f32 %v4963, %v5101
        %v5114 = vadd.f32 %v4964, %v5104
        %v5115 = vld [vmem:[%s4664 + $0x3] sm:$0xff]
        %v5116 = vld [vmem:[%s4664 + $0x13] sm:$0xff]
        %v5117 = vld [vmem:[%s4664 + $0x23] sm:$0xff]
        %v5118 = vld [vmem:[%s4664 + $0x33] sm:$0xff]
        %v5119 = vld [vmem:[%s4664 + $0x43] sm:$0xff]
        %v5120 = vld [vmem:[%s4664 + $0x53] sm:$0xff]
        %v5121 = vld [vmem:[%s4664 + $0x63] sm:$0xff]
        %v5122 = vld [vmem:[%s4664 + $0x73] sm:$0xff]
        %v5123 = vpack.c.bf16 %v5116, %v5115
        %v5124 = vpack.c.bf16 %v5118, %v5117
        %v5125 = vpack.c.bf16 %v5120, %v5119
        %v5126 = vpack.c.bf16 %v5122, %v5121
        %s5127 = scalar_lea.vmem %s3, 1472
        %v5128 = vld [vmem:[%s5127] sm:$0xf]
        %v5129 = vld [vmem:[%s5127 + $0x4] sm:$0xf]
        %v5130 = vld [vmem:[%s5127 + $0x8] sm:$0xf]
        %v5131 = vld [vmem:[%s5127 + $0xc] sm:$0xf]
        %v5132 = vld [vmem:[%s5127 + $0x10] sm:$0xf]
        %v5133 = vld [vmem:[%s5127 + $0x14] sm:$0xf]
        %v5134 = vld [vmem:[%s5127 + $0x18] sm:$0xf]
        %v5135 = vld [vmem:[%s5127 + $0x1c] sm:$0xf]
        %v5136 = vld [vmem:[%s5127 + $0x20] sm:$0xf]
        %v5137 = vld [vmem:[%s5127 + $0x24] sm:$0xf]
        %v5138 = vld [vmem:[%s5127 + $0x28] sm:$0xf]
        %v5139 = vld [vmem:[%s5127 + $0x2c] sm:$0xf]
        %v5140 = vld [vmem:[%s5127 + $0x30] sm:$0xf]
        %v5141 = vld [vmem:[%s5127 + $0x34] sm:$0xf]
        %v5142 = vld [vmem:[%s5127 + $0x38] sm:$0xf]
        %v5143 = vld [vmem:[%s5127 + $0x3c] sm:$0xf]
        %v5160 = vunpack.c.l.b16 %v5128
        %v5161 = vunpack.c.l.b16 %v5129
        %v5162 = vunpack.c.l.b16 %v5130
        %v5163 = vunpack.c.l.b16 %v5131
        %v5164 = vunpack.c.l.b16 %v5132
        %v5165 = vunpack.c.l.b16 %v5133
        %v5166 = vunpack.c.l.b16 %v5134
        %v5167 = vunpack.c.l.b16 %v5135
        %v5168 = vunpack.c.l.b16 %v5136
        %v5169 = vunpack.c.l.b16 %v5137
        %v5170 = vunpack.c.l.b16 %v5138
        %v5171 = vunpack.c.l.b16 %v5139
        %v5172 = vunpack.c.l.b16 %v5140
        %v5173 = vunpack.c.l.b16 %v5141
        %v5174 = vunpack.c.l.b16 %v5142
        %v5175 = vunpack.c.l.b16 %v5143
        %v5176 = vpack.c.b16 %v5161, %v5160
        %v5177 = vpack.c.b16 %v5163, %v5162
        %v5178 = vpack.c.b16 %v5165, %v5164
        %v5179 = vpack.c.b16 %v5167, %v5166
        %v5180 = vpack.c.b16 %v5169, %v5168
        %v5181 = vpack.c.b16 %v5171, %v5170
        %v5182 = vpack.c.b16 %v5173, %v5172
        %v5183 = vpack.c.b16 %v5175, %v5174
        %5192 = vmatprep.subr.bf16.mxu0 0
        %5193 = vmatpush1.bf16.msra.mxu0 %v5176
        %5194 = vmatprep.subr.bf16.mxu0 0
        %5195 = vmatpush1.bf16.msra.mxu0 %v5177
        %5196 = vmatprep.subr.bf16.mxu0 0
        %5197 = vmatpush1.bf16.msra.mxu0 %v5178
        %5198 = vmatprep.subr.bf16.mxu0 0
        %5199 = vmatpush1.bf16.msra.mxu0 %v5179
        %5200 = vmatprep.subr.bf16.mxu0 0
        %5201 = vmatpush1.bf16.msra.mxu0 %v5180
        %5202 = vmatprep.subr.bf16.mxu0 0
        %5203 = vmatpush1.bf16.msra.mxu0 %v5181
        %5204 = vmatprep.subr.bf16.mxu0 0
        %5205 = vmatpush1.bf16.msra.mxu0 %v5182
        %5206 = vmatprep.subr.bf16.mxu0 0
        %5207 = vmatpush1.bf16.msra.mxu0 %v5183
        %5208 = vmatprep.subr.bf16.mxu0 0
        %5209 = vmatpush1.bf16.msra.mxu0 0
        %5210 = vmatprep.subr.bf16.mxu0 0
        %5211 = vmatpush1.bf16.msra.mxu0 0
        %5212 = vmatprep.subr.bf16.mxu0 0
        %5213 = vmatpush1.bf16.msra.mxu0 0
        %5214 = vmatprep.subr.bf16.mxu0 0
        %5215 = vmatpush1.bf16.msra.mxu0 0
        %5216 = vmatprep.subr.bf16.mxu0 0
        %5217 = vmatpush1.bf16.msra.mxu0 0
        %5218 = vmatprep.subr.bf16.mxu0 0
        %5219 = vmatpush1.bf16.msra.mxu0 0
        %5220 = vmatprep.subr.bf16.mxu0 0
        %5221 = vmatpush1.bf16.msra.mxu0 0
        %5222 = vmatprep.subr.bf16.mxu0 0
        %5223 = vmatpush1.bf16.msra.mxu0 0
        %5224 = vmatprep.mubr.bf16.mxu0 0
        %5225 = vmatmul.mubr.bf16.gmra.mrb[0].mxu0 %v5123
        %v5226 = vpop.f32.mrb[0].mxu0
        %v5227 = vadd.f32 0.0, %v5226
        %v5228 = vpop.f32.mrb[0].mxu0
        %v5229 = vpop.f32.mrb[0].mxu0
        %v5230 = vadd.f32 0.0, %v5229
        %v5231 = vpop.f32.mrb[0].mxu0
        %5232 = vmatprep.mubr.bf16.mxu0 0
        %5233 = vmatmul.mubr.bf16.gmra.mrb[0].mxu0 %v5124
        %v5234 = vpop.f32.mrb[0].mxu0
        %v5235 = vadd.f32 0.0, %v5234
        %v5236 = vpop.f32.mrb[0].mxu0
        %v5237 = vpop.f32.mrb[0].mxu0
        %v5238 = vadd.f32 0.0, %v5237
        %v5239 = vpop.f32.mrb[0].mxu0
        %5240 = vmatprep.mubr.bf16.mxu0 0
        %5241 = vmatmul.mubr.bf16.gmra.mrb[0].mxu0 %v5125
        %v5242 = vpop.f32.mrb[0].mxu0
        %v5243 = vadd.f32 0.0, %v5242
        %v5244 = vpop.f32.mrb[0].mxu0
        %v5245 = vpop.f32.mrb[0].mxu0
        %v5246 = vadd.f32 0.0, %v5245
        %v5247 = vpop.f32.mrb[0].mxu0
        %5248 = vmatprep.mubr.bf16.mxu0 0
        %5249 = vmatmul.mubr.bf16.gmra.mrb[0].mxu0 %v5126
        %v5250 = vpop.f32.mrb[0].mxu0
        %v5251 = vadd.f32 0.0, %v5250
        %v5252 = vpop.f32.mrb[0].mxu0
        %v5253 = vpop.f32.mrb[0].mxu0
        %v5254 = vadd.f32 0.0, %v5253
        %v5255 = vpop.f32.mrb[0].mxu0
        %5256 = vdwg.mxu0
        %v5257 = vadd.f32 %v5107, %v5227
        %v5258 = vadd.f32 %v5108, %v5230
        %v5259 = vadd.f32 %v5109, %v5235
        %v5260 = vadd.f32 %v5110, %v5238
        %v5261 = vadd.f32 %v5111, %v5243
        %v5262 = vadd.f32 %v5112, %v5246
        %v5263 = vadd.f32 %v5113, %v5251
        %v5264 = vadd.f32 %v5114, %v5254
        %v5265 = vld [vmem:[%s4664 + $0x4] sm:$0xff]
        %v5266 = vld [vmem:[%s4664 + $0x14] sm:$0xff]
        %v5267 = vld [vmem:[%s4664 + $0x24] sm:$0xff]
        %v5268 = vld [vmem:[%s4664 + $0x34] sm:$0xff]
        %v5269 = vld [vmem:[%s4664 + $0x44] sm:$0xff]
        %v5270 = vld [vmem:[%s4664 + $0x54] sm:$0xff]
        %v5271 = vld [vmem:[%s4664 + $0x64] sm:$0xff]
        %v5272 = vld [vmem:[%s4664 + $0x74] sm:$0xff]
        %v5273 = vpack.c.bf16 %v5266, %v5265
        %v5274 = vpack.c.bf16 %v5268, %v5267
        %v5275 = vpack.c.bf16 %v5270, %v5269
        %v5276 = vpack.c.bf16 %v5272, %v5271
        %s5277 = scalar_lea.vmem %s3, 1536
        %v5278 = vld [vmem:[%s5277] sm:$0xf]
        %v5279 = vld [vmem:[%s5277 + $0x4] sm:$0xf]
        %v5280 = vld [vmem:[%s5277 + $0x8] sm:$0xf]
        %v5281 = vld [vmem:[%s5277 + $0xc] sm:$0xf]
        %v5282 = vld [vmem:[%s5277 + $0x10] sm:$0xf]
        %v5283 = vld [vmem:[%s5277 + $0x14] sm:$0xf]
        %v5284 = vld [vmem:[%s5277 + $0x18] sm:$0xf]
        %v5285 = vld [vmem:[%s5277 + $0x1c] sm:$0xf]
        %v5286 = vld [vmem:[%s5277 + $0x20] sm:$0xf]
        %v5287 = vld [vmem:[%s5277 + $0x24] sm:$0xf]
        %v5288 = vld [vmem:[%s5277 + $0x28] sm:$0xf]
        %v5289 = vld [vmem:[%s5277 + $0x2c] sm:$0xf]
        %v5290 = vld [vmem:[%s5277 + $0x30] sm:$0xf]
        %v5291 = vld [vmem:[%s5277 + $0x34] sm:$0xf]
        %v5292 = vld [vmem:[%s5277 + $0x38] sm:$0xf]
        %v5293 = vld [vmem:[%s5277 + $0x3c] sm:$0xf]
        %v5310 = vunpack.c.l.b16 %v5278
        %v5311 = vunpack.c.l.b16 %v5279
        %v5312 = vunpack.c.l.b16 %v5280
        %v5313 = vunpack.c.l.b16 %v5281
        %v5314 = vunpack.c.l.b16 %v5282
        %v5315 = vunpack.c.l.b16 %v5283
        %v5316 = vunpack.c.l.b16 %v5284
        %v5317 = vunpack.c.l.b16 %v5285
        %v5318 = vunpack.c.l.b16 %v5286
        %v5319 = vunpack.c.l.b16 %v5287
        %v5320 = vunpack.c.l.b16 %v5288
        %v5321 = vunpack.c.l.b16 %v5289
        %v5322 = vunpack.c.l.b16 %v5290
        %v5323 = vunpack.c.l.b16 %v5291
        %v5324 = vunpack.c.l.b16 %v5292
        %v5325 = vunpack.c.l.b16 %v5293
        %v5326 = vpack.c.b16 %v5311, %v5310
        %v5327 = vpack.c.b16 %v5313, %v5312
        %v5328 = vpack.c.b16 %v5315, %v5314
        %v5329 = vpack.c.b16 %v5317, %v5316
        %v5330 = vpack.c.b16 %v5319, %v5318
        %v5331 = vpack.c.b16 %v5321, %v5320
        %v5332 = vpack.c.b16 %v5323, %v5322
        %v5333 = vpack.c.b16 %v5325, %v5324
        %5342 = vmatprep.subr.bf16.mxu0 0
        %5343 = vmatpush1.bf16.msra.mxu0 %v5326
        %5344 = vmatprep.subr.bf16.mxu0 0
        %5345 = vmatpush1.bf16.msra.mxu0 %v5327
        %5346 = vmatprep.subr.bf16.mxu0 0
        %5347 = vmatpush1.bf16.msra.mxu0 %v5328
        %5348 = vmatprep.subr.bf16.mxu0 0
        %5349 = vmatpush1.bf16.msra.mxu0 %v5329
        %5350 = vmatprep.subr.bf16.mxu0 0
        %5351 = vmatpush1.bf16.msra.mxu0 %v5330
        %5352 = vmatprep.subr.bf16.mxu0 0
        %5353 = vmatpush1.bf16.msra.mxu0 %v5331
        %5354 = vmatprep.subr.bf16.mxu0 0
        %5355 = vmatpush1.bf16.msra.mxu0 %v5332
        %5356 = vmatprep.subr.bf16.mxu0 0
        %5357 = vmatpush1.bf16.msra.mxu0 %v5333
        %5358 = vmatprep.subr.bf16.mxu0 0
        %5359 = vmatpush1.bf16.msra.mxu0 0
        %5360 = vmatprep.subr.bf16.mxu0 0
        %5361 = vmatpush1.bf16.msra.mxu0 0
        %5362 = vmatprep.subr.bf16.mxu0 0
        %5363 = vmatpush1.bf16.msra.mxu0 0
        %5364 = vmatprep.subr.bf16.mxu0 0
        %5365 = vmatpush1.bf16.msra.mxu0 0
        %5366 = vmatprep.subr.bf16.mxu0 0
        %5367 = vmatpush1.bf16.msra.mxu0 0
        %5368 = vmatprep.subr.bf16.mxu0 0
        %5369 = vmatpush1.bf16.msra.mxu0 0
        %5370 = vmatprep.subr.bf16.mxu0 0
        %5371 = vmatpush1.bf16.msra.mxu0 0
        %5372 = vmatprep.subr.bf16.mxu0 0
        %5373 = vmatpush1.bf16.msra.mxu0 0
        %5374 = vmatprep.mubr.bf16.mxu0 0
        %5375 = vmatmul.mubr.bf16.gmra.mrb[0].mxu0 %v5273
        %v5376 = vpop.f32.mrb[0].mxu0
        %v5377 = vadd.f32 0.0, %v5376
        %v5378 = vpop.f32.mrb[0].mxu0
        %v5379 = vpop.f32.mrb[0].mxu0
        %v5380 = vadd.f32 0.0, %v5379
        %v5381 = vpop.f32.mrb[0].mxu0
        %5382 = vmatprep.mubr.bf16.mxu0 0
        %5383 = vmatmul.mubr.bf16.gmra.mrb[0].mxu0 %v5274
        %v5384 = vpop.f32.mrb[0].mxu0
        %v5385 = vadd.f32 0.0, %v5384
        %v5386 = vpop.f32.mrb[0].mxu0
        %v5387 = vpop.f32.mrb[0].mxu0
        %v5388 = vadd.f32 0.0, %v5387
        %v5389 = vpop.f32.mrb[0].mxu0
        %5390 = vmatprep.mubr.bf16.mxu0 0
        %5391 = vmatmul.mubr.bf16.gmra.mrb[0].mxu0 %v5275
        %v5392 = vpop.f32.mrb[0].mxu0
        %v5393 = vadd.f32 0.0, %v5392
        %v5394 = vpop.f32.mrb[0].mxu0
        %v5395 = vpop.f32.mrb[0].mxu0
        %v5396 = vadd.f32 0.0, %v5395
        %v5397 = vpop.f32.mrb[0].mxu0
        %5398 = vmatprep.mubr.bf16.mxu0 0
        %5399 = vmatmul.mubr.bf16.gmra.mrb[0].mxu0 %v5276
        %v5400 = vpop.f32.mrb[0].mxu0
        %v5401 = vadd.f32 0.0, %v5400
        %v5402 = vpop.f32.mrb[0].mxu0
        %v5403 = vpop.f32.mrb[0].mxu0
        %v5404 = vadd.f32 0.0, %v5403
        %v5405 = vpop.f32.mrb[0].mxu0
        %5406 = vdwg.mxu0
        %v5407 = vadd.f32 %v5257, %v5377
        %v5408 = vadd.f32 %v5258, %v5380
        %v5409 = vadd.f32 %v5259, %v5385
        %v5410 = vadd.f32 %v5260, %v5388
        %v5411 = vadd.f32 %v5261, %v5393
        %v5412 = vadd.f32 %v5262, %v5396
        %v5413 = vadd.f32 %v5263, %v5401
        %v5414 = vadd.f32 %v5264, %v5404
        %v5423 = vcombine.high %v5407, %v5407
        %v5425 = vunpack.c.l.s4 1983009808
        %v5426 = vunpack.c.0.s8 %v5425
        %v5427 = vlaneseq
        %v5428 = vshrl.u32 %v5427, 7
        %v5429 = vsub.s32 %v5426, %v5428
        %v5430 = vrot.slane %v5407, %v5429
        %v5432 = vunpack.c.l.s4 1983009808
        %v5433 = vunpack.c.0.s8 %v5432
        %v5434 = vlaneseq
        %v5435 = vshrl.u32 %v5434, 7
        %v5436 = vsub.s32 %v5433, %v5435
        %v5437 = vrot.slane %v5423, %v5436
        %v5438 = vcombine.high %v5430, %v5430
        %v5439 = vcombine.high %v5437, %v5437
        %v5440 = vcombine.high %v5408, %v5408
        %v5442 = vunpack.c.l.s4 1983009808
        %v5443 = vunpack.c.0.s8 %v5442
        %v5444 = vlaneseq
        %v5445 = vshrl.u32 %v5444, 7
        %v5446 = vsub.s32 %v5443, %v5445
        %v5447 = vrot.slane %v5408, %v5446
        %v5449 = vunpack.c.l.s4 1983009808
        %v5450 = vunpack.c.0.s8 %v5449
        %v5451 = vlaneseq
        %v5452 = vshrl.u32 %v5451, 7
        %v5453 = vsub.s32 %v5450, %v5452
        %v5454 = vrot.slane %v5440, %v5453
        %v5455 = vcombine.high %v5447, %v5447
        %v5456 = vcombine.high %v5454, %v5454
        %v5457 = vcombine.high %v5409, %v5409
        %v5459 = vunpack.c.l.s4 1983009808
        %v5460 = vunpack.c.0.s8 %v5459
        %v5461 = vlaneseq
        %v5462 = vshrl.u32 %v5461, 7
        %v5463 = vsub.s32 %v5460, %v5462
        %v5464 = vrot.slane %v5409, %v5463
        %v5466 = vunpack.c.l.s4 1983009808
        %v5467 = vunpack.c.0.s8 %v5466
        %v5468 = vlaneseq
        %v5469 = vshrl.u32 %v5468, 7
        %v5470 = vsub.s32 %v5467, %v5469
        %v5471 = vrot.slane %v5457, %v5470
        %v5472 = vcombine.high %v5464, %v5464
        %v5473 = vcombine.high %v5471, %v5471
        %v5474 = vcombine.high %v5410, %v5410
        %v5476 = vunpack.c.l.s4 1983009808
        %v5477 = vunpack.c.0.s8 %v5476
        %v5478 = vlaneseq
        %v5479 = vshrl.u32 %v5478, 7
        %v5480 = vsub.s32 %v5477, %v5479
        %v5481 = vrot.slane %v5410, %v5480
        %v5483 = vunpack.c.l.s4 1983009808
        %v5484 = vunpack.c.0.s8 %v5483
        %v5485 = vlaneseq
        %v5486 = vshrl.u32 %v5485, 7
        %v5487 = vsub.s32 %v5484, %v5486
        %v5488 = vrot.slane %v5474, %v5487
        %v5489 = vcombine.high %v5481, %v5481
        %v5490 = vcombine.high %v5488, %v5488
        %v5491 = vcombine.high %v5411, %v5411
        %v5493 = vunpack.c.l.s4 1983009808
        %v5494 = vunpack.c.0.s8 %v5493
        %v5495 = vlaneseq
        %v5496 = vshrl.u32 %v5495, 7
        %v5497 = vsub.s32 %v5494, %v5496
        %v5498 = vrot.slane %v5411, %v5497
        %v5500 = vunpack.c.l.s4 1983009808
        %v5501 = vunpack.c.0.s8 %v5500
        %v5502 = vlaneseq
        %v5503 = vshrl.u32 %v5502, 7
        %v5504 = vsub.s32 %v5501, %v5503
        %v5505 = vrot.slane %v5491, %v5504
        %v5506 = vcombine.high %v5498, %v5498
        %v5507 = vcombine.high %v5505, %v5505
        %v5508 = vcombine.high %v5412, %v5412
        %v5510 = vunpack.c.l.s4 1983009808
        %v5511 = vunpack.c.0.s8 %v5510
        %v5512 = vlaneseq
        %v5513 = vshrl.u32 %v5512, 7
        %v5514 = vsub.s32 %v5511, %v5513
        %v5515 = vrot.slane %v5412, %v5514
        %v5517 = vunpack.c.l.s4 1983009808
        %v5518 = vunpack.c.0.s8 %v5517
        %v5519 = vlaneseq
        %v5520 = vshrl.u32 %v5519, 7
        %v5521 = vsub.s32 %v5518, %v5520
        %v5522 = vrot.slane %v5508, %v5521
        %v5523 = vcombine.high %v5515, %v5515
        %v5524 = vcombine.high %v5522, %v5522
        %v5525 = vcombine.high %v5413, %v5413
        %v5527 = vunpack.c.l.s4 1983009808
        %v5528 = vunpack.c.0.s8 %v5527
        %v5529 = vlaneseq
        %v5530 = vshrl.u32 %v5529, 7
        %v5531 = vsub.s32 %v5528, %v5530
        %v5532 = vrot.slane %v5413, %v5531
        %v5534 = vunpack.c.l.s4 1983009808
        %v5535 = vunpack.c.0.s8 %v5534
        %v5536 = vlaneseq
        %v5537 = vshrl.u32 %v5536, 7
        %v5538 = vsub.s32 %v5535, %v5537
        %v5539 = vrot.slane %v5525, %v5538
        %v5540 = vcombine.high %v5532, %v5532
        %v5541 = vcombine.high %v5539, %v5539
        %v5542 = vcombine.high %v5414, %v5414
        %v5544 = vunpack.c.l.s4 1983009808
        %v5545 = vunpack.c.0.s8 %v5544
        %v5546 = vlaneseq
        %v5547 = vshrl.u32 %v5546, 7
        %v5548 = vsub.s32 %v5545, %v5547
        %v5549 = vrot.slane %v5414, %v5548
        %v5551 = vunpack.c.l.s4 1983009808
        %v5552 = vunpack.c.0.s8 %v5551
        %v5553 = vlaneseq
        %v5554 = vshrl.u32 %v5553, 7
        %v5555 = vsub.s32 %v5552, %v5554
        %v5556 = vrot.slane %v5542, %v5555
        %v5557 = vcombine.high %v5549, %v5549
        %v5558 = vcombine.high %v5556, %v5556
        %vm5591 = vcmask 1041408
        %v5592 = vsel %vm5591, %v5430, -inf
        %v5593 = vrot.slane %v5592, 4
        %v5594 = vmax.f32 %v5592, %v5593
        %v5595 = vrot.slane %v5594, 2
        %v5596 = vmax.f32 %v5594, %v5595
        %v5597 = vrot.slane %v5596, 1
        %v5598 = vmax.f32 %v5596, %v5597
        %v5599 = vsel %vm5591, %v5438, -inf
        %v5600 = vrot.slane %v5599, 4
        %v5601 = vmax.f32 %v5599, %v5600
        %v5602 = vrot.slane %v5601, 2
        %v5603 = vmax.f32 %v5601, %v5602
        %v5604 = vrot.slane %v5603, 1
        %v5605 = vmax.f32 %v5603, %v5604
        %v5606 = vsel %vm5591, %v5437, -inf
        %v5607 = vrot.slane %v5606, 4
        %v5608 = vmax.f32 %v5606, %v5607
        %v5609 = vrot.slane %v5608, 2
        %v5610 = vmax.f32 %v5608, %v5609
        %v5611 = vrot.slane %v5610, 1
        %v5612 = vmax.f32 %v5610, %v5611
        %v5613 = vsel %vm5591, %v5439, -inf
        %v5614 = vrot.slane %v5613, 4
        %v5615 = vmax.f32 %v5613, %v5614
        %v5616 = vrot.slane %v5615, 2
        %v5617 = vmax.f32 %v5615, %v5616
        %v5618 = vrot.slane %v5617, 1
        %v5619 = vmax.f32 %v5617, %v5618
        %v5620 = vsel %vm5591, %v5447, -inf
        %v5621 = vrot.slane %v5620, 4
        %v5622 = vmax.f32 %v5620, %v5621
        %v5623 = vrot.slane %v5622, 2
        %v5624 = vmax.f32 %v5622, %v5623
        %v5625 = vrot.slane %v5624, 1
        %v5626 = vmax.f32 %v5624, %v5625
        %v5627 = vsel %vm5591, %v5455, -inf
        %v5628 = vrot.slane %v5627, 4
        %v5629 = vmax.f32 %v5627, %v5628
        %v5630 = vrot.slane %v5629, 2
        %v5631 = vmax.f32 %v5629, %v5630
        %v5632 = vrot.slane %v5631, 1
        %v5633 = vmax.f32 %v5631, %v5632
        %v5634 = vsel %vm5591, %v5454, -inf
        %v5635 = vrot.slane %v5634, 4
        %v5636 = vmax.f32 %v5634, %v5635
        %v5637 = vrot.slane %v5636, 2
        %v5638 = vmax.f32 %v5636, %v5637
        %v5639 = vrot.slane %v5638, 1
        %v5640 = vmax.f32 %v5638, %v5639
        %v5641 = vsel %vm5591, %v5456, -inf
        %v5642 = vrot.slane %v5641, 4
        %v5643 = vmax.f32 %v5641, %v5642
        %v5644 = vrot.slane %v5643, 2
        %v5645 = vmax.f32 %v5643, %v5644
        %v5646 = vrot.slane %v5645, 1
        %v5647 = vmax.f32 %v5645, %v5646
        %v5648 = vsel %vm5591, %v5464, -inf
        %v5649 = vrot.slane %v5648, 4
        %v5650 = vmax.f32 %v5648, %v5649
        %v5651 = vrot.slane %v5650, 2
        %v5652 = vmax.f32 %v5650, %v5651
        %v5653 = vrot.slane %v5652, 1
        %v5654 = vmax.f32 %v5652, %v5653
        %v5655 = vsel %vm5591, %v5472, -inf
        %v5656 = vrot.slane %v5655, 4
        %v5657 = vmax.f32 %v5655, %v5656
        %v5658 = vrot.slane %v5657, 2
        %v5659 = vmax.f32 %v5657, %v5658
        %v5660 = vrot.slane %v5659, 1
        %v5661 = vmax.f32 %v5659, %v5660
        %v5662 = vsel %vm5591, %v5471, -inf
        %v5663 = vrot.slane %v5662, 4
        %v5664 = vmax.f32 %v5662, %v5663
        %v5665 = vrot.slane %v5664, 2
        %v5666 = vmax.f32 %v5664, %v5665
        %v5667 = vrot.slane %v5666, 1
        %v5668 = vmax.f32 %v5666, %v5667
        %v5669 = vsel %vm5591, %v5473, -inf
        %v5670 = vrot.slane %v5669, 4
        %v5671 = vmax.f32 %v5669, %v5670
        %v5672 = vrot.slane %v5671, 2
        %v5673 = vmax.f32 %v5671, %v5672
        %v5674 = vrot.slane %v5673, 1
        %v5675 = vmax.f32 %v5673, %v5674
        %v5676 = vsel %vm5591, %v5481, -inf
        %v5677 = vrot.slane %v5676, 4
        %v5678 = vmax.f32 %v5676, %v5677
        %v5679 = vrot.slane %v5678, 2
        %v5680 = vmax.f32 %v5678, %v5679
        %v5681 = vrot.slane %v5680, 1
        %v5682 = vmax.f32 %v5680, %v5681
        %v5683 = vsel %vm5591, %v5489, -inf
        %v5684 = vrot.slane %v5683, 4
        %v5685 = vmax.f32 %v5683, %v5684
        %v5686 = vrot.slane %v5685, 2
        %v5687 = vmax.f32 %v5685, %v5686
        %v5688 = vrot.slane %v5687, 1
        %v5689 = vmax.f32 %v5687, %v5688
        %v5690 = vsel %vm5591, %v5488, -inf
        %v5691 = vrot.slane %v5690, 4
        %v5692 = vmax.f32 %v5690, %v5691
        %v5693 = vrot.slane %v5692, 2
        %v5694 = vmax.f32 %v5692, %v5693
        %v5695 = vrot.slane %v5694, 1
        %v5696 = vmax.f32 %v5694, %v5695
        %v5697 = vsel %vm5591, %v5490, -inf
        %v5698 = vrot.slane %v5697, 4
        %v5699 = vmax.f32 %v5697, %v5698
        %v5700 = vrot.slane %v5699, 2
        %v5701 = vmax.f32 %v5699, %v5700
        %v5702 = vrot.slane %v5701, 1
        %v5703 = vmax.f32 %v5701, %v5702
        %v5704 = vsel %vm5591, %v5498, -inf
        %v5705 = vrot.slane %v5704, 4
        %v5706 = vmax.f32 %v5704, %v5705
        %v5707 = vrot.slane %v5706, 2
        %v5708 = vmax.f32 %v5706, %v5707
        %v5709 = vrot.slane %v5708, 1
        %v5710 = vmax.f32 %v5708, %v5709
        %v5711 = vsel %vm5591, %v5506, -inf
        %v5712 = vrot.slane %v5711, 4
        %v5713 = vmax.f32 %v5711, %v5712
        %v5714 = vrot.slane %v5713, 2
        %v5715 = vmax.f32 %v5713, %v5714
        %v5716 = vrot.slane %v5715, 1
        %v5717 = vmax.f32 %v5715, %v5716
        %v5718 = vsel %vm5591, %v5505, -inf
        %v5719 = vrot.slane %v5718, 4
        %v5720 = vmax.f32 %v5718, %v5719
        %v5721 = vrot.slane %v5720, 2
        %v5722 = vmax.f32 %v5720, %v5721
        %v5723 = vrot.slane %v5722, 1
        %v5724 = vmax.f32 %v5722, %v5723
        %v5725 = vsel %vm5591, %v5507, -inf
        %v5726 = vrot.slane %v5725, 4
        %v5727 = vmax.f32 %v5725, %v5726
        %v5728 = vrot.slane %v5727, 2
        %v5729 = vmax.f32 %v5727, %v5728
        %v5730 = vrot.slane %v5729, 1
        %v5731 = vmax.f32 %v5729, %v5730
        %v5732 = vsel %vm5591, %v5515, -inf
        %v5733 = vrot.slane %v5732, 4
        %v5734 = vmax.f32 %v5732, %v5733
        %v5735 = vrot.slane %v5734, 2
        %v5736 = vmax.f32 %v5734, %v5735
        %v5737 = vrot.slane %v5736, 1
        %v5738 = vmax.f32 %v5736, %v5737
        %v5739 = vsel %vm5591, %v5523, -inf
        %v5740 = vrot.slane %v5739, 4
        %v5741 = vmax.f32 %v5739, %v5740
        %v5742 = vrot.slane %v5741, 2
        %v5743 = vmax.f32 %v5741, %v5742
        %v5744 = vrot.slane %v5743, 1
        %v5745 = vmax.f32 %v5743, %v5744
        %v5746 = vsel %vm5591, %v5522, -inf
        %v5747 = vrot.slane %v5746, 4
        %v5748 = vmax.f32 %v5746, %v5747
        %v5749 = vrot.slane %v5748, 2
        %v5750 = vmax.f32 %v5748, %v5749
        %v5751 = vrot.slane %v5750, 1
        %v5752 = vmax.f32 %v5750, %v5751
        %v5753 = vsel %vm5591, %v5524, -inf
        %v5754 = vrot.slane %v5753, 4
        %v5755 = vmax.f32 %v5753, %v5754
        %v5756 = vrot.slane %v5755, 2
        %v5757 = vmax.f32 %v5755, %v5756
        %v5758 = vrot.slane %v5757, 1
        %v5759 = vmax.f32 %v5757, %v5758
        %v5760 = vsel %vm5591, %v5532, -inf
        %v5761 = vrot.slane %v5760, 4
        %v5762 = vmax.f32 %v5760, %v5761
        %v5763 = vrot.slane %v5762, 2
        %v5764 = vmax.f32 %v5762, %v5763
        %v5765 = vrot.slane %v5764, 1
        %v5766 = vmax.f32 %v5764, %v5765
        %v5767 = vsel %vm5591, %v5540, -inf
        %v5768 = vrot.slane %v5767, 4
        %v5769 = vmax.f32 %v5767, %v5768
        %v5770 = vrot.slane %v5769, 2
        %v5771 = vmax.f32 %v5769, %v5770
        %v5772 = vrot.slane %v5771, 1
        %v5773 = vmax.f32 %v5771, %v5772
        %v5774 = vsel %vm5591, %v5539, -inf
        %v5775 = vrot.slane %v5774, 4
        %v5776 = vmax.f32 %v5774, %v5775
        %v5777 = vrot.slane %v5776, 2
        %v5778 = vmax.f32 %v5776, %v5777
        %v5779 = vrot.slane %v5778, 1
        %v5780 = vmax.f32 %v5778, %v5779
        %v5781 = vsel %vm5591, %v5541, -inf
        %v5782 = vrot.slane %v5781, 4
        %v5783 = vmax.f32 %v5781, %v5782
        %v5784 = vrot.slane %v5783, 2
        %v5785 = vmax.f32 %v5783, %v5784
        %v5786 = vrot.slane %v5785, 1
        %v5787 = vmax.f32 %v5785, %v5786
        %v5788 = vsel %vm5591, %v5549, -inf
        %v5789 = vrot.slane %v5788, 4
        %v5790 = vmax.f32 %v5788, %v5789
        %v5791 = vrot.slane %v5790, 2
        %v5792 = vmax.f32 %v5790, %v5791
        %v5793 = vrot.slane %v5792, 1
        %v5794 = vmax.f32 %v5792, %v5793
        %v5795 = vsel %vm5591, %v5557, -inf
        %v5796 = vrot.slane %v5795, 4
        %v5797 = vmax.f32 %v5795, %v5796
        %v5798 = vrot.slane %v5797, 2
        %v5799 = vmax.f32 %v5797, %v5798
        %v5800 = vrot.slane %v5799, 1
        %v5801 = vmax.f32 %v5799, %v5800
        %v5802 = vsel %vm5591, %v5556, -inf
        %v5803 = vrot.slane %v5802, 4
        %v5804 = vmax.f32 %v5802, %v5803
        %v5805 = vrot.slane %v5804, 2
        %v5806 = vmax.f32 %v5804, %v5805
        %v5807 = vrot.slane %v5806, 1
        %v5808 = vmax.f32 %v5806, %v5807
        %v5809 = vsel %vm5591, %v5558, -inf
        %v5810 = vrot.slane %v5809, 4
        %v5811 = vmax.f32 %v5809, %v5810
        %v5812 = vrot.slane %v5811, 2
        %v5813 = vmax.f32 %v5811, %v5812
        %v5814 = vrot.slane %v5813, 1
        %v5815 = vmax.f32 %v5813, %v5814
        %v5816 = vmax.f32 %v5598, %v5626
        %v5817 = vmax.f32 %v5605, %v5633
        %v5818 = vmax.f32 %v5612, %v5640
        %v5819 = vmax.f32 %v5619, %v5647
        %v5820 = vmax.f32 %v5654, %v5682
        %v5821 = vmax.f32 %v5661, %v5689
        %v5822 = vmax.f32 %v5668, %v5696
        %v5823 = vmax.f32 %v5675, %v5703
        %v5824 = vmax.f32 %v5710, %v5738
        %v5825 = vmax.f32 %v5717, %v5745
        %v5826 = vmax.f32 %v5724, %v5752
        %v5827 = vmax.f32 %v5731, %v5759
        %v5828 = vmax.f32 %v5766, %v5794
        %v5829 = vmax.f32 %v5773, %v5801
        %v5830 = vmax.f32 %v5780, %v5808
        %v5831 = vmax.f32 %v5787, %v5815
        %v5832 = vld [vmem:[%s4] sm:$0x1]
        %v5834 = vlaneseq
        %v5835 = vshrl.u32 %v5834, 7
        %v5836 = vsub.s32 0, %v5835
        %v5837 = vrot.slane %v5832, %v5836
        %v5839 = vadd.f32 %v5816, %v5837
        %v5840 = vadd.f32 %v5817, %v5837
        %v5841 = vadd.f32 %v5818, %v5837
        %v5842 = vadd.f32 %v5819, %v5837
        %v5843 = vadd.f32 %v5820, %v5837
        %v5844 = vadd.f32 %v5821, %v5837
        %v5845 = vadd.f32 %v5822, %v5837
        %v5846 = vadd.f32 %v5823, %v5837
        %v5847 = vadd.f32 %v5824, %v5837
        %v5848 = vadd.f32 %v5825, %v5837
        %v5849 = vadd.f32 %v5826, %v5837
        %v5850 = vadd.f32 %v5827, %v5837
        %v5851 = vadd.f32 %v5828, %v5837
        %v5852 = vadd.f32 %v5829, %v5837
        %v5853 = vadd.f32 %v5830, %v5837
        %v5854 = vadd.f32 %v5831, %v5837
        %v5855 = vmax.f32 %v5839, 0.0
        %v5856 = vmax.f32 %v5840, 0.0
        %v5857 = vmax.f32 %v5841, 0.0
        %v5858 = vmax.f32 %v5842, 0.0
        %v5859 = vmax.f32 %v5843, 0.0
        %v5860 = vmax.f32 %v5844, 0.0
        %v5861 = vmax.f32 %v5845, 0.0
        %v5862 = vmax.f32 %v5846, 0.0
        %v5863 = vmax.f32 %v5847, 0.0
        %v5864 = vmax.f32 %v5848, 0.0
        %v5865 = vmax.f32 %v5849, 0.0
        %v5866 = vmax.f32 %v5850, 0.0
        %v5867 = vmax.f32 %v5851, 0.0
        %v5868 = vmax.f32 %v5852, 0.0
        %v5869 = vmax.f32 %v5853, 0.0
        %v5870 = vmax.f32 %v5854, 0.0
        %v5871 = vlaneseq
        %vm5872 = vcmp.ge.s32.totalorder %v5871, 0
        %vm5873 = vcmp.lt.s32.totalorder %v5871, 16
        %vm5874 = vmand %vm5872, %vm5873
        %5875 = vst.msk [vmem:[#allocation3] sm:$0x1] %vm5874, %v5855
        %v5878 = vunpack.c.l.s4 1966171168
        %v5879 = vunpack.c.0.s8 %v5878
        %v5880 = vlaneseq
        %v5881 = vshrl.u32 %v5880, 7
        %v5882 = vsub.s32 %v5879, %v5881
        %v5883 = vrot.slane %v5856, %v5882
        %v5885 = vunpack.c.l.s4 1966171168
        %v5886 = vunpack.c.0.s8 %v5885
        %v5887 = vlaneseq
        %v5888 = vshrl.u32 %v5887, 7
        %v5889 = vsub.s32 %v5886, %v5888
        %v5890 = vrot.slane %v5883, %v5889
        %5891 = vrot.lane.b32.xlu0 %v5890, 16
        %v5892 = vpop.permute.xlu0 %5891
        %vm5894 = vcmp.ge.s32.totalorder %v5871, 16
        %vm5895 = vcmp.lt.s32.totalorder %v5871, 32
        %vm5896 = vmand %vm5894, %vm5895
        %5897 = vst.msk [vmem:[#allocation3] sm:$0x1] %vm5896, %v5892
        %v5900 = vunpack.c.l.s4 1966171168
        %v5901 = vunpack.c.0.s8 %v5900
        %v5902 = vlaneseq
        %v5903 = vshrl.u32 %v5902, 7
        %v5904 = vsub.s32 %v5901, %v5903
        %v5905 = vrot.slane %v5857, %v5904
        %v5907 = vunpack.c.l.s4 1966171168
        %v5908 = vunpack.c.0.s8 %v5907
        %v5909 = vlaneseq
        %v5910 = vshrl.u32 %v5909, 7
        %v5911 = vsub.s32 %v5908, %v5910
        %v5912 = vrot.slane %v5905, %v5911
        %5913 = vrot.lane.b32.xlu0 %v5912, 32
        %v5914 = vpop.permute.xlu0 %5913
        %vm5916 = vcmp.ge.s32.totalorder %v5871, 32
        %vm5917 = vcmp.lt.s32.totalorder %v5871, 48
        %vm5918 = vmand %vm5916, %vm5917
        %5919 = vst.msk [vmem:[#allocation3] sm:$0x1] %vm5918, %v5914
        %v5922 = vunpack.c.l.s4 1966171168
        %v5923 = vunpack.c.0.s8 %v5922
        %v5924 = vlaneseq
        %v5925 = vshrl.u32 %v5924, 7
        %v5926 = vsub.s32 %v5923, %v5925
        %v5927 = vrot.slane %v5858, %v5926
        %v5929 = vunpack.c.l.s4 1966171168
        %v5930 = vunpack.c.0.s8 %v5929
        %v5931 = vlaneseq
        %v5932 = vshrl.u32 %v5931, 7
        %v5933 = vsub.s32 %v5930, %v5932
        %v5934 = vrot.slane %v5927, %v5933
        %5935 = vrot.lane.b32.xlu0 %v5934, 48
        %v5936 = vpop.permute.xlu0 %5935
        %vm5938 = vcmp.ge.s32.totalorder %v5871, 48
        %vm5939 = vcmp.lt.s32.totalorder %v5871, 64
        %vm5940 = vmand %vm5938, %vm5939
        %5941 = vst.msk [vmem:[#allocation3] sm:$0x1] %vm5940, %v5936
        %v5944 = vunpack.c.l.s4 1966171168
        %v5945 = vunpack.c.0.s8 %v5944
        %v5946 = vlaneseq
        %v5947 = vshrl.u32 %v5946, 7
        %v5948 = vsub.s32 %v5945, %v5947
        %v5949 = vrot.slane %v5859, %v5948
        %v5951 = vunpack.c.l.s4 1966171168
        %v5952 = vunpack.c.0.s8 %v5951
        %v5953 = vlaneseq
        %v5954 = vshrl.u32 %v5953, 7
        %v5955 = vsub.s32 %v5952, %v5954
        %v5956 = vrot.slane %v5949, %v5955
        %5957 = vrot.lane.b32.xlu0 %v5956, 64
        %v5958 = vpop.permute.xlu0 %5957
        %vm5960 = vcmp.ge.s32.totalorder %v5871, 64
        %vm5961 = vcmp.lt.s32.totalorder %v5871, 80
        %vm5962 = vmand %vm5960, %vm5961
        %5963 = vst.msk [vmem:[#allocation3] sm:$0x1] %vm5962, %v5958
        %v5966 = vunpack.c.l.s4 1966171168
        %v5967 = vunpack.c.0.s8 %v5966
        %v5968 = vlaneseq
        %v5969 = vshrl.u32 %v5968, 7
        %v5970 = vsub.s32 %v5967, %v5969
        %v5971 = vrot.slane %v5860, %v5970
        %v5973 = vunpack.c.l.s4 1966171168
        %v5974 = vunpack.c.0.s8 %v5973
        %v5975 = vlaneseq
        %v5976 = vshrl.u32 %v5975, 7
        %v5977 = vsub.s32 %v5974, %v5976
        %v5978 = vrot.slane %v5971, %v5977
        %5979 = vrot.lane.b32.xlu0 %v5978, 80
        %v5980 = vpop.permute.xlu0 %5979
        %vm5982 = vcmp.ge.s32.totalorder %v5871, 80
        %vm5983 = vcmp.lt.s32.totalorder %v5871, 96
        %vm5984 = vmand %vm5982, %vm5983
        %5985 = vst.msk [vmem:[#allocation3] sm:$0x1] %vm5984, %v5980
        %v5988 = vunpack.c.l.s4 1966171168
        %v5989 = vunpack.c.0.s8 %v5988
        %v5990 = vlaneseq
        %v5991 = vshrl.u32 %v5990, 7
        %v5992 = vsub.s32 %v5989, %v5991
        %v5993 = vrot.slane %v5861, %v5992
        %v5995 = vunpack.c.l.s4 1966171168
        %v5996 = vunpack.c.0.s8 %v5995
        %v5997 = vlaneseq
        %v5998 = vshrl.u32 %v5997, 7
        %v5999 = vsub.s32 %v5996, %v5998
        %v6000 = vrot.slane %v5993, %v5999
        %6001 = vrot.lane.b32.xlu0 %v6000, 96
        %v6002 = vpop.permute.xlu0 %6001
        %vm6004 = vcmp.ge.s32.totalorder %v5871, 96
        %vm6005 = vcmp.lt.s32.totalorder %v5871, 112
        %vm6006 = vmand %vm6004, %vm6005
        %6007 = vst.msk [vmem:[#allocation3] sm:$0x1] %vm6006, %v6002
        %v6010 = vunpack.c.l.s4 1966171168
        %v6011 = vunpack.c.0.s8 %v6010
        %v6012 = vlaneseq
        %v6013 = vshrl.u32 %v6012, 7
        %v6014 = vsub.s32 %v6011, %v6013
        %v6015 = vrot.slane %v5862, %v6014
        %v6017 = vunpack.c.l.s4 1966171168
        %v6018 = vunpack.c.0.s8 %v6017
        %v6019 = vlaneseq
        %v6020 = vshrl.u32 %v6019, 7
        %v6021 = vsub.s32 %v6018, %v6020
        %v6022 = vrot.slane %v6015, %v6021
        %6023 = vrot.lane.b32.xlu0 %v6022, 112
        %v6024 = vpop.permute.xlu0 %6023
        %vm6026 = vcmp.ge.s32.totalorder %v5871, 112
        %vm6027 = vcmp.lt.s32.totalorder %v5871, 128
        %vm6028 = vmand %vm6026, %vm6027
        %6029 = vst.msk [vmem:[#allocation3] sm:$0x1] %vm6028, %v6024
        %6030 = vst.msk [vmem:[#allocation3 + $0x1] sm:$0x1] %vm5874, %v5863
        %v6033 = vunpack.c.l.s4 1966171168
        %v6034 = vunpack.c.0.s8 %v6033
        %v6035 = vlaneseq
        %v6036 = vshrl.u32 %v6035, 7
        %v6037 = vsub.s32 %v6034, %v6036
        %v6038 = vrot.slane %v5864, %v6037
        %v6040 = vunpack.c.l.s4 1966171168
        %v6041 = vunpack.c.0.s8 %v6040
        %v6042 = vlaneseq
        %v6043 = vshrl.u32 %v6042, 7
        %v6044 = vsub.s32 %v6041, %v6043
        %v6045 = vrot.slane %v6038, %v6044
        %6046 = vrot.lane.b32.xlu0 %v6045, 16
        %v6047 = vpop.permute.xlu0 %6046
        %6049 = vst.msk [vmem:[#allocation3 + $0x1] sm:$0x1] %vm5896, %v6047
        %v6052 = vunpack.c.l.s4 1966171168
        %v6053 = vunpack.c.0.s8 %v6052
        %v6054 = vlaneseq
        %v6055 = vshrl.u32 %v6054, 7
        %v6056 = vsub.s32 %v6053, %v6055
        %v6057 = vrot.slane %v5865, %v6056
        %v6059 = vunpack.c.l.s4 1966171168
        %v6060 = vunpack.c.0.s8 %v6059
        %v6061 = vlaneseq
        %v6062 = vshrl.u32 %v6061, 7
        %v6063 = vsub.s32 %v6060, %v6062
        %v6064 = vrot.slane %v6057, %v6063
        %6065 = vrot.lane.b32.xlu0 %v6064, 32
        %v6066 = vpop.permute.xlu0 %6065
        %6068 = vst.msk [vmem:[#allocation3 + $0x1] sm:$0x1] %vm5918, %v6066
        %v6071 = vunpack.c.l.s4 1966171168
        %v6072 = vunpack.c.0.s8 %v6071
        %v6073 = vlaneseq
        %v6074 = vshrl.u32 %v6073, 7
        %v6075 = vsub.s32 %v6072, %v6074
        %v6076 = vrot.slane %v5866, %v6075
        %v6078 = vunpack.c.l.s4 1966171168
        %v6079 = vunpack.c.0.s8 %v6078
        %v6080 = vlaneseq
        %v6081 = vshrl.u32 %v6080, 7
        %v6082 = vsub.s32 %v6079, %v6081
        %v6083 = vrot.slane %v6076, %v6082
        %6084 = vrot.lane.b32.xlu0 %v6083, 48
        %v6085 = vpop.permute.xlu0 %6084
        %6087 = vst.msk [vmem:[#allocation3 + $0x1] sm:$0x1] %vm5940, %v6085
        %v6090 = vunpack.c.l.s4 1966171168
        %v6091 = vunpack.c.0.s8 %v6090
        %v6092 = vlaneseq
        %v6093 = vshrl.u32 %v6092, 7
        %v6094 = vsub.s32 %v6091, %v6093
        %v6095 = vrot.slane %v5867, %v6094
        %v6097 = vunpack.c.l.s4 1966171168
        %v6098 = vunpack.c.0.s8 %v6097
        %v6099 = vlaneseq
        %v6100 = vshrl.u32 %v6099, 7
        %v6101 = vsub.s32 %v6098, %v6100
        %v6102 = vrot.slane %v6095, %v6101
        %6103 = vrot.lane.b32.xlu0 %v6102, 64
        %v6104 = vpop.permute.xlu0 %6103
        %6106 = vst.msk [vmem:[#allocation3 + $0x1] sm:$0x1] %vm5962, %v6104
        %v6109 = vunpack.c.l.s4 1966171168
        %v6110 = vunpack.c.0.s8 %v6109
        %v6111 = vlaneseq
        %v6112 = vshrl.u32 %v6111, 7
        %v6113 = vsub.s32 %v6110, %v6112
        %v6114 = vrot.slane %v5868, %v6113
        %v6116 = vunpack.c.l.s4 1966171168
        %v6117 = vunpack.c.0.s8 %v6116
        %v6118 = vlaneseq
        %v6119 = vshrl.u32 %v6118, 7
        %v6120 = vsub.s32 %v6117, %v6119
        %v6121 = vrot.slane %v6114, %v6120
        %6122 = vrot.lane.b32.xlu0 %v6121, 80
        %v6123 = vpop.permute.xlu0 %6122
        %6125 = vst.msk [vmem:[#allocation3 + $0x1] sm:$0x1] %vm5984, %v6123
        %v6128 = vunpack.c.l.s4 1966171168
        %v6129 = vunpack.c.0.s8 %v6128
        %v6130 = vlaneseq
        %v6131 = vshrl.u32 %v6130, 7
        %v6132 = vsub.s32 %v6129, %v6131
        %v6133 = vrot.slane %v5869, %v6132
        %v6135 = vunpack.c.l.s4 1966171168
        %v6136 = vunpack.c.0.s8 %v6135
        %v6137 = vlaneseq
        %v6138 = vshrl.u32 %v6137, 7
        %v6139 = vsub.s32 %v6136, %v6138
        %v6140 = vrot.slane %v6133, %v6139
        %6141 = vrot.lane.b32.xlu0 %v6140, 96
        %v6142 = vpop.permute.xlu0 %6141
        %6144 = vst.msk [vmem:[#allocation3 + $0x1] sm:$0x1] %vm6006, %v6142
        %v6147 = vunpack.c.l.s4 1966171168
        %v6148 = vunpack.c.0.s8 %v6147
        %v6149 = vlaneseq
        %v6150 = vshrl.u32 %v6149, 7
        %v6151 = vsub.s32 %v6148, %v6150
        %v6152 = vrot.slane %v5870, %v6151
        %v6154 = vunpack.c.l.s4 1966171168
        %v6155 = vunpack.c.0.s8 %v6154
        %v6156 = vlaneseq
        %v6157 = vshrl.u32 %v6156, 7
        %v6158 = vsub.s32 %v6155, %v6157
        %v6159 = vrot.slane %v6152, %v6158
        %6160 = vrot.lane.b32.xlu0 %v6159, 112
        %v6161 = vpop.permute.xlu0 %6160
        %6163 = vst.msk [vmem:[#allocation3 + $0x1] sm:$0x1] %vm6028, %v6161
        %v6164 = vld [vmem:[#allocation3] sm:$0x3]
        %v6166 = vlaneseq
        %v6167 = vshrl.u32 %v6166, 7
        %v6168 = vsub.s32 0, %v6167
        %v6169 = vrot.slane %v6164, %v6168
        %v6170 = vlaneseq
        %v6171 = vshrl.u32 %v6170, 7
        %v6172 = vsub.s32 1, %v6171
        %v6173 = vrot.slane %v6164, %v6172
        %v6176 = vpack.c.bf16 %v6169, %v6169
        %v6177 = vpack.c.bf16 %v6173, %v6173
        %v6178 = vld [vmem:[%s5] sm:$0xf]
        %v6179 = vld [vmem:[%s5 + $0x4] sm:$0xf]
        %v6180 = vld [vmem:[%s5 + $0x8] sm:$0xf]
        %v6181 = vld [vmem:[%s5 + $0xc] sm:$0xf]
        %v6182 = vld [vmem:[%s5 + $0x10] sm:$0xf]
        %v6183 = vld [vmem:[%s5 + $0x14] sm:$0xf]
        %v6184 = vld [vmem:[%s5 + $0x18] sm:$0xf]
        %v6185 = vld [vmem:[%s5 + $0x1c] sm:$0xf]
        %v6186 = vld [vmem:[%s5 + $0x20] sm:$0xf]
        %v6187 = vld [vmem:[%s5 + $0x24] sm:$0xf]
        %v6188 = vld [vmem:[%s5 + $0x28] sm:$0xf]
        %v6189 = vld [vmem:[%s5 + $0x2c] sm:$0xf]
        %v6190 = vld [vmem:[%s5 + $0x30] sm:$0xf]
        %v6191 = vld [vmem:[%s5 + $0x34] sm:$0xf]
        %v6192 = vld [vmem:[%s5 + $0x38] sm:$0xf]
        %v6193 = vld [vmem:[%s5 + $0x3c] sm:$0xf]
        %v6194 = vld [vmem:[%s5 + $0x40] sm:$0xf]
        %v6195 = vld [vmem:[%s5 + $0x44] sm:$0xf]
        %v6196 = vld [vmem:[%s5 + $0x48] sm:$0xf]
        %v6197 = vld [vmem:[%s5 + $0x4c] sm:$0xf]
        %v6198 = vld [vmem:[%s5 + $0x50] sm:$0xf]
        %v6199 = vld [vmem:[%s5 + $0x54] sm:$0xf]
        %v6200 = vld [vmem:[%s5 + $0x58] sm:$0xf]
        %v6201 = vld [vmem:[%s5 + $0x5c] sm:$0xf]
        %v6202 = vld [vmem:[%s5 + $0x60] sm:$0xf]
        %v6203 = vld [vmem:[%s5 + $0x64] sm:$0xf]
        %v6204 = vld [vmem:[%s5 + $0x68] sm:$0xf]
        %v6205 = vld [vmem:[%s5 + $0x6c] sm:$0xf]
        %v6206 = vld [vmem:[%s5 + $0x70] sm:$0xf]
        %v6207 = vld [vmem:[%s5 + $0x74] sm:$0xf]
        %v6208 = vld [vmem:[%s5 + $0x78] sm:$0xf]
        %v6209 = vld [vmem:[%s5 + $0x7c] sm:$0xf]
        %v6210 = vld [vmem:[%s6] sm:$0x1]
        %v6243 = vunpack.c.l.b16 %v6178
        %v6244 = vunpack.c.l.b16 %v6179
        %v6245 = vunpack.c.l.b16 %v6180
        %v6246 = vunpack.c.l.b16 %v6181
        %v6247 = vunpack.c.l.b16 %v6182
        %v6248 = vunpack.c.l.b16 %v6183
        %v6249 = vunpack.c.l.b16 %v6184
        %v6250 = vunpack.c.l.b16 %v6185
        %v6251 = vunpack.c.l.b16 %v6186
        %v6252 = vunpack.c.l.b16 %v6187
        %v6253 = vunpack.c.l.b16 %v6188
        %v6254 = vunpack.c.l.b16 %v6189
        %v6255 = vunpack.c.l.b16 %v6190
        %v6256 = vunpack.c.l.b16 %v6191
        %v6257 = vunpack.c.l.b16 %v6192
        %v6258 = vunpack.c.l.b16 %v6193
        %v6259 = vunpack.c.l.b16 %v6194
        %v6260 = vunpack.c.l.b16 %v6195
        %v6261 = vunpack.c.l.b16 %v6196
        %v6262 = vunpack.c.l.b16 %v6197
        %v6263 = vunpack.c.l.b16 %v6198
        %v6264 = vunpack.c.l.b16 %v6199
        %v6265 = vunpack.c.l.b16 %v6200
        %v6266 = vunpack.c.l.b16 %v6201
        %v6267 = vunpack.c.l.b16 %v6202
        %v6268 = vunpack.c.l.b16 %v6203
        %v6269 = vunpack.c.l.b16 %v6204
        %v6270 = vunpack.c.l.b16 %v6205
        %v6271 = vunpack.c.l.b16 %v6206
        %v6272 = vunpack.c.l.b16 %v6207
        %v6273 = vunpack.c.l.b16 %v6208
        %v6274 = vunpack.c.l.b16 %v6209
        %v6275 = vpack.c.b16 %v6244, %v6243
        %v6276 = vpack.c.b16 %v6246, %v6245
        %v6277 = vpack.c.b16 %v6248, %v6247
        %v6278 = vpack.c.b16 %v6250, %v6249
        %v6279 = vpack.c.b16 %v6252, %v6251
        %v6280 = vpack.c.b16 %v6254, %v6253
        %v6281 = vpack.c.b16 %v6256, %v6255
        %v6282 = vpack.c.b16 %v6258, %v6257
        %v6283 = vpack.c.b16 %v6260, %v6259
        %v6284 = vpack.c.b16 %v6262, %v6261
        %v6285 = vpack.c.b16 %v6264, %v6263
        %v6286 = vpack.c.b16 %v6266, %v6265
        %v6287 = vpack.c.b16 %v6268, %v6267
        %v6288 = vpack.c.b16 %v6270, %v6269
        %v6289 = vpack.c.b16 %v6272, %v6271
        %v6290 = vpack.c.b16 %v6274, %v6273
        %6307 = vmatprep.subr.bf16.mxu0 0
        %6308 = vmatpush1.bf16.msra.mxu0 %v6275
        %6309 = vmatprep.subr.bf16.mxu0 0
        %6310 = vmatpush1.bf16.msra.mxu0 %v6276
        %6311 = vmatprep.subr.bf16.mxu0 0
        %6312 = vmatpush1.bf16.msra.mxu0 %v6277
        %6313 = vmatprep.subr.bf16.mxu0 0
        %6314 = vmatpush1.bf16.msra.mxu0 %v6278
        %6315 = vmatprep.subr.bf16.mxu0 0
        %6316 = vmatpush1.bf16.msra.mxu0 %v6279
        %6317 = vmatprep.subr.bf16.mxu0 0
        %6318 = vmatpush1.bf16.msra.mxu0 %v6280
        %6319 = vmatprep.subr.bf16.mxu0 0
        %6320 = vmatpush1.bf16.msra.mxu0 %v6281
        %6321 = vmatprep.subr.bf16.mxu0 0
        %6322 = vmatpush1.bf16.msra.mxu0 %v6282
        %6323 = vmatprep.subr.bf16.mxu0 0
        %6324 = vmatpush1.bf16.msra.mxu0 %v6283
        %6325 = vmatprep.subr.bf16.mxu0 0
        %6326 = vmatpush1.bf16.msra.mxu0 %v6284
        %6327 = vmatprep.subr.bf16.mxu0 0
        %6328 = vmatpush1.bf16.msra.mxu0 %v6285
        %6329 = vmatprep.subr.bf16.mxu0 0
        %6330 = vmatpush1.bf16.msra.mxu0 %v6286
        %6331 = vmatprep.subr.bf16.mxu0 0
        %6332 = vmatpush1.bf16.msra.mxu0 %v6287
        %6333 = vmatprep.subr.bf16.mxu0 0
        %6334 = vmatpush1.bf16.msra.mxu0 %v6288
        %6335 = vmatprep.subr.bf16.mxu0 0
        %6336 = vmatpush1.bf16.msra.mxu0 %v6289
        %6337 = vmatprep.subr.bf16.mxu0 0
        %6338 = vmatpush1.bf16.msra.mxu0 %v6290
        %6339 = vmatprep.mubr.bf16.mxu0 %v6177
        %6340 = vmatmul.mubr.bf16.gmra.mrb[0].mxu0 %v6176
        %v6341 = vpop.f32.mrb[0].mxu0
        %v6342 = vadd.f32 %v6210, %v6341
        %v6343 = vpop.f32.mrb[0].mxu0
        %v6344 = vpop.f32.mrb[0].mxu0
        %v6345 = vpop.f32.mrb[0].mxu0
        %6346 = vdwg.mxu0
        %v6347 = vmax.f32 %v6342, 0.0
        %v6348 = vpack.c.bf16 %v6347, %v6347
        %v6349 = vld [vmem:[%s7] sm:$0xf]
        %v6350 = vld [vmem:[%s7 + $0x4] sm:$0xf]
        %v6351 = vld [vmem:[%s7 + $0x8] sm:$0xf]
        %v6352 = vld [vmem:[%s7 + $0xc] sm:$0xf]
        %v6353 = vld [vmem:[%s7 + $0x10] sm:$0xf]
        %v6354 = vld [vmem:[%s7 + $0x14] sm:$0xf]
        %v6355 = vld [vmem:[%s7 + $0x18] sm:$0xf]
        %v6356 = vld [vmem:[%s7 + $0x1c] sm:$0xf]
        %v6357 = vld [vmem:[%s7 + $0x20] sm:$0xf]
        %v6358 = vld [vmem:[%s7 + $0x24] sm:$0xf]
        %v6359 = vld [vmem:[%s7 + $0x28] sm:$0xf]
        %v6360 = vld [vmem:[%s7 + $0x2c] sm:$0xf]
        %v6361 = vld [vmem:[%s7 + $0x30] sm:$0xf]
        %v6362 = vld [vmem:[%s7 + $0x34] sm:$0xf]
        %v6363 = vld [vmem:[%s7 + $0x38] sm:$0xf]
        %v6364 = vld [vmem:[%s7 + $0x3c] sm:$0xf]
        %v6365 = vld [vmem:[%s8] sm:$0x1]
        %v6382 = vunpack.c.l.b16 %v6349
        %v6383 = vunpack.c.l.b16 %v6350
        %v6384 = vunpack.c.l.b16 %v6351
        %v6385 = vunpack.c.l.b16 %v6352
        %v6386 = vunpack.c.l.b16 %v6353
        %v6387 = vunpack.c.l.b16 %v6354
        %v6388 = vunpack.c.l.b16 %v6355
        %v6389 = vunpack.c.l.b16 %v6356
        %v6390 = vunpack.c.l.b16 %v6357
        %v6391 = vunpack.c.l.b16 %v6358
        %v6392 = vunpack.c.l.b16 %v6359
        %v6393 = vunpack.c.l.b16 %v6360
        %v6394 = vunpack.c.l.b16 %v6361
        %v6395 = vunpack.c.l.b16 %v6362
        %v6396 = vunpack.c.l.b16 %v6363
        %v6397 = vunpack.c.l.b16 %v6364
        %v6398 = vpack.c.b16 %v6383, %v6382
        %v6399 = vpack.c.b16 %v6385, %v6384
        %v6400 = vpack.c.b16 %v6387, %v6386
        %v6401 = vpack.c.b16 %v6389, %v6388
        %v6402 = vpack.c.b16 %v6391, %v6390
        %v6403 = vpack.c.b16 %v6393, %v6392
        %v6404 = vpack.c.b16 %v6395, %v6394
        %v6405 = vpack.c.b16 %v6397, %v6396
        %6414 = vmatprep.subr.bf16.mxu0 0
        %6415 = vmatpush1.bf16.msra.mxu0 %v6398
        %6416 = vmatprep.subr.bf16.mxu0 0
        %6417 = vmatpush1.bf16.msra.mxu0 %v6399
        %6418 = vmatprep.subr.bf16.mxu0 0
        %6419 = vmatpush1.bf16.msra.mxu0 %v6400
        %6420 = vmatprep.subr.bf16.mxu0 0
        %6421 = vmatpush1.bf16.msra.mxu0 %v6401
        %6422 = vmatprep.subr.bf16.mxu0 0
        %6423 = vmatpush1.bf16.msra.mxu0 %v6402
        %6424 = vmatprep.subr.bf16.mxu0 0
        %6425 = vmatpush1.bf16.msra.mxu0 %v6403
        %6426 = vmatprep.subr.bf16.mxu0 0
        %6427 = vmatpush1.bf16.msra.mxu0 %v6404
        %6428 = vmatprep.subr.bf16.mxu0 0
        %6429 = vmatpush1.bf16.msra.mxu0 %v6405
        %6430 = vmatprep.subr.bf16.mxu0 0
        %6431 = vmatpush1.bf16.msra.mxu0 0
        %6432 = vmatprep.subr.bf16.mxu0 0
        %6433 = vmatpush1.bf16.msra.mxu0 0
        %6434 = vmatprep.subr.bf16.mxu0 0
        %6435 = vmatpush1.bf16.msra.mxu0 0
        %6436 = vmatprep.subr.bf16.mxu0 0
        %6437 = vmatpush1.bf16.msra.mxu0 0
        %6438 = vmatprep.subr.bf16.mxu0 0
        %6439 = vmatpush1.bf16.msra.mxu0 0
        %6440 = vmatprep.subr.bf16.mxu0 0
        %6441 = vmatpush1.bf16.msra.mxu0 0
        %6442 = vmatprep.subr.bf16.mxu0 0
        %6443 = vmatpush1.bf16.msra.mxu0 0
        %6444 = vmatprep.subr.bf16.mxu0 0
        %6445 = vmatpush1.bf16.msra.mxu0 0
        %6446 = vmatprep.mubr.bf16.mxu0 0
        %6447 = vmatmul.mubr.bf16.gmra.mrb[0].mxu0 %v6348
        %v6448 = vpop.f32.mrb[0].mxu0
        %v6449 = vadd.f32 %v6365, %v6448
        %v6450 = vpop.f32.mrb[0].mxu0
        %v6451 = vpop.f32.mrb[0].mxu0
        %v6452 = vpop.f32.mrb[0].mxu0
        %6453 = vdwg.mxu0
        %v6454 = vmax.f32 %v6449, 0.0
        %v6455 = vpack.c.bf16 %v6454, %v6454
        %v6456 = vld [vmem:[%s9] sm:$0xf]
        %v6457 = vld [vmem:[%s9 + $0x4] sm:$0xf]
        %v6458 = vld [vmem:[%s9 + $0x8] sm:$0xf]
        %v6459 = vld [vmem:[%s9 + $0xc] sm:$0xf]
        %v6460 = vld [vmem:[%s9 + $0x10] sm:$0xf]
        %v6461 = vld [vmem:[%s9 + $0x14] sm:$0xf]
        %v6462 = vld [vmem:[%s9 + $0x18] sm:$0xf]
        %v6463 = vld [vmem:[%s9 + $0x1c] sm:$0xf]
        %v6464 = vld [vmem:[%s9 + $0x20] sm:$0xf]
        %v6465 = vld [vmem:[%s9 + $0x24] sm:$0xf]
        %v6466 = vld [vmem:[%s9 + $0x28] sm:$0xf]
        %v6467 = vld [vmem:[%s9 + $0x2c] sm:$0xf]
        %v6468 = vld [vmem:[%s9 + $0x30] sm:$0xf]
        %v6469 = vld [vmem:[%s9 + $0x34] sm:$0xf]
        %v6470 = vld [vmem:[%s9 + $0x38] sm:$0xf]
        %v6471 = vld [vmem:[%s9 + $0x3c] sm:$0xf]
        %v6472 = vld [vmem:[%s10] sm:$0x1]
        %v6489 = vunpack.c.l.b16 %v6456
        %v6490 = vunpack.c.l.b16 %v6457
        %v6491 = vunpack.c.l.b16 %v6458
        %v6492 = vunpack.c.l.b16 %v6459
        %v6493 = vunpack.c.l.b16 %v6460
        %v6494 = vunpack.c.l.b16 %v6461
        %v6495 = vunpack.c.l.b16 %v6462
        %v6496 = vunpack.c.l.b16 %v6463
        %v6497 = vunpack.c.l.b16 %v6464
        %v6498 = vunpack.c.l.b16 %v6465
        %v6499 = vunpack.c.l.b16 %v6466
        %v6500 = vunpack.c.l.b16 %v6467
        %v6501 = vunpack.c.l.b16 %v6468
        %v6502 = vunpack.c.l.b16 %v6469
        %v6503 = vunpack.c.l.b16 %v6470
        %v6504 = vunpack.c.l.b16 %v6471
        %v6505 = vpack.c.b16 %v6490, %v6489
        %v6506 = vpack.c.b16 %v6492, %v6491
        %v6507 = vpack.c.b16 %v6494, %v6493
        %v6508 = vpack.c.b16 %v6496, %v6495
        %v6509 = vpack.c.b16 %v6498, %v6497
        %v6510 = vpack.c.b16 %v6500, %v6499
        %v6511 = vpack.c.b16 %v6502, %v6501
        %v6512 = vpack.c.b16 %v6504, %v6503
        %6521 = vmatprep.subr.bf16.mxu0 0
        %6522 = vmatpush1.bf16.msra.mxu0 %v6505
        %6523 = vmatprep.subr.bf16.mxu0 0
        %6524 = vmatpush1.bf16.msra.mxu0 %v6506
        %6525 = vmatprep.subr.bf16.mxu0 0
        %6526 = vmatpush1.bf16.msra.mxu0 %v6507
        %6527 = vmatprep.subr.bf16.mxu0 0
        %6528 = vmatpush1.bf16.msra.mxu0 %v6508
        %6529 = vmatprep.subr.bf16.mxu0 0
        %6530 = vmatpush1.bf16.msra.mxu0 %v6509
        %6531 = vmatprep.subr.bf16.mxu0 0
        %6532 = vmatpush1.bf16.msra.mxu0 %v6510
        %6533 = vmatprep.subr.bf16.mxu0 0
        %6534 = vmatpush1.bf16.msra.mxu0 %v6511
        %6535 = vmatprep.subr.bf16.mxu0 0
        %6536 = vmatpush1.bf16.msra.mxu0 %v6512
        %6537 = vmatprep.subr.bf16.mxu0 0
        %6538 = vmatpush1.bf16.msra.mxu0 0
        %6539 = vmatprep.subr.bf16.mxu0 0
        %6540 = vmatpush1.bf16.msra.mxu0 0
        %6541 = vmatprep.subr.bf16.mxu0 0
        %6542 = vmatpush1.bf16.msra.mxu0 0
        %6543 = vmatprep.subr.bf16.mxu0 0
        %6544 = vmatpush1.bf16.msra.mxu0 0
        %6545 = vmatprep.subr.bf16.mxu0 0
        %6546 = vmatpush1.bf16.msra.mxu0 0
        %6547 = vmatprep.subr.bf16.mxu0 0
        %6548 = vmatpush1.bf16.msra.mxu0 0
        %6549 = vmatprep.subr.bf16.mxu0 0
        %6550 = vmatpush1.bf16.msra.mxu0 0
        %6551 = vmatprep.subr.bf16.mxu0 0
        %6552 = vmatpush1.bf16.msra.mxu0 0
        %6553 = vmatprep.mubr.bf16.mxu0 0
        %6554 = vmatmul.mubr.bf16.gmra.mrb[0].mxu0 %v6455
        %v6555 = vpop.f32.mrb[0].mxu0
        %v6556 = vadd.f32 %v6472, %v6555
        %v6557 = vpop.f32.mrb[0].mxu0
        %v6558 = vpop.f32.mrb[0].mxu0
        %v6559 = vpop.f32.mrb[0].mxu0
        %6560 = vdwg.mxu0
        %v6561 = vlaneseq
        %v6562 = vand.u32 %v6561, 127
        %vm6563 = vcmp.lt.s32.totalorder %v6562, 10
        %v6564 = vsel %vm6563, %v6556, -1e+30
        %vm6565 = vcmask 1040384
        %v6566 = vsel %vm6565, %v6564, -inf
        %6567 = vmax.xlane.f32.xlu0 %v6566
        %v6568 = vpop.xlane.xlu0 %6567
        %v6569 = vsub.f32 %v6556, %v6568
        %v6570 = vsel %vm6563, %v6569, 0.0
        %v6571 = vmul.f32 %v6570, 1.442695
        %v6572 = vpow.pop %v6571
        %v6573 = vsel %vm6563, %v6572, 0.0
        %v6574 = vsel %vm6565, %v6573, 0.0
        %6575 = vadd.xlane.f32.xlu0 %v6574
        %v6576 = vpop.xlane.xlu0 %6575
        %v6577 = vrcp.pop %v6576
        %v6578 = vmul.f32 %v6573, %v6577
        %6579 = vst [vmem:[%s378] sm:$0x1] %v6578
        %s6580 = sand.u32 %s269, 1
        %s6581 = scalar_lea.sflag [#allocation5], %s6580
        %s6582 = sand.u32 %s269, 1
        %s6583 = scalar_lea.vmem [#allocation4], %s6582
        // Predicated region
        $region72: #{net_dropout_forward.1} parent=63 // pred_check
          %p6584 = pneg %p279
        $region73: #{net_dropout_forward.1} parent=63 // pred_check_branch
          %6586 = sbr.rel (%p6584) target = $region75
        $region74: #{net_dropout_forward.1} parent=63 // pred_region
          %s6588 = ssub.s32 16, 16
          %6589 = vsyncadd %s6581, %s6588
          %s6590 = smul.addr %s25, 16
          %s6591 = scalar_lea.hbm %s11, %s6590
          %s6593 = sshll.u32 %s6583, 4
          %s6594 = int_to_ptr.vmem [resolvable:$true] %s6593
          %6596 = dma.vmem_to_hbm [thread:$0]  %s6594, 16, %s6591, %s6581
        $region75: #{net_dropout_forward.1} parent=63 // pred_fallthru
          _
      $region64: #{net_dropout_forward.1} parent=5 // pred_fallthru
        _
      %p6597 = scmp.le.s32.totalorder 2, %s20
      // Predicated region
      $region76: #{net_dropout_forward.1} parent=5 // pred_check
        %p6598 = pneg %p6597
      $region77: #{net_dropout_forward.1} parent=5 // pred_check_branch
        %6600 = sbr.rel (%p6598) target = $region79
      $region78: #{net_dropout_forward.1} parent=5 // pred_region
        %s6601 = ssub.s32 %s20, 2
        // Predicated region
        $region80: #{net_dropout_forward.1} parent=78 // pred_check
          %p6602 = pneg %p285
        $region81: #{net_dropout_forward.1} parent=78 // pred_check_branch
          %6604 = sbr.rel (%p6602) target = $region83
        $region82: #{net_dropout_forward.1} parent=78 // pred_region
          %s6605 = sand.u32 %s270, 1
          %s6606 = scalar_lea.sflag [#allocation5], %s6605
          %s6607 = sand.u32 %s270, 1
          %s6608 = scalar_lea.vmem [#allocation4], %s6607
          %6609 = dma.done %s6606, 16
        $region83: #{net_dropout_forward.1} parent=78 // pred_fallthru
          _
      $region79: #{net_dropout_forward.1} parent=5 // pred_fallthru
        _
    $region6: #{net_dropout_forward.1} parent=1 // loop_footer
      %s24 = sadd.s32 1, %s20
    $region7: #{net_dropout_forward.1} parent=1 // loop_footer_branch
      %19 = sbr.rel target = $region3
    $region8: #{net_dropout_forward.1} parent=1 // loop_exit
      _
    %6610 = vsyncpa [#allocation5], 1
    %s6611 = scalar_lea.sflag [#allocation5], 1
    %6612 = vsyncpa %s6611, 1

</llo_original>
